<compile_context>
chip_gen: v7x
topology: tpu7x:2x2x1
jax: 0.10.0
libtpu: 0.0.40
codegen_flags: <defaults>
</compile_context>

<pallas_src>
import functools
import math

import jax
import jax.numpy as jnp
from jax.experimental import pallas as pl
from jax.experimental.pallas import tpu as pltpu

EPS_LN = 1e-5
EPS_BN = 1e-5
_SQRT_2_OVER_PI = 0.7978845608028654
_NEG_BIG = -1e30


# ----------------------------- in-kernel helpers -----------------------------

def _gelu(x):
    # tanh-approx GELU (tanh runs on the EUP, its own VLIW slot).
    # TODO(synk): exact erf GELU if bit-exactness vs nn.GELU is required.
    return 0.5 * x * (1.0 + jnp.tanh(_SQRT_2_OVER_PI * (x + 0.044715 * x * x * x)))


def _layernorm(x, gamma, beta):
    mu = jnp.mean(x, axis=-1, keepdims=True)
    var = jnp.mean((x - mu) ** 2, axis=-1, keepdims=True)
    return (x - mu) * jax.lax.rsqrt(var + EPS_LN) * gamma + beta


def _softmax_last(x):
    m = jnp.max(x, axis=-1, keepdims=True)
    e = jnp.exp(x - m)
    return e * pl.reciprocal(jnp.sum(e, axis=-1, keepdims=True), approx=True)


# --------------------------------- the kernel --------------------------------

def model_kernel(
    pts_ref, ctr_ref,
    # encoder
    e_w1, e_s1, e_t1, e_w2, e_b2, e_w3l, e_w3g, e_s3, e_t3, e_w4, e_b4,
    # positional embedding
    p_w1, p_b1, p_w2, p_b2,
    # cls token / pos
    cls_tok, cls_pos,
    # per-layer transformer weights (leading depth axis streamed via the grid)
    ln1g, ln1b, wqkv, wo, bo, ln2g, ln2b, wf1, bf1, wf2, bf2,
    # final norm + cls head
    n_g, n_b,
    h_w1c, h_w1m, h_b1, h_s1, h_t1, h_w2, h_b2, h_s2, h_t2, h_w3, h_b3,
    # output + carried state
    out_ref, x_scr, pos_scr,
    *, NB, G, N, S, Spad, D, num_heads, depth):
    f32 = jnp.float32
    bf16 = jnp.bfloat16
    dh = D // num_heads
    M = NB * Spad
    l = pl.program_id(1)

    # ------------- step l == 0: point-group encoder + positional embedding -------------
    @pl.when(l == 0)
    def _encode():
        # Conv1d(3,128,1): (NB*G*N, 8pad) x (8, 128) exact-f32 MXU matmul, BN(eval)+ReLU fold.
        p = pts_ref[...].reshape(NB * G * N, 8)
        f = jnp.dot(p, e_w1[...], preferred_element_type=f32)
        f = jnp.maximum(f * e_s1[...] + e_t1[...], 0.0)
        f = jnp.dot(f.astype(bf16), e_w2[...], preferred_element_type=f32) + e_b2[...]
        fg = jnp.max(f.reshape(NB * G, N, -1), axis=1)               # per-group global feat
        # Conv1d(512,512,1) split into global/local halves: no concat + broadcast.
        # TODO(synk): chunk over N on v5e if G*N grows (keeps f32 temporaries smaller).
        g_loc = jnp.dot(f.astype(bf16), e_w3l[...], preferred_element_type=f32)
        g_glb = jnp.dot(fg.astype(bf16), e_w3g[...], preferred_element_type=f32)
        g = g_loc.reshape(NB * G, N, -1) + g_glb[:, None, :]
        g = jnp.maximum(g * e_s3[...] + e_t3[...], 0.0)
        g = jnp.dot(g.reshape(NB * G * N, -1).astype(bf16), e_w4[...],
                    preferred_element_type=f32) + e_b4[...]
        tokens = jnp.max(g.reshape(NB * G, N, -1), axis=1).reshape(NB, G, D)

        # pos-embed of the centers: (NB*G, 8pad) x (8, 128) f32 MXU, GELU, (128, D) bf16.
        c = ctr_ref[...].reshape(NB * G, 8)
        h = jnp.dot(c, p_w1[...], preferred_element_type=f32) + p_b1[...]
        h = _gelu(h)
        pos_g = (jnp.dot(h.astype(bf16), p_w2[...], preferred_element_type=f32)
                 + p_b2[...]).reshape(NB, G, D)

        pad_rows = Spad - S
        parts_x = [jnp.broadcast_to(cls_tok[...], (NB, 1, D)), tokens]
        parts_p = [jnp.broadcast_to(cls_pos[...], (NB, 1, D)), pos_g]
        if pad_rows:
            zpad = jnp.zeros((NB, pad_rows, D), f32)
            parts_x.append(zpad)
            parts_p.append(zpad)
        x_scr[...] = jnp.concatenate(parts_x, axis=1).reshape(M, D)
        pos_scr[...] = jnp.concatenate(parts_p, axis=1).reshape(M, D)

    # ------------- transformer block `l` (weights streamed one layer at a time) -------------
    xi = x_scr[...] + pos_scr[...]                      # pos re-added every block
    xn = _layernorm(xi, ln1g[...], ln1b[...])
    xb = xn.astype(bf16)

    # fused QKV projection: one (M, D) x (D, 3D) MXU pass (scale folded into Q columns).
    qkv = jnp.dot(xb, wqkv[...], preferred_element_type=f32).reshape(NB, Spad, 3 * D)

    # additive key-padding mask (rows >= S are padding)
    kidx = jax.lax.broadcasted_iota(jnp.int32, (1, 1, Spad), 2)
    key_bias = jnp.where(kidx < S, 0.0, _NEG_BIG).astype(f32)

    ctx_parts = []
    for hi in range(num_heads):                         # only the (S,S) part stays per-head
        o = hi * dh
        qh = qkv[:, :, o:o + dh].astype(bf16)
        kh = qkv[:, :, D + o:D + o + dh].astype(bf16)
        vh = qkv[:, :, 2 * D + o:2 * D + o + dh].astype(bf16)
        s = jnp.einsum('bqd,bkd->bqk', qh, kh, preferred_element_type=f32) + key_bias
        pr = _softmax_last(s)
        ctx_h = jnp.einsum('bqk,bkd->bqd', pr.astype(bf16), vh,
                           preferred_element_type=f32)
        ctx_parts.append(ctx_h.reshape(M, dh))
    ctx = jnp.concatenate(ctx_parts, axis=-1)           # (M, D)

    # fused output projection: one (M, D) x (D, D) MXU pass.
    attn = jnp.dot(ctx.astype(bf16), wo[...], preferred_element_type=f32) + bo[...]
    xh = xi + attn
    xn2 = _layernorm(xh, ln2g[...], ln2b[...])
    m = _gelu(jnp.dot(xn2.astype(bf16), wf1[...], preferred_element_type=f32) + bf1[...])
    x_new = xh + jnp.dot(m.astype(bf16), wf2[...], preferred_element_type=f32) + bf2[...]
    x_scr[...] = x_new

    # ------------- step l == depth-1: final LayerNorm + cls head -------------
    @pl.when(l == depth - 1)
    def _head():
        xn_f = _layernorm(x_new, n_g[...], n_b[...]).reshape(NB, Spad, D)
        cls_f = xn_f[:, 0, :]                                          # (NB, D)
        ridx = jax.lax.broadcasted_iota(jnp.int32, (1, Spad, 1), 1)
        valid = jnp.logical_and(ridx >= 1, ridx < S)                   # groups only
        pooled = jnp.max(jnp.where(valid, xn_f, _NEG_BIG), axis=1)     # (NB, D)
        # [cls | max]-concat folded into the split first linear (no lane concat).
        hc = (jnp.dot(cls_f.astype(bf16), h_w1c[...], preferred_element_type=f32)
              + jnp.dot(pooled.astype(bf16), h_w1m[...], preferred_element_type=f32)
              + h_b1[...])
        hc = jnp.maximum(hc * h_s1[...] + h_t1[...], 0.0)              # BN(eval) + ReLU
        hc = jnp.dot(hc.astype(bf16), h_w2[...], preferred_element_type=f32) + h_b2[...]
        hc = jnp.maximum(hc * h_s2[...] + h_t2[...], 0.0)
        out_ref[...] = (jnp.dot(hc.astype(bf16), h_w3[...],
                                preferred_element_type=f32) + h_b3[...])


# ------------------------------- pallas wrapper -------------------------------

def _padded_block_bytes(shape, dtype):
    """VMEM footprint of one block with (sublane, lane) tiling padding."""
    itemsize = jnp.dtype(dtype).itemsize
    dims = [int(s) for s in shape]
    if len(dims) < 2:
        dims = [1] * (2 - len(dims)) + dims
    sub = 8 if itemsize >= 4 else 8 * (4 // itemsize)
    lead = 1
    for s in dims[:-2]:
        lead *= s
    r = -(-dims[-2] // sub) * sub
    c = -(-dims[-1] // 128) * 128
    return lead * r * c * itemsize


def point_transformer_forward(params, neighborhood, center, *, num_heads,
                              batch_block=None):
    B, G, N, d = neighborhood.shape
    assert d == 3  # TODO(synk): d == 6 (xyz+rgb) input branch not implemented
    enc, pe, blk, hd = params['enc'], params['pos'], params['blk'], params['head']
    depth = blk['wqkv'].shape[0]
    D = blk['wqkv'].shape[1]
    cls_dim = hd['w3'].shape[-1]
    S = G + 1
    Spad = -(-S // 8) * 8

    if batch_block is None:
        # fill the MXU M dim (~128 rows) but keep an even parallel grid for v7x when possible
        nb = max(1, min(B, pl.cdiv(128, Spad)))
        while nb > 1 and (B % nb != 0 or (B // nb) % 2 != 0):
            nb -= 1
        batch_block = nb if B % nb == 0 else 1
    NB = batch_block
    assert B % NB == 0
    M = NB * Spad

    # pad xyz to 8 input channels so the K=3 input convs run on the MXU
    pts = jnp.zeros((B, G * N, 8), jnp.float32).at[:, :, :3].set(
        neighborhood.reshape(B, G * N, 3).astype(jnp.float32))
    ctr = jnp.zeros((B, G, 8), jnp.float32).at[:, :, :3].set(
        center.astype(jnp.float32))

    inputs, in_specs, resident_bytes = [], [], []

    def add(arr, block_shape, index_map):
        inputs.append(arr)
        in_specs.append(pl.BlockSpec(block_shape, index_map))
        concrete = tuple(1 if s is None else s for s in block_shape)
        # double-buffered by the pipeline (constant-index weights are tiny, so the
        # extra buffer is harmless; per-layer weights NEED it for prefetch overlap)
        resident_bytes.append(2 * _padded_block_bytes(concrete, arr.dtype))

    def add_const(arr):            # resident for the whole kernel
        nd = arr.ndim
        add(arr, arr.shape, lambda b, l, _nd=nd: (0,) * _nd)

    def add_layer(arr):            # streamed one transformer layer at a time
        add(arr, (None,) + arr.shape[1:], lambda b, l: (l, 0, 0))

    add(pts, (NB, G * N, 8), lambda b, l: (b, 0, 0))
    add(ctr, (NB, G, 8), lambda b, l: (b, 0, 0))
    for w in (enc['w1'], enc['s1'], enc['t1'], enc['w2'], enc['b2'],
              enc['w3l'], enc['w3g'], enc['s3'], enc['t3'], enc['w4'], enc['b4'],
              pe['w1'], pe['b1'], pe['w2'], pe['b2'],
              params['cls_token'], params['cls_pos']):
        add_const(w)
    for w in (blk['ln1g'], blk['ln1b'], blk['wqkv'], blk['wo'], blk['bo'],
              blk['ln2g'], blk['ln2b'], blk['wf1'], blk['bf1'], blk['wf2'], blk['bf2']):
        add_layer(w)
    for w in (params['norm_g'], params['norm_b'],
              hd['w1c'], hd['w1m'], hd['b1'], hd['s1'], hd['t1'],
              hd['w2'], hd['b2'], hd['s2'], hd['t2'], hd['w3'], hd['b3']):
        add_const(w)

    # explicit scoped-VMEM budget: resident blocks + carried state + activation workspace
    act_bytes = (4 * _padded_block_bytes((NB * G * N, 512), jnp.float32)
                 + 8 * _padded_block_bytes((M, max(4 * D, num_heads * Spad)), jnp.float32))
    vmem_limit = (sum(resident_bytes)
                  + 2 * _padded_block_bytes((NB, cls_dim), jnp.float32)   # output block
                  + 2 * _padded_block_bytes((M, D), jnp.float32)          # x / pos scratch
                  + act_bytes + (8 << 20))                                # margin
    vmem_limit = int(min(max(vmem_limit, 32 << 20), 96 << 20))

    kernel = functools.partial(model_kernel, NB=NB, G=G, N=N, S=S, Spad=Spad, D=D,
                               num_heads=num_heads, depth=depth)

    out = pl.pallas_call(
        kernel,
        out_shape=jax.ShapeDtypeStruct((B // NB, NB, cls_dim), jnp.float32),
        grid=(B // NB, depth),
        in_specs=in_specs,
        out_specs=pl.BlockSpec((None, NB, cls_dim), lambda b, l: (b, 0, 0)),
        scratch_shapes=[pltpu.VMEM((M, D), jnp.float32),    # carried token state x
                        pltpu.VMEM((M, D), jnp.float32)],   # positional embedding
        compiler_params=pltpu.CompilerParams(
            dimension_semantics=("parallel", "arbitrary"),
            vmem_limit_bytes=vmem_limit),
    )(*inputs)
    return out.reshape(B, cls_dim)


# --------------------------------- parameters ---------------------------------

def init_params(key, *, trans_dim, encoder_dims, depth, num_heads, cls_dim):
    D, C, Hm = trans_dim, encoder_dims, 4 * trans_dim
    assert D % num_heads == 0
    dh = D // num_heads
    scale = float(dh) ** -0.5
    keys = iter(jax.random.split(key, 64 + 8 * depth))

    def nrm(shape, std=0.02):
        return (std * jax.random.normal(next(keys), shape)).astype(jnp.float32)

    def bf(a):
        return a.astype(jnp.bfloat16)

    def pad8(w):  # (3, out) -> (8, out) with zero rows (MXU-friendly K)
        return jnp.concatenate([w, jnp.zeros((8 - w.shape[0], w.shape[1]), w.dtype)], 0)

    inv_std = float(1.0 / math.sqrt(1.0 + EPS_BN))     # BN eval fold (mean 0, var 1)

    conv_b1 = nrm((1, 128))
    conv_b3 = nrm((1, 512))
    w3 = nrm((512, 512))
    enc = dict(
        w1=pad8(nrm((3, 128))),
        s1=jnp.full((1, 128), inv_std, jnp.float32), t1=conv_b1 * inv_std,
        w2=bf(nrm((128, 256))), b2=nrm((1, 256)),
        # torch.cat([global, local], channel): rows 0:256 of W3 act on the global
        # feature, rows 256:512 on the per-point feature.
        w3g=bf(w3[0:256, :]), w3l=bf(w3[256:512, :]),
        s3=jnp.full((1, 512), inv_std, jnp.float32), t3=conv_b3 * inv_std,
        w4=bf(nrm((512, C))), b4=nrm((1, C)),
    )
    pos = dict(w1=pad8(nrm((3, 128))), b1=nrm((1, 128)),
               w2=bf(nrm((128, D))), b2=nrm((1, D)))

    wqkv_l, wo_l, bo_l, wf1_l, bf1_l, wf2_l, bf2_l = ([] for _ in range(7))
    for _ in range(depth):
        wqkv = nrm((D, 3 * D))                          # qkv_bias=False
        wqkv = wqkv.at[:, 0:D].multiply(scale)          # fold attention scale into Q cols
        wqkv_l.append(wqkv)
        wo_l.append(nrm((D, D))); bo_l.append(nrm((1, D)))
        wf1_l.append(nrm((D, Hm))); bf1_l.append(nrm((1, Hm)))
        wf2_l.append(nrm((Hm, D))); bf2_l.append(nrm((1, D)))
    blk = dict(
        ln1g=jnp.ones((depth, 1, D), jnp.float32),
        ln1b=jnp.zeros((depth, 1, D), jnp.float32),
        wqkv=bf(jnp.stack(wqkv_l)),                     # (depth, D, 3D), lane-dense
        wo=bf(jnp.stack(wo_l)), bo=jnp.stack(bo_l),
        ln2g=jnp.ones((depth, 1, D), jnp.float32),
        ln2b=jnp.zeros((depth, 1, D), jnp.float32),
        wf1=bf(jnp.stack(wf1_l)), bf1=jnp.stack(bf1_l),
        wf2=bf(jnp.stack(wf2_l)), bf2=jnp.stack(bf2_l),
    )
    hw1 = nrm((2 * D, 256))
    head = dict(
        w1c=bf(hw1[0:D, :]), w1m=bf(hw1[D:2 * D, :]), b1=nrm((1, 256)),
        s1=jnp.full((1, 256), inv_std, jnp.float32), t1=jnp.zeros((1, 256), jnp.float32),
        w2=bf(nrm((256, 256))), b2=nrm((1, 256)),
        s2=jnp.full((1, 256), inv_std, jnp.float32), t2=jnp.zeros((1, 256), jnp.float32),
        w3=bf(nrm((256, cls_dim))), b3=nrm((1, cls_dim)),
    )
    return dict(enc=enc, pos=pos, blk=blk,
                cls_token=nrm((1, D)), cls_pos=nrm((1, D)),
                norm_g=jnp.ones((1, D), jnp.float32),
                norm_b=jnp.zeros((1, D), jnp.float32),
                head=head)


# ------------------------------------ main ------------------------------------

if __name__ == "__main__":
    B, G, N = 2, 8, 16                 # batch, num_group, group_size
    trans_dim = encoder_dims = 64
    depth, num_heads, cls_dim = 2, 4, 10

    key = jax.random.PRNGKey(0)
    kp, kn, kc = jax.random.split(key, 3)
    params = init_params(kp, trans_dim=trans_dim, encoder_dims=encoder_dims,
                         depth=depth, num_heads=num_heads, cls_dim=cls_dim)
    neighborhood = jax.random.normal(kn, (B, G, N, 3), dtype=jnp.float32)
    center = jax.random.normal(kc, (B, G, 3), dtype=jnp.float32)

    fwd = jax.jit(functools.partial(point_transformer_forward, num_heads=num_heads))
    out = jax.block_until_ready(fwd(params, neighborhood, center))
    assert out.shape == (B, cls_dim) and out.dtype == jnp.float32
    assert bool(jnp.all(jnp.isfinite(out)))
    print("KERNEL_OK")
</pallas_src>

<mosaic_0001>
module attributes {stable_mosaic.version = 11 : i64} {
  func.func @model_kernel(%arg0: i32, %arg1: i32, %arg2: memref<1x128x8xf32, #tpu.memory_space<vmem>>, %arg3: memref<1x8x8xf32, #tpu.memory_space<vmem>>, %arg4: memref<8x128xf32, #tpu.memory_space<vmem>>, %arg5: memref<1x128xf32, #tpu.memory_space<vmem>>, %arg6: memref<1x128xf32, #tpu.memory_space<vmem>>, %arg7: memref<128x256xbf16, #tpu.memory_space<vmem>>, %arg8: memref<1x256xf32, #tpu.memory_space<vmem>>, %arg9: memref<256x512xbf16, #tpu.memory_space<vmem>>, %arg10: memref<256x512xbf16, #tpu.memory_space<vmem>>, %arg11: memref<1x512xf32, #tpu.memory_space<vmem>>, %arg12: memref<1x512xf32, #tpu.memory_space<vmem>>, %arg13: memref<512x64xbf16, #tpu.memory_space<vmem>>, %arg14: memref<1x64xf32, #tpu.memory_space<vmem>>, %arg15: memref<8x128xf32, #tpu.memory_space<vmem>>, %arg16: memref<1x128xf32, #tpu.memory_space<vmem>>, %arg17: memref<128x64xbf16, #tpu.memory_space<vmem>>, %arg18: memref<1x64xf32, #tpu.memory_space<vmem>>, %arg19: memref<1x64xf32, #tpu.memory_space<vmem>>, %arg20: memref<1x64xf32, #tpu.memory_space<vmem>>, %arg21: memref<1x1x64xf32, #tpu.memory_space<vmem>>, %arg22: memref<1x1x64xf32, #tpu.memory_space<vmem>>, %arg23: memref<1x64x192xbf16, #tpu.memory_space<vmem>>, %arg24: memref<1x64x64xbf16, #tpu.memory_space<vmem>>, %arg25: memref<1x1x64xf32, #tpu.memory_space<vmem>>, %arg26: memref<1x1x64xf32, #tpu.memory_space<vmem>>, %arg27: memref<1x1x64xf32, #tpu.memory_space<vmem>>, %arg28: memref<1x64x256xbf16, #tpu.memory_space<vmem>>, %arg29: memref<1x1x256xf32, #tpu.memory_space<vmem>>, %arg30: memref<1x256x64xbf16, #tpu.memory_space<vmem>>, %arg31: memref<1x1x64xf32, #tpu.memory_space<vmem>>, %arg32: memref<1x64xf32, #tpu.memory_space<vmem>>, %arg33: memref<1x64xf32, #tpu.memory_space<vmem>>, %arg34: memref<64x256xbf16, #tpu.memory_space<vmem>>, %arg35: memref<64x256xbf16, #tpu.memory_space<vmem>>, %arg36: memref<1x256xf32, #tpu.memory_space<vmem>>, %arg37: memref<1x256xf32, #tpu.memory_space<vmem>>, %arg38: memref<1x256xf32, #tpu.memory_space<vmem>>, %arg39: memref<256x256xbf16, #tpu.memory_space<vmem>>, %arg40: memref<1x256xf32, #tpu.memory_space<vmem>>, %arg41: memref<1x256xf32, #tpu.memory_space<vmem>>, %arg42: memref<1x256xf32, #tpu.memory_space<vmem>>, %arg43: memref<256x10xbf16, #tpu.memory_space<vmem>>, %arg44: memref<1x10xf32, #tpu.memory_space<vmem>>, %arg45: memref<1x1x10xf32, #tpu.memory_space<vmem>>, %arg46: memref<16x64xf32, #tpu.memory_space<vmem>>, %arg47: memref<16x64xf32, #tpu.memory_space<vmem>>) attributes {dimension_semantics = [#tpu.dimension_semantics<parallel>, #tpu.dimension_semantics<arbitrary>], iteration_bounds = array<i64: 2, 2>, scalar_prefetch = 0 : i64, scratch_operands = 2 : i64, tpu.core_type = #tpu.core_type<tc>, window_params = [{transform_indices = @transform_0, window_bounds = array<i64: 1, 128, 8>}, {transform_indices = @transform_1, window_bounds = array<i64: 1, 8, 8>}, {pipeline_mode = #tpu.pipeline_mode<synchronous>, transform_indices = @transform_2, window_bounds = array<i64: 8, 128>}, {pipeline_mode = #tpu.pipeline_mode<synchronous>, transform_indices = @transform_3, window_bounds = array<i64: 1, 128>}, {pipeline_mode = #tpu.pipeline_mode<synchronous>, transform_indices = @transform_4, window_bounds = array<i64: 1, 128>}, {pipeline_mode = #tpu.pipeline_mode<synchronous>, transform_indices = @transform_5, window_bounds = array<i64: 128, 256>}, {pipeline_mode = #tpu.pipeline_mode<synchronous>, transform_indices = @transform_6, window_bounds = array<i64: 1, 256>}, {pipeline_mode = #tpu.pipeline_mode<synchronous>, transform_indices = @transform_7, window_bounds = array<i64: 256, 512>}, {pipeline_mode = #tpu.pipeline_mode<synchronous>, transform_indices = @transform_8, window_bounds = array<i64: 256, 512>}, {pipeline_mode = #tpu.pipeline_mode<synchronous>, transform_indices = @transform_9, window_bounds = array<i64: 1, 512>}, {pipeline_mode = #tpu.pipeline_mode<synchronous>, transform_indices = @transform_10, window_bounds = array<i64: 1, 512>}, {pipeline_mode = #tpu.pipeline_mode<synchronous>, transform_indices = @transform_11, window_bounds = array<i64: 512, 64>}, {pipeline_mode = #tpu.pipeline_mode<synchronous>, transform_indices = @transform_12, window_bounds = array<i64: 1, 64>}, {pipeline_mode = #tpu.pipeline_mode<synchronous>, transform_indices = @transform_13, window_bounds = array<i64: 8, 128>}, {pipeline_mode = #tpu.pipeline_mode<synchronous>, transform_indices = @transform_14, window_bounds = array<i64: 1, 128>}, {pipeline_mode = #tpu.pipeline_mode<synchronous>, transform_indices = @transform_15, window_bounds = array<i64: 128, 64>}, {pipeline_mode = #tpu.pipeline_mode<synchronous>, transform_indices = @transform_16, window_bounds = array<i64: 1, 64>}, {pipeline_mode = #tpu.pipeline_mode<synchronous>, transform_indices = @transform_17, window_bounds = array<i64: 1, 64>}, {pipeline_mode = #tpu.pipeline_mode<synchronous>, transform_indices = @transform_18, window_bounds = array<i64: 1, 64>}, {transform_indices = @transform_19, window_bounds = array<i64: 1, 1, 64>}, {transform_indices = @transform_20, window_bounds = array<i64: 1, 1, 64>}, {transform_indices = @transform_21, window_bounds = array<i64: 1, 64, 192>}, {transform_indices = @transform_22, window_bounds = array<i64: 1, 64, 64>}, {transform_indices = @transform_23, window_bounds = array<i64: 1, 1, 64>}, {transform_indices = @transform_24, window_bounds = array<i64: 1, 1, 64>}, {transform_indices = @transform_25, window_bounds = array<i64: 1, 1, 64>}, {transform_indices = @transform_26, window_bounds = array<i64: 1, 64, 256>}, {transform_indices = @transform_27, window_bounds = array<i64: 1, 1, 256>}, {transform_indices = @transform_28, window_bounds = array<i64: 1, 256, 64>}, {transform_indices = @transform_29, window_bounds = array<i64: 1, 1, 64>}, {pipeline_mode = #tpu.pipeline_mode<synchronous>, transform_indices = @transform_30, window_bounds = array<i64: 1, 64>}, {pipeline_mode = #tpu.pipeline_mode<synchronous>, transform_indices = @transform_31, window_bounds = array<i64: 1, 64>}, {pipeline_mode = #tpu.pipeline_mode<synchronous>, transform_indices = @transform_32, window_bounds = array<i64: 64, 256>}, {pipeline_mode = #tpu.pipeline_mode<synchronous>, transform_indices = @transform_33, window_bounds = array<i64: 64, 256>}, {pipeline_mode = #tpu.pipeline_mode<synchronous>, transform_indices = @transform_34, window_bounds = array<i64: 1, 256>}, {pipeline_mode = #tpu.pipeline_mode<synchronous>, transform_indices = @transform_35, window_bounds = array<i64: 1, 256>}, {pipeline_mode = #tpu.pipeline_mode<synchronous>, transform_indices = @transform_36, window_bounds = array<i64: 1, 256>}, {pipeline_mode = #tpu.pipeline_mode<synchronous>, transform_indices = @transform_37, window_bounds = array<i64: 256, 256>}, {pipeline_mode = #tpu.pipeline_mode<synchronous>, transform_indices = @transform_38, window_bounds = array<i64: 1, 256>}, {pipeline_mode = #tpu.pipeline_mode<synchronous>, transform_indices = @transform_39, window_bounds = array<i64: 1, 256>}, {pipeline_mode = #tpu.pipeline_mode<synchronous>, transform_indices = @transform_40, window_bounds = array<i64: 1, 256>}, {pipeline_mode = #tpu.pipeline_mode<synchronous>, transform_indices = @transform_41, window_bounds = array<i64: 256, 10>}, {pipeline_mode = #tpu.pipeline_mode<synchronous>, transform_indices = @transform_42, window_bounds = array<i64: 1, 10>}, {transform_indices = @transform_43, window_bounds = array<i64: 1, 1, 10>}]} {
    %c0_i32 = arith.constant 0 : i32
    %0 = arith.cmpi eq, %arg1, %c0_i32 : i32
    %1 = arith.extui %0 : i1 to i32
    %c0_i32_0 = arith.constant 0 : i32
    %2 = arith.cmpi ne, %1, %c0_i32_0 : i32
    scf.if %2 {
      %c0_75 = arith.constant 0 : index
      %c0_76 = arith.constant 0 : index
      %c0_77 = arith.constant 0 : index
      %201 = vector.load %arg2[%c0_75, %c0_76, %c0_77] : memref<1x128x8xf32, #tpu.memory_space<vmem>>, vector<1x128x8xf32>
      %202 = vector.shape_cast %201 : vector<1x128x8xf32> to vector<128x8xf32>
      %c0_78 = arith.constant 0 : index
      %c0_79 = arith.constant 0 : index
      %203 = vector.load %arg4[%c0_78, %c0_79] : memref<8x128xf32, #tpu.memory_space<vmem>>, vector<8x128xf32>
      %cst_80 = arith.constant dense<0.000000e+00> : vector<128x128xf32>
      %204 = tpu.matmul %202, %203, %cst_80 {dimension_numbers = #tpu.dot_dimension_numbers<[1], [0], [0], [1], [0, 0, 1, 1], [], []>} : vector<128x8xf32>, vector<8x128xf32>, vector<128x128xf32> -> vector<128x128xf32>
      %c0_81 = arith.constant 0 : index
      %c0_82 = arith.constant 0 : index
      %205 = vector.load %arg5[%c0_81, %c0_82] : memref<1x128xf32, #tpu.memory_space<vmem>>, vector<1x128xf32>
      %206 = vector.broadcast %205 : vector<1x128xf32> to vector<128x128xf32>
      %207 = arith.mulf %204, %206 : vector<128x128xf32>
      %c0_83 = arith.constant 0 : index
      %c0_84 = arith.constant 0 : index
      %208 = vector.load %arg6[%c0_83, %c0_84] : memref<1x128xf32, #tpu.memory_space<vmem>>, vector<1x128xf32>
      %209 = vector.broadcast %208 : vector<1x128xf32> to vector<128x128xf32>
      %210 = arith.addf %207, %209 : vector<128x128xf32>
      %cst_85 = arith.constant 0.000000e+00 : f32
      %211 = vector.broadcast %cst_85 : f32 to vector<128x128xf32>
      %212 = arith.maximumf %210, %211 : vector<128x128xf32>
      %213 = arith.truncf %212 : vector<128x128xf32> to vector<128x128xbf16>
      %c0_86 = arith.constant 0 : index
      %c0_87 = arith.constant 0 : index
      %214 = vector.load %arg7[%c0_86, %c0_87] : memref<128x256xbf16, #tpu.memory_space<vmem>>, vector<128x256xbf16>
      %cst_88 = arith.constant dense<0.000000e+00> : vector<128x256xf32>
      %215 = tpu.matmul %213, %214, %cst_88 {dimension_numbers = #tpu.dot_dimension_numbers<[1], [0], [0], [1], [0, 0, 1, 1], [], []>} : vector<128x128xbf16>, vector<128x256xbf16>, vector<128x256xf32> -> vector<128x256xf32>
      %c0_89 = arith.constant 0 : index
      %c0_90 = arith.constant 0 : index
      %216 = vector.load %arg8[%c0_89, %c0_90] : memref<1x256xf32, #tpu.memory_space<vmem>>, vector<1x256xf32>
      %217 = vector.broadcast %216 : vector<1x256xf32> to vector<128x256xf32>
      %218 = arith.addf %215, %217 : vector<128x256xf32>
      %219 = vector.shape_cast %218 : vector<128x256xf32> to vector<8x16x256xf32>
      %cst_91 = arith.constant dense<0xFF800000> : vector<8x256xf32>
      %220 = vector.multi_reduction <maximumf>, %219, %cst_91 [1] : vector<8x16x256xf32> to vector<8x256xf32>
      %221 = arith.truncf %218 : vector<128x256xf32> to vector<128x256xbf16>
      %c0_92 = arith.constant 0 : index
      %c0_93 = arith.constant 0 : index
      %222 = vector.load %arg9[%c0_92, %c0_93] : memref<256x512xbf16, #tpu.memory_space<vmem>>, vector<256x512xbf16>
      %cst_94 = arith.constant dense<0.000000e+00> : vector<128x512xf32>
      %223 = tpu.matmul %221, %222, %cst_94 {dimension_numbers = #tpu.dot_dimension_numbers<[1], [0], [0], [1], [0, 0, 1, 1], [], []>} : vector<128x256xbf16>, vector<256x512xbf16>, vector<128x512xf32> -> vector<128x512xf32>
      %224 = arith.truncf %220 : vector<8x256xf32> to vector<8x256xbf16>
      %c0_95 = arith.constant 0 : index
      %c0_96 = arith.constant 0 : index
      %225 = vector.load %arg10[%c0_95, %c0_96] : memref<256x512xbf16, #tpu.memory_space<vmem>>, vector<256x512xbf16>
      %cst_97 = arith.constant dense<0.000000e+00> : vector<8x512xf32>
      %226 = tpu.matmul %224, %225, %cst_97 {dimension_numbers = #tpu.dot_dimension_numbers<[1], [0], [0], [1], [0, 0, 1, 1], [], []>} : vector<8x256xbf16>, vector<256x512xbf16>, vector<8x512xf32> -> vector<8x512xf32>
      %227 = vector.shape_cast %223 : vector<128x512xf32> to vector<8x16x512xf32>
      %228 = vector.shape_cast %226 : vector<8x512xf32> to vector<8x1x512xf32>
      %229 = vector.broadcast %228 : vector<8x1x512xf32> to vector<8x16x512xf32>
      %230 = arith.addf %227, %229 : vector<8x16x512xf32>
      %c0_98 = arith.constant 0 : index
      %c0_99 = arith.constant 0 : index
      %231 = vector.load %arg11[%c0_98, %c0_99] : memref<1x512xf32, #tpu.memory_space<vmem>>, vector<1x512xf32>
      %232 = vector.shape_cast %231 : vector<1x512xf32> to vector<1x1x512xf32>
      %233 = vector.broadcast %232 : vector<1x1x512xf32> to vector<8x16x512xf32>
      %234 = arith.mulf %230, %233 : vector<8x16x512xf32>
      %c0_100 = arith.constant 0 : index
      %c0_101 = arith.constant 0 : index
      %235 = vector.load %arg12[%c0_100, %c0_101] : memref<1x512xf32, #tpu.memory_space<vmem>>, vector<1x512xf32>
      %236 = vector.shape_cast %235 : vector<1x512xf32> to vector<1x1x512xf32>
      %237 = vector.broadcast %236 : vector<1x1x512xf32> to vector<8x16x512xf32>
      %238 = arith.addf %234, %237 : vector<8x16x512xf32>
      %cst_102 = arith.constant 0.000000e+00 : f32
      %239 = vector.broadcast %cst_102 : f32 to vector<8x16x512xf32>
      %240 = arith.maximumf %238, %239 : vector<8x16x512xf32>
      %241 = vector.shape_cast %240 : vector<8x16x512xf32> to vector<128x512xf32>
      %242 = arith.truncf %241 : vector<128x512xf32> to vector<128x512xbf16>
      %c0_103 = arith.constant 0 : index
      %c0_104 = arith.constant 0 : index
      %243 = vector.load %arg13[%c0_103, %c0_104] : memref<512x64xbf16, #tpu.memory_space<vmem>>, vector<512x64xbf16>
      %cst_105 = arith.constant dense<0.000000e+00> : vector<128x64xf32>
      %244 = tpu.matmul %242, %243, %cst_105 {dimension_numbers = #tpu.dot_dimension_numbers<[1], [0], [0], [1], [0, 0, 1, 1], [], []>} : vector<128x512xbf16>, vector<512x64xbf16>, vector<128x64xf32> -> vector<128x64xf32>
      %c0_106 = arith.constant 0 : index
      %c0_107 = arith.constant 0 : index
      %245 = vector.load %arg14[%c0_106, %c0_107] : memref<1x64xf32, #tpu.memory_space<vmem>>, vector<1x64xf32>
      %246 = vector.broadcast %245 : vector<1x64xf32> to vector<128x64xf32>
      %247 = arith.addf %244, %246 : vector<128x64xf32>
      %248 = vector.shape_cast %247 : vector<128x64xf32> to vector<8x16x64xf32>
      %cst_108 = arith.constant dense<0xFF800000> : vector<8x64xf32>
      %249 = vector.multi_reduction <maximumf>, %248, %cst_108 [1] : vector<8x16x64xf32> to vector<8x64xf32>
      %250 = vector.shape_cast %249 : vector<8x64xf32> to vector<1x8x64xf32>
      %c0_109 = arith.constant 0 : index
      %c0_110 = arith.constant 0 : index
      %c0_111 = arith.constant 0 : index
      %251 = vector.load %arg3[%c0_109, %c0_110, %c0_111] : memref<1x8x8xf32, #tpu.memory_space<vmem>>, vector<1x8x8xf32>
      %252 = vector.shape_cast %251 : vector<1x8x8xf32> to vector<8x8xf32>
      %c0_112 = arith.constant 0 : index
      %c0_113 = arith.constant 0 : index
      %253 = vector.load %arg15[%c0_112, %c0_113] : memref<8x128xf32, #tpu.memory_space<vmem>>, vector<8x128xf32>
      %cst_114 = arith.constant dense<0.000000e+00> : vector<8x128xf32>
      %254 = tpu.matmul %252, %253, %cst_114 {dimension_numbers = #tpu.dot_dimension_numbers<[1], [0], [0], [1], [0, 0, 1, 1], [], []>} : vector<8x8xf32>, vector<8x128xf32>, vector<8x128xf32> -> vector<8x128xf32>
      %c0_115 = arith.constant 0 : index
      %c0_116 = arith.constant 0 : index
      %255 = vector.load %arg16[%c0_115, %c0_116] : memref<1x128xf32, #tpu.memory_space<vmem>>, vector<1x128xf32>
      %256 = vector.broadcast %255 : vector<1x128xf32> to vector<8x128xf32>
      %257 = arith.addf %254, %256 : vector<8x128xf32>
      %cst_117 = arith.constant 5.000000e-01 : f32
      %258 = vector.broadcast %cst_117 : f32 to vector<8x128xf32>
      %259 = arith.mulf %258, %257 : vector<8x128xf32>
      %cst_118 = arith.constant 4.471500e-02 : f32
      %260 = vector.broadcast %cst_118 : f32 to vector<8x128xf32>
      %261 = arith.mulf %260, %257 : vector<8x128xf32>
      %262 = arith.mulf %261, %257 : vector<8x128xf32>
      %263 = arith.mulf %262, %257 : vector<8x128xf32>
      %264 = arith.addf %257, %263 : vector<8x128xf32>
      %cst_119 = arith.constant 0.797884583 : f32
      %265 = vector.broadcast %cst_119 : f32 to vector<8x128xf32>
      %266 = arith.mulf %265, %264 : vector<8x128xf32>
      %267 = math.tanh %266 : vector<8x128xf32>
      %cst_120 = arith.constant 1.000000e+00 : f32
      %268 = vector.broadcast %cst_120 : f32 to vector<8x128xf32>
      %269 = arith.addf %268, %267 : vector<8x128xf32>
      %270 = arith.mulf %259, %269 : vector<8x128xf32>
      %271 = arith.truncf %270 : vector<8x128xf32> to vector<8x128xbf16>
      %c0_121 = arith.constant 0 : index
      %c0_122 = arith.constant 0 : index
      %272 = vector.load %arg17[%c0_121, %c0_122] : memref<128x64xbf16, #tpu.memory_space<vmem>>, vector<128x64xbf16>
      %cst_123 = arith.constant dense<0.000000e+00> : vector<8x64xf32>
      %273 = tpu.matmul %271, %272, %cst_123 {dimension_numbers = #tpu.dot_dimension_numbers<[1], [0], [0], [1], [0, 0, 1, 1], [], []>} : vector<8x128xbf16>, vector<128x64xbf16>, vector<8x64xf32> -> vector<8x64xf32>
      %c0_124 = arith.constant 0 : index
      %c0_125 = arith.constant 0 : index
      %274 = vector.load %arg18[%c0_124, %c0_125] : memref<1x64xf32, #tpu.memory_space<vmem>>, vector<1x64xf32>
      %275 = vector.broadcast %274 : vector<1x64xf32> to vector<8x64xf32>
      %276 = arith.addf %273, %275 : vector<8x64xf32>
      %277 = vector.shape_cast %276 : vector<8x64xf32> to vector<1x8x64xf32>
      %c0_126 = arith.constant 0 : index
      %c0_127 = arith.constant 0 : index
      %278 = vector.load %arg19[%c0_126, %c0_127] : memref<1x64xf32, #tpu.memory_space<vmem>>, vector<1x64xf32>
      %279 = vector.shape_cast %278 : vector<1x64xf32> to vector<1x1x64xf32>
      %c0_128 = arith.constant 0 : index
      %c0_129 = arith.constant 0 : index
      %280 = vector.load %arg20[%c0_128, %c0_129] : memref<1x64xf32, #tpu.memory_space<vmem>>, vector<1x64xf32>
      %281 = vector.shape_cast %280 : vector<1x64xf32> to vector<1x1x64xf32>
      %cst_130 = arith.constant 0.000000e+00 : f32
      %282 = vector.broadcast %cst_130 : f32 to vector<1x7x64xf32>
      %283 = tpu.concatenate %279, %250, %282 in 1 : vector<1x1x64xf32>, vector<1x8x64xf32>, vector<1x7x64xf32> -> vector<1x16x64xf32>
      %284 = vector.shape_cast %283 : vector<1x16x64xf32> to vector<16x64xf32>
      %c0_131 = arith.constant 0 : index
      %c0_132 = arith.constant 0 : index
      %285 = vector.load %arg46[%c0_131, %c0_132] : memref<16x64xf32, #tpu.memory_space<vmem>>, vector<16x64xf32>
      tpu.vector_store %arg46[%c0_131, %c0_132], %284 {strides = array<i32>} : memref<16x64xf32, #tpu.memory_space<vmem>>, vector<16x64xf32>,
      %286 = tpu.concatenate %281, %277, %282 in 1 : vector<1x1x64xf32>, vector<1x8x64xf32>, vector<1x7x64xf32> -> vector<1x16x64xf32>
      %287 = vector.shape_cast %286 : vector<1x16x64xf32> to vector<16x64xf32>
      %c0_133 = arith.constant 0 : index
      %c0_134 = arith.constant 0 : index
      %288 = vector.load %arg47[%c0_133, %c0_134] : memref<16x64xf32, #tpu.memory_space<vmem>>, vector<16x64xf32>
      tpu.vector_store %arg47[%c0_133, %c0_134], %287 {strides = array<i32>} : memref<16x64xf32, #tpu.memory_space<vmem>>, vector<16x64xf32>,
    } else {
    }
    %c0 = arith.constant 0 : index
    %c0_1 = arith.constant 0 : index
    %3 = vector.load %arg46[%c0, %c0_1] : memref<16x64xf32, #tpu.memory_space<vmem>>, vector<16x64xf32>
    %c0_2 = arith.constant 0 : index
    %c0_3 = arith.constant 0 : index
    %4 = vector.load %arg47[%c0_2, %c0_3] : memref<16x64xf32, #tpu.memory_space<vmem>>, vector<16x64xf32>
    %5 = arith.addf %3, %4 : vector<16x64xf32>
    %c0_4 = arith.constant 0 : index
    %c0_5 = arith.constant 0 : index
    %c0_6 = arith.constant 0 : index
    %6 = vector.load %arg21[%c0_4, %c0_5, %c0_6] : memref<1x1x64xf32, #tpu.memory_space<vmem>>, vector<1x1x64xf32>
    %7 = vector.shape_cast %6 : vector<1x1x64xf32> to vector<1x64xf32>
    %c0_7 = arith.constant 0 : index
    %c0_8 = arith.constant 0 : index
    %c0_9 = arith.constant 0 : index
    %8 = vector.load %arg22[%c0_7, %c0_8, %c0_9] : memref<1x1x64xf32, #tpu.memory_space<vmem>>, vector<1x1x64xf32>
    %9 = vector.shape_cast %8 : vector<1x1x64xf32> to vector<1x64xf32>
    %cst = arith.constant dense<0.000000e+00> : vector<16xf32>
    %10 = vector.multi_reduction <add>, %5, %cst [1] : vector<16x64xf32> to vector<16xf32>
    %11 = vector.shape_cast %10 : vector<16xf32> to vector<16x1xf32>
    %cst_10 = arith.constant 6.400000e+01 : f32
    %12 = vector.broadcast %cst_10 : f32 to vector<16x1xf32>
    %13 = arith.divf %11, %12 : vector<16x1xf32>
    %14 = vector.broadcast %13 : vector<16x1xf32> to vector<16x64xf32>
    %15 = arith.subf %5, %14 : vector<16x64xf32>
    %16 = arith.mulf %15, %15 : vector<16x64xf32>
    %cst_11 = arith.constant dense<0.000000e+00> : vector<16xf32>
    %17 = vector.multi_reduction <add>, %16, %cst_11 [1] : vector<16x64xf32> to vector<16xf32>
    %18 = vector.shape_cast %17 : vector<16xf32> to vector<16x1xf32>
    %cst_12 = arith.constant 6.400000e+01 : f32
    %19 = vector.broadcast %cst_12 : f32 to vector<16x1xf32>
    %20 = arith.divf %18, %19 : vector<16x1xf32>
    %21 = vector.broadcast %13 : vector<16x1xf32> to vector<16x64xf32>
    %22 = arith.subf %5, %21 : vector<16x64xf32>
    %cst_13 = arith.constant 9.99999974E-6 : f32
    %23 = vector.broadcast %cst_13 : f32 to vector<16x1xf32>
    %24 = arith.addf %20, %23 : vector<16x1xf32>
    %25 = math.rsqrt %24 : vector<16x1xf32>
    %26 = vector.broadcast %25 : vector<16x1xf32> to vector<16x64xf32>
    %27 = arith.mulf %22, %26 : vector<16x64xf32>
    %28 = vector.broadcast %7 : vector<1x64xf32> to vector<16x64xf32>
    %29 = arith.mulf %27, %28 : vector<16x64xf32>
    %30 = vector.broadcast %9 : vector<1x64xf32> to vector<16x64xf32>
    %31 = arith.addf %29, %30 : vector<16x64xf32>
    %32 = arith.truncf %31 : vector<16x64xf32> to vector<16x64xbf16>
    %c0_14 = arith.constant 0 : index
    %c0_15 = arith.constant 0 : index
    %c0_16 = arith.constant 0 : index
    %33 = vector.load %arg23[%c0_14, %c0_15, %c0_16] : memref<1x64x192xbf16, #tpu.memory_space<vmem>>, vector<1x64x192xbf16>
    %34 = vector.shape_cast %33 : vector<1x64x192xbf16> to vector<64x192xbf16>
    %cst_17 = arith.constant dense<0.000000e+00> : vector<16x192xf32>
    %35 = tpu.matmul %32, %34, %cst_17 {dimension_numbers = #tpu.dot_dimension_numbers<[1], [0], [0], [1], [0, 0, 1, 1], [], []>} : vector<16x64xbf16>, vector<64x192xbf16>, vector<16x192xf32> -> vector<16x192xf32>
    %36 = vector.shape_cast %35 : vector<16x192xf32> to vector<1x16x192xf32>
    %37 = tpu.iota {dimensions = array<i32: 2>} : vector<1x1x16xi32>
    %c9_i32 = arith.constant 9 : i32
    %38 = vector.broadcast %c9_i32 : i32 to vector<1x1x16xi32>
    %39 = arith.cmpi slt, %37, %38 : vector<1x1x16xi32>
    %cst_18 = arith.constant 0.000000e+00 : f32
    %cst_19 = arith.constant -1.000000e+30 : f32
    %40 = vector.broadcast %cst_18 : f32 to vector<1x1x16xf32>
    %41 = vector.broadcast %cst_19 : f32 to vector<1x1x16xf32>
    %42 = arith.select %39, %40, %41 : vector<1x1x16xi1>, vector<1x1x16xf32>
    %43 = vector.extract_strided_slice %36 {offsets = [0, 0, 0], sizes = [1, 16, 16], strides = [1, 1, 1]} : vector<1x16x192xf32> to vector<1x16x16xf32>
    %44 = arith.truncf %43 : vector<1x16x16xf32> to vector<1x16x16xbf16>
    %45 = vector.extract_strided_slice %36 {offsets = [0, 0, 64], sizes = [1, 16, 16], strides = [1, 1, 1]} : vector<1x16x192xf32> to vector<1x16x16xf32>
    %46 = arith.truncf %45 : vector<1x16x16xf32> to vector<1x16x16xbf16>
    %47 = vector.extract_strided_slice %36 {offsets = [0, 0, 128], sizes = [1, 16, 16], strides = [1, 1, 1]} : vector<1x16x192xf32> to vector<1x16x16xf32>
    %48 = arith.truncf %47 : vector<1x16x16xf32> to vector<1x16x16xbf16>
    "tpu.trace_start"() <{level = 10 : i32, message = "bqd,bkd->bqk"}> : () -> ()
    %cst_20 = arith.constant dense<0.000000e+00> : vector<1x16x16xf32>
    %49 = tpu.matmul %44, %46, %cst_20 {dimension_numbers = #tpu.dot_dimension_numbers<[2], [2], [1], [1], [0, 0, 0, 1, 1, 1], [0], [0]>} : vector<1x16x16xbf16>, vector<1x16x16xbf16>, vector<1x16x16xf32> -> vector<1x16x16xf32>
    "tpu.trace_stop"() : () -> ()
    %50 = vector.broadcast %42 : vector<1x1x16xf32> to vector<1x16x16xf32>
    %51 = arith.addf %49, %50 : vector<1x16x16xf32>
    %cst_21 = arith.constant dense<0xFF800000> : vector<1x16xf32>
    %52 = vector.multi_reduction <maximumf>, %51, %cst_21 [2] : vector<1x16x16xf32> to vector<1x16xf32>
    %53 = vector.shape_cast %52 : vector<1x16xf32> to vector<1x16x1xf32>
    %54 = vector.broadcast %53 : vector<1x16x1xf32> to vector<1x16x16xf32>
    %55 = arith.subf %51, %54 : vector<1x16x16xf32>
    %56 = math.exp %55 : vector<1x16x16xf32>
    %cst_22 = arith.constant dense<0.000000e+00> : vector<1x16xf32>
    %57 = vector.multi_reduction <add>, %56, %cst_22 [2] : vector<1x16x16xf32> to vector<1x16xf32>
    %58 = vector.shape_cast %57 : vector<1x16xf32> to vector<1x16x1xf32>
    %59 = tpu.reciprocal %58 {approx = true} : vector<1x16x1xf32> -> vector<1x16x1xf32>
    %60 = vector.broadcast %59 : vector<1x16x1xf32> to vector<1x16x16xf32>
    %61 = arith.mulf %56, %60 : vector<1x16x16xf32>
    %62 = arith.truncf %61 : vector<1x16x16xf32> to vector<1x16x16xbf16>
    "tpu.trace_start"() <{level = 10 : i32, message = "bqk,bkd->bqd"}> : () -> ()
    %cst_23 = arith.constant dense<0.000000e+00> : vector<1x16x16xf32>
    %63 = tpu.matmul %62, %48, %cst_23 {dimension_numbers = #tpu.dot_dimension_numbers<[2], [1], [1], [2], [0, 0, 0, 1, 1, 2], [0], [0]>} : vector<1x16x16xbf16>, vector<1x16x16xbf16>, vector<1x16x16xf32> -> vector<1x16x16xf32>
    "tpu.trace_stop"() : () -> ()
    %64 = vector.shape_cast %63 : vector<1x16x16xf32> to vector<16x16xf32>
    %65 = vector.extract_strided_slice %36 {offsets = [0, 0, 16], sizes = [1, 16, 16], strides = [1, 1, 1]} : vector<1x16x192xf32> to vector<1x16x16xf32>
    %66 = arith.truncf %65 : vector<1x16x16xf32> to vector<1x16x16xbf16>
    %67 = vector.extract_strided_slice %36 {offsets = [0, 0, 80], sizes = [1, 16, 16], strides = [1, 1, 1]} : vector<1x16x192xf32> to vector<1x16x16xf32>
    %68 = arith.truncf %67 : vector<1x16x16xf32> to vector<1x16x16xbf16>
    %69 = vector.extract_strided_slice %36 {offsets = [0, 0, 144], sizes = [1, 16, 16], strides = [1, 1, 1]} : vector<1x16x192xf32> to vector<1x16x16xf32>
    %70 = arith.truncf %69 : vector<1x16x16xf32> to vector<1x16x16xbf16>
    "tpu.trace_start"() <{level = 10 : i32, message = "bqd,bkd->bqk"}> : () -> ()
    %cst_24 = arith.constant dense<0.000000e+00> : vector<1x16x16xf32>
    %71 = tpu.matmul %66, %68, %cst_24 {dimension_numbers = #tpu.dot_dimension_numbers<[2], [2], [1], [1], [0, 0, 0, 1, 1, 1], [0], [0]>} : vector<1x16x16xbf16>, vector<1x16x16xbf16>, vector<1x16x16xf32> -> vector<1x16x16xf32>
    "tpu.trace_stop"() : () -> ()
    %72 = vector.broadcast %42 : vector<1x1x16xf32> to vector<1x16x16xf32>
    %73 = arith.addf %71, %72 : vector<1x16x16xf32>
    %cst_25 = arith.constant dense<0xFF800000> : vector<1x16xf32>
    %74 = vector.multi_reduction <maximumf>, %73, %cst_25 [2] : vector<1x16x16xf32> to vector<1x16xf32>
    %75 = vector.shape_cast %74 : vector<1x16xf32> to vector<1x16x1xf32>
    %76 = vector.broadcast %75 : vector<1x16x1xf32> to vector<1x16x16xf32>
    %77 = arith.subf %73, %76 : vector<1x16x16xf32>
    %78 = math.exp %77 : vector<1x16x16xf32>
    %cst_26 = arith.constant dense<0.000000e+00> : vector<1x16xf32>
    %79 = vector.multi_reduction <add>, %78, %cst_26 [2] : vector<1x16x16xf32> to vector<1x16xf32>
    %80 = vector.shape_cast %79 : vector<1x16xf32> to vector<1x16x1xf32>
    %81 = tpu.reciprocal %80 {approx = true} : vector<1x16x1xf32> -> vector<1x16x1xf32>
    %82 = vector.broadcast %81 : vector<1x16x1xf32> to vector<1x16x16xf32>
    %83 = arith.mulf %78, %82 : vector<1x16x16xf32>
    %84 = arith.truncf %83 : vector<1x16x16xf32> to vector<1x16x16xbf16>
    "tpu.trace_start"() <{level = 10 : i32, message = "bqk,bkd->bqd"}> : () -> ()
    %cst_27 = arith.constant dense<0.000000e+00> : vector<1x16x16xf32>
    %85 = tpu.matmul %84, %70, %cst_27 {dimension_numbers = #tpu.dot_dimension_numbers<[2], [1], [1], [2], [0, 0, 0, 1, 1, 2], [0], [0]>} : vector<1x16x16xbf16>, vector<1x16x16xbf16>, vector<1x16x16xf32> -> vector<1x16x16xf32>
    "tpu.trace_stop"() : () -> ()
    %86 = vector.shape_cast %85 : vector<1x16x16xf32> to vector<16x16xf32>
    %87 = vector.extract_strided_slice %36 {offsets = [0, 0, 32], sizes = [1, 16, 16], strides = [1, 1, 1]} : vector<1x16x192xf32> to vector<1x16x16xf32>
    %88 = arith.truncf %87 : vector<1x16x16xf32> to vector<1x16x16xbf16>
    %89 = vector.extract_strided_slice %36 {offsets = [0, 0, 96], sizes = [1, 16, 16], strides = [1, 1, 1]} : vector<1x16x192xf32> to vector<1x16x16xf32>
    %90 = arith.truncf %89 : vector<1x16x16xf32> to vector<1x16x16xbf16>
    %91 = vector.extract_strided_slice %36 {offsets = [0, 0, 160], sizes = [1, 16, 16], strides = [1, 1, 1]} : vector<1x16x192xf32> to vector<1x16x16xf32>
    %92 = arith.truncf %91 : vector<1x16x16xf32> to vector<1x16x16xbf16>
    "tpu.trace_start"() <{level = 10 : i32, message = "bqd,bkd->bqk"}> : () -> ()
    %cst_28 = arith.constant dense<0.000000e+00> : vector<1x16x16xf32>
    %93 = tpu.matmul %88, %90, %cst_28 {dimension_numbers = #tpu.dot_dimension_numbers<[2], [2], [1], [1], [0, 0, 0, 1, 1, 1], [0], [0]>} : vector<1x16x16xbf16>, vector<1x16x16xbf16>, vector<1x16x16xf32> -> vector<1x16x16xf32>
    "tpu.trace_stop"() : () -> ()
    %94 = vector.broadcast %42 : vector<1x1x16xf32> to vector<1x16x16xf32>
    %95 = arith.addf %93, %94 : vector<1x16x16xf32>
    %cst_29 = arith.constant dense<0xFF800000> : vector<1x16xf32>
    %96 = vector.multi_reduction <maximumf>, %95, %cst_29 [2] : vector<1x16x16xf32> to vector<1x16xf32>
    %97 = vector.shape_cast %96 : vector<1x16xf32> to vector<1x16x1xf32>
    %98 = vector.broadcast %97 : vector<1x16x1xf32> to vector<1x16x16xf32>
    %99 = arith.subf %95, %98 : vector<1x16x16xf32>
    %100 = math.exp %99 : vector<1x16x16xf32>
    %cst_30 = arith.constant dense<0.000000e+00> : vector<1x16xf32>
    %101 = vector.multi_reduction <add>, %100, %cst_30 [2] : vector<1x16x16xf32> to vector<1x16xf32>
    %102 = vector.shape_cast %101 : vector<1x16xf32> to vector<1x16x1xf32>
    %103 = tpu.reciprocal %102 {approx = true} : vector<1x16x1xf32> -> vector<1x16x1xf32>
    %104 = vector.broadcast %103 : vector<1x16x1xf32> to vector<1x16x16xf32>
    %105 = arith.mulf %100, %104 : vector<1x16x16xf32>
    %106 = arith.truncf %105 : vector<1x16x16xf32> to vector<1x16x16xbf16>
    "tpu.trace_start"() <{level = 10 : i32, message = "bqk,bkd->bqd"}> : () -> ()
    %cst_31 = arith.constant dense<0.000000e+00> : vector<1x16x16xf32>
    %107 = tpu.matmul %106, %92, %cst_31 {dimension_numbers = #tpu.dot_dimension_numbers<[2], [1], [1], [2], [0, 0, 0, 1, 1, 2], [0], [0]>} : vector<1x16x16xbf16>, vector<1x16x16xbf16>, vector<1x16x16xf32> -> vector<1x16x16xf32>
    "tpu.trace_stop"() : () -> ()
    %108 = vector.shape_cast %107 : vector<1x16x16xf32> to vector<16x16xf32>
    %109 = vector.extract_strided_slice %36 {offsets = [0, 0, 48], sizes = [1, 16, 16], strides = [1, 1, 1]} : vector<1x16x192xf32> to vector<1x16x16xf32>
    %110 = arith.truncf %109 : vector<1x16x16xf32> to vector<1x16x16xbf16>
    %111 = vector.extract_strided_slice %36 {offsets = [0, 0, 112], sizes = [1, 16, 16], strides = [1, 1, 1]} : vector<1x16x192xf32> to vector<1x16x16xf32>
    %112 = arith.truncf %111 : vector<1x16x16xf32> to vector<1x16x16xbf16>
    %113 = vector.extract_strided_slice %36 {offsets = [0, 0, 176], sizes = [1, 16, 16], strides = [1, 1, 1]} : vector<1x16x192xf32> to vector<1x16x16xf32>
    %114 = arith.truncf %113 : vector<1x16x16xf32> to vector<1x16x16xbf16>
    "tpu.trace_start"() <{level = 10 : i32, message = "bqd,bkd->bqk"}> : () -> ()
    %cst_32 = arith.constant dense<0.000000e+00> : vector<1x16x16xf32>
    %115 = tpu.matmul %110, %112, %cst_32 {dimension_numbers = #tpu.dot_dimension_numbers<[2], [2], [1], [1], [0, 0, 0, 1, 1, 1], [0], [0]>} : vector<1x16x16xbf16>, vector<1x16x16xbf16>, vector<1x16x16xf32> -> vector<1x16x16xf32>
    "tpu.trace_stop"() : () -> ()
    %116 = vector.broadcast %42 : vector<1x1x16xf32> to vector<1x16x16xf32>
    %117 = arith.addf %115, %116 : vector<1x16x16xf32>
    %cst_33 = arith.constant dense<0xFF800000> : vector<1x16xf32>
    %118 = vector.multi_reduction <maximumf>, %117, %cst_33 [2] : vector<1x16x16xf32> to vector<1x16xf32>
    %119 = vector.shape_cast %118 : vector<1x16xf32> to vector<1x16x1xf32>
    %120 = vector.broadcast %119 : vector<1x16x1xf32> to vector<1x16x16xf32>
    %121 = arith.subf %117, %120 : vector<1x16x16xf32>
    %122 = math.exp %121 : vector<1x16x16xf32>
    %cst_34 = arith.constant dense<0.000000e+00> : vector<1x16xf32>
    %123 = vector.multi_reduction <add>, %122, %cst_34 [2] : vector<1x16x16xf32> to vector<1x16xf32>
    %124 = vector.shape_cast %123 : vector<1x16xf32> to vector<1x16x1xf32>
    %125 = tpu.reciprocal %124 {approx = true} : vector<1x16x1xf32> -> vector<1x16x1xf32>
    %126 = vector.broadcast %125 : vector<1x16x1xf32> to vector<1x16x16xf32>
    %127 = arith.mulf %122, %126 : vector<1x16x16xf32>
    %128 = arith.truncf %127 : vector<1x16x16xf32> to vector<1x16x16xbf16>
    "tpu.trace_start"() <{level = 10 : i32, message = "bqk,bkd->bqd"}> : () -> ()
    %cst_35 = arith.constant dense<0.000000e+00> : vector<1x16x16xf32>
    %129 = tpu.matmul %128, %114, %cst_35 {dimension_numbers = #tpu.dot_dimension_numbers<[2], [1], [1], [2], [0, 0, 0, 1, 1, 2], [0], [0]>} : vector<1x16x16xbf16>, vector<1x16x16xbf16>, vector<1x16x16xf32> -> vector<1x16x16xf32>
    "tpu.trace_stop"() : () -> ()
    %130 = vector.shape_cast %129 : vector<1x16x16xf32> to vector<16x16xf32>
    %131 = tpu.concatenate %64, %86, %108, %130 in 1 : vector<16x16xf32>, vector<16x16xf32>, vector<16x16xf32>, vector<16x16xf32> -> vector<16x64xf32>
    %132 = arith.truncf %131 : vector<16x64xf32> to vector<16x64xbf16>
    %c0_36 = arith.constant 0 : index
    %c0_37 = arith.constant 0 : index
    %c0_38 = arith.constant 0 : index
    %133 = vector.load %arg24[%c0_36, %c0_37, %c0_38] : memref<1x64x64xbf16, #tpu.memory_space<vmem>>, vector<1x64x64xbf16>
    %134 = vector.shape_cast %133 : vector<1x64x64xbf16> to vector<64x64xbf16>
    %cst_39 = arith.constant dense<0.000000e+00> : vector<16x64xf32>
    %135 = tpu.matmul %132, %134, %cst_39 {dimension_numbers = #tpu.dot_dimension_numbers<[1], [0], [0], [1], [0, 0, 1, 1], [], []>} : vector<16x64xbf16>, vector<64x64xbf16>, vector<16x64xf32> -> vector<16x64xf32>
    %c0_40 = arith.constant 0 : index
    %c0_41 = arith.constant 0 : index
    %c0_42 = arith.constant 0 : index
    %136 = vector.load %arg25[%c0_40, %c0_41, %c0_42] : memref<1x1x64xf32, #tpu.memory_space<vmem>>, vector<1x1x64xf32>
    %137 = vector.shape_cast %136 : vector<1x1x64xf32> to vector<1x64xf32>
    %138 = vector.broadcast %137 : vector<1x64xf32> to vector<16x64xf32>
    %139 = arith.addf %135, %138 : vector<16x64xf32>
    %140 = arith.addf %5, %139 : vector<16x64xf32>
    %c0_43 = arith.constant 0 : index
    %c0_44 = arith.constant 0 : index
    %c0_45 = arith.constant 0 : index
    %141 = vector.load %arg26[%c0_43, %c0_44, %c0_45] : memref<1x1x64xf32, #tpu.memory_space<vmem>>, vector<1x1x64xf32>
    %142 = vector.shape_cast %141 : vector<1x1x64xf32> to vector<1x64xf32>
    %c0_46 = arith.constant 0 : index
    %c0_47 = arith.constant 0 : index
    %c0_48 = arith.constant 0 : index
    %143 = vector.load %arg27[%c0_46, %c0_47, %c0_48] : memref<1x1x64xf32, #tpu.memory_space<vmem>>, vector<1x1x64xf32>
    %144 = vector.shape_cast %143 : vector<1x1x64xf32> to vector<1x64xf32>
    %cst_49 = arith.constant dense<0.000000e+00> : vector<16xf32>
    %145 = vector.multi_reduction <add>, %140, %cst_49 [1] : vector<16x64xf32> to vector<16xf32>
    %146 = vector.shape_cast %145 : vector<16xf32> to vector<16x1xf32>
    %cst_50 = arith.constant 6.400000e+01 : f32
    %147 = vector.broadcast %cst_50 : f32 to vector<16x1xf32>
    %148 = arith.divf %146, %147 : vector<16x1xf32>
    %149 = vector.broadcast %148 : vector<16x1xf32> to vector<16x64xf32>
    %150 = arith.subf %140, %149 : vector<16x64xf32>
    %151 = arith.mulf %150, %150 : vector<16x64xf32>
    %cst_51 = arith.constant dense<0.000000e+00> : vector<16xf32>
    %152 = vector.multi_reduction <add>, %151, %cst_51 [1] : vector<16x64xf32> to vector<16xf32>
    %153 = vector.shape_cast %152 : vector<16xf32> to vector<16x1xf32>
    %cst_52 = arith.constant 6.400000e+01 : f32
    %154 = vector.broadcast %cst_52 : f32 to vector<16x1xf32>
    %155 = arith.divf %153, %154 : vector<16x1xf32>
    %156 = vector.broadcast %148 : vector<16x1xf32> to vector<16x64xf32>
    %157 = arith.subf %140, %156 : vector<16x64xf32>
    %cst_53 = arith.constant 9.99999974E-6 : f32
    %158 = vector.broadcast %cst_53 : f32 to vector<16x1xf32>
    %159 = arith.addf %155, %158 : vector<16x1xf32>
    %160 = math.rsqrt %159 : vector<16x1xf32>
    %161 = vector.broadcast %160 : vector<16x1xf32> to vector<16x64xf32>
    %162 = arith.mulf %157, %161 : vector<16x64xf32>
    %163 = vector.broadcast %142 : vector<1x64xf32> to vector<16x64xf32>
    %164 = arith.mulf %162, %163 : vector<16x64xf32>
    %165 = vector.broadcast %144 : vector<1x64xf32> to vector<16x64xf32>
    %166 = arith.addf %164, %165 : vector<16x64xf32>
    %167 = arith.truncf %166 : vector<16x64xf32> to vector<16x64xbf16>
    %c0_54 = arith.constant 0 : index
    %c0_55 = arith.constant 0 : index
    %c0_56 = arith.constant 0 : index
    %168 = vector.load %arg28[%c0_54, %c0_55, %c0_56] : memref<1x64x256xbf16, #tpu.memory_space<vmem>>, vector<1x64x256xbf16>
    %169 = vector.shape_cast %168 : vector<1x64x256xbf16> to vector<64x256xbf16>
    %cst_57 = arith.constant dense<0.000000e+00> : vector<16x256xf32>
    %170 = tpu.matmul %167, %169, %cst_57 {dimension_numbers = #tpu.dot_dimension_numbers<[1], [0], [0], [1], [0, 0, 1, 1], [], []>} : vector<16x64xbf16>, vector<64x256xbf16>, vector<16x256xf32> -> vector<16x256xf32>
    %c0_58 = arith.constant 0 : index
    %c0_59 = arith.constant 0 : index
    %c0_60 = arith.constant 0 : index
    %171 = vector.load %arg29[%c0_58, %c0_59, %c0_60] : memref<1x1x256xf32, #tpu.memory_space<vmem>>, vector<1x1x256xf32>
    %172 = vector.shape_cast %171 : vector<1x1x256xf32> to vector<1x256xf32>
    %173 = vector.broadcast %172 : vector<1x256xf32> to vector<16x256xf32>
    %174 = arith.addf %170, %173 : vector<16x256xf32>
    %cst_61 = arith.constant 5.000000e-01 : f32
    %175 = vector.broadcast %cst_61 : f32 to vector<16x256xf32>
    %176 = arith.mulf %175, %174 : vector<16x256xf32>
    %cst_62 = arith.constant 4.471500e-02 : f32
    %177 = vector.broadcast %cst_62 : f32 to vector<16x256xf32>
    %178 = arith.mulf %177, %174 : vector<16x256xf32>
    %179 = arith.mulf %178, %174 : vector<16x256xf32>
    %180 = arith.mulf %179, %174 : vector<16x256xf32>
    %181 = arith.addf %174, %180 : vector<16x256xf32>
    %cst_63 = arith.constant 0.797884583 : f32
    %182 = vector.broadcast %cst_63 : f32 to vector<16x256xf32>
    %183 = arith.mulf %182, %181 : vector<16x256xf32>
    %184 = math.tanh %183 : vector<16x256xf32>
    %cst_64 = arith.constant 1.000000e+00 : f32
    %185 = vector.broadcast %cst_64 : f32 to vector<16x256xf32>
    %186 = arith.addf %185, %184 : vector<16x256xf32>
    %187 = arith.mulf %176, %186 : vector<16x256xf32>
    %188 = arith.truncf %187 : vector<16x256xf32> to vector<16x256xbf16>
    %c0_65 = arith.constant 0 : index
    %c0_66 = arith.constant 0 : index
    %c0_67 = arith.constant 0 : index
    %189 = vector.load %arg30[%c0_65, %c0_66, %c0_67] : memref<1x256x64xbf16, #tpu.memory_space<vmem>>, vector<1x256x64xbf16>
    %190 = vector.shape_cast %189 : vector<1x256x64xbf16> to vector<256x64xbf16>
    %cst_68 = arith.constant dense<0.000000e+00> : vector<16x64xf32>
    %191 = tpu.matmul %188, %190, %cst_68 {dimension_numbers = #tpu.dot_dimension_numbers<[1], [0], [0], [1], [0, 0, 1, 1], [], []>} : vector<16x256xbf16>, vector<256x64xbf16>, vector<16x64xf32> -> vector<16x64xf32>
    %192 = arith.addf %140, %191 : vector<16x64xf32>
    %c0_69 = arith.constant 0 : index
    %c0_70 = arith.constant 0 : index
    %c0_71 = arith.constant 0 : index
    %193 = vector.load %arg31[%c0_69, %c0_70, %c0_71] : memref<1x1x64xf32, #tpu.memory_space<vmem>>, vector<1x1x64xf32>
    %194 = vector.shape_cast %193 : vector<1x1x64xf32> to vector<1x64xf32>
    %195 = vector.broadcast %194 : vector<1x64xf32> to vector<16x64xf32>
    %196 = arith.addf %192, %195 : vector<16x64xf32>
    %c0_72 = arith.constant 0 : index
    %c0_73 = arith.constant 0 : index
    %197 = vector.load %arg46[%c0_72, %c0_73] : memref<16x64xf32, #tpu.memory_space<vmem>>, vector<16x64xf32>
    tpu.vector_store %arg46[%c0_72, %c0_73], %196 {strides = array<i32>} : memref<16x64xf32, #tpu.memory_space<vmem>>, vector<16x64xf32>,
    %c1_i32 = arith.constant 1 : i32
    %198 = arith.cmpi eq, %arg1, %c1_i32 : i32
    %199 = arith.extui %198 : i1 to i32
    %c0_i32_74 = arith.constant 0 : i32
    %200 = arith.cmpi ne, %199, %c0_i32_74 : i32
    scf.if %200 {
      %c0_75 = arith.constant 0 : index
      %c0_76 = arith.constant 0 : index
      %201 = vector.load %arg32[%c0_75, %c0_76] : memref<1x64xf32, #tpu.memory_space<vmem>>, vector<1x64xf32>
      %c0_77 = arith.constant 0 : index
      %c0_78 = arith.constant 0 : index
      %202 = vector.load %arg33[%c0_77, %c0_78] : memref<1x64xf32, #tpu.memory_space<vmem>>, vector<1x64xf32>
      %cst_79 = arith.constant dense<0.000000e+00> : vector<16xf32>
      %203 = vector.multi_reduction <add>, %196, %cst_79 [1] : vector<16x64xf32> to vector<16xf32>
      %204 = vector.shape_cast %203 : vector<16xf32> to vector<16x1xf32>
      %cst_80 = arith.constant 6.400000e+01 : f32
      %205 = vector.broadcast %cst_80 : f32 to vector<16x1xf32>
      %206 = arith.divf %204, %205 : vector<16x1xf32>
      %207 = vector.broadcast %206 : vector<16x1xf32> to vector<16x64xf32>
      %208 = arith.subf %196, %207 : vector<16x64xf32>
      %209 = arith.mulf %208, %208 : vector<16x64xf32>
      %cst_81 = arith.constant dense<0.000000e+00> : vector<16xf32>
      %210 = vector.multi_reduction <add>, %209, %cst_81 [1] : vector<16x64xf32> to vector<16xf32>
      %211 = vector.shape_cast %210 : vector<16xf32> to vector<16x1xf32>
      %cst_82 = arith.constant 6.400000e+01 : f32
      %212 = vector.broadcast %cst_82 : f32 to vector<16x1xf32>
      %213 = arith.divf %211, %212 : vector<16x1xf32>
      %214 = vector.broadcast %206 : vector<16x1xf32> to vector<16x64xf32>
      %215 = arith.subf %196, %214 : vector<16x64xf32>
      %cst_83 = arith.constant 9.99999974E-6 : f32
      %216 = vector.broadcast %cst_83 : f32 to vector<16x1xf32>
      %217 = arith.addf %213, %216 : vector<16x1xf32>
      %218 = math.rsqrt %217 : vector<16x1xf32>
      %219 = vector.broadcast %218 : vector<16x1xf32> to vector<16x64xf32>
      %220 = arith.mulf %215, %219 : vector<16x64xf32>
      %221 = vector.broadcast %201 : vector<1x64xf32> to vector<16x64xf32>
      %222 = arith.mulf %220, %221 : vector<16x64xf32>
      %223 = vector.broadcast %202 : vector<1x64xf32> to vector<16x64xf32>
      %224 = arith.addf %222, %223 : vector<16x64xf32>
      %225 = vector.shape_cast %224 : vector<16x64xf32> to vector<1x16x64xf32>
      %226 = vector.extract_strided_slice %225 {offsets = [0, 0, 0], sizes = [1, 1, 64], strides = [1, 1, 1]} : vector<1x16x64xf32> to vector<1x1x64xf32>
      %227 = vector.shape_cast %226 : vector<1x1x64xf32> to vector<1x64xf32>
      %228 = tpu.iota {dimensions = array<i32: 1>} : vector<1x16x1xi32>
      %c1_i32_84 = arith.constant 1 : i32
      %229 = vector.broadcast %c1_i32_84 : i32 to vector<1x16x1xi32>
      %230 = arith.cmpi sge, %228, %229 : vector<1x16x1xi32>
      %c9_i32_85 = arith.constant 9 : i32
      %231 = vector.broadcast %c9_i32_85 : i32 to vector<1x16x1xi32>
      %232 = arith.cmpi slt, %228, %231 : vector<1x16x1xi32>
      %233 = arith.andi %230, %232 : vector<1x16x1xi1>
      %cst_86 = arith.constant -1.000000e+30 : f32
      %234 = vector.shape_cast %233 : vector<1x16x1xi1> to vector<1x16x1xi1>
      %235 = vector.broadcast %234 : vector<1x16x1xi1> to vector<1x16x64xi1>
      %236 = vector.broadcast %cst_86 : f32 to vector<1x16x64xf32>
      %237 = arith.select %235, %225, %236 : vector<1x16x64xi1>, vector<1x16x64xf32>
      %cst_87 = arith.constant dense<0xFF800000> : vector<1x64xf32>
      %238 = vector.multi_reduction <maximumf>, %237, %cst_87 [1] : vector<1x16x64xf32> to vector<1x64xf32>
      %239 = arith.truncf %227 : vector<1x64xf32> to vector<1x64xbf16>
      %c0_88 = arith.constant 0 : index
      %c0_89 = arith.constant 0 : index
      %240 = vector.load %arg34[%c0_88, %c0_89] : memref<64x256xbf16, #tpu.memory_space<vmem>>, vector<64x256xbf16>
      %cst_90 = arith.constant dense<0.000000e+00> : vector<1x256xf32>
      %241 = tpu.matmul %239, %240, %cst_90 {dimension_numbers = #tpu.dot_dimension_numbers<[1], [0], [0], [1], [0, 0, 1, 1], [], []>} : vector<1x64xbf16>, vector<64x256xbf16>, vector<1x256xf32> -> vector<1x256xf32>
      %242 = arith.truncf %238 : vector<1x64xf32> to vector<1x64xbf16>
      %c0_91 = arith.constant 0 : index
      %c0_92 = arith.constant 0 : index
      %243 = vector.load %arg35[%c0_91, %c0_92] : memref<64x256xbf16, #tpu.memory_space<vmem>>, vector<64x256xbf16>
      %cst_93 = arith.constant dense<0.000000e+00> : vector<1x256xf32>
      %244 = tpu.matmul %242, %243, %cst_93 {dimension_numbers = #tpu.dot_dimension_numbers<[1], [0], [0], [1], [0, 0, 1, 1], [], []>} : vector<1x64xbf16>, vector<64x256xbf16>, vector<1x256xf32> -> vector<1x256xf32>
      %245 = arith.addf %241, %244 : vector<1x256xf32>
      %c0_94 = arith.constant 0 : index
      %c0_95 = arith.constant 0 : index
      %246 = vector.load %arg36[%c0_94, %c0_95] : memref<1x256xf32, #tpu.memory_space<vmem>>, vector<1x256xf32>
      %247 = arith.addf %245, %246 : vector<1x256xf32>
      %c0_96 = arith.constant 0 : index
      %c0_97 = arith.constant 0 : index
      %248 = vector.load %arg37[%c0_96, %c0_97] : memref<1x256xf32, #tpu.memory_space<vmem>>, vector<1x256xf32>
      %249 = arith.mulf %247, %248 : vector<1x256xf32>
      %c0_98 = arith.constant 0 : index
      %c0_99 = arith.constant 0 : index
      %250 = vector.load %arg38[%c0_98, %c0_99] : memref<1x256xf32, #tpu.memory_space<vmem>>, vector<1x256xf32>
      %251 = arith.addf %249, %250 : vector<1x256xf32>
      %cst_100 = arith.constant 0.000000e+00 : f32
      %252 = vector.broadcast %cst_100 : f32 to vector<1x256xf32>
      %253 = arith.maximumf %251, %252 : vector<1x256xf32>
      %254 = arith.truncf %253 : vector<1x256xf32> to vector<1x256xbf16>
      %c0_101 = arith.constant 0 : index
      %c0_102 = arith.constant 0 : index
      %255 = vector.load %arg39[%c0_101, %c0_102] : memref<256x256xbf16, #tpu.memory_space<vmem>>, vector<256x256xbf16>
      %cst_103 = arith.constant dense<0.000000e+00> : vector<1x256xf32>
      %256 = tpu.matmul %254, %255, %cst_103 {dimension_numbers = #tpu.dot_dimension_numbers<[1], [0], [0], [1], [0, 0, 1, 1], [], []>} : vector<1x256xbf16>, vector<256x256xbf16>, vector<1x256xf32> -> vector<1x256xf32>
      %c0_104 = arith.constant 0 : index
      %c0_105 = arith.constant 0 : index
      %257 = vector.load %arg40[%c0_104, %c0_105] : memref<1x256xf32, #tpu.memory_space<vmem>>, vector<1x256xf32>
      %258 = arith.addf %256, %257 : vector<1x256xf32>
      %c0_106 = arith.constant 0 : index
      %c0_107 = arith.constant 0 : index
      %259 = vector.load %arg41[%c0_106, %c0_107] : memref<1x256xf32, #tpu.memory_space<vmem>>, vector<1x256xf32>
      %260 = arith.mulf %258, %259 : vector<1x256xf32>
      %c0_108 = arith.constant 0 : index
      %c0_109 = arith.constant 0 : index
      %261 = vector.load %arg42[%c0_108, %c0_109] : memref<1x256xf32, #tpu.memory_space<vmem>>, vector<1x256xf32>
      %262 = arith.addf %260, %261 : vector<1x256xf32>
      %cst_110 = arith.constant 0.000000e+00 : f32
      %263 = vector.broadcast %cst_110 : f32 to vector<1x256xf32>
      %264 = arith.maximumf %262, %263 : vector<1x256xf32>
      %265 = arith.truncf %264 : vector<1x256xf32> to vector<1x256xbf16>
      %c0_111 = arith.constant 0 : index
      %c0_112 = arith.constant 0 : index
      %266 = vector.load %arg43[%c0_111, %c0_112] : memref<256x10xbf16, #tpu.memory_space<vmem>>, vector<256x10xbf16>
      %cst_113 = arith.constant dense<0.000000e+00> : vector<1x10xf32>
      %267 = tpu.matmul %265, %266, %cst_113 {dimension_numbers = #tpu.dot_dimension_numbers<[1], [0], [0], [1], [0, 0, 1, 1], [], []>} : vector<1x256xbf16>, vector<256x10xbf16>, vector<1x10xf32> -> vector<1x10xf32>
      %c0_114 = arith.constant 0 : index
      %c0_115 = arith.constant 0 : index
      %268 = vector.load %arg44[%c0_114, %c0_115] : memref<1x10xf32, #tpu.memory_space<vmem>>, vector<1x10xf32>
      %269 = arith.addf %267, %268 : vector<1x10xf32>
      %c0_116 = arith.constant 0 : index
      %c0_117 = arith.constant 0 : index
      %c0_118 = arith.constant 0 : index
      %270 = vector.load %arg45[%c0_116, %c0_117, %c0_118] : memref<1x1x10xf32, #tpu.memory_space<vmem>>, vector<1x1x10xf32>
      %271 = vector.shape_cast %270 : vector<1x1x10xf32> to vector<1x10xf32>
      %272 = vector.shape_cast %269 : vector<1x10xf32> to vector<1x1x10xf32>
      tpu.vector_store %arg45[%c0_116, %c0_117, %c0_118], %272 {strides = array<i32>} : memref<1x1x10xf32, #tpu.memory_space<vmem>>, vector<1x1x10xf32>,
    } else {
    }
    return
  }
  func.func @transform_0(%arg0: i32, %arg1: i32) -> (i32, i32, i32) {
    %c0_i32 = arith.constant 0 : i32
    %c0_i32_0 = arith.constant 0 : i32
    %c0_i32_1 = arith.constant 0 : i32
    return %arg0, %c0_i32, %c0_i32_0 : i32, i32, i32
  }
  func.func @transform_1(%arg0: i32, %arg1: i32) -> (i32, i32, i32) {
    %c0_i32 = arith.constant 0 : i32
    %c0_i32_0 = arith.constant 0 : i32
    %c0_i32_1 = arith.constant 0 : i32
    return %arg0, %c0_i32, %c0_i32_0 : i32, i32, i32
  }
  func.func @transform_2(%arg0: i32, %arg1: i32) -> (i32, i32) {
    %c0_i32 = arith.constant 0 : i32
    %c0_i32_0 = arith.constant 0 : i32
    %c0_i32_1 = arith.constant 0 : i32
    return %c0_i32, %c0_i32_0 : i32, i32
  }
  func.func @transform_3(%arg0: i32, %arg1: i32) -> (i32, i32) {
    %c0_i32 = arith.constant 0 : i32
    %c0_i32_0 = arith.constant 0 : i32
    %c0_i32_1 = arith.constant 0 : i32
    return %c0_i32, %c0_i32_0 : i32, i32
  }
  func.func @transform_4(%arg0: i32, %arg1: i32) -> (i32, i32) {
    %c0_i32 = arith.constant 0 : i32
    %c0_i32_0 = arith.constant 0 : i32
    %c0_i32_1 = arith.constant 0 : i32
    return %c0_i32, %c0_i32_0 : i32, i32
  }
  func.func @transform_5(%arg0: i32, %arg1: i32) -> (i32, i32) {
    %c0_i32 = arith.constant 0 : i32
    %c0_i32_0 = arith.constant 0 : i32
    %c0_i32_1 = arith.constant 0 : i32
    return %c0_i32, %c0_i32_0 : i32, i32
  }
  func.func @transform_6(%arg0: i32, %arg1: i32) -> (i32, i32) {
    %c0_i32 = arith.constant 0 : i32
    %c0_i32_0 = arith.constant 0 : i32
    %c0_i32_1 = arith.constant 0 : i32
    return %c0_i32, %c0_i32_0 : i32, i32
  }
  func.func @transform_7(%arg0: i32, %arg1: i32) -> (i32, i32) {
    %c0_i32 = arith.constant 0 : i32
    %c0_i32_0 = arith.constant 0 : i32
    %c0_i32_1 = arith.constant 0 : i32
    return %c0_i32, %c0_i32_0 : i32, i32
  }
  func.func @transform_8(%arg0: i32, %arg1: i32) -> (i32, i32) {
    %c0_i32 = arith.constant 0 : i32
    %c0_i32_0 = arith.constant 0 : i32
    %c0_i32_1 = arith.constant 0 : i32
    return %c0_i32, %c0_i32_0 : i32, i32
  }
  func.func @transform_9(%arg0: i32, %arg1: i32) -> (i32, i32) {
    %c0_i32 = arith.constant 0 : i32
    %c0_i32_0 = arith.constant 0 : i32
    %c0_i32_1 = arith.constant 0 : i32
    return %c0_i32, %c0_i32_0 : i32, i32
  }
  func.func @transform_10(%arg0: i32, %arg1: i32) -> (i32, i32) {
    %c0_i32 = arith.constant 0 : i32
    %c0_i32_0 = arith.constant 0 : i32
    %c0_i32_1 = arith.constant 0 : i32
    return %c0_i32, %c0_i32_0 : i32, i32
  }
  func.func @transform_11(%arg0: i32, %arg1: i32) -> (i32, i32) {
    %c0_i32 = arith.constant 0 : i32
    %c0_i32_0 = arith.constant 0 : i32
    %c0_i32_1 = arith.constant 0 : i32
    return %c0_i32, %c0_i32_0 : i32, i32
  }
  func.func @transform_12(%arg0: i32, %arg1: i32) -> (i32, i32) {
    %c0_i32 = arith.constant 0 : i32
    %c0_i32_0 = arith.constant 0 : i32
    %c0_i32_1 = arith.constant 0 : i32
    return %c0_i32, %c0_i32_0 : i32, i32
  }
  func.func @transform_13(%arg0: i32, %arg1: i32) -> (i32, i32) {
    %c0_i32 = arith.constant 0 : i32
    %c0_i32_0 = arith.constant 0 : i32
    %c0_i32_1 = arith.constant 0 : i32
    return %c0_i32, %c0_i32_0 : i32, i32
  }
  func.func @transform_14(%arg0: i32, %arg1: i32) -> (i32, i32) {
    %c0_i32 = arith.constant 0 : i32
    %c0_i32_0 = arith.constant 0 : i32
    %c0_i32_1 = arith.constant 0 : i32
    return %c0_i32, %c0_i32_0 : i32, i32
  }
  func.func @transform_15(%arg0: i32, %arg1: i32) -> (i32, i32) {
    %c0_i32 = arith.constant 0 : i32
    %c0_i32_0 = arith.constant 0 : i32
    %c0_i32_1 = arith.constant 0 : i32
    return %c0_i32, %c0_i32_0 : i32, i32
  }
  func.func @transform_16(%arg0: i32, %arg1: i32) -> (i32, i32) {
    %c0_i32 = arith.constant 0 : i32
    %c0_i32_0 = arith.constant 0 : i32
    %c0_i32_1 = arith.constant 0 : i32
    return %c0_i32, %c0_i32_0 : i32, i32
  }
  func.func @transform_17(%arg0: i32, %arg1: i32) -> (i32, i32) {
    %c0_i32 = arith.constant 0 : i32
    %c0_i32_0 = arith.constant 0 : i32
    %c0_i32_1 = arith.constant 0 : i32
    return %c0_i32, %c0_i32_0 : i32, i32
  }
  func.func @transform_18(%arg0: i32, %arg1: i32) -> (i32, i32) {
    %c0_i32 = arith.constant 0 : i32
    %c0_i32_0 = arith.constant 0 : i32
    %c0_i32_1 = arith.constant 0 : i32
    return %c0_i32, %c0_i32_0 : i32, i32
  }
  func.func @transform_19(%arg0: i32, %arg1: i32) -> (i32, i32, i32) {
    %c0_i32 = arith.constant 0 : i32
    %c0_i32_0 = arith.constant 0 : i32
    %c0_i32_1 = arith.constant 0 : i32
    return %arg1, %c0_i32, %c0_i32_0 : i32, i32, i32
  }
  func.func @transform_20(%arg0: i32, %arg1: i32) -> (i32, i32, i32) {
    %c0_i32 = arith.constant 0 : i32
    %c0_i32_0 = arith.constant 0 : i32
    %c0_i32_1 = arith.constant 0 : i32
    return %arg1, %c0_i32, %c0_i32_0 : i32, i32, i32
  }
  func.func @transform_21(%arg0: i32, %arg1: i32) -> (i32, i32, i32) {
    %c0_i32 = arith.constant 0 : i32
    %c0_i32_0 = arith.constant 0 : i32
    %c0_i32_1 = arith.constant 0 : i32
    return %arg1, %c0_i32, %c0_i32_0 : i32, i32, i32
  }
  func.func @transform_22(%arg0: i32, %arg1: i32) -> (i32, i32, i32) {
    %c0_i32 = arith.constant 0 : i32
    %c0_i32_0 = arith.constant 0 : i32
    %c0_i32_1 = arith.constant 0 : i32
    return %arg1, %c0_i32, %c0_i32_0 : i32, i32, i32
  }
  func.func @transform_23(%arg0: i32, %arg1: i32) -> (i32, i32, i32) {
    %c0_i32 = arith.constant 0 : i32
    %c0_i32_0 = arith.constant 0 : i32
    %c0_i32_1 = arith.constant 0 : i32
    return %arg1, %c0_i32, %c0_i32_0 : i32, i32, i32
  }
  func.func @transform_24(%arg0: i32, %arg1: i32) -> (i32, i32, i32) {
    %c0_i32 = arith.constant 0 : i32
    %c0_i32_0 = arith.constant 0 : i32
    %c0_i32_1 = arith.constant 0 : i32
    return %arg1, %c0_i32, %c0_i32_0 : i32, i32, i32
  }
  func.func @transform_25(%arg0: i32, %arg1: i32) -> (i32, i32, i32) {
    %c0_i32 = arith.constant 0 : i32
    %c0_i32_0 = arith.constant 0 : i32
    %c0_i32_1 = arith.constant 0 : i32
    return %arg1, %c0_i32, %c0_i32_0 : i32, i32, i32
  }
  func.func @transform_26(%arg0: i32, %arg1: i32) -> (i32, i32, i32) {
    %c0_i32 = arith.constant 0 : i32
    %c0_i32_0 = arith.constant 0 : i32
    %c0_i32_1 = arith.constant 0 : i32
    return %arg1, %c0_i32, %c0_i32_0 : i32, i32, i32
  }
  func.func @transform_27(%arg0: i32, %arg1: i32) -> (i32, i32, i32) {
    %c0_i32 = arith.constant 0 : i32
    %c0_i32_0 = arith.constant 0 : i32
    %c0_i32_1 = arith.constant 0 : i32
    return %arg1, %c0_i32, %c0_i32_0 : i32, i32, i32
  }
  func.func @transform_28(%arg0: i32, %arg1: i32) -> (i32, i32, i32) {
    %c0_i32 = arith.constant 0 : i32
    %c0_i32_0 = arith.constant 0 : i32
    %c0_i32_1 = arith.constant 0 : i32
    return %arg1, %c0_i32, %c0_i32_0 : i32, i32, i32
  }
  func.func @transform_29(%arg0: i32, %arg1: i32) -> (i32, i32, i32) {
    %c0_i32 = arith.constant 0 : i32
    %c0_i32_0 = arith.constant 0 : i32
    %c0_i32_1 = arith.constant 0 : i32
    return %arg1, %c0_i32, %c0_i32_0 : i32, i32, i32
  }
  func.func @transform_30(%arg0: i32, %arg1: i32) -> (i32, i32) {
    %c0_i32 = arith.constant 0 : i32
    %c0_i32_0 = arith.constant 0 : i32
    %c0_i32_1 = arith.constant 0 : i32
    return %c0_i32, %c0_i32_0 : i32, i32
  }
  func.func @transform_31(%arg0: i32, %arg1: i32) -> (i32, i32) {
    %c0_i32 = arith.constant 0 : i32
    %c0_i32_0 = arith.constant 0 : i32
    %c0_i32_1 = arith.constant 0 : i32
    return %c0_i32, %c0_i32_0 : i32, i32
  }
  func.func @transform_32(%arg0: i32, %arg1: i32) -> (i32, i32) {
    %c0_i32 = arith.constant 0 : i32
    %c0_i32_0 = arith.constant 0 : i32
    %c0_i32_1 = arith.constant 0 : i32
    return %c0_i32, %c0_i32_0 : i32, i32
  }
  func.func @transform_33(%arg0: i32, %arg1: i32) -> (i32, i32) {
    %c0_i32 = arith.constant 0 : i32
    %c0_i32_0 = arith.constant 0 : i32
    %c0_i32_1 = arith.constant 0 : i32
    return %c0_i32, %c0_i32_0 : i32, i32
  }
  func.func @transform_34(%arg0: i32, %arg1: i32) -> (i32, i32) {
    %c0_i32 = arith.constant 0 : i32
    %c0_i32_0 = arith.constant 0 : i32
    %c0_i32_1 = arith.constant 0 : i32
    return %c0_i32, %c0_i32_0 : i32, i32
  }
  func.func @transform_35(%arg0: i32, %arg1: i32) -> (i32, i32) {
    %c0_i32 = arith.constant 0 : i32
    %c0_i32_0 = arith.constant 0 : i32
    %c0_i32_1 = arith.constant 0 : i32
    return %c0_i32, %c0_i32_0 : i32, i32
  }
  func.func @transform_36(%arg0: i32, %arg1: i32) -> (i32, i32) {
    %c0_i32 = arith.constant 0 : i32
    %c0_i32_0 = arith.constant 0 : i32
    %c0_i32_1 = arith.constant 0 : i32
    return %c0_i32, %c0_i32_0 : i32, i32
  }
  func.func @transform_37(%arg0: i32, %arg1: i32) -> (i32, i32) {
    %c0_i32 = arith.constant 0 : i32
    %c0_i32_0 = arith.constant 0 : i32
    %c0_i32_1 = arith.constant 0 : i32
    return %c0_i32, %c0_i32_0 : i32, i32
  }
  func.func @transform_38(%arg0: i32, %arg1: i32) -> (i32, i32) {
    %c0_i32 = arith.constant 0 : i32
    %c0_i32_0 = arith.constant 0 : i32
    %c0_i32_1 = arith.constant 0 : i32
    return %c0_i32, %c0_i32_0 : i32, i32
  }
  func.func @transform_39(%arg0: i32, %arg1: i32) -> (i32, i32) {
    %c0_i32 = arith.constant 0 : i32
    %c0_i32_0 = arith.constant 0 : i32
    %c0_i32_1 = arith.constant 0 : i32
    return %c0_i32, %c0_i32_0 : i32, i32
  }
  func.func @transform_40(%arg0: i32, %arg1: i32) -> (i32, i32) {
    %c0_i32 = arith.constant 0 : i32
    %c0_i32_0 = arith.constant 0 : i32
    %c0_i32_1 = arith.constant 0 : i32
    return %c0_i32, %c0_i32_0 : i32, i32
  }
  func.func @transform_41(%arg0: i32, %arg1: i32) -> (i32, i32) {
    %c0_i32 = arith.constant 0 : i32
    %c0_i32_0 = arith.constant 0 : i32
    %c0_i32_1 = arith.constant 0 : i32
    return %c0_i32, %c0_i32_0 : i32, i32
  }
  func.func @transform_42(%arg0: i32, %arg1: i32) -> (i32, i32) {
    %c0_i32 = arith.constant 0 : i32
    %c0_i32_0 = arith.constant 0 : i32
    %c0_i32_1 = arith.constant 0 : i32
    return %c0_i32, %c0_i32_0 : i32, i32
  }
  func.func @transform_43(%arg0: i32, %arg1: i32) -> (i32, i32, i32) {
    %c0_i32 = arith.constant 0 : i32
    %c0_i32_0 = arith.constant 0 : i32
    %c0_i32_1 = arith.constant 0 : i32
    return %arg0, %c0_i32, %c0_i32_0 : i32, i32, i32
  }
}

</mosaic_0001>

<llo_original>
// kernel: point_transformer_forward.1
$region0: #{point_transformer_forward.1}
  #allocation0 [shape = 'u32[]', space=smem, size = 0x4, offset = 0x4, fixed_abs, tag = 'smem constant byte address 0x4 - core index']
  #allocation1 [shape = 'u32[144,128]{1,0:T(1,128)}', space=vmem, size = 0x12000, scoped, tag = 'internal scratch']
  #allocation2 [shape = 'f32[16,64]{1,0:T(8,128)}', space=vmem, size = 0x2000, scoped, tag = 'scratch operand']
  #allocation3 [shape = 'f32[16,64]{1,0:T(8,128)}', space=vmem, size = 0x2000, scoped, tag = 'scratch operand']
  %s0 = inlined_call_operand.smem [shape: u32[44], index: -1, kind: input, shape index: {}]
  %s1 = sld [smem:[%s0]]
  %s2 = scalar_lea.smem %s0, 1
  %s3 = sld [smem:[%s2]]
  %s4 = scalar_lea.smem %s0, 2
  %s5 = sld [smem:[%s4]]
  %s6 = scalar_lea.smem %s0, 3
  %s7 = sld [smem:[%s6]]
  %s8 = scalar_lea.smem %s0, 4
  %s9 = sld [smem:[%s8]]
  %s10 = scalar_lea.smem %s0, 5
  %s11 = sld [smem:[%s10]]
  %s12 = scalar_lea.smem %s0, 6
  %s13 = sld [smem:[%s12]]
  %s14 = scalar_lea.smem %s0, 7
  %s15 = sld [smem:[%s14]]
  %s16 = scalar_lea.smem %s0, 8
  %s17 = sld [smem:[%s16]]
  %s18 = scalar_lea.smem %s0, 9
  %s19 = sld [smem:[%s18]]
  %s20 = scalar_lea.smem %s0, 10
  %s21 = sld [smem:[%s20]]
  %s22 = scalar_lea.smem %s0, 11
  %s23 = sld [smem:[%s22]]
  %s24 = scalar_lea.smem %s0, 12
  %s25 = sld [smem:[%s24]]
  %s26 = scalar_lea.smem %s0, 13
  %s27 = sld [smem:[%s26]]
  %s28 = scalar_lea.smem %s0, 14
  %s29 = sld [smem:[%s28]]
  %s30 = scalar_lea.smem %s0, 15
  %s31 = sld [smem:[%s30]]
  %s32 = scalar_lea.smem %s0, 16
  %s33 = sld [smem:[%s32]]
  %s34 = scalar_lea.smem %s0, 17
  %s35 = sld [smem:[%s34]]
  %s36 = scalar_lea.smem %s0, 18
  %s37 = sld [smem:[%s36]]
  %s38 = scalar_lea.smem %s0, 19
  %s39 = sld [smem:[%s38]]
  %s40 = scalar_lea.smem %s0, 20
  %s41 = sld [smem:[%s40]]
  %s42 = scalar_lea.smem %s0, 21
  %s43 = sld [smem:[%s42]]
  %s44 = scalar_lea.smem %s0, 22
  %s45 = sld [smem:[%s44]]
  %s46 = scalar_lea.smem %s0, 23
  %s47 = sld [smem:[%s46]]
  %s48 = scalar_lea.smem %s0, 24
  %s49 = sld [smem:[%s48]]
  %s50 = scalar_lea.smem %s0, 25
  %s51 = sld [smem:[%s50]]
  %s52 = scalar_lea.smem %s0, 26
  %s53 = sld [smem:[%s52]]
  %s54 = scalar_lea.smem %s0, 27
  %s55 = sld [smem:[%s54]]
  %s56 = scalar_lea.smem %s0, 28
  %s57 = sld [smem:[%s56]]
  %s58 = scalar_lea.smem %s0, 29
  %s59 = sld [smem:[%s58]]
  %s60 = scalar_lea.smem %s0, 30
  %s61 = sld [smem:[%s60]]
  %s62 = scalar_lea.smem %s0, 31
  %s63 = sld [smem:[%s62]]
  %s64 = scalar_lea.smem %s0, 32
  %s65 = sld [smem:[%s64]]
  %s66 = scalar_lea.smem %s0, 33
  %s67 = sld [smem:[%s66]]
  %s68 = scalar_lea.smem %s0, 34
  %s69 = sld [smem:[%s68]]
  %s70 = scalar_lea.smem %s0, 35
  %s71 = sld [smem:[%s70]]
  %s72 = scalar_lea.smem %s0, 36
  %s73 = sld [smem:[%s72]]
  %s74 = scalar_lea.smem %s0, 37
  %s75 = sld [smem:[%s74]]
  %s76 = scalar_lea.smem %s0, 38
  %s77 = sld [smem:[%s76]]
  %s78 = scalar_lea.smem %s0, 39
  %s79 = sld [smem:[%s78]]
  %s80 = scalar_lea.smem %s0, 40
  %s81 = sld [smem:[%s80]]
  %s82 = scalar_lea.smem %s0, 41
  %s83 = sld [smem:[%s82]]
  %s84 = scalar_lea.smem %s0, 42
  %s85 = sld [smem:[%s84]]
  %s86 = scalar_lea.smem %s0, 43
  %s87 = sld [smem:[%s86]]
  %s88 = sld [smem:[#allocation0]]
  $region309: #{point_transformer_forward.1} parent=0
    _
  %s90 = ssub.s32 1, %s88
  %s91 = scalar_select 0, %s90, %s88
  $region1: #{point_transformer_forward.1} parent=0
    #allocation4 [shape = 'u8[4096]{0}', space=vmem, size = 0x1000, scoped, tag = 'input window, operand 13, single buffered']
    #allocation5 [shape = 's32[2]{0}', space=sflag, size = 0x8, scoped, tag = 'scoped memory for point_transformer_forward.1']
    #allocation6 [shape = 's32[2]{0}', space=sflag, size = 0x8, scoped, tag = 'scoped memory for point_transformer_forward.1']
    #allocation7 [shape = 'u8[512]{0}', space=vmem, size = 0x400, scoped, tag = 'input window, operand 14, single buffered']
    #allocation8 [shape = 's32[1]{0}', space=sflag, size = 0x4, scoped, tag = 'scoped memory for point_transformer_forward.1']
    #allocation9 [shape = 'u8[512]{0}', space=vmem, size = 0x400, scoped, tag = 'input window, operand 16, single buffered']
    #allocation10 [shape = 'u8[512]{0}', space=vmem, size = 0x400, scoped, tag = 'input window, operand 17, single buffered']
    #allocation11 [shape = 's32[1]{0}', space=sflag, size = 0x4, scoped, tag = 'scoped memory for point_transformer_forward.1']
    #allocation12 [shape = 'u8[512]{0}', space=vmem, size = 0x400, scoped, tag = 'input window, operand 18, single buffered']
    #allocation13 [shape = 'u8[1024]{0}', space=vmem, size = 0x400, scoped, tag = 'input window, operand 19']
    #allocation14 [shape = 's32[2]{0}', space=sflag, size = 0x8, scoped, tag = 'scoped memory for point_transformer_forward.1']
    #allocation15 [shape = 'u8[1024]{0}', space=vmem, size = 0x400, scoped, tag = 'input window, operand 20']
    #allocation16 [shape = 'u8[32768]{0}', space=vmem, size = 0x8000, scoped, tag = 'input window, operand 22']
    #allocation17 [shape = 's32[2]{0}', space=sflag, size = 0x8, scoped, tag = 'scoped memory for point_transformer_forward.1']
    #allocation18 [shape = 'u8[1024]{0}', space=vmem, size = 0x400, scoped, tag = 'input window, operand 23']
    #allocation19 [shape = 'u8[1024]{0}', space=vmem, size = 0x400, scoped, tag = 'input window, operand 24']
    #allocation20 [shape = 's32[2]{0}', space=sflag, size = 0x8, scoped, tag = 'scoped memory for point_transformer_forward.1']
    #allocation21 [shape = 'u8[1024]{0}', space=vmem, size = 0x400, scoped, tag = 'input window, operand 25']
    #allocation22 [shape = 'u8[2048]{0}', space=vmem, size = 0x800, scoped, tag = 'input window, operand 27']
    #allocation23 [shape = 's32[2]{0}', space=sflag, size = 0x8, scoped, tag = 'scoped memory for point_transformer_forward.1']
    #allocation24 [shape = 'u8[1024]{0}', space=vmem, size = 0x400, scoped, tag = 'input window, operand 29']
    #allocation25 [shape = 'u8[512]{0}', space=vmem, size = 0x400, scoped, tag = 'input window, operand 30, single buffered']
    #allocation26 [shape = 's32[1]{0}', space=sflag, size = 0x4, scoped, tag = 'scoped memory for point_transformer_forward.1']
    #allocation27 [shape = 'u8[512]{0}', space=vmem, size = 0x400, scoped, tag = 'input window, operand 31, single buffered']
    #allocation28 [shape = 'u8[32768]{0}', space=vmem, size = 0x8000, scoped, tag = 'input window, operand 32, single buffered']
    #allocation29 [shape = 's32[1]{0}', space=sflag, size = 0x4, scoped, tag = 'scoped memory for point_transformer_forward.1']
    #allocation30 [shape = 'u8[32768]{0}', space=vmem, size = 0x8000, scoped, tag = 'input window, operand 33, single buffered']
    #allocation31 [shape = 'u8[1024]{0}', space=vmem, size = 0x400, scoped, tag = 'input window, operand 34, single buffered']
    #allocation32 [shape = 's32[1]{0}', space=sflag, size = 0x4, scoped, tag = 'scoped memory for point_transformer_forward.1']
    #allocation33 [shape = 'u8[1024]{0}', space=vmem, size = 0x400, scoped, tag = 'input window, operand 35, single buffered']
    #allocation34 [shape = 'u8[1024]{0}', space=vmem, size = 0x400, scoped, tag = 'input window, operand 36, single buffered']
    #allocation35 [shape = 's32[1]{0}', space=sflag, size = 0x4, scoped, tag = 'scoped memory for point_transformer_forward.1']
    #allocation36 [shape = 'u8[1024]{0}', space=vmem, size = 0x400, scoped, tag = 'input window, operand 38, single buffered']
    #allocation37 [shape = 'u8[1024]{0}', space=vmem, size = 0x400, scoped, tag = 'input window, operand 39, single buffered']
    #allocation38 [shape = 's32[1]{0}', space=sflag, size = 0x4, scoped, tag = 'scoped memory for point_transformer_forward.1']
    #allocation39 [shape = 'u8[1024]{0}', space=vmem, size = 0x400, scoped, tag = 'input window, operand 40, single buffered']
    #allocation40 [shape = 'u8[512]{0}', space=vmem, size = 0x400, scoped, tag = 'input window, operand 42, single buffered']
    #allocation41 [shape = 's32[1]{0}', space=sflag, size = 0x4, scoped, tag = 'scoped memory for point_transformer_forward.1']
    #allocation42 [shape = 'u8[1024]{0}', space=vmem, size = 0x400, scoped, tag = 'output window, operand 0']
    %92 = vsyncpa [#allocation5], 0
    %93 = vsyncpa [#allocation8], 0
    %94 = vsyncpa [#allocation11], 0
    %95 = vsyncpa [#allocation14], 0
    %s96 = scalar_lea.sflag [#allocation14], 1
    %97 = vsyncpa %s96, 0
    %98 = vsyncpa [#allocation17], 0
    %s99 = scalar_lea.sflag [#allocation17], 1
    %100 = vsyncpa %s99, 0
    %101 = vsyncpa [#allocation20], 0
    %s102 = scalar_lea.sflag [#allocation20], 1
    %103 = vsyncpa %s102, 0
    %104 = vsyncpa [#allocation23], 0
    %s105 = scalar_lea.sflag [#allocation23], 1
    %106 = vsyncpa %s105, 0
    %107 = vsyncpa [#allocation26], 0
    %108 = vsyncpa [#allocation29], 0
    %109 = vsyncpa [#allocation32], 0
    %110 = vsyncpa [#allocation35], 0
    %111 = vsyncpa [#allocation38], 0
    %112 = vsyncpa [#allocation41], 0
    %113 = vsyncpa [#allocation6], 0
    %s114 = scalar_lea.sflag [#allocation6], 1
    %115 = vsyncpa %s114, 0
    loop: start=0, step=1, limit=6
    $region2: #{point_transformer_forward.1} parent=1 // loop_pre_header
      _
    $region3: #{point_transformer_forward.1} parent=1 // loop_header
      %s117 = sphi 0, %s121
      %p118 = scmp.ge.s32.totalorder %s117, 6
      %s124 = sphi 0, %s136
      %s125 = sphi 0, %s132
      %s126 = sphi 0, %s124
      %s127 = sphi 0, %s125
      %s128 = sphi 0, %s126
      %s129 = sphi 0, %s127
      %s139 = sphi 0, %s141
      %s142 = sphi 0, %s139
      %s143 = sphi 0, %s142
      %s159 = sphi 0, %s143
      %s165 = sphi 0, %s167
      %s168 = sphi 0, %s165
      %s169 = sphi 0, %s168
      %s185 = sphi 0, %s169
      %s189 = sphi 0, %s189
      %s191 = sphi 0, %s189
      %s192 = sphi 0, %s191
      %s206 = sphi 0, %s192
      %s210 = sphi 0, %s210
      %s212 = sphi 0, %s210
      %s213 = sphi 0, %s212
      %s227 = sphi 0, %s213
      %s231 = sphi 0, %s231
      %s233 = sphi 0, %s231
      %s234 = sphi 0, %s233
      %s248 = sphi 0, %s234
      %s252 = sphi 0, %s252
      %s254 = sphi 0, %s252
      %s255 = sphi 0, %s254
      %s269 = sphi 0, %s255
      %s273 = sphi 0, %s273
      %s275 = sphi 0, %s273
      %s276 = sphi 0, %s275
      %s290 = sphi 0, %s276
      %s294 = sphi 0, %s294
      %s296 = sphi 0, %s294
      %s297 = sphi 0, %s296
      %s311 = sphi 0, %s297
      %s315 = sphi 0, %s315
      %s317 = sphi 0, %s315
      %s318 = sphi 0, %s317
      %s332 = sphi 0, %s318
      %s336 = sphi 0, %s336
      %s338 = sphi 0, %s336
      %s339 = sphi 0, %s338
      %s353 = sphi 0, %s339
      %s357 = sphi 0, %s357
      %s359 = sphi 0, %s357
      %s360 = sphi 0, %s359
      %s374 = sphi 0, %s360
      %s378 = sphi 0, %s378
      %s380 = sphi 0, %s378
      %s381 = sphi 0, %s380
      %s395 = sphi 0, %s381
      %s399 = sphi 0, %s399
      %s401 = sphi 0, %s399
      %s402 = sphi 0, %s401
      %s416 = sphi 0, %s402
      %s420 = sphi 0, %s420
      %s422 = sphi 0, %s420
      %s423 = sphi 0, %s422
      %s437 = sphi 0, %s423
      %s441 = sphi 0, %s441
      %s443 = sphi 0, %s441
      %s444 = sphi 0, %s443
      %s458 = sphi 0, %s444
      %s462 = sphi 0, %s462
      %s464 = sphi 0, %s462
      %s465 = sphi 0, %s464
      %s479 = sphi 0, %s465
      %s483 = sphi 0, %s483
      %s485 = sphi 0, %s483
      %s486 = sphi 0, %s485
      %s500 = sphi 0, %s486
      %s504 = sphi 0, %s504
      %s506 = sphi 0, %s504
      %s507 = sphi 0, %s506
      %s521 = sphi 0, %s507
      %s525 = sphi 0, %s525
      %s527 = sphi 0, %s525
      %s528 = sphi 0, %s527
      %s542 = sphi 0, %s528
      %s548 = sphi 0, %s550
      %s551 = sphi 0, %s548
      %s552 = sphi 0, %s551
      %s568 = sphi 0, %s552
      %s574 = sphi 0, %s576
      %s577 = sphi 0, %s574
      %s578 = sphi 0, %s577
      %s594 = sphi 0, %s578
      %s600 = sphi 0, %s602
      %s603 = sphi 0, %s600
      %s604 = sphi 0, %s603
      %s620 = sphi 0, %s604
      %s626 = sphi 0, %s628
      %s629 = sphi 0, %s626
      %s630 = sphi 0, %s629
      %s646 = sphi 0, %s630
      %s652 = sphi 0, %s654
      %s655 = sphi 0, %s652
      %s656 = sphi 0, %s655
      %s672 = sphi 0, %s656
      %s678 = sphi 0, %s680
      %s681 = sphi 0, %s678
      %s682 = sphi 0, %s681
      %s698 = sphi 0, %s682
      %s704 = sphi 0, %s706
      %s707 = sphi 0, %s704
      %s708 = sphi 0, %s707
      %s724 = sphi 0, %s708
      %s730 = sphi 0, %s732
      %s733 = sphi 0, %s730
      %s734 = sphi 0, %s733
      %s750 = sphi 0, %s734
      %s756 = sphi 0, %s758
      %s759 = sphi 0, %s756
      %s760 = sphi 0, %s759
      %s776 = sphi 0, %s760
      %s782 = sphi 0, %s784
      %s785 = sphi 0, %s782
      %s786 = sphi 0, %s785
      %s802 = sphi 0, %s786
      %s808 = sphi 0, %s810
      %s811 = sphi 0, %s808
      %s812 = sphi 0, %s811
      %s828 = sphi 0, %s812
      %s832 = sphi 0, %s832
      %s834 = sphi 0, %s832
      %s835 = sphi 0, %s834
      %s849 = sphi 0, %s835
      %s853 = sphi 0, %s853
      %s855 = sphi 0, %s853
      %s856 = sphi 0, %s855
      %s870 = sphi 0, %s856
      %s874 = sphi 0, %s874
      %s876 = sphi 0, %s874
      %s877 = sphi 0, %s876
      %s891 = sphi 0, %s877
      %s895 = sphi 0, %s895
      %s897 = sphi 0, %s895
      %s898 = sphi 0, %s897
      %s912 = sphi 0, %s898
      %s916 = sphi 0, %s916
      %s918 = sphi 0, %s916
      %s919 = sphi 0, %s918
      %s933 = sphi 0, %s919
      %s937 = sphi 0, %s937
      %s939 = sphi 0, %s937
      %s940 = sphi 0, %s939
      %s954 = sphi 0, %s940
      %s958 = sphi 0, %s958
      %s960 = sphi 0, %s958
      %s961 = sphi 0, %s960
      %s975 = sphi 0, %s961
      %s979 = sphi 0, %s979
      %s981 = sphi 0, %s979
      %s982 = sphi 0, %s981
      %s996 = sphi 0, %s982
      %s1000 = sphi 0, %s1000
      %s1002 = sphi 0, %s1000
      %s1003 = sphi 0, %s1002
      %s1017 = sphi 0, %s1003
      %s1021 = sphi 0, %s1021
      %s1023 = sphi 0, %s1021
      %s1024 = sphi 0, %s1023
      %s1038 = sphi 0, %s1024
      %s1042 = sphi 0, %s1042
      %s1044 = sphi 0, %s1042
      %s1045 = sphi 0, %s1044
      %s1059 = sphi 0, %s1045
      %s1063 = sphi 0, %s1063
      %s1065 = sphi 0, %s1063
      %s1066 = sphi 0, %s1065
      %s1080 = sphi 0, %s1066
      %s1084 = sphi 0, %s1084
      %s1086 = sphi 0, %s1084
      %s1087 = sphi 0, %s1086
      %s1101 = sphi 0, %s1087
      %s1107 = sphi 0, %s1109
      %s1110 = sphi 0, %s1107
      %s1111 = sphi 0, %s1110
      %s1127 = sphi 0, %s1111
    $region4: #{point_transformer_forward.1} parent=1 // loop_header_branch
      %120 = sbr.rel (%p118) target = $region8
    $region5: #{point_transformer_forward.1} parent=1 // loop_body
      %s122 = ssub.s32 %s117, 1
      %s123 = ssub.s32 %s117, 2
      %s130 = sadd.s32 1, %s125
      %p131 = scmp.ge.s32.totalorder %s130, 2
      %s132 = scalar_select %p131, 0, %s130
      %s133 = sadd.s32 1, %s124
      %s134 = scalar_select %p131, %s133, %s124
      %p135 = scmp.ge.s32.totalorder %s134, 2
      %s136 = scalar_select %p135, 0, %s134
      %s137 = ssub.s32 %s124, %s136
      %p138 = scmp.eq.s32.totalorder %s137, 0
      %s140 = sadd.s32 %s139, 1
      %s141 = scalar_select %p138, %s139, %s140
      %p144 = pneg %p138
      %p145 = scmp.eq.s32.totalorder %s117, 3
      %p146 = por %p144, %p145
      %p147 = scmp.ne.s32.totalorder %s139, %s142
      %p148 = scmp.eq.s32.totalorder %s117, 0
      %p149 = por %p147, %p148
      %p150 = scmp.ne.s32.totalorder %s139, %s142
      %p151 = scmp.eq.s32.totalorder %s122, 3
      %p152 = por %p150, %p151
      %p153 = scmp.ne.s32.totalorder %s142, %s143
      %p154 = scmp.eq.s32.totalorder %s122, 0
      %p155 = por %p153, %p154
      %p156 = scmp.ne.s32.totalorder %s142, %s143
      %p157 = scmp.eq.s32.totalorder %s123, 3
      %p158 = por %p156, %p157
      %p160 = scmp.ne.s32.totalorder %s143, %s159
      %p161 = scmp.eq.s32.totalorder %s123, 0
      %p162 = por %p160, %p161
      %s163 = ssub.s32 %s124, %s136
      %p164 = scmp.eq.s32.totalorder %s163, 0
      %s166 = sadd.s32 %s165, 1
      %s167 = scalar_select %p164, %s165, %s166
      %p170 = pneg %p164
      %p171 = scmp.eq.s32.totalorder %s117, 3
      %p172 = por %p170, %p171
      %p173 = scmp.ne.s32.totalorder %s165, %s168
      %p174 = scmp.eq.s32.totalorder %s117, 0
      %p175 = por %p173, %p174
      %p176 = scmp.ne.s32.totalorder %s165, %s168
      %p177 = scmp.eq.s32.totalorder %s122, 3
      %p178 = por %p176, %p177
      %p179 = scmp.ne.s32.totalorder %s168, %s169
      %p180 = scmp.eq.s32.totalorder %s122, 0
      %p181 = por %p179, %p180
      %p182 = scmp.ne.s32.totalorder %s168, %s169
      %p183 = scmp.eq.s32.totalorder %s123, 3
      %p184 = por %p182, %p183
      %p186 = scmp.ne.s32.totalorder %s169, %s185
      %p187 = scmp.eq.s32.totalorder %s123, 0
      %p188 = por %p186, %p187
      %s190 = sadd.s32 %s189, 1
      %p193 = scmp.eq.s32.totalorder %s117, 3
      %p194 = scmp.ne.s32.totalorder %s189, %s191
      %p195 = scmp.eq.s32.totalorder %s117, 0
      %p196 = por %p194, %p195
      %p197 = scmp.ne.s32.totalorder %s189, %s191
      %p198 = scmp.eq.s32.totalorder %s122, 3
      %p199 = por %p197, %p198
      %p200 = scmp.ne.s32.totalorder %s191, %s192
      %p201 = scmp.eq.s32.totalorder %s122, 0
      %p202 = por %p200, %p201
      %p203 = scmp.ne.s32.totalorder %s191, %s192
      %p204 = scmp.eq.s32.totalorder %s123, 3
      %p205 = por %p203, %p204
      %p207 = scmp.ne.s32.totalorder %s192, %s206
      %p208 = scmp.eq.s32.totalorder %s123, 0
      %p209 = por %p207, %p208
      %s211 = sadd.s32 %s210, 1
      %p214 = scmp.eq.s32.totalorder %s117, 3
      %p215 = scmp.ne.s32.totalorder %s210, %s212
      %p216 = scmp.eq.s32.totalorder %s117, 0
      %p217 = por %p215, %p216
      %p218 = scmp.ne.s32.totalorder %s210, %s212
      %p219 = scmp.eq.s32.totalorder %s122, 3
      %p220 = por %p218, %p219
      %p221 = scmp.ne.s32.totalorder %s212, %s213
      %p222 = scmp.eq.s32.totalorder %s122, 0
      %p223 = por %p221, %p222
      %p224 = scmp.ne.s32.totalorder %s212, %s213
      %p225 = scmp.eq.s32.totalorder %s123, 3
      %p226 = por %p224, %p225
      %p228 = scmp.ne.s32.totalorder %s213, %s227
      %p229 = scmp.eq.s32.totalorder %s123, 0
      %p230 = por %p228, %p229
      %s232 = sadd.s32 %s231, 1
      %p235 = scmp.eq.s32.totalorder %s117, 3
      %p236 = scmp.ne.s32.totalorder %s231, %s233
      %p237 = scmp.eq.s32.totalorder %s117, 0
      %p238 = por %p236, %p237
      %p239 = scmp.ne.s32.totalorder %s231, %s233
      %p240 = scmp.eq.s32.totalorder %s122, 3
      %p241 = por %p239, %p240
      %p242 = scmp.ne.s32.totalorder %s233, %s234
      %p243 = scmp.eq.s32.totalorder %s122, 0
      %p244 = por %p242, %p243
      %p245 = scmp.ne.s32.totalorder %s233, %s234
      %p246 = scmp.eq.s32.totalorder %s123, 3
      %p247 = por %p245, %p246
      %p249 = scmp.ne.s32.totalorder %s234, %s248
      %p250 = scmp.eq.s32.totalorder %s123, 0
      %p251 = por %p249, %p250
      %s253 = sadd.s32 %s252, 1
      %p256 = scmp.eq.s32.totalorder %s117, 3
      %p257 = scmp.ne.s32.totalorder %s252, %s254
      %p258 = scmp.eq.s32.totalorder %s117, 0
      %p259 = por %p257, %p258
      %p260 = scmp.ne.s32.totalorder %s252, %s254
      %p261 = scmp.eq.s32.totalorder %s122, 3
      %p262 = por %p260, %p261
      %p263 = scmp.ne.s32.totalorder %s254, %s255
      %p264 = scmp.eq.s32.totalorder %s122, 0
      %p265 = por %p263, %p264
      %p266 = scmp.ne.s32.totalorder %s254, %s255
      %p267 = scmp.eq.s32.totalorder %s123, 3
      %p268 = por %p266, %p267
      %p270 = scmp.ne.s32.totalorder %s255, %s269
      %p271 = scmp.eq.s32.totalorder %s123, 0
      %p272 = por %p270, %p271
      %s274 = sadd.s32 %s273, 1
      %p277 = scmp.eq.s32.totalorder %s117, 3
      %p278 = scmp.ne.s32.totalorder %s273, %s275
      %p279 = scmp.eq.s32.totalorder %s117, 0
      %p280 = por %p278, %p279
      %p281 = scmp.ne.s32.totalorder %s273, %s275
      %p282 = scmp.eq.s32.totalorder %s122, 3
      %p283 = por %p281, %p282
      %p284 = scmp.ne.s32.totalorder %s275, %s276
      %p285 = scmp.eq.s32.totalorder %s122, 0
      %p286 = por %p284, %p285
      %p287 = scmp.ne.s32.totalorder %s275, %s276
      %p288 = scmp.eq.s32.totalorder %s123, 3
      %p289 = por %p287, %p288
      %p291 = scmp.ne.s32.totalorder %s276, %s290
      %p292 = scmp.eq.s32.totalorder %s123, 0
      %p293 = por %p291, %p292
      %s295 = sadd.s32 %s294, 1
      %p298 = scmp.eq.s32.totalorder %s117, 3
      %p299 = scmp.ne.s32.totalorder %s294, %s296
      %p300 = scmp.eq.s32.totalorder %s117, 0
      %p301 = por %p299, %p300
      %p302 = scmp.ne.s32.totalorder %s294, %s296
      %p303 = scmp.eq.s32.totalorder %s122, 3
      %p304 = por %p302, %p303
      %p305 = scmp.ne.s32.totalorder %s296, %s297
      %p306 = scmp.eq.s32.totalorder %s122, 0
      %p307 = por %p305, %p306
      %p308 = scmp.ne.s32.totalorder %s296, %s297
      %p309 = scmp.eq.s32.totalorder %s123, 3
      %p310 = por %p308, %p309
      %p312 = scmp.ne.s32.totalorder %s297, %s311
      %p313 = scmp.eq.s32.totalorder %s123, 0
      %p314 = por %p312, %p313
      %s316 = sadd.s32 %s315, 1
      %p319 = scmp.eq.s32.totalorder %s117, 3
      %p320 = scmp.ne.s32.totalorder %s315, %s317
      %p321 = scmp.eq.s32.totalorder %s117, 0
      %p322 = por %p320, %p321
      %p323 = scmp.ne.s32.totalorder %s315, %s317
      %p324 = scmp.eq.s32.totalorder %s122, 3
      %p325 = por %p323, %p324
      %p326 = scmp.ne.s32.totalorder %s317, %s318
      %p327 = scmp.eq.s32.totalorder %s122, 0
      %p328 = por %p326, %p327
      %p329 = scmp.ne.s32.totalorder %s317, %s318
      %p330 = scmp.eq.s32.totalorder %s123, 3
      %p331 = por %p329, %p330
      %p333 = scmp.ne.s32.totalorder %s318, %s332
      %p334 = scmp.eq.s32.totalorder %s123, 0
      %p335 = por %p333, %p334
      %s337 = sadd.s32 %s336, 1
      %p340 = scmp.eq.s32.totalorder %s117, 3
      %p341 = scmp.ne.s32.totalorder %s336, %s338
      %p342 = scmp.eq.s32.totalorder %s117, 0
      %p343 = por %p341, %p342
      %p344 = scmp.ne.s32.totalorder %s336, %s338
      %p345 = scmp.eq.s32.totalorder %s122, 3
      %p346 = por %p344, %p345
      %p347 = scmp.ne.s32.totalorder %s338, %s339
      %p348 = scmp.eq.s32.totalorder %s122, 0
      %p349 = por %p347, %p348
      %p350 = scmp.ne.s32.totalorder %s338, %s339
      %p351 = scmp.eq.s32.totalorder %s123, 3
      %p352 = por %p350, %p351
      %p354 = scmp.ne.s32.totalorder %s339, %s353
      %p355 = scmp.eq.s32.totalorder %s123, 0
      %p356 = por %p354, %p355
      %s358 = sadd.s32 %s357, 1
      %p361 = scmp.eq.s32.totalorder %s117, 3
      %p362 = scmp.ne.s32.totalorder %s357, %s359
      %p363 = scmp.eq.s32.totalorder %s117, 0
      %p364 = por %p362, %p363
      %p365 = scmp.ne.s32.totalorder %s357, %s359
      %p366 = scmp.eq.s32.totalorder %s122, 3
      %p367 = por %p365, %p366
      %p368 = scmp.ne.s32.totalorder %s359, %s360
      %p369 = scmp.eq.s32.totalorder %s122, 0
      %p370 = por %p368, %p369
      %p371 = scmp.ne.s32.totalorder %s359, %s360
      %p372 = scmp.eq.s32.totalorder %s123, 3
      %p373 = por %p371, %p372
      %p375 = scmp.ne.s32.totalorder %s360, %s374
      %p376 = scmp.eq.s32.totalorder %s123, 0
      %p377 = por %p375, %p376
      %s379 = sadd.s32 %s378, 1
      %p382 = scmp.eq.s32.totalorder %s117, 3
      %p383 = scmp.ne.s32.totalorder %s378, %s380
      %p384 = scmp.eq.s32.totalorder %s117, 0
      %p385 = por %p383, %p384
      %p386 = scmp.ne.s32.totalorder %s378, %s380
      %p387 = scmp.eq.s32.totalorder %s122, 3
      %p388 = por %p386, %p387
      %p389 = scmp.ne.s32.totalorder %s380, %s381
      %p390 = scmp.eq.s32.totalorder %s122, 0
      %p391 = por %p389, %p390
      %p392 = scmp.ne.s32.totalorder %s380, %s381
      %p393 = scmp.eq.s32.totalorder %s123, 3
      %p394 = por %p392, %p393
      %p396 = scmp.ne.s32.totalorder %s381, %s395
      %p397 = scmp.eq.s32.totalorder %s123, 0
      %p398 = por %p396, %p397
      %s400 = sadd.s32 %s399, 1
      %p403 = scmp.eq.s32.totalorder %s117, 3
      %p404 = scmp.ne.s32.totalorder %s399, %s401
      %p405 = scmp.eq.s32.totalorder %s117, 0
      %p406 = por %p404, %p405
      %p407 = scmp.ne.s32.totalorder %s399, %s401
      %p408 = scmp.eq.s32.totalorder %s122, 3
      %p409 = por %p407, %p408
      %p410 = scmp.ne.s32.totalorder %s401, %s402
      %p411 = scmp.eq.s32.totalorder %s122, 0
      %p412 = por %p410, %p411
      %p413 = scmp.ne.s32.totalorder %s401, %s402
      %p414 = scmp.eq.s32.totalorder %s123, 3
      %p415 = por %p413, %p414
      %p417 = scmp.ne.s32.totalorder %s402, %s416
      %p418 = scmp.eq.s32.totalorder %s123, 0
      %p419 = por %p417, %p418
      %s421 = sadd.s32 %s420, 1
      %p424 = scmp.eq.s32.totalorder %s117, 3
      %p425 = scmp.ne.s32.totalorder %s420, %s422
      %p426 = scmp.eq.s32.totalorder %s117, 0
      %p427 = por %p425, %p426
      %p428 = scmp.ne.s32.totalorder %s420, %s422
      %p429 = scmp.eq.s32.totalorder %s122, 3
      %p430 = por %p428, %p429
      %p431 = scmp.ne.s32.totalorder %s422, %s423
      %p432 = scmp.eq.s32.totalorder %s122, 0
      %p433 = por %p431, %p432
      %p434 = scmp.ne.s32.totalorder %s422, %s423
      %p435 = scmp.eq.s32.totalorder %s123, 3
      %p436 = por %p434, %p435
      %p438 = scmp.ne.s32.totalorder %s423, %s437
      %p439 = scmp.eq.s32.totalorder %s123, 0
      %p440 = por %p438, %p439
      %s442 = sadd.s32 %s441, 1
      %p445 = scmp.eq.s32.totalorder %s117, 3
      %p446 = scmp.ne.s32.totalorder %s441, %s443
      %p447 = scmp.eq.s32.totalorder %s117, 0
      %p448 = por %p446, %p447
      %p449 = scmp.ne.s32.totalorder %s441, %s443
      %p450 = scmp.eq.s32.totalorder %s122, 3
      %p451 = por %p449, %p450
      %p452 = scmp.ne.s32.totalorder %s443, %s444
      %p453 = scmp.eq.s32.totalorder %s122, 0
      %p454 = por %p452, %p453
      %p455 = scmp.ne.s32.totalorder %s443, %s444
      %p456 = scmp.eq.s32.totalorder %s123, 3
      %p457 = por %p455, %p456
      %p459 = scmp.ne.s32.totalorder %s444, %s458
      %p460 = scmp.eq.s32.totalorder %s123, 0
      %p461 = por %p459, %p460
      %s463 = sadd.s32 %s462, 1
      %p466 = scmp.eq.s32.totalorder %s117, 3
      %p467 = scmp.ne.s32.totalorder %s462, %s464
      %p468 = scmp.eq.s32.totalorder %s117, 0
      %p469 = por %p467, %p468
      %p470 = scmp.ne.s32.totalorder %s462, %s464
      %p471 = scmp.eq.s32.totalorder %s122, 3
      %p472 = por %p470, %p471
      %p473 = scmp.ne.s32.totalorder %s464, %s465
      %p474 = scmp.eq.s32.totalorder %s122, 0
      %p475 = por %p473, %p474
      %p476 = scmp.ne.s32.totalorder %s464, %s465
      %p477 = scmp.eq.s32.totalorder %s123, 3
      %p478 = por %p476, %p477
      %p480 = scmp.ne.s32.totalorder %s465, %s479
      %p481 = scmp.eq.s32.totalorder %s123, 0
      %p482 = por %p480, %p481
      %s484 = sadd.s32 %s483, 1
      %p487 = scmp.eq.s32.totalorder %s117, 3
      %p488 = scmp.ne.s32.totalorder %s483, %s485
      %p489 = scmp.eq.s32.totalorder %s117, 0
      %p490 = por %p488, %p489
      %p491 = scmp.ne.s32.totalorder %s483, %s485
      %p492 = scmp.eq.s32.totalorder %s122, 3
      %p493 = por %p491, %p492
      %p494 = scmp.ne.s32.totalorder %s485, %s486
      %p495 = scmp.eq.s32.totalorder %s122, 0
      %p496 = por %p494, %p495
      %p497 = scmp.ne.s32.totalorder %s485, %s486
      %p498 = scmp.eq.s32.totalorder %s123, 3
      %p499 = por %p497, %p498
      %p501 = scmp.ne.s32.totalorder %s486, %s500
      %p502 = scmp.eq.s32.totalorder %s123, 0
      %p503 = por %p501, %p502
      %s505 = sadd.s32 %s504, 1
      %p508 = scmp.eq.s32.totalorder %s117, 3
      %p509 = scmp.ne.s32.totalorder %s504, %s506
      %p510 = scmp.eq.s32.totalorder %s117, 0
      %p511 = por %p509, %p510
      %p512 = scmp.ne.s32.totalorder %s504, %s506
      %p513 = scmp.eq.s32.totalorder %s122, 3
      %p514 = por %p512, %p513
      %p515 = scmp.ne.s32.totalorder %s506, %s507
      %p516 = scmp.eq.s32.totalorder %s122, 0
      %p517 = por %p515, %p516
      %p518 = scmp.ne.s32.totalorder %s506, %s507
      %p519 = scmp.eq.s32.totalorder %s123, 3
      %p520 = por %p518, %p519
      %p522 = scmp.ne.s32.totalorder %s507, %s521
      %p523 = scmp.eq.s32.totalorder %s123, 0
      %p524 = por %p522, %p523
      %s526 = sadd.s32 %s525, 1
      %p529 = scmp.eq.s32.totalorder %s117, 3
      %p530 = scmp.ne.s32.totalorder %s525, %s527
      %p531 = scmp.eq.s32.totalorder %s117, 0
      %p532 = por %p530, %p531
      %p533 = scmp.ne.s32.totalorder %s525, %s527
      %p534 = scmp.eq.s32.totalorder %s122, 3
      %p535 = por %p533, %p534
      %p536 = scmp.ne.s32.totalorder %s527, %s528
      %p537 = scmp.eq.s32.totalorder %s122, 0
      %p538 = por %p536, %p537
      %p539 = scmp.ne.s32.totalorder %s527, %s528
      %p540 = scmp.eq.s32.totalorder %s123, 3
      %p541 = por %p539, %p540
      %p543 = scmp.ne.s32.totalorder %s528, %s542
      %p544 = scmp.eq.s32.totalorder %s123, 0
      %p545 = por %p543, %p544
      %s546 = ssub.s32 %s125, %s132
      %p547 = scmp.eq.s32.totalorder %s546, 0
      %s549 = sadd.s32 %s548, 1
      %s550 = scalar_select %p547, %s548, %s549
      %p553 = pneg %p547
      %p554 = scmp.eq.s32.totalorder %s117, 3
      %p555 = por %p553, %p554
      %p556 = scmp.ne.s32.totalorder %s548, %s551
      %p557 = scmp.eq.s32.totalorder %s117, 0
      %p558 = por %p556, %p557
      %p559 = scmp.ne.s32.totalorder %s548, %s551
      %p560 = scmp.eq.s32.totalorder %s122, 3
      %p561 = por %p559, %p560
      %p562 = scmp.ne.s32.totalorder %s551, %s552
      %p563 = scmp.eq.s32.totalorder %s122, 0
      %p564 = por %p562, %p563
      %p565 = scmp.ne.s32.totalorder %s551, %s552
      %p566 = scmp.eq.s32.totalorder %s123, 3
      %p567 = por %p565, %p566
      %p569 = scmp.ne.s32.totalorder %s552, %s568
      %p570 = scmp.eq.s32.totalorder %s123, 0
      %p571 = por %p569, %p570
      %s572 = ssub.s32 %s125, %s132
      %p573 = scmp.eq.s32.totalorder %s572, 0
      %s575 = sadd.s32 %s574, 1
      %s576 = scalar_select %p573, %s574, %s575
      %p579 = pneg %p573
      %p580 = scmp.eq.s32.totalorder %s117, 3
      %p581 = por %p579, %p580
      %p582 = scmp.ne.s32.totalorder %s574, %s577
      %p583 = scmp.eq.s32.totalorder %s117, 0
      %p584 = por %p582, %p583
      %p585 = scmp.ne.s32.totalorder %s574, %s577
      %p586 = scmp.eq.s32.totalorder %s122, 3
      %p587 = por %p585, %p586
      %p588 = scmp.ne.s32.totalorder %s577, %s578
      %p589 = scmp.eq.s32.totalorder %s122, 0
      %p590 = por %p588, %p589
      %p591 = scmp.ne.s32.totalorder %s577, %s578
      %p592 = scmp.eq.s32.totalorder %s123, 3
      %p593 = por %p591, %p592
      %p595 = scmp.ne.s32.totalorder %s578, %s594
      %p596 = scmp.eq.s32.totalorder %s123, 0
      %p597 = por %p595, %p596
      %s598 = ssub.s32 %s125, %s132
      %p599 = scmp.eq.s32.totalorder %s598, 0
      %s601 = sadd.s32 %s600, 1
      %s602 = scalar_select %p599, %s600, %s601
      %p605 = pneg %p599
      %p606 = scmp.eq.s32.totalorder %s117, 3
      %p607 = por %p605, %p606
      %p608 = scmp.ne.s32.totalorder %s600, %s603
      %p609 = scmp.eq.s32.totalorder %s117, 0
      %p610 = por %p608, %p609
      %p611 = scmp.ne.s32.totalorder %s600, %s603
      %p612 = scmp.eq.s32.totalorder %s122, 3
      %p613 = por %p611, %p612
      %p614 = scmp.ne.s32.totalorder %s603, %s604
      %p615 = scmp.eq.s32.totalorder %s122, 0
      %p616 = por %p614, %p615
      %p617 = scmp.ne.s32.totalorder %s603, %s604
      %p618 = scmp.eq.s32.totalorder %s123, 3
      %p619 = por %p617, %p618
      %p621 = scmp.ne.s32.totalorder %s604, %s620
      %p622 = scmp.eq.s32.totalorder %s123, 0
      %p623 = por %p621, %p622
      %s624 = ssub.s32 %s125, %s132
      %p625 = scmp.eq.s32.totalorder %s624, 0
      %s627 = sadd.s32 %s626, 1
      %s628 = scalar_select %p625, %s626, %s627
      %p631 = pneg %p625
      %p632 = scmp.eq.s32.totalorder %s117, 3
      %p633 = por %p631, %p632
      %p634 = scmp.ne.s32.totalorder %s626, %s629
      %p635 = scmp.eq.s32.totalorder %s117, 0
      %p636 = por %p634, %p635
      %p637 = scmp.ne.s32.totalorder %s626, %s629
      %p638 = scmp.eq.s32.totalorder %s122, 3
      %p639 = por %p637, %p638
      %p640 = scmp.ne.s32.totalorder %s629, %s630
      %p641 = scmp.eq.s32.totalorder %s122, 0
      %p642 = por %p640, %p641
      %p643 = scmp.ne.s32.totalorder %s629, %s630
      %p644 = scmp.eq.s32.totalorder %s123, 3
      %p645 = por %p643, %p644
      %p647 = scmp.ne.s32.totalorder %s630, %s646
      %p648 = scmp.eq.s32.totalorder %s123, 0
      %p649 = por %p647, %p648
      %s650 = ssub.s32 %s125, %s132
      %p651 = scmp.eq.s32.totalorder %s650, 0
      %s653 = sadd.s32 %s652, 1
      %s654 = scalar_select %p651, %s652, %s653
      %p657 = pneg %p651
      %p658 = scmp.eq.s32.totalorder %s117, 3
      %p659 = por %p657, %p658
      %p660 = scmp.ne.s32.totalorder %s652, %s655
      %p661 = scmp.eq.s32.totalorder %s117, 0
      %p662 = por %p660, %p661
      %p663 = scmp.ne.s32.totalorder %s652, %s655
      %p664 = scmp.eq.s32.totalorder %s122, 3
      %p665 = por %p663, %p664
      %p666 = scmp.ne.s32.totalorder %s655, %s656
      %p667 = scmp.eq.s32.totalorder %s122, 0
      %p668 = por %p666, %p667
      %p669 = scmp.ne.s32.totalorder %s655, %s656
      %p670 = scmp.eq.s32.totalorder %s123, 3
      %p671 = por %p669, %p670
      %p673 = scmp.ne.s32.totalorder %s656, %s672
      %p674 = scmp.eq.s32.totalorder %s123, 0
      %p675 = por %p673, %p674
      %s676 = ssub.s32 %s125, %s132
      %p677 = scmp.eq.s32.totalorder %s676, 0
      %s679 = sadd.s32 %s678, 1
      %s680 = scalar_select %p677, %s678, %s679
      %p683 = pneg %p677
      %p684 = scmp.eq.s32.totalorder %s117, 3
      %p685 = por %p683, %p684
      %p686 = scmp.ne.s32.totalorder %s678, %s681
      %p687 = scmp.eq.s32.totalorder %s117, 0
      %p688 = por %p686, %p687
      %p689 = scmp.ne.s32.totalorder %s678, %s681
      %p690 = scmp.eq.s32.totalorder %s122, 3
      %p691 = por %p689, %p690
      %p692 = scmp.ne.s32.totalorder %s681, %s682
      %p693 = scmp.eq.s32.totalorder %s122, 0
      %p694 = por %p692, %p693
      %p695 = scmp.ne.s32.totalorder %s681, %s682
      %p696 = scmp.eq.s32.totalorder %s123, 3
      %p697 = por %p695, %p696
      %p699 = scmp.ne.s32.totalorder %s682, %s698
      %p700 = scmp.eq.s32.totalorder %s123, 0
      %p701 = por %p699, %p700
      %s702 = ssub.s32 %s125, %s132
      %p703 = scmp.eq.s32.totalorder %s702, 0
      %s705 = sadd.s32 %s704, 1
      %s706 = scalar_select %p703, %s704, %s705
      %p709 = pneg %p703
      %p710 = scmp.eq.s32.totalorder %s117, 3
      %p711 = por %p709, %p710
      %p712 = scmp.ne.s32.totalorder %s704, %s707
      %p713 = scmp.eq.s32.totalorder %s117, 0
      %p714 = por %p712, %p713
      %p715 = scmp.ne.s32.totalorder %s704, %s707
      %p716 = scmp.eq.s32.totalorder %s122, 3
      %p717 = por %p715, %p716
      %p718 = scmp.ne.s32.totalorder %s707, %s708
      %p719 = scmp.eq.s32.totalorder %s122, 0
      %p720 = por %p718, %p719
      %p721 = scmp.ne.s32.totalorder %s707, %s708
      %p722 = scmp.eq.s32.totalorder %s123, 3
      %p723 = por %p721, %p722
      %p725 = scmp.ne.s32.totalorder %s708, %s724
      %p726 = scmp.eq.s32.totalorder %s123, 0
      %p727 = por %p725, %p726
      %s728 = ssub.s32 %s125, %s132
      %p729 = scmp.eq.s32.totalorder %s728, 0
      %s731 = sadd.s32 %s730, 1
      %s732 = scalar_select %p729, %s730, %s731
      %p735 = pneg %p729
      %p736 = scmp.eq.s32.totalorder %s117, 3
      %p737 = por %p735, %p736
      %p738 = scmp.ne.s32.totalorder %s730, %s733
      %p739 = scmp.eq.s32.totalorder %s117, 0
      %p740 = por %p738, %p739
      %p741 = scmp.ne.s32.totalorder %s730, %s733
      %p742 = scmp.eq.s32.totalorder %s122, 3
      %p743 = por %p741, %p742
      %p744 = scmp.ne.s32.totalorder %s733, %s734
      %p745 = scmp.eq.s32.totalorder %s122, 0
      %p746 = por %p744, %p745
      %p747 = scmp.ne.s32.totalorder %s733, %s734
      %p748 = scmp.eq.s32.totalorder %s123, 3
      %p749 = por %p747, %p748
      %p751 = scmp.ne.s32.totalorder %s734, %s750
      %p752 = scmp.eq.s32.totalorder %s123, 0
      %p753 = por %p751, %p752
      %s754 = ssub.s32 %s125, %s132
      %p755 = scmp.eq.s32.totalorder %s754, 0
      %s757 = sadd.s32 %s756, 1
      %s758 = scalar_select %p755, %s756, %s757
      %p761 = pneg %p755
      %p762 = scmp.eq.s32.totalorder %s117, 3
      %p763 = por %p761, %p762
      %p764 = scmp.ne.s32.totalorder %s756, %s759
      %p765 = scmp.eq.s32.totalorder %s117, 0
      %p766 = por %p764, %p765
      %p767 = scmp.ne.s32.totalorder %s756, %s759
      %p768 = scmp.eq.s32.totalorder %s122, 3
      %p769 = por %p767, %p768
      %p770 = scmp.ne.s32.totalorder %s759, %s760
      %p771 = scmp.eq.s32.totalorder %s122, 0
      %p772 = por %p770, %p771
      %p773 = scmp.ne.s32.totalorder %s759, %s760
      %p774 = scmp.eq.s32.totalorder %s123, 3
      %p775 = por %p773, %p774
      %p777 = scmp.ne.s32.totalorder %s760, %s776
      %p778 = scmp.eq.s32.totalorder %s123, 0
      %p779 = por %p777, %p778
      %s780 = ssub.s32 %s125, %s132
      %p781 = scmp.eq.s32.totalorder %s780, 0
      %s783 = sadd.s32 %s782, 1
      %s784 = scalar_select %p781, %s782, %s783
      %p787 = pneg %p781
      %p788 = scmp.eq.s32.totalorder %s117, 3
      %p789 = por %p787, %p788
      %p790 = scmp.ne.s32.totalorder %s782, %s785
      %p791 = scmp.eq.s32.totalorder %s117, 0
      %p792 = por %p790, %p791
      %p793 = scmp.ne.s32.totalorder %s782, %s785
      %p794 = scmp.eq.s32.totalorder %s122, 3
      %p795 = por %p793, %p794
      %p796 = scmp.ne.s32.totalorder %s785, %s786
      %p797 = scmp.eq.s32.totalorder %s122, 0
      %p798 = por %p796, %p797
      %p799 = scmp.ne.s32.totalorder %s785, %s786
      %p800 = scmp.eq.s32.totalorder %s123, 3
      %p801 = por %p799, %p800
      %p803 = scmp.ne.s32.totalorder %s786, %s802
      %p804 = scmp.eq.s32.totalorder %s123, 0
      %p805 = por %p803, %p804
      %s806 = ssub.s32 %s125, %s132
      %p807 = scmp.eq.s32.totalorder %s806, 0
      %s809 = sadd.s32 %s808, 1
      %s810 = scalar_select %p807, %s808, %s809
      %p813 = pneg %p807
      %p814 = scmp.eq.s32.totalorder %s117, 3
      %p815 = por %p813, %p814
      %p816 = scmp.ne.s32.totalorder %s808, %s811
      %p817 = scmp.eq.s32.totalorder %s117, 0
      %p818 = por %p816, %p817
      %p819 = scmp.ne.s32.totalorder %s808, %s811
      %p820 = scmp.eq.s32.totalorder %s122, 3
      %p821 = por %p819, %p820
      %p822 = scmp.ne.s32.totalorder %s811, %s812
      %p823 = scmp.eq.s32.totalorder %s122, 0
      %p824 = por %p822, %p823
      %p825 = scmp.ne.s32.totalorder %s811, %s812
      %p826 = scmp.eq.s32.totalorder %s123, 3
      %p827 = por %p825, %p826
      %p829 = scmp.ne.s32.totalorder %s812, %s828
      %p830 = scmp.eq.s32.totalorder %s123, 0
      %p831 = por %p829, %p830
      %s833 = sadd.s32 %s832, 1
      %p836 = scmp.eq.s32.totalorder %s117, 3
      %p837 = scmp.ne.s32.totalorder %s832, %s834
      %p838 = scmp.eq.s32.totalorder %s117, 0
      %p839 = por %p837, %p838
      %p840 = scmp.ne.s32.totalorder %s832, %s834
      %p841 = scmp.eq.s32.totalorder %s122, 3
      %p842 = por %p840, %p841
      %p843 = scmp.ne.s32.totalorder %s834, %s835
      %p844 = scmp.eq.s32.totalorder %s122, 0
      %p845 = por %p843, %p844
      %p846 = scmp.ne.s32.totalorder %s834, %s835
      %p847 = scmp.eq.s32.totalorder %s123, 3
      %p848 = por %p846, %p847
      %p850 = scmp.ne.s32.totalorder %s835, %s849
      %p851 = scmp.eq.s32.totalorder %s123, 0
      %p852 = por %p850, %p851
      %s854 = sadd.s32 %s853, 1
      %p857 = scmp.eq.s32.totalorder %s117, 3
      %p858 = scmp.ne.s32.totalorder %s853, %s855
      %p859 = scmp.eq.s32.totalorder %s117, 0
      %p860 = por %p858, %p859
      %p861 = scmp.ne.s32.totalorder %s853, %s855
      %p862 = scmp.eq.s32.totalorder %s122, 3
      %p863 = por %p861, %p862
      %p864 = scmp.ne.s32.totalorder %s855, %s856
      %p865 = scmp.eq.s32.totalorder %s122, 0
      %p866 = por %p864, %p865
      %p867 = scmp.ne.s32.totalorder %s855, %s856
      %p868 = scmp.eq.s32.totalorder %s123, 3
      %p869 = por %p867, %p868
      %p871 = scmp.ne.s32.totalorder %s856, %s870
      %p872 = scmp.eq.s32.totalorder %s123, 0
      %p873 = por %p871, %p872
      %s875 = sadd.s32 %s874, 1
      %p878 = scmp.eq.s32.totalorder %s117, 3
      %p879 = scmp.ne.s32.totalorder %s874, %s876
      %p880 = scmp.eq.s32.totalorder %s117, 0
      %p881 = por %p879, %p880
      %p882 = scmp.ne.s32.totalorder %s874, %s876
      %p883 = scmp.eq.s32.totalorder %s122, 3
      %p884 = por %p882, %p883
      %p885 = scmp.ne.s32.totalorder %s876, %s877
      %p886 = scmp.eq.s32.totalorder %s122, 0
      %p887 = por %p885, %p886
      %p888 = scmp.ne.s32.totalorder %s876, %s877
      %p889 = scmp.eq.s32.totalorder %s123, 3
      %p890 = por %p888, %p889
      %p892 = scmp.ne.s32.totalorder %s877, %s891
      %p893 = scmp.eq.s32.totalorder %s123, 0
      %p894 = por %p892, %p893
      %s896 = sadd.s32 %s895, 1
      %p899 = scmp.eq.s32.totalorder %s117, 3
      %p900 = scmp.ne.s32.totalorder %s895, %s897
      %p901 = scmp.eq.s32.totalorder %s117, 0
      %p902 = por %p900, %p901
      %p903 = scmp.ne.s32.totalorder %s895, %s897
      %p904 = scmp.eq.s32.totalorder %s122, 3
      %p905 = por %p903, %p904
      %p906 = scmp.ne.s32.totalorder %s897, %s898
      %p907 = scmp.eq.s32.totalorder %s122, 0
      %p908 = por %p906, %p907
      %p909 = scmp.ne.s32.totalorder %s897, %s898
      %p910 = scmp.eq.s32.totalorder %s123, 3
      %p911 = por %p909, %p910
      %p913 = scmp.ne.s32.totalorder %s898, %s912
      %p914 = scmp.eq.s32.totalorder %s123, 0
      %p915 = por %p913, %p914
      %s917 = sadd.s32 %s916, 1
      %p920 = scmp.eq.s32.totalorder %s117, 3
      %p921 = scmp.ne.s32.totalorder %s916, %s918
      %p922 = scmp.eq.s32.totalorder %s117, 0
      %p923 = por %p921, %p922
      %p924 = scmp.ne.s32.totalorder %s916, %s918
      %p925 = scmp.eq.s32.totalorder %s122, 3
      %p926 = por %p924, %p925
      %p927 = scmp.ne.s32.totalorder %s918, %s919
      %p928 = scmp.eq.s32.totalorder %s122, 0
      %p929 = por %p927, %p928
      %p930 = scmp.ne.s32.totalorder %s918, %s919
      %p931 = scmp.eq.s32.totalorder %s123, 3
      %p932 = por %p930, %p931
      %p934 = scmp.ne.s32.totalorder %s919, %s933
      %p935 = scmp.eq.s32.totalorder %s123, 0
      %p936 = por %p934, %p935
      %s938 = sadd.s32 %s937, 1
      %p941 = scmp.eq.s32.totalorder %s117, 3
      %p942 = scmp.ne.s32.totalorder %s937, %s939
      %p943 = scmp.eq.s32.totalorder %s117, 0
      %p944 = por %p942, %p943
      %p945 = scmp.ne.s32.totalorder %s937, %s939
      %p946 = scmp.eq.s32.totalorder %s122, 3
      %p947 = por %p945, %p946
      %p948 = scmp.ne.s32.totalorder %s939, %s940
      %p949 = scmp.eq.s32.totalorder %s122, 0
      %p950 = por %p948, %p949
      %p951 = scmp.ne.s32.totalorder %s939, %s940
      %p952 = scmp.eq.s32.totalorder %s123, 3
      %p953 = por %p951, %p952
      %p955 = scmp.ne.s32.totalorder %s940, %s954
      %p956 = scmp.eq.s32.totalorder %s123, 0
      %p957 = por %p955, %p956
      %s959 = sadd.s32 %s958, 1
      %p962 = scmp.eq.s32.totalorder %s117, 3
      %p963 = scmp.ne.s32.totalorder %s958, %s960
      %p964 = scmp.eq.s32.totalorder %s117, 0
      %p965 = por %p963, %p964
      %p966 = scmp.ne.s32.totalorder %s958, %s960
      %p967 = scmp.eq.s32.totalorder %s122, 3
      %p968 = por %p966, %p967
      %p969 = scmp.ne.s32.totalorder %s960, %s961
      %p970 = scmp.eq.s32.totalorder %s122, 0
      %p971 = por %p969, %p970
      %p972 = scmp.ne.s32.totalorder %s960, %s961
      %p973 = scmp.eq.s32.totalorder %s123, 3
      %p974 = por %p972, %p973
      %p976 = scmp.ne.s32.totalorder %s961, %s975
      %p977 = scmp.eq.s32.totalorder %s123, 0
      %p978 = por %p976, %p977
      %s980 = sadd.s32 %s979, 1
      %p983 = scmp.eq.s32.totalorder %s117, 3
      %p984 = scmp.ne.s32.totalorder %s979, %s981
      %p985 = scmp.eq.s32.totalorder %s117, 0
      %p986 = por %p984, %p985
      %p987 = scmp.ne.s32.totalorder %s979, %s981
      %p988 = scmp.eq.s32.totalorder %s122, 3
      %p989 = por %p987, %p988
      %p990 = scmp.ne.s32.totalorder %s981, %s982
      %p991 = scmp.eq.s32.totalorder %s122, 0
      %p992 = por %p990, %p991
      %p993 = scmp.ne.s32.totalorder %s981, %s982
      %p994 = scmp.eq.s32.totalorder %s123, 3
      %p995 = por %p993, %p994
      %p997 = scmp.ne.s32.totalorder %s982, %s996
      %p998 = scmp.eq.s32.totalorder %s123, 0
      %p999 = por %p997, %p998
      %s1001 = sadd.s32 %s1000, 1
      %p1004 = scmp.eq.s32.totalorder %s117, 3
      %p1005 = scmp.ne.s32.totalorder %s1000, %s1002
      %p1006 = scmp.eq.s32.totalorder %s117, 0
      %p1007 = por %p1005, %p1006
      %p1008 = scmp.ne.s32.totalorder %s1000, %s1002
      %p1009 = scmp.eq.s32.totalorder %s122, 3
      %p1010 = por %p1008, %p1009
      %p1011 = scmp.ne.s32.totalorder %s1002, %s1003
      %p1012 = scmp.eq.s32.totalorder %s122, 0
      %p1013 = por %p1011, %p1012
      %p1014 = scmp.ne.s32.totalorder %s1002, %s1003
      %p1015 = scmp.eq.s32.totalorder %s123, 3
      %p1016 = por %p1014, %p1015
      %p1018 = scmp.ne.s32.totalorder %s1003, %s1017
      %p1019 = scmp.eq.s32.totalorder %s123, 0
      %p1020 = por %p1018, %p1019
      %s1022 = sadd.s32 %s1021, 1
      %p1025 = scmp.eq.s32.totalorder %s117, 3
      %p1026 = scmp.ne.s32.totalorder %s1021, %s1023
      %p1027 = scmp.eq.s32.totalorder %s117, 0
      %p1028 = por %p1026, %p1027
      %p1029 = scmp.ne.s32.totalorder %s1021, %s1023
      %p1030 = scmp.eq.s32.totalorder %s122, 3
      %p1031 = por %p1029, %p1030
      %p1032 = scmp.ne.s32.totalorder %s1023, %s1024
      %p1033 = scmp.eq.s32.totalorder %s122, 0
      %p1034 = por %p1032, %p1033
      %p1035 = scmp.ne.s32.totalorder %s1023, %s1024
      %p1036 = scmp.eq.s32.totalorder %s123, 3
      %p1037 = por %p1035, %p1036
      %p1039 = scmp.ne.s32.totalorder %s1024, %s1038
      %p1040 = scmp.eq.s32.totalorder %s123, 0
      %p1041 = por %p1039, %p1040
      %s1043 = sadd.s32 %s1042, 1
      %p1046 = scmp.eq.s32.totalorder %s117, 3
      %p1047 = scmp.ne.s32.totalorder %s1042, %s1044
      %p1048 = scmp.eq.s32.totalorder %s117, 0
      %p1049 = por %p1047, %p1048
      %p1050 = scmp.ne.s32.totalorder %s1042, %s1044
      %p1051 = scmp.eq.s32.totalorder %s122, 3
      %p1052 = por %p1050, %p1051
      %p1053 = scmp.ne.s32.totalorder %s1044, %s1045
      %p1054 = scmp.eq.s32.totalorder %s122, 0
      %p1055 = por %p1053, %p1054
      %p1056 = scmp.ne.s32.totalorder %s1044, %s1045
      %p1057 = scmp.eq.s32.totalorder %s123, 3
      %p1058 = por %p1056, %p1057
      %p1060 = scmp.ne.s32.totalorder %s1045, %s1059
      %p1061 = scmp.eq.s32.totalorder %s123, 0
      %p1062 = por %p1060, %p1061
      %s1064 = sadd.s32 %s1063, 1
      %p1067 = scmp.eq.s32.totalorder %s117, 3
      %p1068 = scmp.ne.s32.totalorder %s1063, %s1065
      %p1069 = scmp.eq.s32.totalorder %s117, 0
      %p1070 = por %p1068, %p1069
      %p1071 = scmp.ne.s32.totalorder %s1063, %s1065
      %p1072 = scmp.eq.s32.totalorder %s122, 3
      %p1073 = por %p1071, %p1072
      %p1074 = scmp.ne.s32.totalorder %s1065, %s1066
      %p1075 = scmp.eq.s32.totalorder %s122, 0
      %p1076 = por %p1074, %p1075
      %p1077 = scmp.ne.s32.totalorder %s1065, %s1066
      %p1078 = scmp.eq.s32.totalorder %s123, 3
      %p1079 = por %p1077, %p1078
      %p1081 = scmp.ne.s32.totalorder %s1066, %s1080
      %p1082 = scmp.eq.s32.totalorder %s123, 0
      %p1083 = por %p1081, %p1082
      %s1085 = sadd.s32 %s1084, 1
      %p1088 = scmp.eq.s32.totalorder %s117, 3
      %p1089 = scmp.ne.s32.totalorder %s1084, %s1086
      %p1090 = scmp.eq.s32.totalorder %s117, 0
      %p1091 = por %p1089, %p1090
      %p1092 = scmp.ne.s32.totalorder %s1084, %s1086
      %p1093 = scmp.eq.s32.totalorder %s122, 3
      %p1094 = por %p1092, %p1093
      %p1095 = scmp.ne.s32.totalorder %s1086, %s1087
      %p1096 = scmp.eq.s32.totalorder %s122, 0
      %p1097 = por %p1095, %p1096
      %p1098 = scmp.ne.s32.totalorder %s1086, %s1087
      %p1099 = scmp.eq.s32.totalorder %s123, 3
      %p1100 = por %p1098, %p1099
      %p1102 = scmp.ne.s32.totalorder %s1087, %s1101
      %p1103 = scmp.eq.s32.totalorder %s123, 0
      %p1104 = por %p1102, %p1103
      %s1105 = ssub.s32 %s124, %s136
      %p1106 = scmp.eq.s32.totalorder %s1105, 0
      %s1108 = sadd.s32 %s1107, 1
      %s1109 = scalar_select %p1106, %s1107, %s1108
      %p1112 = pneg %p1106
      %p1113 = scmp.eq.s32.totalorder %s117, 3
      %p1114 = por %p1112, %p1113
      %p1115 = scmp.ne.s32.totalorder %s1107, %s1110
      %p1116 = scmp.eq.s32.totalorder %s117, 0
      %p1117 = por %p1115, %p1116
      %p1118 = scmp.ne.s32.totalorder %s1107, %s1110
      %p1119 = scmp.eq.s32.totalorder %s122, 3
      %p1120 = por %p1118, %p1119
      %p1121 = scmp.ne.s32.totalorder %s1110, %s1111
      %p1122 = scmp.eq.s32.totalorder %s122, 0
      %p1123 = por %p1121, %p1122
      %p1124 = scmp.ne.s32.totalorder %s1110, %s1111
      %p1125 = scmp.eq.s32.totalorder %s123, 3
      %p1126 = por %p1124, %p1125
      %p1128 = scmp.ne.s32.totalorder %s1111, %s1127
      %p1129 = scmp.eq.s32.totalorder %s123, 0
      %p1130 = por %p1128, %p1129
      %p1131 = scmp.le.s32.totalorder 1, %s117
      %p1132 = scmp.lt.s32.totalorder %s117, 5
      %p1133 = pnand %p1131, %p1132
      %p1134 = pneg %p1133
      // Predicated region
      $region9: #{point_transformer_forward.1} parent=5 // pred_check
        _
      $region10: #{point_transformer_forward.1} parent=5 // pred_check_branch
        %1136 = sbr.rel (%p1133) target = $region12
      $region11: #{point_transformer_forward.1} parent=5 // pred_region
        %s1137 = ssub.s32 %s117, 1
        // Predicated region
        $region13: #{point_transformer_forward.1} parent=11 // pred_check
          %p1138 = pneg %p202
        $region14: #{point_transformer_forward.1} parent=11 // pred_check_branch
          %1140 = sbr.rel (%p1138) target = $region16
        $region15: #{point_transformer_forward.1} parent=11 // pred_region
          _
        $region16: #{point_transformer_forward.1} parent=11 // pred_fallthru
          _
        // Predicated region
        $region17: #{point_transformer_forward.1} parent=11 // pred_check
          %p1141 = pneg %p223
        $region18: #{point_transformer_forward.1} parent=11 // pred_check_branch
          %1143 = sbr.rel (%p1141) target = $region20
        $region19: #{point_transformer_forward.1} parent=11 // pred_region
          _
        $region20: #{point_transformer_forward.1} parent=11 // pred_fallthru
          _
        // Predicated region
        $region21: #{point_transformer_forward.1} parent=11 // pred_check
          %p1144 = pneg %p244
        $region22: #{point_transformer_forward.1} parent=11 // pred_check_branch
          %1146 = sbr.rel (%p1144) target = $region24
        $region23: #{point_transformer_forward.1} parent=11 // pred_region
          _
        $region24: #{point_transformer_forward.1} parent=11 // pred_fallthru
          _
        // Predicated region
        $region25: #{point_transformer_forward.1} parent=11 // pred_check
          %p1147 = pneg %p265
        $region26: #{point_transformer_forward.1} parent=11 // pred_check_branch
          %1149 = sbr.rel (%p1147) target = $region28
        $region27: #{point_transformer_forward.1} parent=11 // pred_region
          _
        $region28: #{point_transformer_forward.1} parent=11 // pred_fallthru
          _
        // Predicated region
        $region29: #{point_transformer_forward.1} parent=11 // pred_check
          %p1150 = pneg %p286
        $region30: #{point_transformer_forward.1} parent=11 // pred_check_branch
          %1152 = sbr.rel (%p1150) target = $region32
        $region31: #{point_transformer_forward.1} parent=11 // pred_region
          _
        $region32: #{point_transformer_forward.1} parent=11 // pred_fallthru
          _
        // Predicated region
        $region33: #{point_transformer_forward.1} parent=11 // pred_check
          %p1153 = pneg %p307
        $region34: #{point_transformer_forward.1} parent=11 // pred_check_branch
          %1155 = sbr.rel (%p1153) target = $region36
        $region35: #{point_transformer_forward.1} parent=11 // pred_region
          _
        $region36: #{point_transformer_forward.1} parent=11 // pred_fallthru
          _
        // Predicated region
        $region37: #{point_transformer_forward.1} parent=11 // pred_check
          %p1156 = pneg %p328
        $region38: #{point_transformer_forward.1} parent=11 // pred_check_branch
          %1158 = sbr.rel (%p1156) target = $region40
        $region39: #{point_transformer_forward.1} parent=11 // pred_region
          _
        $region40: #{point_transformer_forward.1} parent=11 // pred_fallthru
          _
        // Predicated region
        $region41: #{point_transformer_forward.1} parent=11 // pred_check
          %p1159 = pneg %p349
        $region42: #{point_transformer_forward.1} parent=11 // pred_check_branch
          %1161 = sbr.rel (%p1159) target = $region44
        $region43: #{point_transformer_forward.1} parent=11 // pred_region
          _
        $region44: #{point_transformer_forward.1} parent=11 // pred_fallthru
          _
        // Predicated region
        $region45: #{point_transformer_forward.1} parent=11 // pred_check
          %p1162 = pneg %p370
        $region46: #{point_transformer_forward.1} parent=11 // pred_check_branch
          %1164 = sbr.rel (%p1162) target = $region48
        $region47: #{point_transformer_forward.1} parent=11 // pred_region
          _
        $region48: #{point_transformer_forward.1} parent=11 // pred_fallthru
          _
        // Predicated region
        $region49: #{point_transformer_forward.1} parent=11 // pred_check
          %p1165 = pneg %p391
        $region50: #{point_transformer_forward.1} parent=11 // pred_check_branch
          %1167 = sbr.rel (%p1165) target = $region52
        $region51: #{point_transformer_forward.1} parent=11 // pred_region
          _
        $region52: #{point_transformer_forward.1} parent=11 // pred_fallthru
          _
        // Predicated region
        $region53: #{point_transformer_forward.1} parent=11 // pred_check
          %p1168 = pneg %p412
        $region54: #{point_transformer_forward.1} parent=11 // pred_check_branch
          %1170 = sbr.rel (%p1168) target = $region56
        $region55: #{point_transformer_forward.1} parent=11 // pred_region
          _
        $region56: #{point_transformer_forward.1} parent=11 // pred_fallthru
          _
        // Predicated region
        $region57: #{point_transformer_forward.1} parent=11 // pred_check
          %p1171 = pneg %p433
        $region58: #{point_transformer_forward.1} parent=11 // pred_check_branch
          %1173 = sbr.rel (%p1171) target = $region60
        $region59: #{point_transformer_forward.1} parent=11 // pred_region
          %s1175 = ssub.s32 128, 128
          %1176 = vsyncadd [#allocation5], %s1175
          %s1178 = sshll.u32 [#allocation4], 4
          %s1179 = int_to_ptr.vmem [resolvable:$true] %s1178
          %1181 = dma.hbm_to_vmem [thread:$0]  %s27, 128, %s1179, [#allocation5]
        $region60: #{point_transformer_forward.1} parent=11 // pred_fallthru
          _
        // Predicated region
        $region61: #{point_transformer_forward.1} parent=11 // pred_check
          %p1182 = pneg %p454
        $region62: #{point_transformer_forward.1} parent=11 // pred_check_branch
          %1184 = sbr.rel (%p1182) target = $region64
        $region63: #{point_transformer_forward.1} parent=11 // pred_region
          %s1186 = ssub.s32 16, 16
          %1187 = vsyncadd [#allocation8], %s1186
          %s1189 = sshll.u32 [#allocation7], 4
          %s1190 = int_to_ptr.vmem [resolvable:$true] %s1189
          %1192 = dma.hbm_to_vmem [thread:$0]  %s29, 16, %s1190, [#allocation8]
        $region64: #{point_transformer_forward.1} parent=11 // pred_fallthru
          _
        // Predicated region
        $region65: #{point_transformer_forward.1} parent=11 // pred_check
          %p1193 = pneg %p475
        $region66: #{point_transformer_forward.1} parent=11 // pred_check_branch
          %1195 = sbr.rel (%p1193) target = $region68
        $region67: #{point_transformer_forward.1} parent=11 // pred_region
          _
        $region68: #{point_transformer_forward.1} parent=11 // pred_fallthru
          _
        // Predicated region
        $region69: #{point_transformer_forward.1} parent=11 // pred_check
          %p1196 = pneg %p496
        $region70: #{point_transformer_forward.1} parent=11 // pred_check_branch
          %1198 = sbr.rel (%p1196) target = $region72
        $region71: #{point_transformer_forward.1} parent=11 // pred_region
          %s1200 = ssub.s32 16, 16
          %1201 = vsyncadd [#allocation8], %s1200
          %s1203 = sshll.u32 [#allocation9], 4
          %s1204 = int_to_ptr.vmem [resolvable:$true] %s1203
          %1206 = dma.hbm_to_vmem [thread:$0]  %s33, 16, %s1204, [#allocation8]
        $region72: #{point_transformer_forward.1} parent=11 // pred_fallthru
          _
        // Predicated region
        $region73: #{point_transformer_forward.1} parent=11 // pred_check
          %p1207 = pneg %p517
        $region74: #{point_transformer_forward.1} parent=11 // pred_check_branch
          %1209 = sbr.rel (%p1207) target = $region76
        $region75: #{point_transformer_forward.1} parent=11 // pred_region
          %s1211 = ssub.s32 16, 16
          %1212 = vsyncadd [#allocation11], %s1211
          %s1214 = sshll.u32 [#allocation10], 4
          %s1215 = int_to_ptr.vmem [resolvable:$true] %s1214
          %1217 = dma.hbm_to_vmem [thread:$0]  %s35, 16, %s1215, [#allocation11]
        $region76: #{point_transformer_forward.1} parent=11 // pred_fallthru
          _
        // Predicated region
        $region77: #{point_transformer_forward.1} parent=11 // pred_check
          %p1218 = pneg %p538
        $region78: #{point_transformer_forward.1} parent=11 // pred_check_branch
          %1220 = sbr.rel (%p1218) target = $region80
        $region79: #{point_transformer_forward.1} parent=11 // pred_region
          %s1222 = ssub.s32 16, 16
          %1223 = vsyncadd [#allocation11], %s1222
          %s1225 = sshll.u32 [#allocation12], 4
          %s1226 = int_to_ptr.vmem [resolvable:$true] %s1225
          %1228 = dma.hbm_to_vmem [thread:$0]  %s37, 16, %s1226, [#allocation11]
        $region80: #{point_transformer_forward.1} parent=11 // pred_fallthru
          _
        // Predicated region
        $region81: #{point_transformer_forward.1} parent=11 // pred_check
          %p1229 = pneg %p845
        $region82: #{point_transformer_forward.1} parent=11 // pred_check_branch
          %1231 = sbr.rel (%p1229) target = $region84
        $region83: #{point_transformer_forward.1} parent=11 // pred_region
          %s1233 = ssub.s32 16, 16
          %1234 = vsyncadd [#allocation26], %s1233
          %s1236 = sshll.u32 [#allocation25], 4
          %s1237 = int_to_ptr.vmem [resolvable:$true] %s1236
          %1239 = dma.hbm_to_vmem [thread:$0]  %s61, 16, %s1237, [#allocation26]
        $region84: #{point_transformer_forward.1} parent=11 // pred_fallthru
          _
        // Predicated region
        $region85: #{point_transformer_forward.1} parent=11 // pred_check
          %p1240 = pneg %p866
        $region86: #{point_transformer_forward.1} parent=11 // pred_check_branch
          %1242 = sbr.rel (%p1240) target = $region88
        $region87: #{point_transformer_forward.1} parent=11 // pred_region
          %s1244 = ssub.s32 16, 16
          %1245 = vsyncadd [#allocation26], %s1244
          %s1247 = sshll.u32 [#allocation27], 4
          %s1248 = int_to_ptr.vmem [resolvable:$true] %s1247
          %1250 = dma.hbm_to_vmem [thread:$0]  %s63, 16, %s1248, [#allocation26]
        $region88: #{point_transformer_forward.1} parent=11 // pred_fallthru
          _
        // Predicated region
        $region89: #{point_transformer_forward.1} parent=11 // pred_check
          %p1251 = pneg %p887
        $region90: #{point_transformer_forward.1} parent=11 // pred_check_branch
          %1253 = sbr.rel (%p1251) target = $region92
        $region91: #{point_transformer_forward.1} parent=11 // pred_region
          %s1255 = ssub.s32 1024, 1024
          %1256 = vsyncadd [#allocation29], %s1255
          %s1257 = sshll.u32 [#allocation28], 4
          %s1258 = int_to_ptr.vmem [resolvable:$true] %s1257
          %1263 = dma.hbm_to_vmem [thread:$0]  %s65, 1024, %s1258, [#allocation29], 128, 128, 8
        $region92: #{point_transformer_forward.1} parent=11 // pred_fallthru
          _
        // Predicated region
        $region93: #{point_transformer_forward.1} parent=11 // pred_check
          %p1264 = pneg %p908
        $region94: #{point_transformer_forward.1} parent=11 // pred_check_branch
          %1266 = sbr.rel (%p1264) target = $region96
        $region95: #{point_transformer_forward.1} parent=11 // pred_region
          %s1268 = ssub.s32 1024, 1024
          %1269 = vsyncadd [#allocation29], %s1268
          %s1270 = sshll.u32 [#allocation30], 4
          %s1271 = int_to_ptr.vmem [resolvable:$true] %s1270
          %1276 = dma.hbm_to_vmem [thread:$0]  %s67, 1024, %s1271, [#allocation29], 128, 128, 8
        $region96: #{point_transformer_forward.1} parent=11 // pred_fallthru
          _
        // Predicated region
        $region97: #{point_transformer_forward.1} parent=11 // pred_check
          %p1277 = pneg %p929
        $region98: #{point_transformer_forward.1} parent=11 // pred_check_branch
          %1279 = sbr.rel (%p1277) target = $region100
        $region99: #{point_transformer_forward.1} parent=11 // pred_region
          %s1281 = ssub.s32 32, 32
          %1282 = vsyncadd [#allocation32], %s1281
          %s1284 = sshll.u32 [#allocation31], 4
          %s1285 = int_to_ptr.vmem [resolvable:$true] %s1284
          %1287 = dma.hbm_to_vmem [thread:$0]  %s69, 32, %s1285, [#allocation32]
        $region100: #{point_transformer_forward.1} parent=11 // pred_fallthru
          _
        // Predicated region
        $region101: #{point_transformer_forward.1} parent=11 // pred_check
          %p1288 = pneg %p950
        $region102: #{point_transformer_forward.1} parent=11 // pred_check_branch
          %1290 = sbr.rel (%p1288) target = $region104
        $region103: #{point_transformer_forward.1} parent=11 // pred_region
          %s1292 = ssub.s32 32, 32
          %1293 = vsyncadd [#allocation32], %s1292
          %s1295 = sshll.u32 [#allocation33], 4
          %s1296 = int_to_ptr.vmem [resolvable:$true] %s1295
          %1298 = dma.hbm_to_vmem [thread:$0]  %s71, 32, %s1296, [#allocation32]
        $region104: #{point_transformer_forward.1} parent=11 // pred_fallthru
          _
        // Predicated region
        $region105: #{point_transformer_forward.1} parent=11 // pred_check
          %p1299 = pneg %p971
        $region106: #{point_transformer_forward.1} parent=11 // pred_check_branch
          %1301 = sbr.rel (%p1299) target = $region108
        $region107: #{point_transformer_forward.1} parent=11 // pred_region
          %s1303 = ssub.s32 32, 32
          %1304 = vsyncadd [#allocation35], %s1303
          %s1306 = sshll.u32 [#allocation34], 4
          %s1307 = int_to_ptr.vmem [resolvable:$true] %s1306
          %1309 = dma.hbm_to_vmem [thread:$0]  %s73, 32, %s1307, [#allocation35]
        $region108: #{point_transformer_forward.1} parent=11 // pred_fallthru
          _
        // Predicated region
        $region109: #{point_transformer_forward.1} parent=11 // pred_check
          %p1310 = pneg %p992
        $region110: #{point_transformer_forward.1} parent=11 // pred_check_branch
          %1312 = sbr.rel (%p1310) target = $region112
        $region111: #{point_transformer_forward.1} parent=11 // pred_region
          _
        $region112: #{point_transformer_forward.1} parent=11 // pred_fallthru
          _
        // Predicated region
        $region113: #{point_transformer_forward.1} parent=11 // pred_check
          %p1313 = pneg %p1013
        $region114: #{point_transformer_forward.1} parent=11 // pred_check_branch
          %1315 = sbr.rel (%p1313) target = $region116
        $region115: #{point_transformer_forward.1} parent=11 // pred_region
          %s1317 = ssub.s32 32, 32
          %1318 = vsyncadd [#allocation35], %s1317
          %s1320 = sshll.u32 [#allocation36], 4
          %s1321 = int_to_ptr.vmem [resolvable:$true] %s1320
          %1323 = dma.hbm_to_vmem [thread:$0]  %s77, 32, %s1321, [#allocation35]
        $region116: #{point_transformer_forward.1} parent=11 // pred_fallthru
          _
        // Predicated region
        $region117: #{point_transformer_forward.1} parent=11 // pred_check
          %p1324 = pneg %p1034
        $region118: #{point_transformer_forward.1} parent=11 // pred_check_branch
          %1326 = sbr.rel (%p1324) target = $region120
        $region119: #{point_transformer_forward.1} parent=11 // pred_region
          %s1328 = ssub.s32 32, 32
          %1329 = vsyncadd [#allocation38], %s1328
          %s1331 = sshll.u32 [#allocation37], 4
          %s1332 = int_to_ptr.vmem [resolvable:$true] %s1331
          %1334 = dma.hbm_to_vmem [thread:$0]  %s79, 32, %s1332, [#allocation38]
        $region120: #{point_transformer_forward.1} parent=11 // pred_fallthru
          _
        // Predicated region
        $region121: #{point_transformer_forward.1} parent=11 // pred_check
          %p1335 = pneg %p1055
        $region122: #{point_transformer_forward.1} parent=11 // pred_check_branch
          %1337 = sbr.rel (%p1335) target = $region124
        $region123: #{point_transformer_forward.1} parent=11 // pred_region
          %s1339 = ssub.s32 32, 32
          %1340 = vsyncadd [#allocation38], %s1339
          %s1342 = sshll.u32 [#allocation39], 4
          %s1343 = int_to_ptr.vmem [resolvable:$true] %s1342
          %1345 = dma.hbm_to_vmem [thread:$0]  %s81, 32, %s1343, [#allocation38]
        $region124: #{point_transformer_forward.1} parent=11 // pred_fallthru
          _
        // Predicated region
        $region125: #{point_transformer_forward.1} parent=11 // pred_check
          %p1346 = pneg %p1076
        $region126: #{point_transformer_forward.1} parent=11 // pred_check_branch
          %1348 = sbr.rel (%p1346) target = $region128
        $region127: #{point_transformer_forward.1} parent=11 // pred_region
          _
        $region128: #{point_transformer_forward.1} parent=11 // pred_fallthru
          _
        // Predicated region
        $region129: #{point_transformer_forward.1} parent=11 // pred_check
          %p1349 = pneg %p1097
        $region130: #{point_transformer_forward.1} parent=11 // pred_check_branch
          %1351 = sbr.rel (%p1349) target = $region132
        $region131: #{point_transformer_forward.1} parent=11 // pred_region
          %s1353 = ssub.s32 16, 16
          %1354 = vsyncadd [#allocation41], %s1353
          %s1356 = sshll.u32 [#allocation40], 4
          %s1357 = int_to_ptr.vmem [resolvable:$true] %s1356
          %1359 = dma.hbm_to_vmem [thread:$0]  %s85, 16, %s1357, [#allocation41]
        $region132: #{point_transformer_forward.1} parent=11 // pred_fallthru
          _
      $region12: #{point_transformer_forward.1} parent=5 // pred_fallthru
        _
      %p1360 = scmp.lt.s32.totalorder %s117, 4
      // Predicated region
      $region133: #{point_transformer_forward.1} parent=5 // pred_check
        %p1361 = pneg %p1360
      $region134: #{point_transformer_forward.1} parent=5 // pred_check_branch
        %1363 = sbr.rel (%p1361) target = $region136
      $region135: #{point_transformer_forward.1} parent=5 // pred_region
        // Predicated region
        $region137: #{point_transformer_forward.1} parent=135 // pred_check
          %p1364 = pneg %p149
        $region138: #{point_transformer_forward.1} parent=135 // pred_check_branch
          %1366 = sbr.rel (%p1364) target = $region140
        $region139: #{point_transformer_forward.1} parent=135 // pred_region
          %p1367 = scmp.lt.s32.totalorder %s124, 1
          %s1368 = scalar_select %p1367, %s124, 1
          %s1369 = smul.addr %s1368, 16
          %s1370 = smul.addr %s1369, 8
          %s1371 = scalar_lea.vmem %s1, %s1370
        $region140: #{point_transformer_forward.1} parent=135 // pred_fallthru
          _
        // Predicated region
        $region141: #{point_transformer_forward.1} parent=135 // pred_check
          %p1372 = pneg %p175
        $region142: #{point_transformer_forward.1} parent=135 // pred_check_branch
          %1374 = sbr.rel (%p1372) target = $region144
        $region143: #{point_transformer_forward.1} parent=135 // pred_region
          %p1375 = scmp.lt.s32.totalorder %s124, 1
          %s1376 = scalar_select %p1375, %s124, 1
          %s1377 = smul.addr %s1376, 8
          %s1378 = scalar_lea.vmem %s3, %s1377
        $region144: #{point_transformer_forward.1} parent=135 // pred_fallthru
          _
        // Predicated region
        $region145: #{point_transformer_forward.1} parent=135 // pred_check
          %p1379 = pneg %p558
        $region146: #{point_transformer_forward.1} parent=135 // pred_check_branch
          %1381 = sbr.rel (%p1379) target = $region148
        $region147: #{point_transformer_forward.1} parent=135 // pred_region
          %s1382 = sand.u32 %s117, 1
          %s1383 = scalar_lea.sflag [#allocation14], %s1382
          %s1384 = sand.u32 %s548, 1
          %s1385 = scalar_lea.vmem [#allocation13], %s1384
          %s1387 = ssub.s32 16, 16
          %1388 = vsyncadd %s1383, %s1387
          %s1389 = smul.addr %s125, 16
          %s1390 = scalar_lea.hbm %s39, %s1389
          %s1392 = sshll.u32 %s1385, 4
          %s1393 = int_to_ptr.vmem [resolvable:$true] %s1392
          %1395 = dma.hbm_to_vmem [thread:$0]  %s1390, 16, %s1393, %s1383
        $region148: #{point_transformer_forward.1} parent=135 // pred_fallthru
          _
        // Predicated region
        $region149: #{point_transformer_forward.1} parent=135 // pred_check
          %p1396 = pneg %p584
        $region150: #{point_transformer_forward.1} parent=135 // pred_check_branch
          %1398 = sbr.rel (%p1396) target = $region152
        $region151: #{point_transformer_forward.1} parent=135 // pred_region
          %s1399 = sand.u32 %s117, 1
          %s1400 = scalar_lea.sflag [#allocation14], %s1399
          %s1401 = sand.u32 %s574, 1
          %s1402 = scalar_lea.vmem [#allocation15], %s1401
          %s1404 = ssub.s32 16, 16
          %1405 = vsyncadd %s1400, %s1404
          %s1406 = smul.addr %s125, 16
          %s1407 = scalar_lea.hbm %s41, %s1406
          %s1409 = sshll.u32 %s1402, 4
          %s1410 = int_to_ptr.vmem [resolvable:$true] %s1409
          %1412 = dma.hbm_to_vmem [thread:$0]  %s1407, 16, %s1410, %s1400
        $region152: #{point_transformer_forward.1} parent=135 // pred_fallthru
          _
        // Predicated region
        $region153: #{point_transformer_forward.1} parent=135 // pred_check
          %p1413 = pneg %p610
        $region154: #{point_transformer_forward.1} parent=135 // pred_check_branch
          %1415 = sbr.rel (%p1413) target = $region156
        $region155: #{point_transformer_forward.1} parent=135 // pred_region
          %p1416 = scmp.lt.s32.totalorder %s125, 1
          %s1417 = scalar_select %p1416, %s125, 1
          %s1418 = smul.addr %s1417, 16
          %s1419 = smul.addr %s1418, 4
          %s1420 = scalar_lea.vmem %s43, %s1419
        $region156: #{point_transformer_forward.1} parent=135 // pred_fallthru
          _
        // Predicated region
        $region157: #{point_transformer_forward.1} parent=135 // pred_check
          %p1421 = pneg %p636
        $region158: #{point_transformer_forward.1} parent=135 // pred_check_branch
          %1423 = sbr.rel (%p1421) target = $region160
        $region159: #{point_transformer_forward.1} parent=135 // pred_region
          %s1424 = sand.u32 %s117, 1
          %s1425 = scalar_lea.sflag [#allocation17], %s1424
          %s1426 = sand.u32 %s626, 1
          %s1427 = smul.addr %s1426, 32
          %s1428 = scalar_lea.vmem [#allocation16], %s1427
          %s1430 = ssub.s32 512, 512
          %1431 = vsyncadd %s1425, %s1430
          %s1432 = smul.addr %s125, 8
          %s1433 = smul.addr %s1432, 64
          %s1434 = scalar_lea.hbm %s45, %s1433
          %s1435 = sshll.u32 %s1428, 4
          %s1436 = int_to_ptr.vmem [resolvable:$true] %s1435
          %1441 = dma.hbm_to_vmem [thread:$0]  %s1434, 512, %s1436, %s1425, 64, 64, 4
        $region160: #{point_transformer_forward.1} parent=135 // pred_fallthru
          _
        // Predicated region
        $region161: #{point_transformer_forward.1} parent=135 // pred_check
          %p1442 = pneg %p662
        $region162: #{point_transformer_forward.1} parent=135 // pred_check_branch
          %1444 = sbr.rel (%p1442) target = $region164
        $region163: #{point_transformer_forward.1} parent=135 // pred_region
          %s1445 = sand.u32 %s117, 1
          %s1446 = scalar_lea.sflag [#allocation17], %s1445
          %s1447 = sand.u32 %s652, 1
          %s1448 = scalar_lea.vmem [#allocation18], %s1447
          %s1450 = ssub.s32 16, 16
          %1451 = vsyncadd %s1446, %s1450
          %s1452 = smul.addr %s125, 16
          %s1453 = scalar_lea.hbm %s47, %s1452
          %s1455 = sshll.u32 %s1448, 4
          %s1456 = int_to_ptr.vmem [resolvable:$true] %s1455
          %1458 = dma.hbm_to_vmem [thread:$0]  %s1453, 16, %s1456, %s1446
        $region164: #{point_transformer_forward.1} parent=135 // pred_fallthru
          _
        // Predicated region
        $region165: #{point_transformer_forward.1} parent=135 // pred_check
          %p1459 = pneg %p688
        $region166: #{point_transformer_forward.1} parent=135 // pred_check_branch
          %1461 = sbr.rel (%p1459) target = $region168
        $region167: #{point_transformer_forward.1} parent=135 // pred_region
          %s1462 = sand.u32 %s117, 1
          %s1463 = scalar_lea.sflag [#allocation20], %s1462
          %s1464 = sand.u32 %s678, 1
          %s1465 = scalar_lea.vmem [#allocation19], %s1464
          %s1467 = ssub.s32 16, 16
          %1468 = vsyncadd %s1463, %s1467
          %s1469 = smul.addr %s125, 16
          %s1470 = scalar_lea.hbm %s49, %s1469
          %s1472 = sshll.u32 %s1465, 4
          %s1473 = int_to_ptr.vmem [resolvable:$true] %s1472
          %1475 = dma.hbm_to_vmem [thread:$0]  %s1470, 16, %s1473, %s1463
        $region168: #{point_transformer_forward.1} parent=135 // pred_fallthru
          _
        // Predicated region
        $region169: #{point_transformer_forward.1} parent=135 // pred_check
          %p1476 = pneg %p714
        $region170: #{point_transformer_forward.1} parent=135 // pred_check_branch
          %1478 = sbr.rel (%p1476) target = $region172
        $region171: #{point_transformer_forward.1} parent=135 // pred_region
          %s1479 = sand.u32 %s117, 1
          %s1480 = scalar_lea.sflag [#allocation20], %s1479
          %s1481 = sand.u32 %s704, 1
          %s1482 = scalar_lea.vmem [#allocation21], %s1481
          %s1484 = ssub.s32 16, 16
          %1485 = vsyncadd %s1480, %s1484
          %s1486 = smul.addr %s125, 16
          %s1487 = scalar_lea.hbm %s51, %s1486
          %s1489 = sshll.u32 %s1482, 4
          %s1490 = int_to_ptr.vmem [resolvable:$true] %s1489
          %1492 = dma.hbm_to_vmem [thread:$0]  %s1487, 16, %s1490, %s1480
        $region172: #{point_transformer_forward.1} parent=135 // pred_fallthru
          _
        // Predicated region
        $region173: #{point_transformer_forward.1} parent=135 // pred_check
          %p1493 = pneg %p740
        $region174: #{point_transformer_forward.1} parent=135 // pred_check_branch
          %1495 = sbr.rel (%p1493) target = $region176
        $region175: #{point_transformer_forward.1} parent=135 // pred_region
          %p1496 = scmp.lt.s32.totalorder %s125, 1
          %s1497 = scalar_select %p1496, %s125, 1
          %s1498 = smul.addr %s1497, 16
          %s1499 = smul.addr %s1498, 4
          %s1500 = scalar_lea.vmem %s53, %s1499
        $region176: #{point_transformer_forward.1} parent=135 // pred_fallthru
          _
        // Predicated region
        $region177: #{point_transformer_forward.1} parent=135 // pred_check
          %p1501 = pneg %p766
        $region178: #{point_transformer_forward.1} parent=135 // pred_check_branch
          %1503 = sbr.rel (%p1501) target = $region180
        $region179: #{point_transformer_forward.1} parent=135 // pred_region
          %s1504 = sand.u32 %s117, 1
          %s1505 = scalar_lea.sflag [#allocation23], %s1504
          %s1506 = sand.u32 %s756, 1
          %s1507 = smul.addr %s1506, 2
          %s1508 = scalar_lea.vmem [#allocation22], %s1507
          %s1510 = ssub.s32 32, 32
          %1511 = vsyncadd %s1505, %s1510
          %s1512 = smul.addr %s125, 2
          %s1513 = smul.addr %s1512, 16
          %s1514 = scalar_lea.hbm %s55, %s1513
          %s1516 = sshll.u32 %s1508, 4
          %s1517 = int_to_ptr.vmem [resolvable:$true] %s1516
          %1519 = dma.hbm_to_vmem [thread:$0]  %s1514, 32, %s1517, %s1505
        $region180: #{point_transformer_forward.1} parent=135 // pred_fallthru
          _
        // Predicated region
        $region181: #{point_transformer_forward.1} parent=135 // pred_check
          %p1520 = pneg %p792
        $region182: #{point_transformer_forward.1} parent=135 // pred_check_branch
          %1522 = sbr.rel (%p1520) target = $region184
        $region183: #{point_transformer_forward.1} parent=135 // pred_region
          %p1523 = scmp.lt.s32.totalorder %s125, 1
          %s1524 = scalar_select %p1523, %s125, 1
          %s1525 = smul.addr %s1524, 32
          %s1526 = smul.addr %s1525, 4
          %s1527 = scalar_lea.vmem %s57, %s1526
        $region184: #{point_transformer_forward.1} parent=135 // pred_fallthru
          _
        // Predicated region
        $region185: #{point_transformer_forward.1} parent=135 // pred_check
          %p1528 = pneg %p818
        $region186: #{point_transformer_forward.1} parent=135 // pred_check_branch
          %1530 = sbr.rel (%p1528) target = $region188
        $region187: #{point_transformer_forward.1} parent=135 // pred_region
          %s1531 = sand.u32 %s117, 1
          %s1532 = scalar_lea.sflag [#allocation23], %s1531
          %s1533 = sand.u32 %s808, 1
          %s1534 = scalar_lea.vmem [#allocation24], %s1533
          %s1536 = ssub.s32 16, 16
          %1537 = vsyncadd %s1532, %s1536
          %s1538 = smul.addr %s125, 16
          %s1539 = scalar_lea.hbm %s59, %s1538
          %s1541 = sshll.u32 %s1534, 4
          %s1542 = int_to_ptr.vmem [resolvable:$true] %s1541
          %1544 = dma.hbm_to_vmem [thread:$0]  %s1539, 16, %s1542, %s1532
        $region188: #{point_transformer_forward.1} parent=135 // pred_fallthru
          _
      $region136: #{point_transformer_forward.1} parent=5 // pred_fallthru
        _
      %p1545 = scmp.le.s32.totalorder 1, %s117
      %p1546 = scmp.lt.s32.totalorder %s117, 5
      %p1547 = pnand %p1545, %p1546
      %p1548 = pneg %p1547
      // Predicated region
      $region189: #{point_transformer_forward.1} parent=5 // pred_check
        _
      $region190: #{point_transformer_forward.1} parent=5 // pred_check_branch
        %1550 = sbr.rel (%p1547) target = $region192
      $region191: #{point_transformer_forward.1} parent=5 // pred_region
        %s1551 = ssub.s32 %s117, 1
        // Predicated region
        $region193: #{point_transformer_forward.1} parent=191 // pred_check
          %p1552 = pneg %p433
        $region194: #{point_transformer_forward.1} parent=191 // pred_check_branch
          %1554 = sbr.rel (%p1552) target = $region196
        $region195: #{point_transformer_forward.1} parent=191 // pred_region
          %1555 = dma.done [#allocation5], 128
        $region196: #{point_transformer_forward.1} parent=191 // pred_fallthru
          _
        // Predicated region
        $region197: #{point_transformer_forward.1} parent=191 // pred_check
          %p1556 = pneg %p454
        $region198: #{point_transformer_forward.1} parent=191 // pred_check_branch
          %1558 = sbr.rel (%p1556) target = $region200
        $region199: #{point_transformer_forward.1} parent=191 // pred_region
          %1559 = dma.done [#allocation8], 16
        $region200: #{point_transformer_forward.1} parent=191 // pred_fallthru
          _
        // Predicated region
        $region201: #{point_transformer_forward.1} parent=191 // pred_check
          %p1560 = pneg %p496
        $region202: #{point_transformer_forward.1} parent=191 // pred_check_branch
          %1562 = sbr.rel (%p1560) target = $region204
        $region203: #{point_transformer_forward.1} parent=191 // pred_region
          %1563 = dma.done [#allocation8], 16
        $region204: #{point_transformer_forward.1} parent=191 // pred_fallthru
          _
        // Predicated region
        $region205: #{point_transformer_forward.1} parent=191 // pred_check
          %p1564 = pneg %p517
        $region206: #{point_transformer_forward.1} parent=191 // pred_check_branch
          %1566 = sbr.rel (%p1564) target = $region208
        $region207: #{point_transformer_forward.1} parent=191 // pred_region
          %1567 = dma.done [#allocation11], 16
        $region208: #{point_transformer_forward.1} parent=191 // pred_fallthru
          _
        // Predicated region
        $region209: #{point_transformer_forward.1} parent=191 // pred_check
          %p1568 = pneg %p538
        $region210: #{point_transformer_forward.1} parent=191 // pred_check_branch
          %1570 = sbr.rel (%p1568) target = $region212
        $region211: #{point_transformer_forward.1} parent=191 // pred_region
          %1571 = dma.done [#allocation11], 16
        $region212: #{point_transformer_forward.1} parent=191 // pred_fallthru
          _
        %s1572 = sand.u32 %s122, 1
        %s1573 = scalar_lea.sflag [#allocation14], %s1572
        %s1574 = sand.u32 %s551, 1
        %s1575 = scalar_lea.vmem [#allocation13], %s1574
        // Predicated region
        $region213: #{point_transformer_forward.1} parent=191 // pred_check
          %p1576 = pneg %p564
        $region214: #{point_transformer_forward.1} parent=191 // pred_check_branch
          %1578 = sbr.rel (%p1576) target = $region216
        $region215: #{point_transformer_forward.1} parent=191 // pred_region
          %1579 = dma.done %s1573, 16
        $region216: #{point_transformer_forward.1} parent=191 // pred_fallthru
          _
        %s1580 = sand.u32 %s122, 1
        %s1581 = scalar_lea.sflag [#allocation14], %s1580
        %s1582 = sand.u32 %s577, 1
        %s1583 = scalar_lea.vmem [#allocation15], %s1582
        // Predicated region
        $region217: #{point_transformer_forward.1} parent=191 // pred_check
          %p1584 = pneg %p590
        $region218: #{point_transformer_forward.1} parent=191 // pred_check_branch
          %1586 = sbr.rel (%p1584) target = $region220
        $region219: #{point_transformer_forward.1} parent=191 // pred_region
          %1587 = dma.done %s1581, 16
        $region220: #{point_transformer_forward.1} parent=191 // pred_fallthru
          _
        %s1588 = sand.u32 %s122, 1
        %s1589 = scalar_lea.sflag [#allocation17], %s1588
        %s1590 = sand.u32 %s629, 1
        %s1591 = smul.addr %s1590, 32
        %s1592 = scalar_lea.vmem [#allocation16], %s1591
        // Predicated region
        $region221: #{point_transformer_forward.1} parent=191 // pred_check
          %p1593 = pneg %p642
        $region222: #{point_transformer_forward.1} parent=191 // pred_check_branch
          %1595 = sbr.rel (%p1593) target = $region224
        $region223: #{point_transformer_forward.1} parent=191 // pred_region
          %1596 = dma.done %s1589, 512
        $region224: #{point_transformer_forward.1} parent=191 // pred_fallthru
          _
        %s1597 = sand.u32 %s122, 1
        %s1598 = scalar_lea.sflag [#allocation17], %s1597
        %s1599 = sand.u32 %s655, 1
        %s1600 = scalar_lea.vmem [#allocation18], %s1599
        // Predicated region
        $region225: #{point_transformer_forward.1} parent=191 // pred_check
          %p1601 = pneg %p668
        $region226: #{point_transformer_forward.1} parent=191 // pred_check_branch
          %1603 = sbr.rel (%p1601) target = $region228
        $region227: #{point_transformer_forward.1} parent=191 // pred_region
          %1604 = dma.done %s1598, 16
        $region228: #{point_transformer_forward.1} parent=191 // pred_fallthru
          _
        %s1605 = sand.u32 %s122, 1
        %s1606 = scalar_lea.sflag [#allocation20], %s1605
        %s1607 = sand.u32 %s681, 1
        %s1608 = scalar_lea.vmem [#allocation19], %s1607
        // Predicated region
        $region229: #{point_transformer_forward.1} parent=191 // pred_check
          %p1609 = pneg %p694
        $region230: #{point_transformer_forward.1} parent=191 // pred_check_branch
          %1611 = sbr.rel (%p1609) target = $region232
        $region231: #{point_transformer_forward.1} parent=191 // pred_region
          %1612 = dma.done %s1606, 16
        $region232: #{point_transformer_forward.1} parent=191 // pred_fallthru
          _
        %s1613 = sand.u32 %s122, 1
        %s1614 = scalar_lea.sflag [#allocation20], %s1613
        %s1615 = sand.u32 %s707, 1
        %s1616 = scalar_lea.vmem [#allocation21], %s1615
        // Predicated region
        $region233: #{point_transformer_forward.1} parent=191 // pred_check
          %p1617 = pneg %p720
        $region234: #{point_transformer_forward.1} parent=191 // pred_check_branch
          %1619 = sbr.rel (%p1617) target = $region236
        $region235: #{point_transformer_forward.1} parent=191 // pred_region
          %1620 = dma.done %s1614, 16
        $region236: #{point_transformer_forward.1} parent=191 // pred_fallthru
          _
        %s1621 = sand.u32 %s122, 1
        %s1622 = scalar_lea.sflag [#allocation23], %s1621
        %s1623 = sand.u32 %s759, 1
        %s1624 = smul.addr %s1623, 2
        %s1625 = scalar_lea.vmem [#allocation22], %s1624
        // Predicated region
        $region237: #{point_transformer_forward.1} parent=191 // pred_check
          %p1626 = pneg %p772
        $region238: #{point_transformer_forward.1} parent=191 // pred_check_branch
          %1628 = sbr.rel (%p1626) target = $region240
        $region239: #{point_transformer_forward.1} parent=191 // pred_region
          %1629 = dma.done %s1622, 32
        $region240: #{point_transformer_forward.1} parent=191 // pred_fallthru
          _
        %s1630 = sand.u32 %s122, 1
        %s1631 = scalar_lea.sflag [#allocation23], %s1630
        %s1632 = sand.u32 %s811, 1
        %s1633 = scalar_lea.vmem [#allocation24], %s1632
        // Predicated region
        $region241: #{point_transformer_forward.1} parent=191 // pred_check
          %p1634 = pneg %p824
        $region242: #{point_transformer_forward.1} parent=191 // pred_check_branch
          %1636 = sbr.rel (%p1634) target = $region244
        $region243: #{point_transformer_forward.1} parent=191 // pred_region
          %1637 = dma.done %s1631, 16
        $region244: #{point_transformer_forward.1} parent=191 // pred_fallthru
          _
        // Predicated region
        $region245: #{point_transformer_forward.1} parent=191 // pred_check
          %p1638 = pneg %p845
        $region246: #{point_transformer_forward.1} parent=191 // pred_check_branch
          %1640 = sbr.rel (%p1638) target = $region248
        $region247: #{point_transformer_forward.1} parent=191 // pred_region
          %1641 = dma.done [#allocation26], 16
        $region248: #{point_transformer_forward.1} parent=191 // pred_fallthru
          _
        // Predicated region
        $region249: #{point_transformer_forward.1} parent=191 // pred_check
          %p1642 = pneg %p866
        $region250: #{point_transformer_forward.1} parent=191 // pred_check_branch
          %1644 = sbr.rel (%p1642) target = $region252
        $region251: #{point_transformer_forward.1} parent=191 // pred_region
          %1645 = dma.done [#allocation26], 16
        $region252: #{point_transformer_forward.1} parent=191 // pred_fallthru
          _
        // Predicated region
        $region253: #{point_transformer_forward.1} parent=191 // pred_check
          %p1646 = pneg %p887
        $region254: #{point_transformer_forward.1} parent=191 // pred_check_branch
          %1648 = sbr.rel (%p1646) target = $region256
        $region255: #{point_transformer_forward.1} parent=191 // pred_region
          %1649 = dma.done [#allocation29], 1024
        $region256: #{point_transformer_forward.1} parent=191 // pred_fallthru
          _
        // Predicated region
        $region257: #{point_transformer_forward.1} parent=191 // pred_check
          %p1650 = pneg %p908
        $region258: #{point_transformer_forward.1} parent=191 // pred_check_branch
          %1652 = sbr.rel (%p1650) target = $region260
        $region259: #{point_transformer_forward.1} parent=191 // pred_region
          %1653 = dma.done [#allocation29], 1024
        $region260: #{point_transformer_forward.1} parent=191 // pred_fallthru
          _
        // Predicated region
        $region261: #{point_transformer_forward.1} parent=191 // pred_check
          %p1654 = pneg %p929
        $region262: #{point_transformer_forward.1} parent=191 // pred_check_branch
          %1656 = sbr.rel (%p1654) target = $region264
        $region263: #{point_transformer_forward.1} parent=191 // pred_region
          %1657 = dma.done [#allocation32], 32
        $region264: #{point_transformer_forward.1} parent=191 // pred_fallthru
          _
        // Predicated region
        $region265: #{point_transformer_forward.1} parent=191 // pred_check
          %p1658 = pneg %p950
        $region266: #{point_transformer_forward.1} parent=191 // pred_check_branch
          %1660 = sbr.rel (%p1658) target = $region268
        $region267: #{point_transformer_forward.1} parent=191 // pred_region
          %1661 = dma.done [#allocation32], 32
        $region268: #{point_transformer_forward.1} parent=191 // pred_fallthru
          _
        // Predicated region
        $region269: #{point_transformer_forward.1} parent=191 // pred_check
          %p1662 = pneg %p971
        $region270: #{point_transformer_forward.1} parent=191 // pred_check_branch
          %1664 = sbr.rel (%p1662) target = $region272
        $region271: #{point_transformer_forward.1} parent=191 // pred_region
          %1665 = dma.done [#allocation35], 32
        $region272: #{point_transformer_forward.1} parent=191 // pred_fallthru
          _
        // Predicated region
        $region273: #{point_transformer_forward.1} parent=191 // pred_check
          %p1666 = pneg %p1013
        $region274: #{point_transformer_forward.1} parent=191 // pred_check_branch
          %1668 = sbr.rel (%p1666) target = $region276
        $region275: #{point_transformer_forward.1} parent=191 // pred_region
          %1669 = dma.done [#allocation35], 32
        $region276: #{point_transformer_forward.1} parent=191 // pred_fallthru
          _
        // Predicated region
        $region277: #{point_transformer_forward.1} parent=191 // pred_check
          %p1670 = pneg %p1034
        $region278: #{point_transformer_forward.1} parent=191 // pred_check_branch
          %1672 = sbr.rel (%p1670) target = $region280
        $region279: #{point_transformer_forward.1} parent=191 // pred_region
          %1673 = dma.done [#allocation38], 32
        $region280: #{point_transformer_forward.1} parent=191 // pred_fallthru
          _
        // Predicated region
        $region281: #{point_transformer_forward.1} parent=191 // pred_check
          %p1674 = pneg %p1055
        $region282: #{point_transformer_forward.1} parent=191 // pred_check_branch
          %1676 = sbr.rel (%p1674) target = $region284
        $region283: #{point_transformer_forward.1} parent=191 // pred_region
          %1677 = dma.done [#allocation38], 32
        $region284: #{point_transformer_forward.1} parent=191 // pred_fallthru
          _
        // Predicated region
        $region285: #{point_transformer_forward.1} parent=191 // pred_check
          %p1678 = pneg %p1097
        $region286: #{point_transformer_forward.1} parent=191 // pred_check_branch
          %1680 = sbr.rel (%p1678) target = $region288
        $region287: #{point_transformer_forward.1} parent=191 // pred_region
          %1681 = dma.done [#allocation41], 16
        $region288: #{point_transformer_forward.1} parent=191 // pred_fallthru
          _
        %p1682 = scmp.lt.s32.totalorder %s126, 1
        %s1683 = scalar_select %p1682, %s126, 1
        %s1684 = smul.addr %s1683, 16
        %s1685 = smul.addr %s1684, 8
        %s1686 = scalar_lea.vmem %s1, %s1685
        %p1687 = pneg %p155
        %p1688 = pneg %p152
        %p1689 = scmp.lt.s32.totalorder %s126, 1
        %s1690 = scalar_select %p1689, %s126, 1
        %s1691 = smul.addr %s1690, 8
        %s1692 = scalar_lea.vmem %s3, %s1691
        %p1693 = pneg %p181
        %p1694 = pneg %p178
        %p1695 = pneg %p202
        %p1696 = pneg %p199
        %p1697 = pneg %p223
        %p1698 = pneg %p220
        %p1699 = pneg %p244
        %p1700 = pneg %p241
        %p1701 = pneg %p265
        %p1702 = pneg %p262
        %p1703 = pneg %p286
        %p1704 = pneg %p283
        %p1705 = pneg %p307
        %p1706 = pneg %p304
        %p1707 = pneg %p328
        %p1708 = pneg %p325
        %p1709 = pneg %p349
        %p1710 = pneg %p346
        %p1711 = pneg %p370
        %p1712 = pneg %p367
        %p1713 = pneg %p391
        %p1714 = pneg %p388
        %p1715 = pneg %p412
        %p1716 = pneg %p409
        %p1717 = pneg %p433
        %p1718 = pneg %p430
        %p1719 = pneg %p454
        %p1720 = pneg %p451
        %p1721 = pneg %p475
        %p1722 = pneg %p472
        %p1723 = pneg %p496
        %p1724 = pneg %p493
        %p1725 = pneg %p517
        %p1726 = pneg %p514
        %p1727 = pneg %p538
        %p1728 = pneg %p535
        %s1729 = sand.u32 %s122, 1
        %s1730 = scalar_lea.sflag [#allocation14], %s1729
        %s1731 = sand.u32 %s551, 1
        %s1732 = scalar_lea.vmem [#allocation13], %s1731
        %p1733 = pneg %p564
        %p1734 = pneg %p561
        %s1735 = sand.u32 %s122, 1
        %s1736 = scalar_lea.sflag [#allocation14], %s1735
        %s1737 = sand.u32 %s577, 1
        %s1738 = scalar_lea.vmem [#allocation15], %s1737
        %p1739 = pneg %p590
        %p1740 = pneg %p587
        %p1741 = scmp.lt.s32.totalorder %s127, 1
        %s1742 = scalar_select %p1741, %s127, 1
        %s1743 = smul.addr %s1742, 16
        %s1744 = smul.addr %s1743, 4
        %s1745 = scalar_lea.vmem %s43, %s1744
        %p1746 = pneg %p616
        %p1747 = pneg %p613
        %s1748 = sand.u32 %s122, 1
        %s1749 = scalar_lea.sflag [#allocation17], %s1748
        %s1750 = sand.u32 %s629, 1
        %s1751 = smul.addr %s1750, 32
        %s1752 = scalar_lea.vmem [#allocation16], %s1751
        %p1753 = pneg %p642
        %p1754 = pneg %p639
        %s1755 = sand.u32 %s122, 1
        %s1756 = scalar_lea.sflag [#allocation17], %s1755
        %s1757 = sand.u32 %s655, 1
        %s1758 = scalar_lea.vmem [#allocation18], %s1757
        %p1759 = pneg %p668
        %p1760 = pneg %p665
        %s1761 = sand.u32 %s122, 1
        %s1762 = scalar_lea.sflag [#allocation20], %s1761
        %s1763 = sand.u32 %s681, 1
        %s1764 = scalar_lea.vmem [#allocation19], %s1763
        %p1765 = pneg %p694
        %p1766 = pneg %p691
        %s1767 = sand.u32 %s122, 1
        %s1768 = scalar_lea.sflag [#allocation20], %s1767
        %s1769 = sand.u32 %s707, 1
        %s1770 = scalar_lea.vmem [#allocation21], %s1769
        %p1771 = pneg %p720
        %p1772 = pneg %p717
        %p1773 = scmp.lt.s32.totalorder %s127, 1
        %s1774 = scalar_select %p1773, %s127, 1
        %s1775 = smul.addr %s1774, 16
        %s1776 = smul.addr %s1775, 4
        %s1777 = scalar_lea.vmem %s53, %s1776
        %p1778 = pneg %p746
        %p1779 = pneg %p743
        %s1780 = sand.u32 %s122, 1
        %s1781 = scalar_lea.sflag [#allocation23], %s1780
        %s1782 = sand.u32 %s759, 1
        %s1783 = smul.addr %s1782, 2
        %s1784 = scalar_lea.vmem [#allocation22], %s1783
        %p1785 = pneg %p772
        %p1786 = pneg %p769
        %p1787 = scmp.lt.s32.totalorder %s127, 1
        %s1788 = scalar_select %p1787, %s127, 1
        %s1789 = smul.addr %s1788, 32
        %s1790 = smul.addr %s1789, 4
        %s1791 = scalar_lea.vmem %s57, %s1790
        %p1792 = pneg %p798
        %p1793 = pneg %p795
        %s1794 = sand.u32 %s122, 1
        %s1795 = scalar_lea.sflag [#allocation23], %s1794
        %s1796 = sand.u32 %s811, 1
        %s1797 = scalar_lea.vmem [#allocation24], %s1796
        %p1798 = pneg %p824
        %p1799 = pneg %p821
        %p1800 = pneg %p845
        %p1801 = pneg %p842
        %p1802 = pneg %p866
        %p1803 = pneg %p863
        %p1804 = pneg %p887
        %p1805 = pneg %p884
        %p1806 = pneg %p908
        %p1807 = pneg %p905
        %p1808 = pneg %p929
        %p1809 = pneg %p926
        %p1810 = pneg %p950
        %p1811 = pneg %p947
        %p1812 = pneg %p971
        %p1813 = pneg %p968
        %p1814 = pneg %p992
        %p1815 = pneg %p989
        %p1816 = pneg %p1013
        %p1817 = pneg %p1010
        %p1818 = pneg %p1034
        %p1819 = pneg %p1031
        %p1820 = pneg %p1055
        %p1821 = pneg %p1052
        %p1822 = pneg %p1076
        %p1823 = pneg %p1073
        %p1824 = pneg %p1097
        %p1825 = pneg %p1094
        %p1826 = pneg %p1123
        %p1827 = pneg %p1120
        %s1828 = sand.u32 %s1110, 1
        %s1829 = scalar_lea.sflag [#allocation6], %s1828
        %s1830 = sand.u32 %s1110, 1
        %s1831 = scalar_lea.vmem [#allocation42], %s1830
        %p1832 = scmp.lt.s32.totalorder %s126, 1
        %s1833 = scalar_select %p1832, %s126, 1
        %s1834 = smul.addr %s1833, 16
        %s1835 = smul.addr %s1834, 8
        %s1836 = scalar_lea.vmem %s1, %s1835
        %p1837 = scmp.lt.s32.totalorder %s126, 1
        %s1838 = scalar_select %p1837, %s126, 1
        %s1839 = smul.addr %s1838, 8
        %s1840 = scalar_lea.vmem %s3, %s1839
        %p1841 = scmp.lt.s32.totalorder %s127, 1
        %s1842 = scalar_select %p1841, %s127, 1
        %s1843 = smul.addr %s1842, 16
        %s1844 = smul.addr %s1843, 4
        %s1845 = scalar_lea.vmem %s43, %s1844
        %p1846 = scmp.lt.s32.totalorder %s127, 1
        %s1847 = scalar_select %p1846, %s127, 1
        %s1848 = smul.addr %s1847, 16
        %s1849 = smul.addr %s1848, 4
        %s1850 = scalar_lea.vmem %s53, %s1849
        %p1851 = scmp.lt.s32.totalorder %s127, 1
        %s1852 = scalar_select %p1851, %s127, 1
        %s1853 = smul.addr %s1852, 32
        %s1854 = smul.addr %s1853, 4
        %s1855 = scalar_lea.vmem %s57, %s1854
        %p1857 = scmp.eq.s32.totalorder %s127, 0
        // Predicated region
        $region289: #{point_transformer_forward.1} parent=191 // pred_check
          %p1858 = pneg %p1857
        $region290: #{point_transformer_forward.1} parent=191 // pred_check_branch
          %1860 = sbr.rel (%p1858) target = $region292
        $region291: #{point_transformer_forward.1} parent=191 // pred_region
          %v1861 = vld [vmem:[%s1836] sm:$0xff]
          %v1862 = vld [vmem:[%s1836 + $0x8] sm:$0xff]
          %v1863 = vld [vmem:[%s1836 + $0x10] sm:$0xff]
          %v1864 = vld [vmem:[%s1836 + $0x18] sm:$0xff]
          %v1865 = vld [vmem:[%s1836 + $0x20] sm:$0xff]
          %v1866 = vld [vmem:[%s1836 + $0x28] sm:$0xff]
          %v1867 = vld [vmem:[%s1836 + $0x30] sm:$0xff]
          %v1868 = vld [vmem:[%s1836 + $0x38] sm:$0xff]
          %v1869 = vld [vmem:[%s1836 + $0x40] sm:$0xff]
          %v1870 = vld [vmem:[%s1836 + $0x48] sm:$0xff]
          %v1871 = vld [vmem:[%s1836 + $0x50] sm:$0xff]
          %v1872 = vld [vmem:[%s1836 + $0x58] sm:$0xff]
          %v1873 = vld [vmem:[%s1836 + $0x60] sm:$0xff]
          %v1874 = vld [vmem:[%s1836 + $0x68] sm:$0xff]
          %v1875 = vld [vmem:[%s1836 + $0x70] sm:$0xff]
          %v1876 = vld [vmem:[%s1836 + $0x78] sm:$0xff]
          %v1877 = vld [vmem:[%s5] sm:$0xff]
          %vm1878 = vcmask 64512
          %v1880 = vsel %vm1878, %v1861, 0
          %v1883 = vsel %vm1878, %v1862, 0
          %v1886 = vsel %vm1878, %v1863, 0
          %v1889 = vsel %vm1878, %v1864, 0
          %v1892 = vsel %vm1878, %v1865, 0
          %v1895 = vsel %vm1878, %v1866, 0
          %v1898 = vsel %vm1878, %v1867, 0
          %v1901 = vsel %vm1878, %v1868, 0
          %v1904 = vsel %vm1878, %v1869, 0
          %v1907 = vsel %vm1878, %v1870, 0
          %v1910 = vsel %vm1878, %v1871, 0
          %v1913 = vsel %vm1878, %v1872, 0
          %v1916 = vsel %vm1878, %v1873, 0
          %v1919 = vsel %vm1878, %v1874, 0
          %v1922 = vsel %vm1878, %v1875, 0
          %v1925 = vsel %vm1878, %v1876, 0
          %1927 = vmatprep.subr.mxu0 0.0
          %1928 = vmatpush1.msra.mxu0 %v1877
          %1929 = vmatprep.subr.mxu0 0.0
          %1930 = vmatpush1.msra.mxu0 0.0
          %1931 = vmatprep.subr.mxu0 0.0
          %1932 = vmatpush1.msra.mxu0 0.0
          %1933 = vmatprep.subr.mxu0 0.0
          %1934 = vmatpush1.msra.mxu0 0.0
          %1935 = vmatprep.subr.mxu0 0.0
          %1936 = vmatpush1.msra.mxu0 0.0
          %1937 = vmatprep.subr.mxu0 0.0
          %1938 = vmatpush1.msra.mxu0 0.0
          %1939 = vmatprep.subr.mxu0 0.0
          %1940 = vmatpush1.msra.mxu0 0.0
          %1941 = vmatprep.subr.mxu0 0.0
          %1942 = vmatpush1.msra.mxu0 0.0
          %1943 = vmatprep.subr.mxu0 0.0
          %1944 = vmatpush1.msra.mxu0 0.0
          %1945 = vmatprep.subr.mxu0 0.0
          %1946 = vmatpush1.msra.mxu0 0.0
          %1947 = vmatprep.subr.mxu0 0.0
          %1948 = vmatpush1.msra.mxu0 0.0
          %1949 = vmatprep.subr.mxu0 0.0
          %1950 = vmatpush1.msra.mxu0 0.0
          %1951 = vmatprep.subr.mxu0 0.0
          %1952 = vmatpush1.msra.mxu0 0.0
          %1953 = vmatprep.subr.mxu0 0.0
          %1954 = vmatpush1.msra.mxu0 0.0
          %1955 = vmatprep.subr.mxu0 0.0
          %1956 = vmatpush1.msra.mxu0 0.0
          %1957 = vmatprep.subr.mxu0 0.0
          %1958 = vmatpush1.msra.mxu0 0.0
          %1959 = vmatprep.subr.mxu0 0.0
          %1960 = vmatpush1.msra.mxu0 0.0
          %1961 = vmatprep.subr.mxu0 0.0
          %1962 = vmatpush1.msra.mxu0 0.0
          %1963 = vmatprep.subr.mxu0 0.0
          %1964 = vmatpush1.msra.mxu0 0.0
          %1965 = vmatprep.subr.mxu0 0.0
          %1966 = vmatpush1.msra.mxu0 0.0
          %1967 = vmatprep.subr.mxu0 0.0
          %1968 = vmatpush1.msra.mxu0 0.0
          %1969 = vmatprep.subr.mxu0 0.0
          %1970 = vmatpush1.msra.mxu0 0.0
          %1971 = vmatprep.subr.mxu0 0.0
          %1972 = vmatpush1.msra.mxu0 0.0
          %1973 = vmatprep.subr.mxu0 0.0
          %1974 = vmatpush1.msra.mxu0 0.0
          %1975 = vmatprep.subr.mxu0 0.0
          %1976 = vmatpush1.msra.mxu0 0.0
          %1977 = vmatprep.subr.mxu0 0.0
          %1978 = vmatpush1.msra.mxu0 0.0
          %1979 = vmatprep.subr.mxu0 0.0
          %1980 = vmatpush1.msra.mxu0 0.0
          %1981 = vmatprep.subr.mxu0 0.0
          %1982 = vmatpush1.msra.mxu0 0.0
          %1983 = vmatprep.subr.mxu0 0.0
          %1984 = vmatpush1.msra.mxu0 0.0
          %1985 = vmatprep.subr.mxu0 0.0
          %1986 = vmatpush1.msra.mxu0 0.0
          %1987 = vmatprep.subr.mxu0 0.0
          %1988 = vmatpush1.msra.mxu0 0.0
          %1989 = vmatprep.subr.mxu0 0.0
          %1990 = vmatpush1.msra.mxu0 0.0
          %1991 = vmatprep.mubr.f32.mxu0 0.0
          %1992 = vmatmul.mubr.f32.gmra.mrb[0].mxu0 %v1880
          %v1993 = vpop.f32.mrb[0].mxu0
          %v1994 = vadd.f32 0.0, %v1993
          %v1995 = vpop.f32.mrb[0].mxu0
          %1996 = vmatprep.mubr.f32.mxu0 0.0
          %1997 = vmatmul.mubr.f32.gmra.mrb[0].mxu0 %v1883
          %v1998 = vpop.f32.mrb[0].mxu0
          %v1999 = vadd.f32 0.0, %v1998
          %v2000 = vpop.f32.mrb[0].mxu0
          %2001 = vmatprep.mubr.f32.mxu0 0.0
          %2002 = vmatmul.mubr.f32.gmra.mrb[0].mxu0 %v1886
          %v2003 = vpop.f32.mrb[0].mxu0
          %v2004 = vadd.f32 0.0, %v2003
          %v2005 = vpop.f32.mrb[0].mxu0
          %2006 = vmatprep.mubr.f32.mxu0 0.0
          %2007 = vmatmul.mubr.f32.gmra.mrb[0].mxu0 %v1889
          %v2008 = vpop.f32.mrb[0].mxu0
          %v2009 = vadd.f32 0.0, %v2008
          %v2010 = vpop.f32.mrb[0].mxu0
          %2011 = vmatprep.mubr.f32.mxu0 0.0
          %2012 = vmatmul.mubr.f32.gmra.mrb[0].mxu0 %v1892
          %v2013 = vpop.f32.mrb[0].mxu0
          %v2014 = vadd.f32 0.0, %v2013
          %v2015 = vpop.f32.mrb[0].mxu0
          %2016 = vmatprep.mubr.f32.mxu0 0.0
          %2017 = vmatmul.mubr.f32.gmra.mrb[0].mxu0 %v1895
          %v2018 = vpop.f32.mrb[0].mxu0
          %v2019 = vadd.f32 0.0, %v2018
          %v2020 = vpop.f32.mrb[0].mxu0
          %2021 = vmatprep.mubr.f32.mxu0 0.0
          %2022 = vmatmul.mubr.f32.gmra.mrb[0].mxu0 %v1898
          %v2023 = vpop.f32.mrb[0].mxu0
          %v2024 = vadd.f32 0.0, %v2023
          %v2025 = vpop.f32.mrb[0].mxu0
          %2026 = vmatprep.mubr.f32.mxu0 0.0
          %2027 = vmatmul.mubr.f32.gmra.mrb[0].mxu0 %v1901
          %v2028 = vpop.f32.mrb[0].mxu0
          %v2029 = vadd.f32 0.0, %v2028
          %v2030 = vpop.f32.mrb[0].mxu0
          %2031 = vmatprep.mubr.f32.mxu0 0.0
          %2032 = vmatmul.mubr.f32.gmra.mrb[0].mxu0 %v1904
          %v2033 = vpop.f32.mrb[0].mxu0
          %v2034 = vadd.f32 0.0, %v2033
          %v2035 = vpop.f32.mrb[0].mxu0
          %2036 = vmatprep.mubr.f32.mxu0 0.0
          %2037 = vmatmul.mubr.f32.gmra.mrb[0].mxu0 %v1907
          %v2038 = vpop.f32.mrb[0].mxu0
          %v2039 = vadd.f32 0.0, %v2038
          %v2040 = vpop.f32.mrb[0].mxu0
          %2041 = vmatprep.mubr.f32.mxu0 0.0
          %2042 = vmatmul.mubr.f32.gmra.mrb[0].mxu0 %v1910
          %v2043 = vpop.f32.mrb[0].mxu0
          %v2044 = vadd.f32 0.0, %v2043
          %v2045 = vpop.f32.mrb[0].mxu0
          %2046 = vmatprep.mubr.f32.mxu0 0.0
          %2047 = vmatmul.mubr.f32.gmra.mrb[0].mxu0 %v1913
          %v2048 = vpop.f32.mrb[0].mxu0
          %v2049 = vadd.f32 0.0, %v2048
          %v2050 = vpop.f32.mrb[0].mxu0
          %2051 = vmatprep.mubr.f32.mxu0 0.0
          %2052 = vmatmul.mubr.f32.gmra.mrb[0].mxu0 %v1916
          %v2053 = vpop.f32.mrb[0].mxu0
          %v2054 = vadd.f32 0.0, %v2053
          %v2055 = vpop.f32.mrb[0].mxu0
          %2056 = vmatprep.mubr.f32.mxu0 0.0
          %2057 = vmatmul.mubr.f32.gmra.mrb[0].mxu0 %v1919
          %v2058 = vpop.f32.mrb[0].mxu0
          %v2059 = vadd.f32 0.0, %v2058
          %v2060 = vpop.f32.mrb[0].mxu0
          %2061 = vmatprep.mubr.f32.mxu0 0.0
          %2062 = vmatmul.mubr.f32.gmra.mrb[0].mxu0 %v1922
          %v2063 = vpop.f32.mrb[0].mxu0
          %v2064 = vadd.f32 0.0, %v2063
          %v2065 = vpop.f32.mrb[0].mxu0
          %2066 = vmatprep.mubr.f32.mxu0 0.0
          %2067 = vmatmul.mubr.f32.gmra.mrb[0].mxu0 %v1925
          %v2068 = vpop.f32.mrb[0].mxu0
          %v2069 = vadd.f32 0.0, %v2068
          %v2070 = vpop.f32.mrb[0].mxu0
          %2071 = vdwg.mxu0
          %v2072 = vld [vmem:[%s7] sm:$0x1]
          %v2074 = vlaneseq
          %v2075 = vshrl.u32 %v2074, 7
          %v2076 = vsub.s32 0, %v2075
          %v2077 = vrot.slane %v2072, %v2076
          %v2079 = vmul.f32 %v1994, %v2077
          %v2080 = vmul.f32 %v1999, %v2077
          %v2081 = vmul.f32 %v2004, %v2077
          %v2082 = vmul.f32 %v2009, %v2077
          %v2083 = vmul.f32 %v2014, %v2077
          %v2084 = vmul.f32 %v2019, %v2077
          %v2085 = vmul.f32 %v2024, %v2077
          %v2086 = vmul.f32 %v2029, %v2077
          %v2087 = vmul.f32 %v2034, %v2077
          %v2088 = vmul.f32 %v2039, %v2077
          %v2089 = vmul.f32 %v2044, %v2077
          %v2090 = vmul.f32 %v2049, %v2077
          %v2091 = vmul.f32 %v2054, %v2077
          %v2092 = vmul.f32 %v2059, %v2077
          %v2093 = vmul.f32 %v2064, %v2077
          %v2094 = vmul.f32 %v2069, %v2077
          %v2095 = vld [vmem:[%s9] sm:$0x1]
          %v2097 = vlaneseq
          %v2098 = vshrl.u32 %v2097, 7
          %v2099 = vsub.s32 0, %v2098
          %v2100 = vrot.slane %v2095, %v2099
          %v2102 = vadd.f32 %v2079, %v2100
          %v2103 = vadd.f32 %v2080, %v2100
          %v2104 = vadd.f32 %v2081, %v2100
          %v2105 = vadd.f32 %v2082, %v2100
          %v2106 = vadd.f32 %v2083, %v2100
          %v2107 = vadd.f32 %v2084, %v2100
          %v2108 = vadd.f32 %v2085, %v2100
          %v2109 = vadd.f32 %v2086, %v2100
          %v2110 = vadd.f32 %v2087, %v2100
          %v2111 = vadd.f32 %v2088, %v2100
          %v2112 = vadd.f32 %v2089, %v2100
          %v2113 = vadd.f32 %v2090, %v2100
          %v2114 = vadd.f32 %v2091, %v2100
          %v2115 = vadd.f32 %v2092, %v2100
          %v2116 = vadd.f32 %v2093, %v2100
          %v2117 = vadd.f32 %v2094, %v2100
          %v2118 = vmax.f32 %v2102, 0.0
          %v2119 = vmax.f32 %v2103, 0.0
          %v2120 = vmax.f32 %v2104, 0.0
          %v2121 = vmax.f32 %v2105, 0.0
          %v2122 = vmax.f32 %v2106, 0.0
          %v2123 = vmax.f32 %v2107, 0.0
          %v2124 = vmax.f32 %v2108, 0.0
          %v2125 = vmax.f32 %v2109, 0.0
          %v2126 = vmax.f32 %v2110, 0.0
          %v2127 = vmax.f32 %v2111, 0.0
          %v2128 = vmax.f32 %v2112, 0.0
          %v2129 = vmax.f32 %v2113, 0.0
          %v2130 = vmax.f32 %v2114, 0.0
          %v2131 = vmax.f32 %v2115, 0.0
          %v2132 = vmax.f32 %v2116, 0.0
          %v2133 = vmax.f32 %v2117, 0.0
          %v2134 = vpack.c.bf16 %v2119, %v2118
          %v2135 = vpack.c.bf16 %v2121, %v2120
          %v2136 = vpack.c.bf16 %v2123, %v2122
          %v2137 = vpack.c.bf16 %v2125, %v2124
          %v2138 = vpack.c.bf16 %v2127, %v2126
          %v2139 = vpack.c.bf16 %v2129, %v2128
          %v2140 = vpack.c.bf16 %v2131, %v2130
          %v2141 = vpack.c.bf16 %v2133, %v2132
          %v2142 = vld [vmem:[%s11] sm:$0xff]
          %v2143 = vld [vmem:[%s11 + $0x8] sm:$0xff]
          %v2144 = vld [vmem:[%s11 + $0x10] sm:$0xff]
          %v2145 = vld [vmem:[%s11 + $0x18] sm:$0xff]
          %v2146 = vld [vmem:[%s11 + $0x20] sm:$0xff]
          %v2147 = vld [vmem:[%s11 + $0x28] sm:$0xff]
          %v2148 = vld [vmem:[%s11 + $0x30] sm:$0xff]
          %v2149 = vld [vmem:[%s11 + $0x38] sm:$0xff]
          %v2150 = vld [vmem:[%s11 + $0x40] sm:$0xff]
          %v2151 = vld [vmem:[%s11 + $0x48] sm:$0xff]
          %v2152 = vld [vmem:[%s11 + $0x50] sm:$0xff]
          %v2153 = vld [vmem:[%s11 + $0x58] sm:$0xff]
          %v2154 = vld [vmem:[%s11 + $0x60] sm:$0xff]
          %v2155 = vld [vmem:[%s11 + $0x68] sm:$0xff]
          %v2156 = vld [vmem:[%s11 + $0x70] sm:$0xff]
          %v2157 = vld [vmem:[%s11 + $0x78] sm:$0xff]
          %v2158 = vld [vmem:[%s13] sm:$0x3]
          %v2160 = vlaneseq
          %v2161 = vshrl.u32 %v2160, 7
          %v2162 = vsub.s32 0, %v2161
          %v2163 = vrot.slane %v2158, %v2162
          %v2164 = vlaneseq
          %v2165 = vshrl.u32 %v2164, 7
          %v2166 = vsub.s32 1, %v2165
          %v2167 = vrot.slane %v2158, %v2166
          %v2186 = vunpack.c.l.b16 %v2142
          %v2187 = vunpack.c.h.b16 %v2142
          %v2188 = vunpack.c.l.b16 %v2143
          %v2189 = vunpack.c.h.b16 %v2143
          %v2190 = vunpack.c.l.b16 %v2144
          %v2191 = vunpack.c.h.b16 %v2144
          %v2192 = vunpack.c.l.b16 %v2145
          %v2193 = vunpack.c.h.b16 %v2145
          %v2194 = vunpack.c.l.b16 %v2146
          %v2195 = vunpack.c.h.b16 %v2146
          %v2196 = vunpack.c.l.b16 %v2147
          %v2197 = vunpack.c.h.b16 %v2147
          %v2198 = vunpack.c.l.b16 %v2148
          %v2199 = vunpack.c.h.b16 %v2148
          %v2200 = vunpack.c.l.b16 %v2149
          %v2201 = vunpack.c.h.b16 %v2149
          %v2202 = vunpack.c.l.b16 %v2150
          %v2203 = vunpack.c.h.b16 %v2150
          %v2204 = vunpack.c.l.b16 %v2151
          %v2205 = vunpack.c.h.b16 %v2151
          %v2206 = vunpack.c.l.b16 %v2152
          %v2207 = vunpack.c.h.b16 %v2152
          %v2208 = vunpack.c.l.b16 %v2153
          %v2209 = vunpack.c.h.b16 %v2153
          %v2210 = vunpack.c.l.b16 %v2154
          %v2211 = vunpack.c.h.b16 %v2154
          %v2212 = vunpack.c.l.b16 %v2155
          %v2213 = vunpack.c.h.b16 %v2155
          %v2214 = vunpack.c.l.b16 %v2156
          %v2215 = vunpack.c.h.b16 %v2156
          %v2216 = vunpack.c.l.b16 %v2157
          %v2217 = vunpack.c.h.b16 %v2157
          %v2218 = vpack.c.b16 %v2188, %v2186
          %v2219 = vpack.c.b16 %v2189, %v2187
          %v2220 = vpack.c.b16 %v2192, %v2190
          %v2221 = vpack.c.b16 %v2193, %v2191
          %v2222 = vpack.c.b16 %v2196, %v2194
          %v2223 = vpack.c.b16 %v2197, %v2195
          %v2224 = vpack.c.b16 %v2200, %v2198
          %v2225 = vpack.c.b16 %v2201, %v2199
          %v2226 = vpack.c.b16 %v2204, %v2202
          %v2227 = vpack.c.b16 %v2205, %v2203
          %v2228 = vpack.c.b16 %v2208, %v2206
          %v2229 = vpack.c.b16 %v2209, %v2207
          %v2230 = vpack.c.b16 %v2212, %v2210
          %v2231 = vpack.c.b16 %v2213, %v2211
          %v2232 = vpack.c.b16 %v2216, %v2214
          %v2233 = vpack.c.b16 %v2217, %v2215
          %2250 = vmatprep.subr.bf16.mxu0 %v2219
          %2251 = vmatpush1.bf16.msra.mxu0 %v2218
          %2252 = vmatprep.subr.bf16.mxu0 %v2221
          %2253 = vmatpush1.bf16.msra.mxu0 %v2220
          %2254 = vmatprep.subr.bf16.mxu0 %v2223
          %2255 = vmatpush1.bf16.msra.mxu0 %v2222
          %2256 = vmatprep.subr.bf16.mxu0 %v2225
          %2257 = vmatpush1.bf16.msra.mxu0 %v2224
          %2258 = vmatprep.subr.bf16.mxu0 %v2227
          %2259 = vmatpush1.bf16.msra.mxu0 %v2226
          %2260 = vmatprep.subr.bf16.mxu0 %v2229
          %2261 = vmatpush1.bf16.msra.mxu0 %v2228
          %2262 = vmatprep.subr.bf16.mxu0 %v2231
          %2263 = vmatpush1.bf16.msra.mxu0 %v2230
          %2264 = vmatprep.subr.bf16.mxu0 %v2233
          %2265 = vmatpush1.bf16.msra.mxu0 %v2232
          %2266 = vmatprep.subr.bf16.mxu0 0
          %2267 = vmatpush1.bf16.msra.mxu0 0
          %2268 = vmatprep.subr.bf16.mxu0 0
          %2269 = vmatpush1.bf16.msra.mxu0 0
          %2270 = vmatprep.subr.bf16.mxu0 0
          %2271 = vmatpush1.bf16.msra.mxu0 0
          %2272 = vmatprep.subr.bf16.mxu0 0
          %2273 = vmatpush1.bf16.msra.mxu0 0
          %2274 = vmatprep.subr.bf16.mxu0 0
          %2275 = vmatpush1.bf16.msra.mxu0 0
          %2276 = vmatprep.subr.bf16.mxu0 0
          %2277 = vmatpush1.bf16.msra.mxu0 0
          %2278 = vmatprep.subr.bf16.mxu0 0
          %2279 = vmatpush1.bf16.msra.mxu0 0
          %2280 = vmatprep.subr.bf16.mxu0 0
          %2281 = vmatpush1.bf16.msra.mxu0 0
          %2282 = vmatprep.mubr.bf16.mxu0 0
          %2283 = vmatmul.mubr.bf16.gmra.mrb[0].mxu0 %v2134
          %v2284 = vpop.f32.mrb[0].mxu0
          %v2285 = vadd.f32 %v2163, %v2284
          %v2286 = vpop.f32.mrb[0].mxu0
          %v2287 = vadd.f32 %v2167, %v2286
          %v2288 = vpop.f32.mrb[0].mxu0
          %v2289 = vadd.f32 %v2163, %v2288
          %v2290 = vpop.f32.mrb[0].mxu0
          %v2291 = vadd.f32 %v2167, %v2290
          %2292 = vmatprep.mubr.bf16.mxu0 0
          %2293 = vmatmul.mubr.bf16.gmra.mrb[0].mxu0 %v2135
          %v2294 = vpop.f32.mrb[0].mxu0
          %v2295 = vadd.f32 %v2163, %v2294
          %v2296 = vpop.f32.mrb[0].mxu0
          %v2297 = vadd.f32 %v2167, %v2296
          %v2298 = vpop.f32.mrb[0].mxu0
          %v2299 = vadd.f32 %v2163, %v2298
          %v2300 = vpop.f32.mrb[0].mxu0
          %v2301 = vadd.f32 %v2167, %v2300
          %2302 = vmatprep.mubr.bf16.mxu0 0
          %2303 = vmatmul.mubr.bf16.gmra.mrb[0].mxu0 %v2136
          %v2304 = vpop.f32.mrb[0].mxu0
          %v2305 = vadd.f32 %v2163, %v2304
          %v2306 = vpop.f32.mrb[0].mxu0
          %v2307 = vadd.f32 %v2167, %v2306
          %v2308 = vpop.f32.mrb[0].mxu0
          %v2309 = vadd.f32 %v2163, %v2308
          %v2310 = vpop.f32.mrb[0].mxu0
          %v2311 = vadd.f32 %v2167, %v2310
          %2312 = vmatprep.mubr.bf16.mxu0 0
          %2313 = vmatmul.mubr.bf16.gmra.mrb[0].mxu0 %v2137
          %v2314 = vpop.f32.mrb[0].mxu0
          %v2315 = vadd.f32 %v2163, %v2314
          %v2316 = vpop.f32.mrb[0].mxu0
          %v2317 = vadd.f32 %v2167, %v2316
          %v2318 = vpop.f32.mrb[0].mxu0
          %v2319 = vadd.f32 %v2163, %v2318
          %v2320 = vpop.f32.mrb[0].mxu0
          %v2321 = vadd.f32 %v2167, %v2320
          %2322 = vmatprep.mubr.bf16.mxu0 0
          %2323 = vmatmul.mubr.bf16.gmra.mrb[0].mxu0 %v2138
          %v2324 = vpop.f32.mrb[0].mxu0
          %v2325 = vadd.f32 %v2163, %v2324
          %v2326 = vpop.f32.mrb[0].mxu0
          %v2327 = vadd.f32 %v2167, %v2326
          %v2328 = vpop.f32.mrb[0].mxu0
          %v2329 = vadd.f32 %v2163, %v2328
          %v2330 = vpop.f32.mrb[0].mxu0
          %v2331 = vadd.f32 %v2167, %v2330
          %2332 = vmatprep.mubr.bf16.mxu0 0
          %2333 = vmatmul.mubr.bf16.gmra.mrb[0].mxu0 %v2139
          %v2334 = vpop.f32.mrb[0].mxu0
          %v2335 = vadd.f32 %v2163, %v2334
          %v2336 = vpop.f32.mrb[0].mxu0
          %v2337 = vadd.f32 %v2167, %v2336
          %v2338 = vpop.f32.mrb[0].mxu0
          %v2339 = vadd.f32 %v2163, %v2338
          %v2340 = vpop.f32.mrb[0].mxu0
          %v2341 = vadd.f32 %v2167, %v2340
          %2342 = vmatprep.mubr.bf16.mxu0 0
          %2343 = vmatmul.mubr.bf16.gmra.mrb[0].mxu0 %v2140
          %v2344 = vpop.f32.mrb[0].mxu0
          %v2345 = vadd.f32 %v2163, %v2344
          %v2346 = vpop.f32.mrb[0].mxu0
          %v2347 = vadd.f32 %v2167, %v2346
          %v2348 = vpop.f32.mrb[0].mxu0
          %v2349 = vadd.f32 %v2163, %v2348
          %v2350 = vpop.f32.mrb[0].mxu0
          %v2351 = vadd.f32 %v2167, %v2350
          %2352 = vmatprep.mubr.bf16.mxu0 0
          %2353 = vmatmul.mubr.bf16.gmra.mrb[0].mxu0 %v2141
          %v2354 = vpop.f32.mrb[0].mxu0
          %v2355 = vadd.f32 %v2163, %v2354
          %v2356 = vpop.f32.mrb[0].mxu0
          %v2357 = vadd.f32 %v2167, %v2356
          %v2358 = vpop.f32.mrb[0].mxu0
          %v2359 = vadd.f32 %v2163, %v2358
          %v2360 = vpop.f32.mrb[0].mxu0
          %v2361 = vadd.f32 %v2167, %v2360
          %2362 = vdwg.mxu0
          %v2363 = vmax.f32 %v2285, %v2289
          %v2364 = vrot.slane %v2363, 4
          %v2365 = vmax.f32 %v2363, %v2364
          %v2366 = vrot.slane %v2365, 2
          %v2367 = vmax.f32 %v2365, %v2366
          %v2368 = vrot.slane %v2367, 1
          %v2369 = vmax.f32 %v2367, %v2368
          %v2370 = vmax.f32 %v2287, %v2291
          %v2371 = vrot.slane %v2370, 4
          %v2372 = vmax.f32 %v2370, %v2371
          %v2373 = vrot.slane %v2372, 2
          %v2374 = vmax.f32 %v2372, %v2373
          %v2375 = vrot.slane %v2374, 1
          %v2376 = vmax.f32 %v2374, %v2375
          %v2377 = vmax.f32 %v2295, %v2299
          %v2378 = vrot.slane %v2377, 4
          %v2379 = vmax.f32 %v2377, %v2378
          %v2380 = vrot.slane %v2379, 2
          %v2381 = vmax.f32 %v2379, %v2380
          %v2382 = vrot.slane %v2381, 1
          %v2383 = vmax.f32 %v2381, %v2382
          %v2384 = vmax.f32 %v2297, %v2301
          %v2385 = vrot.slane %v2384, 4
          %v2386 = vmax.f32 %v2384, %v2385
          %v2387 = vrot.slane %v2386, 2
          %v2388 = vmax.f32 %v2386, %v2387
          %v2389 = vrot.slane %v2388, 1
          %v2390 = vmax.f32 %v2388, %v2389
          %v2391 = vmax.f32 %v2305, %v2309
          %v2392 = vrot.slane %v2391, 4
          %v2393 = vmax.f32 %v2391, %v2392
          %v2394 = vrot.slane %v2393, 2
          %v2395 = vmax.f32 %v2393, %v2394
          %v2396 = vrot.slane %v2395, 1
          %v2397 = vmax.f32 %v2395, %v2396
          %v2398 = vmax.f32 %v2307, %v2311
          %v2399 = vrot.slane %v2398, 4
          %v2400 = vmax.f32 %v2398, %v2399
          %v2401 = vrot.slane %v2400, 2
          %v2402 = vmax.f32 %v2400, %v2401
          %v2403 = vrot.slane %v2402, 1
          %v2404 = vmax.f32 %v2402, %v2403
          %v2405 = vmax.f32 %v2315, %v2319
          %v2406 = vrot.slane %v2405, 4
          %v2407 = vmax.f32 %v2405, %v2406
          %v2408 = vrot.slane %v2407, 2
          %v2409 = vmax.f32 %v2407, %v2408
          %v2410 = vrot.slane %v2409, 1
          %v2411 = vmax.f32 %v2409, %v2410
          %v2412 = vmax.f32 %v2317, %v2321
          %v2413 = vrot.slane %v2412, 4
          %v2414 = vmax.f32 %v2412, %v2413
          %v2415 = vrot.slane %v2414, 2
          %v2416 = vmax.f32 %v2414, %v2415
          %v2417 = vrot.slane %v2416, 1
          %v2418 = vmax.f32 %v2416, %v2417
          %v2419 = vmax.f32 %v2325, %v2329
          %v2420 = vrot.slane %v2419, 4
          %v2421 = vmax.f32 %v2419, %v2420
          %v2422 = vrot.slane %v2421, 2
          %v2423 = vmax.f32 %v2421, %v2422
          %v2424 = vrot.slane %v2423, 1
          %v2425 = vmax.f32 %v2423, %v2424
          %v2426 = vmax.f32 %v2327, %v2331
          %v2427 = vrot.slane %v2426, 4
          %v2428 = vmax.f32 %v2426, %v2427
          %v2429 = vrot.slane %v2428, 2
          %v2430 = vmax.f32 %v2428, %v2429
          %v2431 = vrot.slane %v2430, 1
          %v2432 = vmax.f32 %v2430, %v2431
          %v2433 = vmax.f32 %v2335, %v2339
          %v2434 = vrot.slane %v2433, 4
          %v2435 = vmax.f32 %v2433, %v2434
          %v2436 = vrot.slane %v2435, 2
          %v2437 = vmax.f32 %v2435, %v2436
          %v2438 = vrot.slane %v2437, 1
          %v2439 = vmax.f32 %v2437, %v2438
          %v2440 = vmax.f32 %v2337, %v2341
          %v2441 = vrot.slane %v2440, 4
          %v2442 = vmax.f32 %v2440, %v2441
          %v2443 = vrot.slane %v2442, 2
          %v2444 = vmax.f32 %v2442, %v2443
          %v2445 = vrot.slane %v2444, 1
          %v2446 = vmax.f32 %v2444, %v2445
          %v2447 = vmax.f32 %v2345, %v2349
          %v2448 = vrot.slane %v2447, 4
          %v2449 = vmax.f32 %v2447, %v2448
          %v2450 = vrot.slane %v2449, 2
          %v2451 = vmax.f32 %v2449, %v2450
          %v2452 = vrot.slane %v2451, 1
          %v2453 = vmax.f32 %v2451, %v2452
          %v2454 = vmax.f32 %v2347, %v2351
          %v2455 = vrot.slane %v2454, 4
          %v2456 = vmax.f32 %v2454, %v2455
          %v2457 = vrot.slane %v2456, 2
          %v2458 = vmax.f32 %v2456, %v2457
          %v2459 = vrot.slane %v2458, 1
          %v2460 = vmax.f32 %v2458, %v2459
          %v2461 = vmax.f32 %v2355, %v2359
          %v2462 = vrot.slane %v2461, 4
          %v2463 = vmax.f32 %v2461, %v2462
          %v2464 = vrot.slane %v2463, 2
          %v2465 = vmax.f32 %v2463, %v2464
          %v2466 = vrot.slane %v2465, 1
          %v2467 = vmax.f32 %v2465, %v2466
          %v2468 = vmax.f32 %v2357, %v2361
          %v2469 = vrot.slane %v2468, 4
          %v2470 = vmax.f32 %v2468, %v2469
          %v2471 = vrot.slane %v2470, 2
          %v2472 = vmax.f32 %v2470, %v2471
          %v2473 = vrot.slane %v2472, 1
          %v2474 = vmax.f32 %v2472, %v2473
          %v2475 = vpack.c.bf16 %v2289, %v2285
          %v2476 = vpack.c.bf16 %v2291, %v2287
          %v2477 = vpack.c.bf16 %v2299, %v2295
          %v2478 = vpack.c.bf16 %v2301, %v2297
          %v2479 = vpack.c.bf16 %v2309, %v2305
          %v2480 = vpack.c.bf16 %v2311, %v2307
          %v2481 = vpack.c.bf16 %v2319, %v2315
          %v2482 = vpack.c.bf16 %v2321, %v2317
          %v2483 = vpack.c.bf16 %v2329, %v2325
          %v2484 = vpack.c.bf16 %v2331, %v2327
          %v2485 = vpack.c.bf16 %v2339, %v2335
          %v2486 = vpack.c.bf16 %v2341, %v2337
          %v2487 = vpack.c.bf16 %v2349, %v2345
          %v2488 = vpack.c.bf16 %v2351, %v2347
          %v2489 = vpack.c.bf16 %v2359, %v2355
          %v2490 = vpack.c.bf16 %v2361, %v2357
          %v2491 = vld [vmem:[%s15] sm:$0xff]
          %v2492 = vld [vmem:[%s15 + $0x8] sm:$0xff]
          %v2493 = vld [vmem:[%s15 + $0x10] sm:$0xff]
          %v2494 = vld [vmem:[%s15 + $0x18] sm:$0xff]
          %v2495 = vld [vmem:[%s15 + $0x20] sm:$0xff]
          %v2496 = vld [vmem:[%s15 + $0x28] sm:$0xff]
          %v2497 = vld [vmem:[%s15 + $0x30] sm:$0xff]
          %v2498 = vld [vmem:[%s15 + $0x38] sm:$0xff]
          %v2499 = vld [vmem:[%s15 + $0x40] sm:$0xff]
          %v2500 = vld [vmem:[%s15 + $0x48] sm:$0xff]
          %v2501 = vld [vmem:[%s15 + $0x50] sm:$0xff]
          %v2502 = vld [vmem:[%s15 + $0x58] sm:$0xff]
          %v2503 = vld [vmem:[%s15 + $0x60] sm:$0xff]
          %v2504 = vld [vmem:[%s15 + $0x68] sm:$0xff]
          %v2505 = vld [vmem:[%s15 + $0x70] sm:$0xff]
          %v2506 = vld [vmem:[%s15 + $0x78] sm:$0xff]
          %v2507 = vld [vmem:[%s15 + $0x80] sm:$0xff]
          %v2508 = vld [vmem:[%s15 + $0x88] sm:$0xff]
          %v2509 = vld [vmem:[%s15 + $0x90] sm:$0xff]
          %v2510 = vld [vmem:[%s15 + $0x98] sm:$0xff]
          %v2511 = vld [vmem:[%s15 + $0xa0] sm:$0xff]
          %v2512 = vld [vmem:[%s15 + $0xa8] sm:$0xff]
          %v2513 = vld [vmem:[%s15 + $0xb0] sm:$0xff]
          %v2514 = vld [vmem:[%s15 + $0xb8] sm:$0xff]
          %v2515 = vld [vmem:[%s15 + $0xc0] sm:$0xff]
          %v2516 = vld [vmem:[%s15 + $0xc8] sm:$0xff]
          %v2517 = vld [vmem:[%s15 + $0xd0] sm:$0xff]
          %v2518 = vld [vmem:[%s15 + $0xd8] sm:$0xff]
          %v2519 = vld [vmem:[%s15 + $0xe0] sm:$0xff]
          %v2520 = vld [vmem:[%s15 + $0xe8] sm:$0xff]
          %v2521 = vld [vmem:[%s15 + $0xf0] sm:$0xff]
          %v2522 = vld [vmem:[%s15 + $0xf8] sm:$0xff]
          %v2523 = vld [vmem:[%s15 + $0x100] sm:$0xff]
          %v2524 = vld [vmem:[%s15 + $0x108] sm:$0xff]
          %v2525 = vld [vmem:[%s15 + $0x110] sm:$0xff]
          %v2526 = vld [vmem:[%s15 + $0x118] sm:$0xff]
          %v2527 = vld [vmem:[%s15 + $0x120] sm:$0xff]
          %v2528 = vld [vmem:[%s15 + $0x128] sm:$0xff]
          %v2529 = vld [vmem:[%s15 + $0x130] sm:$0xff]
          %v2530 = vld [vmem:[%s15 + $0x138] sm:$0xff]
          %v2531 = vld [vmem:[%s15 + $0x140] sm:$0xff]
          %v2532 = vld [vmem:[%s15 + $0x148] sm:$0xff]
          %v2533 = vld [vmem:[%s15 + $0x150] sm:$0xff]
          %v2534 = vld [vmem:[%s15 + $0x158] sm:$0xff]
          %v2535 = vld [vmem:[%s15 + $0x160] sm:$0xff]
          %v2536 = vld [vmem:[%s15 + $0x168] sm:$0xff]
          %v2537 = vld [vmem:[%s15 + $0x170] sm:$0xff]
          %v2538 = vld [vmem:[%s15 + $0x178] sm:$0xff]
          %v2539 = vld [vmem:[%s15 + $0x180] sm:$0xff]
          %v2540 = vld [vmem:[%s15 + $0x188] sm:$0xff]
          %v2541 = vld [vmem:[%s15 + $0x190] sm:$0xff]
          %v2542 = vld [vmem:[%s15 + $0x198] sm:$0xff]
          %v2543 = vld [vmem:[%s15 + $0x1a0] sm:$0xff]
          %v2544 = vld [vmem:[%s15 + $0x1a8] sm:$0xff]
          %v2545 = vld [vmem:[%s15 + $0x1b0] sm:$0xff]
          %v2546 = vld [vmem:[%s15 + $0x1b8] sm:$0xff]
          %v2547 = vld [vmem:[%s15 + $0x1c0] sm:$0xff]
          %v2548 = vld [vmem:[%s15 + $0x1c8] sm:$0xff]
          %v2549 = vld [vmem:[%s15 + $0x1d0] sm:$0xff]
          %v2550 = vld [vmem:[%s15 + $0x1d8] sm:$0xff]
          %v2551 = vld [vmem:[%s15 + $0x1e0] sm:$0xff]
          %v2552 = vld [vmem:[%s15 + $0x1e8] sm:$0xff]
          %v2553 = vld [vmem:[%s15 + $0x1f0] sm:$0xff]
          %v2554 = vld [vmem:[%s15 + $0x1f8] sm:$0xff]
          %v2619 = vunpack.c.l.b16 %v2491
          %v2620 = vunpack.c.h.b16 %v2491
          %v2621 = vunpack.c.l.b16 %v2492
          %v2622 = vunpack.c.h.b16 %v2492
          %v2623 = vunpack.c.l.b16 %v2493
          %v2624 = vunpack.c.h.b16 %v2493
          %v2625 = vunpack.c.l.b16 %v2494
          %v2626 = vunpack.c.h.b16 %v2494
          %v2627 = vunpack.c.l.b16 %v2495
          %v2628 = vunpack.c.h.b16 %v2495
          %v2629 = vunpack.c.l.b16 %v2496
          %v2630 = vunpack.c.h.b16 %v2496
          %v2631 = vunpack.c.l.b16 %v2497
          %v2632 = vunpack.c.h.b16 %v2497
          %v2633 = vunpack.c.l.b16 %v2498
          %v2634 = vunpack.c.h.b16 %v2498
          %v2635 = vunpack.c.l.b16 %v2499
          %v2636 = vunpack.c.h.b16 %v2499
          %v2637 = vunpack.c.l.b16 %v2500
          %v2638 = vunpack.c.h.b16 %v2500
          %v2639 = vunpack.c.l.b16 %v2501
          %v2640 = vunpack.c.h.b16 %v2501
          %v2641 = vunpack.c.l.b16 %v2502
          %v2642 = vunpack.c.h.b16 %v2502
          %v2643 = vunpack.c.l.b16 %v2503
          %v2644 = vunpack.c.h.b16 %v2503
          %v2645 = vunpack.c.l.b16 %v2504
          %v2646 = vunpack.c.h.b16 %v2504
          %v2647 = vunpack.c.l.b16 %v2505
          %v2648 = vunpack.c.h.b16 %v2505
          %v2649 = vunpack.c.l.b16 %v2506
          %v2650 = vunpack.c.h.b16 %v2506
          %v2651 = vunpack.c.l.b16 %v2507
          %v2652 = vunpack.c.h.b16 %v2507
          %v2653 = vunpack.c.l.b16 %v2508
          %v2654 = vunpack.c.h.b16 %v2508
          %v2655 = vunpack.c.l.b16 %v2509
          %v2656 = vunpack.c.h.b16 %v2509
          %v2657 = vunpack.c.l.b16 %v2510
          %v2658 = vunpack.c.h.b16 %v2510
          %v2659 = vunpack.c.l.b16 %v2511
          %v2660 = vunpack.c.h.b16 %v2511
          %v2661 = vunpack.c.l.b16 %v2512
          %v2662 = vunpack.c.h.b16 %v2512
          %v2663 = vunpack.c.l.b16 %v2513
          %v2664 = vunpack.c.h.b16 %v2513
          %v2665 = vunpack.c.l.b16 %v2514
          %v2666 = vunpack.c.h.b16 %v2514
          %v2667 = vunpack.c.l.b16 %v2515
          %v2668 = vunpack.c.h.b16 %v2515
          %v2669 = vunpack.c.l.b16 %v2516
          %v2670 = vunpack.c.h.b16 %v2516
          %v2671 = vunpack.c.l.b16 %v2517
          %v2672 = vunpack.c.h.b16 %v2517
          %v2673 = vunpack.c.l.b16 %v2518
          %v2674 = vunpack.c.h.b16 %v2518
          %v2675 = vunpack.c.l.b16 %v2519
          %v2676 = vunpack.c.h.b16 %v2519
          %v2677 = vunpack.c.l.b16 %v2520
          %v2678 = vunpack.c.h.b16 %v2520
          %v2679 = vunpack.c.l.b16 %v2521
          %v2680 = vunpack.c.h.b16 %v2521
          %v2681 = vunpack.c.l.b16 %v2522
          %v2682 = vunpack.c.h.b16 %v2522
          %v2683 = vunpack.c.l.b16 %v2523
          %v2684 = vunpack.c.h.b16 %v2523
          %v2685 = vunpack.c.l.b16 %v2524
          %v2686 = vunpack.c.h.b16 %v2524
          %v2687 = vunpack.c.l.b16 %v2525
          %v2688 = vunpack.c.h.b16 %v2525
          %v2689 = vunpack.c.l.b16 %v2526
          %v2690 = vunpack.c.h.b16 %v2526
          %v2691 = vunpack.c.l.b16 %v2527
          %v2692 = vunpack.c.h.b16 %v2527
          %v2693 = vunpack.c.l.b16 %v2528
          %v2694 = vunpack.c.h.b16 %v2528
          %v2695 = vunpack.c.l.b16 %v2529
          %v2696 = vunpack.c.h.b16 %v2529
          %v2697 = vunpack.c.l.b16 %v2530
          %v2698 = vunpack.c.h.b16 %v2530
          %v2699 = vunpack.c.l.b16 %v2531
          %v2700 = vunpack.c.h.b16 %v2531
          %v2701 = vunpack.c.l.b16 %v2532
          %v2702 = vunpack.c.h.b16 %v2532
          %v2703 = vunpack.c.l.b16 %v2533
          %v2704 = vunpack.c.h.b16 %v2533
          %v2705 = vunpack.c.l.b16 %v2534
          %v2706 = vunpack.c.h.b16 %v2534
          %v2707 = vunpack.c.l.b16 %v2535
          %v2708 = vunpack.c.h.b16 %v2535
          %v2709 = vunpack.c.l.b16 %v2536
          %v2710 = vunpack.c.h.b16 %v2536
          %v2711 = vunpack.c.l.b16 %v2537
          %v2712 = vunpack.c.h.b16 %v2537
          %v2713 = vunpack.c.l.b16 %v2538
          %v2714 = vunpack.c.h.b16 %v2538
          %v2715 = vunpack.c.l.b16 %v2539
          %v2716 = vunpack.c.h.b16 %v2539
          %v2717 = vunpack.c.l.b16 %v2540
          %v2718 = vunpack.c.h.b16 %v2540
          %v2719 = vunpack.c.l.b16 %v2541
          %v2720 = vunpack.c.h.b16 %v2541
          %v2721 = vunpack.c.l.b16 %v2542
          %v2722 = vunpack.c.h.b16 %v2542
          %v2723 = vunpack.c.l.b16 %v2543
          %v2724 = vunpack.c.h.b16 %v2543
          %v2725 = vunpack.c.l.b16 %v2544
          %v2726 = vunpack.c.h.b16 %v2544
          %v2727 = vunpack.c.l.b16 %v2545
          %v2728 = vunpack.c.h.b16 %v2545
          %v2729 = vunpack.c.l.b16 %v2546
          %v2730 = vunpack.c.h.b16 %v2546
          %v2731 = vunpack.c.l.b16 %v2547
          %v2732 = vunpack.c.h.b16 %v2547
          %v2733 = vunpack.c.l.b16 %v2548
          %v2734 = vunpack.c.h.b16 %v2548
          %v2735 = vunpack.c.l.b16 %v2549
          %v2736 = vunpack.c.h.b16 %v2549
          %v2737 = vunpack.c.l.b16 %v2550
          %v2738 = vunpack.c.h.b16 %v2550
          %v2739 = vunpack.c.l.b16 %v2551
          %v2740 = vunpack.c.h.b16 %v2551
          %v2741 = vunpack.c.l.b16 %v2552
          %v2742 = vunpack.c.h.b16 %v2552
          %v2743 = vunpack.c.l.b16 %v2553
          %v2744 = vunpack.c.h.b16 %v2553
          %v2745 = vunpack.c.l.b16 %v2554
          %v2746 = vunpack.c.h.b16 %v2554
          %v2747 = vpack.c.b16 %v2623, %v2619
          %v2748 = vpack.c.b16 %v2624, %v2620
          %v2749 = vpack.c.b16 %v2625, %v2621
          %v2750 = vpack.c.b16 %v2626, %v2622
          %v2751 = vpack.c.b16 %v2631, %v2627
          %v2752 = vpack.c.b16 %v2632, %v2628
          %v2753 = vpack.c.b16 %v2633, %v2629
          %v2754 = vpack.c.b16 %v2634, %v2630
          %v2755 = vpack.c.b16 %v2639, %v2635
          %v2756 = vpack.c.b16 %v2640, %v2636
          %v2757 = vpack.c.b16 %v2641, %v2637
          %v2758 = vpack.c.b16 %v2642, %v2638
          %v2759 = vpack.c.b16 %v2647, %v2643
          %v2760 = vpack.c.b16 %v2648, %v2644
          %v2761 = vpack.c.b16 %v2649, %v2645
          %v2762 = vpack.c.b16 %v2650, %v2646
          %v2763 = vpack.c.b16 %v2655, %v2651
          %v2764 = vpack.c.b16 %v2656, %v2652
          %v2765 = vpack.c.b16 %v2657, %v2653
          %v2766 = vpack.c.b16 %v2658, %v2654
          %v2767 = vpack.c.b16 %v2663, %v2659
          %v2768 = vpack.c.b16 %v2664, %v2660
          %v2769 = vpack.c.b16 %v2665, %v2661
          %v2770 = vpack.c.b16 %v2666, %v2662
          %v2771 = vpack.c.b16 %v2671, %v2667
          %v2772 = vpack.c.b16 %v2672, %v2668
          %v2773 = vpack.c.b16 %v2673, %v2669
          %v2774 = vpack.c.b16 %v2674, %v2670
          %v2775 = vpack.c.b16 %v2679, %v2675
          %v2776 = vpack.c.b16 %v2680, %v2676
          %v2777 = vpack.c.b16 %v2681, %v2677
          %v2778 = vpack.c.b16 %v2682, %v2678
          %v2779 = vpack.c.b16 %v2687, %v2683
          %v2780 = vpack.c.b16 %v2688, %v2684
          %v2781 = vpack.c.b16 %v2689, %v2685
          %v2782 = vpack.c.b16 %v2690, %v2686
          %v2783 = vpack.c.b16 %v2695, %v2691
          %v2784 = vpack.c.b16 %v2696, %v2692
          %v2785 = vpack.c.b16 %v2697, %v2693
          %v2786 = vpack.c.b16 %v2698, %v2694
          %v2787 = vpack.c.b16 %v2703, %v2699
          %v2788 = vpack.c.b16 %v2704, %v2700
          %v2789 = vpack.c.b16 %v2705, %v2701
          %v2790 = vpack.c.b16 %v2706, %v2702
          %v2791 = vpack.c.b16 %v2711, %v2707
          %v2792 = vpack.c.b16 %v2712, %v2708
          %v2793 = vpack.c.b16 %v2713, %v2709
          %v2794 = vpack.c.b16 %v2714, %v2710
          %v2795 = vpack.c.b16 %v2719, %v2715
          %v2796 = vpack.c.b16 %v2720, %v2716
          %v2797 = vpack.c.b16 %v2721, %v2717
          %v2798 = vpack.c.b16 %v2722, %v2718
          %v2799 = vpack.c.b16 %v2727, %v2723
          %v2800 = vpack.c.b16 %v2728, %v2724
          %v2801 = vpack.c.b16 %v2729, %v2725
          %v2802 = vpack.c.b16 %v2730, %v2726
          %v2803 = vpack.c.b16 %v2735, %v2731
          %v2804 = vpack.c.b16 %v2736, %v2732
          %v2805 = vpack.c.b16 %v2737, %v2733
          %v2806 = vpack.c.b16 %v2738, %v2734
          %v2807 = vpack.c.b16 %v2743, %v2739
          %v2808 = vpack.c.b16 %v2744, %v2740
          %v2809 = vpack.c.b16 %v2745, %v2741
          %v2810 = vpack.c.b16 %v2746, %v2742
          %2875 = vmatprep.subr.bf16.mxu0 %v2748
          %2876 = vmatpush1.bf16.msra.mxu0 %v2747
          %2877 = vmatprep.subr.bf16.mxu0 %v2752
          %2878 = vmatpush1.bf16.msra.mxu0 %v2751
          %2879 = vmatprep.subr.bf16.mxu0 %v2756
          %2880 = vmatpush1.bf16.msra.mxu0 %v2755
          %2881 = vmatprep.subr.bf16.mxu0 %v2760
          %2882 = vmatpush1.bf16.msra.mxu0 %v2759
          %2883 = vmatprep.subr.bf16.mxu0 %v2764
          %2884 = vmatpush1.bf16.msra.mxu0 %v2763
          %2885 = vmatprep.subr.bf16.mxu0 %v2768
          %2886 = vmatpush1.bf16.msra.mxu0 %v2767
          %2887 = vmatprep.subr.bf16.mxu0 %v2772
          %2888 = vmatpush1.bf16.msra.mxu0 %v2771
          %2889 = vmatprep.subr.bf16.mxu0 %v2776
          %2890 = vmatpush1.bf16.msra.mxu0 %v2775
          %2891 = vmatprep.subr.bf16.mxu0 %v2780
          %2892 = vmatpush1.bf16.msra.mxu0 %v2779
          %2893 = vmatprep.subr.bf16.mxu0 %v2784
          %2894 = vmatpush1.bf16.msra.mxu0 %v2783
          %2895 = vmatprep.subr.bf16.mxu0 %v2788
          %2896 = vmatpush1.bf16.msra.mxu0 %v2787
          %2897 = vmatprep.subr.bf16.mxu0 %v2792
          %2898 = vmatpush1.bf16.msra.mxu0 %v2791
          %2899 = vmatprep.subr.bf16.mxu0 %v2796
          %2900 = vmatpush1.bf16.msra.mxu0 %v2795
          %2901 = vmatprep.subr.bf16.mxu0 %v2800
          %2902 = vmatpush1.bf16.msra.mxu0 %v2799
          %2903 = vmatprep.subr.bf16.mxu0 %v2804
          %2904 = vmatpush1.bf16.msra.mxu0 %v2803
          %2905 = vmatprep.subr.bf16.mxu0 %v2808
          %2906 = vmatpush1.bf16.msra.mxu0 %v2807
          %2907 = vmatprep.mubr.bf16.mxu0 %v2476
          %2908 = vmatmul.mubr.bf16.gmra.mrb[0].mxu0 %v2475
          %v2909 = vpop.f32.mrb[0].mxu0
          %v2910 = vadd.f32 0.0, %v2909
          %v2911 = vpop.f32.mrb[0].mxu0
          %v2912 = vadd.f32 0.0, %v2911
          %v2913 = vpop.f32.mrb[0].mxu0
          %v2914 = vadd.f32 0.0, %v2913
          %v2915 = vpop.f32.mrb[0].mxu0
          %v2916 = vadd.f32 0.0, %v2915
          %2917 = vmatprep.mubr.bf16.mxu0 %v2478
          %2918 = vmatmul.mubr.bf16.gmra.mrb[0].mxu0 %v2477
          %v2919 = vpop.f32.mrb[0].mxu0
          %v2920 = vadd.f32 0.0, %v2919
          %v2921 = vpop.f32.mrb[0].mxu0
          %v2922 = vadd.f32 0.0, %v2921
          %v2923 = vpop.f32.mrb[0].mxu0
          %v2924 = vadd.f32 0.0, %v2923
          %v2925 = vpop.f32.mrb[0].mxu0
          %v2926 = vadd.f32 0.0, %v2925
          %2927 = vmatprep.mubr.bf16.mxu0 %v2480
          %2928 = vmatmul.mubr.bf16.gmra.mrb[0].mxu0 %v2479
          %v2929 = vpop.f32.mrb[0].mxu0
          %v2930 = vadd.f32 0.0, %v2929
          %v2931 = vpop.f32.mrb[0].mxu0
          %v2932 = vadd.f32 0.0, %v2931
          %v2933 = vpop.f32.mrb[0].mxu0
          %v2934 = vadd.f32 0.0, %v2933
          %v2935 = vpop.f32.mrb[0].mxu0
          %v2936 = vadd.f32 0.0, %v2935
          %2937 = vmatprep.mubr.bf16.mxu0 %v2482
          %2938 = vmatmul.mubr.bf16.gmra.mrb[0].mxu0 %v2481
          %v2939 = vpop.f32.mrb[0].mxu0
          %v2940 = vadd.f32 0.0, %v2939
          %v2941 = vpop.f32.mrb[0].mxu0
          %v2942 = vadd.f32 0.0, %v2941
          %v2943 = vpop.f32.mrb[0].mxu0
          %v2944 = vadd.f32 0.0, %v2943
          %v2945 = vpop.f32.mrb[0].mxu0
          %v2946 = vadd.f32 0.0, %v2945
          %2947 = vmatprep.mubr.bf16.mxu0 %v2484
          %2948 = vmatmul.mubr.bf16.gmra.mrb[0].mxu0 %v2483
          %v2949 = vpop.f32.mrb[0].mxu0
          %v2950 = vadd.f32 0.0, %v2949
          %v2951 = vpop.f32.mrb[0].mxu0
          %v2952 = vadd.f32 0.0, %v2951
          %v2953 = vpop.f32.mrb[0].mxu0
          %v2954 = vadd.f32 0.0, %v2953
          %v2955 = vpop.f32.mrb[0].mxu0
          %v2956 = vadd.f32 0.0, %v2955
          %2957 = vmatprep.mubr.bf16.mxu0 %v2486
          %2958 = vmatmul.mubr.bf16.gmra.mrb[0].mxu0 %v2485
          %v2959 = vpop.f32.mrb[0].mxu0
          %v2960 = vadd.f32 0.0, %v2959
          %v2961 = vpop.f32.mrb[0].mxu0
          %v2962 = vadd.f32 0.0, %v2961
          %v2963 = vpop.f32.mrb[0].mxu0
          %v2964 = vadd.f32 0.0, %v2963
          %v2965 = vpop.f32.mrb[0].mxu0
          %v2966 = vadd.f32 0.0, %v2965
          %2967 = vmatprep.mubr.bf16.mxu0 %v2488
          %2968 = vmatmul.mubr.bf16.gmra.mrb[0].mxu0 %v2487
          %v2969 = vpop.f32.mrb[0].mxu0
          %v2970 = vadd.f32 0.0, %v2969
          %v2971 = vpop.f32.mrb[0].mxu0
          %v2972 = vadd.f32 0.0, %v2971
          %v2973 = vpop.f32.mrb[0].mxu0
          %v2974 = vadd.f32 0.0, %v2973
          %v2975 = vpop.f32.mrb[0].mxu0
          %v2976 = vadd.f32 0.0, %v2975
          %2977 = vmatprep.mubr.bf16.mxu0 %v2490
          %2978 = vmatmul.mubr.bf16.gmra.mrb[0].mxu0 %v2489
          %v2979 = vpop.f32.mrb[0].mxu0
          %v2980 = vadd.f32 0.0, %v2979
          %v2981 = vpop.f32.mrb[0].mxu0
          %v2982 = vadd.f32 0.0, %v2981
          %v2983 = vpop.f32.mrb[0].mxu0
          %v2984 = vadd.f32 0.0, %v2983
          %v2985 = vpop.f32.mrb[0].mxu0
          %v2986 = vadd.f32 0.0, %v2985
          %2987 = vdwg.mxu0
          %2988 = vmatprep.subr.bf16.mxu0 %v2750
          %2989 = vmatpush1.bf16.msra.mxu0 %v2749
          %2990 = vmatprep.subr.bf16.mxu0 %v2754
          %2991 = vmatpush1.bf16.msra.mxu0 %v2753
          %2992 = vmatprep.subr.bf16.mxu0 %v2758
          %2993 = vmatpush1.bf16.msra.mxu0 %v2757
          %2994 = vmatprep.subr.bf16.mxu0 %v2762
          %2995 = vmatpush1.bf16.msra.mxu0 %v2761
          %2996 = vmatprep.subr.bf16.mxu0 %v2766
          %2997 = vmatpush1.bf16.msra.mxu0 %v2765
          %2998 = vmatprep.subr.bf16.mxu0 %v2770
          %2999 = vmatpush1.bf16.msra.mxu0 %v2769
          %3000 = vmatprep.subr.bf16.mxu0 %v2774
          %3001 = vmatpush1.bf16.msra.mxu0 %v2773
          %3002 = vmatprep.subr.bf16.mxu0 %v2778
          %3003 = vmatpush1.bf16.msra.mxu0 %v2777
          %3004 = vmatprep.subr.bf16.mxu0 %v2782
          %3005 = vmatpush1.bf16.msra.mxu0 %v2781
          %3006 = vmatprep.subr.bf16.mxu0 %v2786
          %3007 = vmatpush1.bf16.msra.mxu0 %v2785
          %3008 = vmatprep.subr.bf16.mxu0 %v2790
          %3009 = vmatpush1.bf16.msra.mxu0 %v2789
          %3010 = vmatprep.subr.bf16.mxu0 %v2794
          %3011 = vmatpush1.bf16.msra.mxu0 %v2793
          %3012 = vmatprep.subr.bf16.mxu0 %v2798
          %3013 = vmatpush1.bf16.msra.mxu0 %v2797
          %3014 = vmatprep.subr.bf16.mxu0 %v2802
          %3015 = vmatpush1.bf16.msra.mxu0 %v2801
          %3016 = vmatprep.subr.bf16.mxu0 %v2806
          %3017 = vmatpush1.bf16.msra.mxu0 %v2805
          %3018 = vmatprep.subr.bf16.mxu0 %v2810
          %3019 = vmatpush1.bf16.msra.mxu0 %v2809
          %3020 = vmatprep.mubr.bf16.mxu0 %v2476
          %3021 = vmatmul.mubr.bf16.gmra.mrb[0].mxu0 %v2475
          %v3022 = vpop.f32.mrb[0].mxu0
          %v3023 = vadd.f32 0.0, %v3022
          %v3024 = vpop.f32.mrb[0].mxu0
          %v3025 = vadd.f32 0.0, %v3024
          %v3026 = vpop.f32.mrb[0].mxu0
          %v3027 = vadd.f32 0.0, %v3026
          %v3028 = vpop.f32.mrb[0].mxu0
          %v3029 = vadd.f32 0.0, %v3028
          %3030 = vmatprep.mubr.bf16.mxu0 %v2478
          %3031 = vmatmul.mubr.bf16.gmra.mrb[0].mxu0 %v2477
          %v3032 = vpop.f32.mrb[0].mxu0
          %v3033 = vadd.f32 0.0, %v3032
          %v3034 = vpop.f32.mrb[0].mxu0
          %v3035 = vadd.f32 0.0, %v3034
          %v3036 = vpop.f32.mrb[0].mxu0
          %v3037 = vadd.f32 0.0, %v3036
          %v3038 = vpop.f32.mrb[0].mxu0
          %v3039 = vadd.f32 0.0, %v3038
          %3040 = vmatprep.mubr.bf16.mxu0 %v2480
          %3041 = vmatmul.mubr.bf16.gmra.mrb[0].mxu0 %v2479
          %v3042 = vpop.f32.mrb[0].mxu0
          %v3043 = vadd.f32 0.0, %v3042
          %v3044 = vpop.f32.mrb[0].mxu0
          %v3045 = vadd.f32 0.0, %v3044
          %v3046 = vpop.f32.mrb[0].mxu0
          %v3047 = vadd.f32 0.0, %v3046
          %v3048 = vpop.f32.mrb[0].mxu0
          %v3049 = vadd.f32 0.0, %v3048
          %3050 = vmatprep.mubr.bf16.mxu0 %v2482
          %3051 = vmatmul.mubr.bf16.gmra.mrb[0].mxu0 %v2481
          %v3052 = vpop.f32.mrb[0].mxu0
          %v3053 = vadd.f32 0.0, %v3052
          %v3054 = vpop.f32.mrb[0].mxu0
          %v3055 = vadd.f32 0.0, %v3054
          %v3056 = vpop.f32.mrb[0].mxu0
          %v3057 = vadd.f32 0.0, %v3056
          %v3058 = vpop.f32.mrb[0].mxu0
          %v3059 = vadd.f32 0.0, %v3058
          %3060 = vmatprep.mubr.bf16.mxu0 %v2484
          %3061 = vmatmul.mubr.bf16.gmra.mrb[0].mxu0 %v2483
          %v3062 = vpop.f32.mrb[0].mxu0
          %v3063 = vadd.f32 0.0, %v3062
          %v3064 = vpop.f32.mrb[0].mxu0
          %v3065 = vadd.f32 0.0, %v3064
          %v3066 = vpop.f32.mrb[0].mxu0
          %v3067 = vadd.f32 0.0, %v3066
          %v3068 = vpop.f32.mrb[0].mxu0
          %v3069 = vadd.f32 0.0, %v3068
          %3070 = vmatprep.mubr.bf16.mxu0 %v2486
          %3071 = vmatmul.mubr.bf16.gmra.mrb[0].mxu0 %v2485
          %v3072 = vpop.f32.mrb[0].mxu0
          %v3073 = vadd.f32 0.0, %v3072
          %v3074 = vpop.f32.mrb[0].mxu0
          %v3075 = vadd.f32 0.0, %v3074
          %v3076 = vpop.f32.mrb[0].mxu0
          %v3077 = vadd.f32 0.0, %v3076
          %v3078 = vpop.f32.mrb[0].mxu0
          %v3079 = vadd.f32 0.0, %v3078
          %3080 = vmatprep.mubr.bf16.mxu0 %v2488
          %3081 = vmatmul.mubr.bf16.gmra.mrb[0].mxu0 %v2487
          %v3082 = vpop.f32.mrb[0].mxu0
          %v3083 = vadd.f32 0.0, %v3082
          %v3084 = vpop.f32.mrb[0].mxu0
          %v3085 = vadd.f32 0.0, %v3084
          %v3086 = vpop.f32.mrb[0].mxu0
          %v3087 = vadd.f32 0.0, %v3086
          %v3088 = vpop.f32.mrb[0].mxu0
          %v3089 = vadd.f32 0.0, %v3088
          %3090 = vmatprep.mubr.bf16.mxu0 %v2490
          %3091 = vmatmul.mubr.bf16.gmra.mrb[0].mxu0 %v2489
          %v3092 = vpop.f32.mrb[0].mxu0
          %v3093 = vadd.f32 0.0, %v3092
          %v3094 = vpop.f32.mrb[0].mxu0
          %v3095 = vadd.f32 0.0, %v3094
          %v3096 = vpop.f32.mrb[0].mxu0
          %v3097 = vadd.f32 0.0, %v3096
          %v3098 = vpop.f32.mrb[0].mxu0
          %v3099 = vadd.f32 0.0, %v3098
          %3100 = vdwg.mxu0
          %v3101 = vpack.c.bf16 %v2369, %v2369
          %v3102 = vpack.c.bf16 %v2376, %v2376
          %v3103 = vpack.c.bf16 %v2383, %v2383
          %v3104 = vpack.c.bf16 %v2390, %v2390
          %v3105 = vpack.c.bf16 %v2397, %v2397
          %v3106 = vpack.c.bf16 %v2404, %v2404
          %v3107 = vpack.c.bf16 %v2411, %v2411
          %v3108 = vpack.c.bf16 %v2418, %v2418
          %v3109 = vpack.c.bf16 %v2425, %v2425
          %v3110 = vpack.c.bf16 %v2432, %v2432
          %v3111 = vpack.c.bf16 %v2439, %v2439
          %v3112 = vpack.c.bf16 %v2446, %v2446
          %v3113 = vpack.c.bf16 %v2453, %v2453
          %v3114 = vpack.c.bf16 %v2460, %v2460
          %v3115 = vpack.c.bf16 %v2467, %v2467
          %v3116 = vpack.c.bf16 %v2474, %v2474
          %v3117 = vld [vmem:[%s17] sm:$0xff]
          %v3118 = vld [vmem:[%s17 + $0x8] sm:$0xff]
          %v3119 = vld [vmem:[%s17 + $0x10] sm:$0xff]
          %v3120 = vld [vmem:[%s17 + $0x18] sm:$0xff]
          %v3121 = vld [vmem:[%s17 + $0x20] sm:$0xff]
          %v3122 = vld [vmem:[%s17 + $0x28] sm:$0xff]
          %v3123 = vld [vmem:[%s17 + $0x30] sm:$0xff]
          %v3124 = vld [vmem:[%s17 + $0x38] sm:$0xff]
          %v3125 = vld [vmem:[%s17 + $0x40] sm:$0xff]
          %v3126 = vld [vmem:[%s17 + $0x48] sm:$0xff]
          %v3127 = vld [vmem:[%s17 + $0x50] sm:$0xff]
          %v3128 = vld [vmem:[%s17 + $0x58] sm:$0xff]
          %v3129 = vld [vmem:[%s17 + $0x60] sm:$0xff]
          %v3130 = vld [vmem:[%s17 + $0x68] sm:$0xff]
          %v3131 = vld [vmem:[%s17 + $0x70] sm:$0xff]
          %v3132 = vld [vmem:[%s17 + $0x78] sm:$0xff]
          %v3133 = vld [vmem:[%s17 + $0x80] sm:$0xff]
          %v3134 = vld [vmem:[%s17 + $0x88] sm:$0xff]
          %v3135 = vld [vmem:[%s17 + $0x90] sm:$0xff]
          %v3136 = vld [vmem:[%s17 + $0x98] sm:$0xff]
          %v3137 = vld [vmem:[%s17 + $0xa0] sm:$0xff]
          %v3138 = vld [vmem:[%s17 + $0xa8] sm:$0xff]
          %v3139 = vld [vmem:[%s17 + $0xb0] sm:$0xff]
          %v3140 = vld [vmem:[%s17 + $0xb8] sm:$0xff]
          %v3141 = vld [vmem:[%s17 + $0xc0] sm:$0xff]
          %v3142 = vld [vmem:[%s17 + $0xc8] sm:$0xff]
          %v3143 = vld [vmem:[%s17 + $0xd0] sm:$0xff]
          %v3144 = vld [vmem:[%s17 + $0xd8] sm:$0xff]
          %v3145 = vld [vmem:[%s17 + $0xe0] sm:$0xff]
          %v3146 = vld [vmem:[%s17 + $0xe8] sm:$0xff]
          %v3147 = vld [vmem:[%s17 + $0xf0] sm:$0xff]
          %v3148 = vld [vmem:[%s17 + $0xf8] sm:$0xff]
          %v3149 = vld [vmem:[%s17 + $0x100] sm:$0xff]
          %v3150 = vld [vmem:[%s17 + $0x108] sm:$0xff]
          %v3151 = vld [vmem:[%s17 + $0x110] sm:$0xff]
          %v3152 = vld [vmem:[%s17 + $0x118] sm:$0xff]
          %v3153 = vld [vmem:[%s17 + $0x120] sm:$0xff]
          %v3154 = vld [vmem:[%s17 + $0x128] sm:$0xff]
          %v3155 = vld [vmem:[%s17 + $0x130] sm:$0xff]
          %v3156 = vld [vmem:[%s17 + $0x138] sm:$0xff]
          %v3157 = vld [vmem:[%s17 + $0x140] sm:$0xff]
          %v3158 = vld [vmem:[%s17 + $0x148] sm:$0xff]
          %v3159 = vld [vmem:[%s17 + $0x150] sm:$0xff]
          %v3160 = vld [vmem:[%s17 + $0x158] sm:$0xff]
          %v3161 = vld [vmem:[%s17 + $0x160] sm:$0xff]
          %v3162 = vld [vmem:[%s17 + $0x168] sm:$0xff]
          %v3163 = vld [vmem:[%s17 + $0x170] sm:$0xff]
          %v3164 = vld [vmem:[%s17 + $0x178] sm:$0xff]
          %v3165 = vld [vmem:[%s17 + $0x180] sm:$0xff]
          %v3166 = vld [vmem:[%s17 + $0x188] sm:$0xff]
          %v3167 = vld [vmem:[%s17 + $0x190] sm:$0xff]
          %v3168 = vld [vmem:[%s17 + $0x198] sm:$0xff]
          %v3169 = vld [vmem:[%s17 + $0x1a0] sm:$0xff]
          %v3170 = vld [vmem:[%s17 + $0x1a8] sm:$0xff]
          %v3171 = vld [vmem:[%s17 + $0x1b0] sm:$0xff]
          %v3172 = vld [vmem:[%s17 + $0x1b8] sm:$0xff]
          %v3173 = vld [vmem:[%s17 + $0x1c0] sm:$0xff]
          %v3174 = vld [vmem:[%s17 + $0x1c8] sm:$0xff]
          %v3175 = vld [vmem:[%s17 + $0x1d0] sm:$0xff]
          %v3176 = vld [vmem:[%s17 + $0x1d8] sm:$0xff]
          %v3177 = vld [vmem:[%s17 + $0x1e0] sm:$0xff]
          %v3178 = vld [vmem:[%s17 + $0x1e8] sm:$0xff]
          %v3179 = vld [vmem:[%s17 + $0x1f0] sm:$0xff]
          %v3180 = vld [vmem:[%s17 + $0x1f8] sm:$0xff]
          %v3197 = vunpack.c.l.b16 %v3101
          %v3198 = vunpack.c.l.b16 %v3102
          %v3199 = vunpack.c.l.b16 %v3103
          %v3200 = vunpack.c.l.b16 %v3104
          %v3201 = vunpack.c.l.b16 %v3105
          %v3202 = vunpack.c.l.b16 %v3106
          %v3203 = vunpack.c.l.b16 %v3107
          %v3204 = vunpack.c.l.b16 %v3108
          %v3205 = vunpack.c.l.b16 %v3109
          %v3206 = vunpack.c.l.b16 %v3110
          %v3207 = vunpack.c.l.b16 %v3111
          %v3208 = vunpack.c.l.b16 %v3112
          %v3209 = vunpack.c.l.b16 %v3113
          %v3210 = vunpack.c.l.b16 %v3114
          %v3211 = vunpack.c.l.b16 %v3115
          %v3212 = vunpack.c.l.b16 %v3116
          %vm3213 = vcmask 1041409
          %v3214 = vsel %vm3213, %v3199, %v3197
          %vm3215 = vcmask 1042434
          %v3216 = vsel %vm3215, %v3201, %v3214
          %vm3217 = vcmask 1043459
          %v3218 = vsel %vm3217, %v3203, %v3216
          %vm3219 = vcmask 1044484
          %v3220 = vsel %vm3219, %v3205, %v3218
          %vm3221 = vcmask 1045509
          %v3222 = vsel %vm3221, %v3207, %v3220
          %vm3223 = vcmask 1046534
          %v3224 = vsel %vm3223, %v3209, %v3222
          %vm3225 = vcmask 1047559
          %v3226 = vsel %vm3225, %v3211, %v3224
          %v3227 = vsel %vm3213, %v3200, %v3198
          %v3228 = vsel %vm3215, %v3202, %v3227
          %v3229 = vsel %vm3217, %v3204, %v3228
          %v3230 = vsel %vm3219, %v3206, %v3229
          %v3231 = vsel %vm3221, %v3208, %v3230
          %v3232 = vsel %vm3223, %v3210, %v3231
          %v3233 = vsel %vm3225, %v3212, %v3232
          %v3234 = vpack.c.b16 %v3226, %v3226
          %v3235 = vpack.c.b16 %v3233, %v3233
          %v3302 = vunpack.c.l.b16 %v3117
          %v3303 = vunpack.c.h.b16 %v3117
          %v3304 = vunpack.c.l.b16 %v3118
          %v3305 = vunpack.c.h.b16 %v3118
          %v3306 = vunpack.c.l.b16 %v3119
          %v3307 = vunpack.c.h.b16 %v3119
          %v3308 = vunpack.c.l.b16 %v3120
          %v3309 = vunpack.c.h.b16 %v3120
          %v3310 = vunpack.c.l.b16 %v3121
          %v3311 = vunpack.c.h.b16 %v3121
          %v3312 = vunpack.c.l.b16 %v3122
          %v3313 = vunpack.c.h.b16 %v3122
          %v3314 = vunpack.c.l.b16 %v3123
          %v3315 = vunpack.c.h.b16 %v3123
          %v3316 = vunpack.c.l.b16 %v3124
          %v3317 = vunpack.c.h.b16 %v3124
          %v3318 = vunpack.c.l.b16 %v3125
          %v3319 = vunpack.c.h.b16 %v3125
          %v3320 = vunpack.c.l.b16 %v3126
          %v3321 = vunpack.c.h.b16 %v3126
          %v3322 = vunpack.c.l.b16 %v3127
          %v3323 = vunpack.c.h.b16 %v3127
          %v3324 = vunpack.c.l.b16 %v3128
          %v3325 = vunpack.c.h.b16 %v3128
          %v3326 = vunpack.c.l.b16 %v3129
          %v3327 = vunpack.c.h.b16 %v3129
          %v3328 = vunpack.c.l.b16 %v3130
          %v3329 = vunpack.c.h.b16 %v3130
          %v3330 = vunpack.c.l.b16 %v3131
          %v3331 = vunpack.c.h.b16 %v3131
          %v3332 = vunpack.c.l.b16 %v3132
          %v3333 = vunpack.c.h.b16 %v3132
          %v3334 = vunpack.c.l.b16 %v3133
          %v3335 = vunpack.c.h.b16 %v3133
          %v3336 = vunpack.c.l.b16 %v3134
          %v3337 = vunpack.c.h.b16 %v3134
          %v3338 = vunpack.c.l.b16 %v3135
          %v3339 = vunpack.c.h.b16 %v3135
          %v3340 = vunpack.c.l.b16 %v3136
          %v3341 = vunpack.c.h.b16 %v3136
          %v3342 = vunpack.c.l.b16 %v3137
          %v3343 = vunpack.c.h.b16 %v3137
          %v3344 = vunpack.c.l.b16 %v3138
          %v3345 = vunpack.c.h.b16 %v3138
          %v3346 = vunpack.c.l.b16 %v3139
          %v3347 = vunpack.c.h.b16 %v3139
          %v3348 = vunpack.c.l.b16 %v3140
          %v3349 = vunpack.c.h.b16 %v3140
          %v3350 = vunpack.c.l.b16 %v3141
          %v3351 = vunpack.c.h.b16 %v3141
          %v3352 = vunpack.c.l.b16 %v3142
          %v3353 = vunpack.c.h.b16 %v3142
          %v3354 = vunpack.c.l.b16 %v3143
          %v3355 = vunpack.c.h.b16 %v3143
          %v3356 = vunpack.c.l.b16 %v3144
          %v3357 = vunpack.c.h.b16 %v3144
          %v3358 = vunpack.c.l.b16 %v3145
          %v3359 = vunpack.c.h.b16 %v3145
          %v3360 = vunpack.c.l.b16 %v3146
          %v3361 = vunpack.c.h.b16 %v3146
          %v3362 = vunpack.c.l.b16 %v3147
          %v3363 = vunpack.c.h.b16 %v3147
          %v3364 = vunpack.c.l.b16 %v3148
          %v3365 = vunpack.c.h.b16 %v3148
          %v3366 = vunpack.c.l.b16 %v3149
          %v3367 = vunpack.c.h.b16 %v3149
          %v3368 = vunpack.c.l.b16 %v3150
          %v3369 = vunpack.c.h.b16 %v3150
          %v3370 = vunpack.c.l.b16 %v3151
          %v3371 = vunpack.c.h.b16 %v3151
          %v3372 = vunpack.c.l.b16 %v3152
          %v3373 = vunpack.c.h.b16 %v3152
          %v3374 = vunpack.c.l.b16 %v3153
          %v3375 = vunpack.c.h.b16 %v3153
          %v3376 = vunpack.c.l.b16 %v3154
          %v3377 = vunpack.c.h.b16 %v3154
          %v3378 = vunpack.c.l.b16 %v3155
          %v3379 = vunpack.c.h.b16 %v3155
          %v3380 = vunpack.c.l.b16 %v3156
          %v3381 = vunpack.c.h.b16 %v3156
          %v3382 = vunpack.c.l.b16 %v3157
          %v3383 = vunpack.c.h.b16 %v3157
          %v3384 = vunpack.c.l.b16 %v3158
          %v3385 = vunpack.c.h.b16 %v3158
          %v3386 = vunpack.c.l.b16 %v3159
          %v3387 = vunpack.c.h.b16 %v3159
          %v3388 = vunpack.c.l.b16 %v3160
          %v3389 = vunpack.c.h.b16 %v3160
          %v3390 = vunpack.c.l.b16 %v3161
          %v3391 = vunpack.c.h.b16 %v3161
          %v3392 = vunpack.c.l.b16 %v3162
          %v3393 = vunpack.c.h.b16 %v3162
          %v3394 = vunpack.c.l.b16 %v3163
          %v3395 = vunpack.c.h.b16 %v3163
          %v3396 = vunpack.c.l.b16 %v3164
          %v3397 = vunpack.c.h.b16 %v3164
          %v3398 = vunpack.c.l.b16 %v3165
          %v3399 = vunpack.c.h.b16 %v3165
          %v3400 = vunpack.c.l.b16 %v3166
          %v3401 = vunpack.c.h.b16 %v3166
          %v3402 = vunpack.c.l.b16 %v3167
          %v3403 = vunpack.c.h.b16 %v3167
          %v3404 = vunpack.c.l.b16 %v3168
          %v3405 = vunpack.c.h.b16 %v3168
          %v3406 = vunpack.c.l.b16 %v3169
          %v3407 = vunpack.c.h.b16 %v3169
          %v3408 = vunpack.c.l.b16 %v3170
          %v3409 = vunpack.c.h.b16 %v3170
          %v3410 = vunpack.c.l.b16 %v3171
          %v3411 = vunpack.c.h.b16 %v3171
          %v3412 = vunpack.c.l.b16 %v3172
          %v3413 = vunpack.c.h.b16 %v3172
          %v3414 = vunpack.c.l.b16 %v3173
          %v3415 = vunpack.c.h.b16 %v3173
          %v3416 = vunpack.c.l.b16 %v3174
          %v3417 = vunpack.c.h.b16 %v3174
          %v3418 = vunpack.c.l.b16 %v3175
          %v3419 = vunpack.c.h.b16 %v3175
          %v3420 = vunpack.c.l.b16 %v3176
          %v3421 = vunpack.c.h.b16 %v3176
          %v3422 = vunpack.c.l.b16 %v3177
          %v3423 = vunpack.c.h.b16 %v3177
          %v3424 = vunpack.c.l.b16 %v3178
          %v3425 = vunpack.c.h.b16 %v3178
          %v3426 = vunpack.c.l.b16 %v3179
          %v3427 = vunpack.c.h.b16 %v3179
          %v3428 = vunpack.c.l.b16 %v3180
          %v3429 = vunpack.c.h.b16 %v3180
          %v3430 = vpack.c.b16 %v3306, %v3302
          %v3431 = vpack.c.b16 %v3307, %v3303
          %v3432 = vpack.c.b16 %v3308, %v3304
          %v3433 = vpack.c.b16 %v3309, %v3305
          %v3434 = vpack.c.b16 %v3314, %v3310
          %v3435 = vpack.c.b16 %v3315, %v3311
          %v3436 = vpack.c.b16 %v3316, %v3312
          %v3437 = vpack.c.b16 %v3317, %v3313
          %v3438 = vpack.c.b16 %v3322, %v3318
          %v3439 = vpack.c.b16 %v3323, %v3319
          %v3440 = vpack.c.b16 %v3324, %v3320
          %v3441 = vpack.c.b16 %v3325, %v3321
          %v3442 = vpack.c.b16 %v3330, %v3326
          %v3443 = vpack.c.b16 %v3331, %v3327
          %v3444 = vpack.c.b16 %v3332, %v3328
          %v3445 = vpack.c.b16 %v3333, %v3329
          %v3446 = vpack.c.b16 %v3338, %v3334
          %v3447 = vpack.c.b16 %v3339, %v3335
          %v3448 = vpack.c.b16 %v3340, %v3336
          %v3449 = vpack.c.b16 %v3341, %v3337
          %v3450 = vpack.c.b16 %v3346, %v3342
          %v3451 = vpack.c.b16 %v3347, %v3343
          %v3452 = vpack.c.b16 %v3348, %v3344
          %v3453 = vpack.c.b16 %v3349, %v3345
          %v3454 = vpack.c.b16 %v3354, %v3350
          %v3455 = vpack.c.b16 %v3355, %v3351
          %v3456 = vpack.c.b16 %v3356, %v3352
          %v3457 = vpack.c.b16 %v3357, %v3353
          %v3458 = vpack.c.b16 %v3362, %v3358
          %v3459 = vpack.c.b16 %v3363, %v3359
          %v3460 = vpack.c.b16 %v3364, %v3360
          %v3461 = vpack.c.b16 %v3365, %v3361
          %v3462 = vpack.c.b16 %v3370, %v3366
          %v3463 = vpack.c.b16 %v3371, %v3367
          %v3464 = vpack.c.b16 %v3372, %v3368
          %v3465 = vpack.c.b16 %v3373, %v3369
          %v3466 = vpack.c.b16 %v3378, %v3374
          %v3467 = vpack.c.b16 %v3379, %v3375
          %v3468 = vpack.c.b16 %v3380, %v3376
          %v3469 = vpack.c.b16 %v3381, %v3377
          %v3470 = vpack.c.b16 %v3386, %v3382
          %v3471 = vpack.c.b16 %v3387, %v3383
          %v3472 = vpack.c.b16 %v3388, %v3384
          %v3473 = vpack.c.b16 %v3389, %v3385
          %v3474 = vpack.c.b16 %v3394, %v3390
          %v3475 = vpack.c.b16 %v3395, %v3391
          %v3476 = vpack.c.b16 %v3396, %v3392
          %v3477 = vpack.c.b16 %v3397, %v3393
          %v3478 = vpack.c.b16 %v3402, %v3398
          %v3479 = vpack.c.b16 %v3403, %v3399
          %v3480 = vpack.c.b16 %v3404, %v3400
          %v3481 = vpack.c.b16 %v3405, %v3401
          %v3482 = vpack.c.b16 %v3410, %v3406
          %v3483 = vpack.c.b16 %v3411, %v3407
          %v3484 = vpack.c.b16 %v3412, %v3408
          %v3485 = vpack.c.b16 %v3413, %v3409
          %v3486 = vpack.c.b16 %v3418, %v3414
          %v3487 = vpack.c.b16 %v3419, %v3415
          %v3488 = vpack.c.b16 %v3420, %v3416
          %v3489 = vpack.c.b16 %v3421, %v3417
          %v3490 = vpack.c.b16 %v3426, %v3422
          %v3491 = vpack.c.b16 %v3427, %v3423
          %v3492 = vpack.c.b16 %v3428, %v3424
          %v3493 = vpack.c.b16 %v3429, %v3425
          %3558 = vmatprep.subr.bf16.mxu0 %v3431
          %3559 = vmatpush1.bf16.msra.mxu0 %v3430
          %3560 = vmatprep.subr.bf16.mxu0 %v3435
          %3561 = vmatpush1.bf16.msra.mxu0 %v3434
          %3562 = vmatprep.subr.bf16.mxu0 %v3439
          %3563 = vmatpush1.bf16.msra.mxu0 %v3438
          %3564 = vmatprep.subr.bf16.mxu0 %v3443
          %3565 = vmatpush1.bf16.msra.mxu0 %v3442
          %3566 = vmatprep.subr.bf16.mxu0 %v3447
          %3567 = vmatpush1.bf16.msra.mxu0 %v3446
          %3568 = vmatprep.subr.bf16.mxu0 %v3451
          %3569 = vmatpush1.bf16.msra.mxu0 %v3450
          %3570 = vmatprep.subr.bf16.mxu0 %v3455
          %3571 = vmatpush1.bf16.msra.mxu0 %v3454
          %3572 = vmatprep.subr.bf16.mxu0 %v3459
          %3573 = vmatpush1.bf16.msra.mxu0 %v3458
          %3574 = vmatprep.subr.bf16.mxu0 %v3463
          %3575 = vmatpush1.bf16.msra.mxu0 %v3462
          %3576 = vmatprep.subr.bf16.mxu0 %v3467
          %3577 = vmatpush1.bf16.msra.mxu0 %v3466
          %3578 = vmatprep.subr.bf16.mxu0 %v3471
          %3579 = vmatpush1.bf16.msra.mxu0 %v3470
          %3580 = vmatprep.subr.bf16.mxu0 %v3475
          %3581 = vmatpush1.bf16.msra.mxu0 %v3474
          %3582 = vmatprep.subr.bf16.mxu0 %v3479
          %3583 = vmatpush1.bf16.msra.mxu0 %v3478
          %3584 = vmatprep.subr.bf16.mxu0 %v3483
          %3585 = vmatpush1.bf16.msra.mxu0 %v3482
          %3586 = vmatprep.subr.bf16.mxu0 %v3487
          %3587 = vmatpush1.bf16.msra.mxu0 %v3486
          %3588 = vmatprep.subr.bf16.mxu0 %v3491
          %3589 = vmatpush1.bf16.msra.mxu0 %v3490
          %3590 = vmatprep.mubr.bf16.mxu0 %v3235
          %3591 = vmatmul.mubr.bf16.gmra.mrb[0].mxu0 %v3234
          %v3592 = vpop.f32.mrb[0].mxu0
          %v3593 = vadd.f32 0.0, %v3592
          %v3594 = vpop.f32.mrb[0].mxu0
          %v3595 = vadd.f32 0.0, %v3594
          %v3596 = vpop.f32.mrb[0].mxu0
          %v3597 = vpop.f32.mrb[0].mxu0
          %3598 = vdwg.mxu0
          %3599 = vmatprep.subr.bf16.mxu0 %v3433
          %3600 = vmatpush1.bf16.msra.mxu0 %v3432
          %3601 = vmatprep.subr.bf16.mxu0 %v3437
          %3602 = vmatpush1.bf16.msra.mxu0 %v3436
          %3603 = vmatprep.subr.bf16.mxu0 %v3441
          %3604 = vmatpush1.bf16.msra.mxu0 %v3440
          %3605 = vmatprep.subr.bf16.mxu0 %v3445
          %3606 = vmatpush1.bf16.msra.mxu0 %v3444
          %3607 = vmatprep.subr.bf16.mxu0 %v3449
          %3608 = vmatpush1.bf16.msra.mxu0 %v3448
          %3609 = vmatprep.subr.bf16.mxu0 %v3453
          %3610 = vmatpush1.bf16.msra.mxu0 %v3452
          %3611 = vmatprep.subr.bf16.mxu0 %v3457
          %3612 = vmatpush1.bf16.msra.mxu0 %v3456
          %3613 = vmatprep.subr.bf16.mxu0 %v3461
          %3614 = vmatpush1.bf16.msra.mxu0 %v3460
          %3615 = vmatprep.subr.bf16.mxu0 %v3465
          %3616 = vmatpush1.bf16.msra.mxu0 %v3464
          %3617 = vmatprep.subr.bf16.mxu0 %v3469
          %3618 = vmatpush1.bf16.msra.mxu0 %v3468
          %3619 = vmatprep.subr.bf16.mxu0 %v3473
          %3620 = vmatpush1.bf16.msra.mxu0 %v3472
          %3621 = vmatprep.subr.bf16.mxu0 %v3477
          %3622 = vmatpush1.bf16.msra.mxu0 %v3476
          %3623 = vmatprep.subr.bf16.mxu0 %v3481
          %3624 = vmatpush1.bf16.msra.mxu0 %v3480
          %3625 = vmatprep.subr.bf16.mxu0 %v3485
          %3626 = vmatpush1.bf16.msra.mxu0 %v3484
          %3627 = vmatprep.subr.bf16.mxu0 %v3489
          %3628 = vmatpush1.bf16.msra.mxu0 %v3488
          %3629 = vmatprep.subr.bf16.mxu0 %v3493
          %3630 = vmatpush1.bf16.msra.mxu0 %v3492
          %3631 = vmatprep.mubr.bf16.mxu0 %v3235
          %3632 = vmatmul.mubr.bf16.gmra.mrb[0].mxu0 %v3234
          %v3633 = vpop.f32.mrb[0].mxu0
          %v3634 = vadd.f32 0.0, %v3633
          %v3635 = vpop.f32.mrb[0].mxu0
          %v3636 = vadd.f32 0.0, %v3635
          %v3637 = vpop.f32.mrb[0].mxu0
          %v3638 = vpop.f32.mrb[0].mxu0
          %3639 = vdwg.mxu0
          %v3644 = vcombine.low %v3593, %v3595
          %v3645 = vcombine.high %v3593, %v3595
          %v3646 = vcombine.low %v3634, %v3636
          %v3647 = vcombine.high %v3634, %v3636
          %v3649 = vunpack.c.l.s4 1966171168
          %v3650 = vunpack.c.0.s8 %v3649
          %v3651 = vlaneseq
          %v3652 = vshrl.u32 %v3651, 7
          %v3653 = vsub.s32 %v3650, %v3652
          %v3654 = vrot.slane %v3644, %v3653
          %v3656 = vunpack.c.l.s4 1966171168
          %v3657 = vunpack.c.0.s8 %v3656
          %v3658 = vlaneseq
          %v3659 = vshrl.u32 %v3658, 7
          %v3660 = vsub.s32 %v3657, %v3659
          %v3661 = vrot.slane %v3645, %v3660
          %v3663 = vunpack.c.l.s4 1966171168
          %v3664 = vunpack.c.0.s8 %v3663
          %v3665 = vlaneseq
          %v3666 = vshrl.u32 %v3665, 7
          %v3667 = vsub.s32 %v3664, %v3666
          %v3668 = vrot.slane %v3646, %v3667
          %v3670 = vunpack.c.l.s4 1966171168
          %v3671 = vunpack.c.0.s8 %v3670
          %v3672 = vlaneseq
          %v3673 = vshrl.u32 %v3672, 7
          %v3674 = vsub.s32 %v3671, %v3673
          %v3675 = vrot.slane %v3647, %v3674
          %v3676 = vcombine.low %v3654, %v3668
          %v3677 = vcombine.high %v3654, %v3668
          %v3678 = vcombine.low %v3661, %v3675
          %v3679 = vcombine.high %v3661, %v3675
          %v3681 = vunpack.c.l.s4 1966171168
          %v3682 = vunpack.c.0.s8 %v3681
          %v3683 = vlaneseq
          %v3684 = vshrl.u32 %v3683, 7
          %v3685 = vsub.s32 %v3682, %v3684
          %v3686 = vrot.slane %v3676, %v3685
          %v3688 = vunpack.c.l.s4 1966171168
          %v3689 = vunpack.c.0.s8 %v3688
          %v3690 = vlaneseq
          %v3691 = vshrl.u32 %v3690, 7
          %v3692 = vsub.s32 %v3689, %v3691
          %v3693 = vrot.slane %v3678, %v3692
          %v3695 = vunpack.c.l.s4 1966171168
          %v3696 = vunpack.c.0.s8 %v3695
          %v3697 = vlaneseq
          %v3698 = vshrl.u32 %v3697, 7
          %v3699 = vsub.s32 %v3696, %v3698
          %v3700 = vrot.slane %v3677, %v3699
          %v3702 = vunpack.c.l.s4 1966171168
          %v3703 = vunpack.c.0.s8 %v3702
          %v3704 = vlaneseq
          %v3705 = vshrl.u32 %v3704, 7
          %v3706 = vsub.s32 %v3703, %v3705
          %v3707 = vrot.slane %v3679, %v3706
          %v3708 = vcombine.high %v3686, %v3686
          %v3709 = vcombine.high %v3693, %v3693
          %v3710 = vcombine.high %v3700, %v3700
          %v3711 = vcombine.high %v3707, %v3707
          %v3712 = vlaneseq
          %v3713 = vshrl.u32 %v3712, 7
          %v3714 = vsub.s32 0, %v3713
          %v3715 = vrot.slane %v3686, %v3714
          %v3716 = vlaneseq
          %v3717 = vshrl.u32 %v3716, 7
          %v3718 = vsub.s32 1, %v3717
          %v3719 = vrot.slane %v3686, %v3718
          %v3720 = vlaneseq
          %v3721 = vshrl.u32 %v3720, 7
          %v3722 = vsub.s32 2, %v3721
          %v3723 = vrot.slane %v3686, %v3722
          %v3724 = vlaneseq
          %v3725 = vshrl.u32 %v3724, 7
          %v3726 = vsub.s32 3, %v3725
          %v3727 = vrot.slane %v3686, %v3726
          %v3728 = vlaneseq
          %v3729 = vshrl.u32 %v3728, 7
          %v3730 = vsub.s32 0, %v3729
          %v3731 = vrot.slane %v3700, %v3730
          %v3732 = vlaneseq
          %v3733 = vshrl.u32 %v3732, 7
          %v3734 = vsub.s32 1, %v3733
          %v3735 = vrot.slane %v3700, %v3734
          %v3736 = vlaneseq
          %v3737 = vshrl.u32 %v3736, 7
          %v3738 = vsub.s32 2, %v3737
          %v3739 = vrot.slane %v3700, %v3738
          %v3740 = vlaneseq
          %v3741 = vshrl.u32 %v3740, 7
          %v3742 = vsub.s32 3, %v3741
          %v3743 = vrot.slane %v3700, %v3742
          %v3744 = vlaneseq
          %v3745 = vshrl.u32 %v3744, 7
          %v3746 = vsub.s32 0, %v3745
          %v3747 = vrot.slane %v3708, %v3746
          %v3748 = vlaneseq
          %v3749 = vshrl.u32 %v3748, 7
          %v3750 = vsub.s32 1, %v3749
          %v3751 = vrot.slane %v3708, %v3750
          %v3752 = vlaneseq
          %v3753 = vshrl.u32 %v3752, 7
          %v3754 = vsub.s32 2, %v3753
          %v3755 = vrot.slane %v3708, %v3754
          %v3756 = vlaneseq
          %v3757 = vshrl.u32 %v3756, 7
          %v3758 = vsub.s32 3, %v3757
          %v3759 = vrot.slane %v3708, %v3758
          %v3760 = vlaneseq
          %v3761 = vshrl.u32 %v3760, 7
          %v3762 = vsub.s32 0, %v3761
          %v3763 = vrot.slane %v3710, %v3762
          %v3764 = vlaneseq
          %v3765 = vshrl.u32 %v3764, 7
          %v3766 = vsub.s32 1, %v3765
          %v3767 = vrot.slane %v3710, %v3766
          %v3768 = vlaneseq
          %v3769 = vshrl.u32 %v3768, 7
          %v3770 = vsub.s32 2, %v3769
          %v3771 = vrot.slane %v3710, %v3770
          %v3772 = vlaneseq
          %v3773 = vshrl.u32 %v3772, 7
          %v3774 = vsub.s32 3, %v3773
          %v3775 = vrot.slane %v3710, %v3774
          %v3776 = vlaneseq
          %v3777 = vshrl.u32 %v3776, 7
          %v3778 = vsub.s32 0, %v3777
          %v3779 = vrot.slane %v3693, %v3778
          %v3780 = vlaneseq
          %v3781 = vshrl.u32 %v3780, 7
          %v3782 = vsub.s32 1, %v3781
          %v3783 = vrot.slane %v3693, %v3782
          %v3784 = vlaneseq
          %v3785 = vshrl.u32 %v3784, 7
          %v3786 = vsub.s32 2, %v3785
          %v3787 = vrot.slane %v3693, %v3786
          %v3788 = vlaneseq
          %v3789 = vshrl.u32 %v3788, 7
          %v3790 = vsub.s32 3, %v3789
          %v3791 = vrot.slane %v3693, %v3790
          %v3792 = vlaneseq
          %v3793 = vshrl.u32 %v3792, 7
          %v3794 = vsub.s32 0, %v3793
          %v3795 = vrot.slane %v3707, %v3794
          %v3796 = vlaneseq
          %v3797 = vshrl.u32 %v3796, 7
          %v3798 = vsub.s32 1, %v3797
          %v3799 = vrot.slane %v3707, %v3798
          %v3800 = vlaneseq
          %v3801 = vshrl.u32 %v3800, 7
          %v3802 = vsub.s32 2, %v3801
          %v3803 = vrot.slane %v3707, %v3802
          %v3804 = vlaneseq
          %v3805 = vshrl.u32 %v3804, 7
          %v3806 = vsub.s32 3, %v3805
          %v3807 = vrot.slane %v3707, %v3806
          %v3808 = vlaneseq
          %v3809 = vshrl.u32 %v3808, 7
          %v3810 = vsub.s32 0, %v3809
          %v3811 = vrot.slane %v3709, %v3810
          %v3812 = vlaneseq
          %v3813 = vshrl.u32 %v3812, 7
          %v3814 = vsub.s32 1, %v3813
          %v3815 = vrot.slane %v3709, %v3814
          %v3816 = vlaneseq
          %v3817 = vshrl.u32 %v3816, 7
          %v3818 = vsub.s32 2, %v3817
          %v3819 = vrot.slane %v3709, %v3818
          %v3820 = vlaneseq
          %v3821 = vshrl.u32 %v3820, 7
          %v3822 = vsub.s32 3, %v3821
          %v3823 = vrot.slane %v3709, %v3822
          %v3824 = vlaneseq
          %v3825 = vshrl.u32 %v3824, 7
          %v3826 = vsub.s32 0, %v3825
          %v3827 = vrot.slane %v3711, %v3826
          %v3828 = vlaneseq
          %v3829 = vshrl.u32 %v3828, 7
          %v3830 = vsub.s32 1, %v3829
          %v3831 = vrot.slane %v3711, %v3830
          %v3832 = vlaneseq
          %v3833 = vshrl.u32 %v3832, 7
          %v3834 = vsub.s32 2, %v3833
          %v3835 = vrot.slane %v3711, %v3834
          %v3836 = vlaneseq
          %v3837 = vshrl.u32 %v3836, 7
          %v3838 = vsub.s32 3, %v3837
          %v3839 = vrot.slane %v3711, %v3838
          %v3872 = vadd.f32 %v2910, %v3715
          %v3873 = vadd.f32 %v2912, %v3719
          %v3874 = vadd.f32 %v3023, %v3723
          %v3875 = vadd.f32 %v3025, %v3727
          %v3876 = vadd.f32 %v2914, %v3715
          %v3877 = vadd.f32 %v2916, %v3719
          %v3878 = vadd.f32 %v3027, %v3723
          %v3879 = vadd.f32 %v3029, %v3727
          %v3880 = vadd.f32 %v2920, %v3731
          %v3881 = vadd.f32 %v2922, %v3735
          %v3882 = vadd.f32 %v3033, %v3739
          %v3883 = vadd.f32 %v3035, %v3743
          %v3884 = vadd.f32 %v2924, %v3731
          %v3885 = vadd.f32 %v2926, %v3735
          %v3886 = vadd.f32 %v3037, %v3739
          %v3887 = vadd.f32 %v3039, %v3743
          %v3888 = vadd.f32 %v2930, %v3747
          %v3889 = vadd.f32 %v2932, %v3751
          %v3890 = vadd.f32 %v3043, %v3755
          %v3891 = vadd.f32 %v3045, %v3759
          %v3892 = vadd.f32 %v2934, %v3747
          %v3893 = vadd.f32 %v2936, %v3751
          %v3894 = vadd.f32 %v3047, %v3755
          %v3895 = vadd.f32 %v3049, %v3759
          %v3896 = vadd.f32 %v2940, %v3763
          %v3897 = vadd.f32 %v2942, %v3767
          %v3898 = vadd.f32 %v3053, %v3771
          %v3899 = vadd.f32 %v3055, %v3775
          %v3900 = vadd.f32 %v2944, %v3763
          %v3901 = vadd.f32 %v2946, %v3767
          %v3902 = vadd.f32 %v3057, %v3771
          %v3903 = vadd.f32 %v3059, %v3775
          %v3904 = vadd.f32 %v2950, %v3779
          %v3905 = vadd.f32 %v2952, %v3783
          %v3906 = vadd.f32 %v3063, %v3787
          %v3907 = vadd.f32 %v3065, %v3791
          %v3908 = vadd.f32 %v2954, %v3779
          %v3909 = vadd.f32 %v2956, %v3783
          %v3910 = vadd.f32 %v3067, %v3787
          %v3911 = vadd.f32 %v3069, %v3791
          %v3912 = vadd.f32 %v2960, %v3795
          %v3913 = vadd.f32 %v2962, %v3799
          %v3914 = vadd.f32 %v3073, %v3803
          %v3915 = vadd.f32 %v3075, %v3807
          %v3916 = vadd.f32 %v2964, %v3795
          %v3917 = vadd.f32 %v2966, %v3799
          %v3918 = vadd.f32 %v3077, %v3803
          %v3919 = vadd.f32 %v3079, %v3807
          %v3920 = vadd.f32 %v2970, %v3811
          %v3921 = vadd.f32 %v2972, %v3815
          %v3922 = vadd.f32 %v3083, %v3819
          %v3923 = vadd.f32 %v3085, %v3823
          %v3924 = vadd.f32 %v2974, %v3811
          %v3925 = vadd.f32 %v2976, %v3815
          %v3926 = vadd.f32 %v3087, %v3819
          %v3927 = vadd.f32 %v3089, %v3823
          %v3928 = vadd.f32 %v2980, %v3827
          %v3929 = vadd.f32 %v2982, %v3831
          %v3930 = vadd.f32 %v3093, %v3835
          %v3931 = vadd.f32 %v3095, %v3839
          %v3932 = vadd.f32 %v2984, %v3827
          %v3933 = vadd.f32 %v2986, %v3831
          %v3934 = vadd.f32 %v3097, %v3835
          %v3935 = vadd.f32 %v3099, %v3839
          %v3936 = vld [vmem:[%s19] sm:$0xf]
          %v3938 = vlaneseq
          %v3939 = vshrl.u32 %v3938, 7
          %v3940 = vsub.s32 0, %v3939
          %v3941 = vrot.slane %v3936, %v3940
          %v3942 = vlaneseq
          %v3943 = vshrl.u32 %v3942, 7
          %v3944 = vsub.s32 1, %v3943
          %v3945 = vrot.slane %v3936, %v3944
          %v3946 = vlaneseq
          %v3947 = vshrl.u32 %v3946, 7
          %v3948 = vsub.s32 2, %v3947
          %v3949 = vrot.slane %v3936, %v3948
          %v3950 = vlaneseq
          %v3951 = vshrl.u32 %v3950, 7
          %v3952 = vsub.s32 3, %v3951
          %v3953 = vrot.slane %v3936, %v3952
          %v3958 = vmul.f32 %v3872, %v3941
          %v3959 = vmul.f32 %v3873, %v3945
          %v3960 = vmul.f32 %v3874, %v3949
          %v3961 = vmul.f32 %v3875, %v3953
          %v3962 = vmul.f32 %v3876, %v3941
          %v3963 = vmul.f32 %v3877, %v3945
          %v3964 = vmul.f32 %v3878, %v3949
          %v3965 = vmul.f32 %v3879, %v3953
          %v3966 = vmul.f32 %v3880, %v3941
          %v3967 = vmul.f32 %v3881, %v3945
          %v3968 = vmul.f32 %v3882, %v3949
          %v3969 = vmul.f32 %v3883, %v3953
          %v3970 = vmul.f32 %v3884, %v3941
          %v3971 = vmul.f32 %v3885, %v3945
          %v3972 = vmul.f32 %v3886, %v3949
          %v3973 = vmul.f32 %v3887, %v3953
          %v3974 = vmul.f32 %v3888, %v3941
          %v3975 = vmul.f32 %v3889, %v3945
          %v3976 = vmul.f32 %v3890, %v3949
          %v3977 = vmul.f32 %v3891, %v3953
          %v3978 = vmul.f32 %v3892, %v3941
          %v3979 = vmul.f32 %v3893, %v3945
          %v3980 = vmul.f32 %v3894, %v3949
          %v3981 = vmul.f32 %v3895, %v3953
          %v3982 = vmul.f32 %v3896, %v3941
          %v3983 = vmul.f32 %v3897, %v3945
          %v3984 = vmul.f32 %v3898, %v3949
          %v3985 = vmul.f32 %v3899, %v3953
          %v3986 = vmul.f32 %v3900, %v3941
          %v3987 = vmul.f32 %v3901, %v3945
          %v3988 = vmul.f32 %v3902, %v3949
          %v3989 = vmul.f32 %v3903, %v3953
          %v3990 = vmul.f32 %v3904, %v3941
          %v3991 = vmul.f32 %v3905, %v3945
          %v3992 = vmul.f32 %v3906, %v3949
          %v3993 = vmul.f32 %v3907, %v3953
          %v3994 = vmul.f32 %v3908, %v3941
          %v3995 = vmul.f32 %v3909, %v3945
          %v3996 = vmul.f32 %v3910, %v3949
          %v3997 = vmul.f32 %v3911, %v3953
          %v3998 = vmul.f32 %v3912, %v3941
          %v3999 = vmul.f32 %v3913, %v3945
          %v4000 = vmul.f32 %v3914, %v3949
          %v4001 = vmul.f32 %v3915, %v3953
          %v4002 = vmul.f32 %v3916, %v3941
          %v4003 = vmul.f32 %v3917, %v3945
          %v4004 = vmul.f32 %v3918, %v3949
          %v4005 = vmul.f32 %v3919, %v3953
          %v4006 = vmul.f32 %v3920, %v3941
          %v4007 = vmul.f32 %v3921, %v3945
          %v4008 = vmul.f32 %v3922, %v3949
          %v4009 = vmul.f32 %v3923, %v3953
          %v4010 = vmul.f32 %v3924, %v3941
          %v4011 = vmul.f32 %v3925, %v3945
          %v4012 = vmul.f32 %v3926, %v3949
          %v4013 = vmul.f32 %v3927, %v3953
          %v4014 = vmul.f32 %v3928, %v3941
          %v4015 = vmul.f32 %v3929, %v3945
          %v4016 = vmul.f32 %v3930, %v3949
          %v4017 = vmul.f32 %v3931, %v3953
          %v4018 = vmul.f32 %v3932, %v3941
          %v4019 = vmul.f32 %v3933, %v3945
          %v4020 = vmul.f32 %v3934, %v3949
          %v4021 = vmul.f32 %v3935, %v3953
          %v4022 = vld [vmem:[%s21] sm:$0xf]
          %v4024 = vlaneseq
          %v4025 = vshrl.u32 %v4024, 7
          %v4026 = vsub.s32 0, %v4025
          %v4027 = vrot.slane %v4022, %v4026
          %v4028 = vlaneseq
          %v4029 = vshrl.u32 %v4028, 7
          %v4030 = vsub.s32 1, %v4029
          %v4031 = vrot.slane %v4022, %v4030
          %v4032 = vlaneseq
          %v4033 = vshrl.u32 %v4032, 7
          %v4034 = vsub.s32 2, %v4033
          %v4035 = vrot.slane %v4022, %v4034
          %v4036 = vlaneseq
          %v4037 = vshrl.u32 %v4036, 7
          %v4038 = vsub.s32 3, %v4037
          %v4039 = vrot.slane %v4022, %v4038
          %v4044 = vadd.f32 %v3958, %v4027
          %v4045 = vadd.f32 %v3959, %v4031
          %v4046 = vadd.f32 %v3960, %v4035
          %v4047 = vadd.f32 %v3961, %v4039
          %v4048 = vadd.f32 %v3962, %v4027
          %v4049 = vadd.f32 %v3963, %v4031
          %v4050 = vadd.f32 %v3964, %v4035
          %v4051 = vadd.f32 %v3965, %v4039
          %v4052 = vadd.f32 %v3966, %v4027
          %v4053 = vadd.f32 %v3967, %v4031
          %v4054 = vadd.f32 %v3968, %v4035
          %v4055 = vadd.f32 %v3969, %v4039
          %v4056 = vadd.f32 %v3970, %v4027
          %v4057 = vadd.f32 %v3971, %v4031
          %v4058 = vadd.f32 %v3972, %v4035
          %v4059 = vadd.f32 %v3973, %v4039
          %v4060 = vadd.f32 %v3974, %v4027
          %v4061 = vadd.f32 %v3975, %v4031
          %v4062 = vadd.f32 %v3976, %v4035
          %v4063 = vadd.f32 %v3977, %v4039
          %v4064 = vadd.f32 %v3978, %v4027
          %v4065 = vadd.f32 %v3979, %v4031
          %v4066 = vadd.f32 %v3980, %v4035
          %v4067 = vadd.f32 %v3981, %v4039
          %v4068 = vadd.f32 %v3982, %v4027
          %v4069 = vadd.f32 %v3983, %v4031
          %v4070 = vadd.f32 %v3984, %v4035
          %v4071 = vadd.f32 %v3985, %v4039
          %v4072 = vadd.f32 %v3986, %v4027
          %v4073 = vadd.f32 %v3987, %v4031
          %v4074 = vadd.f32 %v3988, %v4035
          %v4075 = vadd.f32 %v3989, %v4039
          %v4076 = vadd.f32 %v3990, %v4027
          %v4077 = vadd.f32 %v3991, %v4031
          %v4078 = vadd.f32 %v3992, %v4035
          %v4079 = vadd.f32 %v3993, %v4039
          %v4080 = vadd.f32 %v3994, %v4027
          %v4081 = vadd.f32 %v3995, %v4031
          %v4082 = vadd.f32 %v3996, %v4035
          %v4083 = vadd.f32 %v3997, %v4039
          %v4084 = vadd.f32 %v3998, %v4027
          %v4085 = vadd.f32 %v3999, %v4031
          %v4086 = vadd.f32 %v4000, %v4035
          %v4087 = vadd.f32 %v4001, %v4039
          %v4088 = vadd.f32 %v4002, %v4027
          %v4089 = vadd.f32 %v4003, %v4031
          %v4090 = vadd.f32 %v4004, %v4035
          %v4091 = vadd.f32 %v4005, %v4039
          %v4092 = vadd.f32 %v4006, %v4027
          %v4093 = vadd.f32 %v4007, %v4031
          %v4094 = vadd.f32 %v4008, %v4035
          %v4095 = vadd.f32 %v4009, %v4039
          %v4096 = vadd.f32 %v4010, %v4027
          %v4097 = vadd.f32 %v4011, %v4031
          %v4098 = vadd.f32 %v4012, %v4035
          %v4099 = vadd.f32 %v4013, %v4039
          %v4100 = vadd.f32 %v4014, %v4027
          %v4101 = vadd.f32 %v4015, %v4031
          %v4102 = vadd.f32 %v4016, %v4035
          %v4103 = vadd.f32 %v4017, %v4039
          %v4104 = vadd.f32 %v4018, %v4027
          %v4105 = vadd.f32 %v4019, %v4031
          %v4106 = vadd.f32 %v4020, %v4035
          %v4107 = vadd.f32 %v4021, %v4039
          %v4108 = vmax.f32 %v4044, 0.0
          %v4109 = vmax.f32 %v4045, 0.0
          %v4110 = vmax.f32 %v4046, 0.0
          %v4111 = vmax.f32 %v4047, 0.0
          %v4112 = vmax.f32 %v4048, 0.0
          %v4113 = vmax.f32 %v4049, 0.0
          %v4114 = vmax.f32 %v4050, 0.0
          %v4115 = vmax.f32 %v4051, 0.0
          %v4116 = vmax.f32 %v4052, 0.0
          %v4117 = vmax.f32 %v4053, 0.0
          %v4118 = vmax.f32 %v4054, 0.0
          %v4119 = vmax.f32 %v4055, 0.0
          %v4120 = vmax.f32 %v4056, 0.0
          %v4121 = vmax.f32 %v4057, 0.0
          %v4122 = vmax.f32 %v4058, 0.0
          %v4123 = vmax.f32 %v4059, 0.0
          %v4124 = vmax.f32 %v4060, 0.0
          %v4125 = vmax.f32 %v4061, 0.0
          %v4126 = vmax.f32 %v4062, 0.0
          %v4127 = vmax.f32 %v4063, 0.0
          %v4128 = vmax.f32 %v4064, 0.0
          %v4129 = vmax.f32 %v4065, 0.0
          %v4130 = vmax.f32 %v4066, 0.0
          %v4131 = vmax.f32 %v4067, 0.0
          %v4132 = vmax.f32 %v4068, 0.0
          %v4133 = vmax.f32 %v4069, 0.0
          %v4134 = vmax.f32 %v4070, 0.0
          %v4135 = vmax.f32 %v4071, 0.0
          %v4136 = vmax.f32 %v4072, 0.0
          %v4137 = vmax.f32 %v4073, 0.0
          %v4138 = vmax.f32 %v4074, 0.0
          %v4139 = vmax.f32 %v4075, 0.0
          %v4140 = vmax.f32 %v4076, 0.0
          %v4141 = vmax.f32 %v4077, 0.0
          %v4142 = vmax.f32 %v4078, 0.0
          %v4143 = vmax.f32 %v4079, 0.0
          %v4144 = vmax.f32 %v4080, 0.0
          %v4145 = vmax.f32 %v4081, 0.0
          %v4146 = vmax.f32 %v4082, 0.0
          %v4147 = vmax.f32 %v4083, 0.0
          %v4148 = vmax.f32 %v4084, 0.0
          %v4149 = vmax.f32 %v4085, 0.0
          %v4150 = vmax.f32 %v4086, 0.0
          %v4151 = vmax.f32 %v4087, 0.0
          %v4152 = vmax.f32 %v4088, 0.0
          %v4153 = vmax.f32 %v4089, 0.0
          %v4154 = vmax.f32 %v4090, 0.0
          %v4155 = vmax.f32 %v4091, 0.0
          %v4156 = vmax.f32 %v4092, 0.0
          %v4157 = vmax.f32 %v4093, 0.0
          %v4158 = vmax.f32 %v4094, 0.0
          %v4159 = vmax.f32 %v4095, 0.0
          %v4160 = vmax.f32 %v4096, 0.0
          %v4161 = vmax.f32 %v4097, 0.0
          %v4162 = vmax.f32 %v4098, 0.0
          %v4163 = vmax.f32 %v4099, 0.0
          %v4164 = vmax.f32 %v4100, 0.0
          %v4165 = vmax.f32 %v4101, 0.0
          %v4166 = vmax.f32 %v4102, 0.0
          %v4167 = vmax.f32 %v4103, 0.0
          %v4168 = vmax.f32 %v4104, 0.0
          %v4169 = vmax.f32 %v4105, 0.0
          %v4170 = vmax.f32 %v4106, 0.0
          %v4171 = vmax.f32 %v4107, 0.0
          %v4172 = vpack.c.bf16 %v4112, %v4108
          %v4173 = vpack.c.bf16 %v4113, %v4109
          %v4174 = vpack.c.bf16 %v4114, %v4110
          %v4175 = vpack.c.bf16 %v4115, %v4111
          %v4176 = vpack.c.bf16 %v4120, %v4116
          %v4177 = vpack.c.bf16 %v4121, %v4117
          %v4178 = vpack.c.bf16 %v4122, %v4118
          %v4179 = vpack.c.bf16 %v4123, %v4119
          %v4180 = vpack.c.bf16 %v4128, %v4124
          %v4181 = vpack.c.bf16 %v4129, %v4125
          %v4182 = vpack.c.bf16 %v4130, %v4126
          %v4183 = vpack.c.bf16 %v4131, %v4127
          %v4184 = vpack.c.bf16 %v4136, %v4132
          %v4185 = vpack.c.bf16 %v4137, %v4133
          %v4186 = vpack.c.bf16 %v4138, %v4134
          %v4187 = vpack.c.bf16 %v4139, %v4135
          %v4188 = vpack.c.bf16 %v4144, %v4140
          %v4189 = vpack.c.bf16 %v4145, %v4141
          %v4190 = vpack.c.bf16 %v4146, %v4142
          %v4191 = vpack.c.bf16 %v4147, %v4143
          %v4192 = vpack.c.bf16 %v4152, %v4148
          %v4193 = vpack.c.bf16 %v4153, %v4149
          %v4194 = vpack.c.bf16 %v4154, %v4150
          %v4195 = vpack.c.bf16 %v4155, %v4151
          %v4196 = vpack.c.bf16 %v4160, %v4156
          %v4197 = vpack.c.bf16 %v4161, %v4157
          %v4198 = vpack.c.bf16 %v4162, %v4158
          %v4199 = vpack.c.bf16 %v4163, %v4159
          %v4200 = vpack.c.bf16 %v4168, %v4164
          %v4201 = vpack.c.bf16 %v4169, %v4165
          %v4202 = vpack.c.bf16 %v4170, %v4166
          %v4203 = vpack.c.bf16 %v4171, %v4167
          %v4204 = vld [vmem:[%s23] sm:$0xf]
          %v4205 = vld [vmem:[%s23 + $0x4] sm:$0xf]
          %v4206 = vld [vmem:[%s23 + $0x8] sm:$0xf]
          %v4207 = vld [vmem:[%s23 + $0xc] sm:$0xf]
          %v4208 = vld [vmem:[%s23 + $0x10] sm:$0xf]
          %v4209 = vld [vmem:[%s23 + $0x14] sm:$0xf]
          %v4210 = vld [vmem:[%s23 + $0x18] sm:$0xf]
          %v4211 = vld [vmem:[%s23 + $0x1c] sm:$0xf]
          %v4212 = vld [vmem:[%s23 + $0x20] sm:$0xf]
          %v4213 = vld [vmem:[%s23 + $0x24] sm:$0xf]
          %v4214 = vld [vmem:[%s23 + $0x28] sm:$0xf]
          %v4215 = vld [vmem:[%s23 + $0x2c] sm:$0xf]
          %v4216 = vld [vmem:[%s23 + $0x30] sm:$0xf]
          %v4217 = vld [vmem:[%s23 + $0x34] sm:$0xf]
          %v4218 = vld [vmem:[%s23 + $0x38] sm:$0xf]
          %v4219 = vld [vmem:[%s23 + $0x3c] sm:$0xf]
          %v4220 = vld [vmem:[%s23 + $0x40] sm:$0xf]
          %v4221 = vld [vmem:[%s23 + $0x44] sm:$0xf]
          %v4222 = vld [vmem:[%s23 + $0x48] sm:$0xf]
          %v4223 = vld [vmem:[%s23 + $0x4c] sm:$0xf]
          %v4224 = vld [vmem:[%s23 + $0x50] sm:$0xf]
          %v4225 = vld [vmem:[%s23 + $0x54] sm:$0xf]
          %v4226 = vld [vmem:[%s23 + $0x58] sm:$0xf]
          %v4227 = vld [vmem:[%s23 + $0x5c] sm:$0xf]
          %v4228 = vld [vmem:[%s23 + $0x60] sm:$0xf]
          %v4229 = vld [vmem:[%s23 + $0x64] sm:$0xf]
          %v4230 = vld [vmem:[%s23 + $0x68] sm:$0xf]
          %v4231 = vld [vmem:[%s23 + $0x6c] sm:$0xf]
          %v4232 = vld [vmem:[%s23 + $0x70] sm:$0xf]
          %v4233 = vld [vmem:[%s23 + $0x74] sm:$0xf]
          %v4234 = vld [vmem:[%s23 + $0x78] sm:$0xf]
          %v4235 = vld [vmem:[%s23 + $0x7c] sm:$0xf]
          %v4236 = vld [vmem:[%s23 + $0x80] sm:$0xf]
          %v4237 = vld [vmem:[%s23 + $0x84] sm:$0xf]
          %v4238 = vld [vmem:[%s23 + $0x88] sm:$0xf]
          %v4239 = vld [vmem:[%s23 + $0x8c] sm:$0xf]
          %v4240 = vld [vmem:[%s23 + $0x90] sm:$0xf]
          %v4241 = vld [vmem:[%s23 + $0x94] sm:$0xf]
          %v4242 = vld [vmem:[%s23 + $0x98] sm:$0xf]
          %v4243 = vld [vmem:[%s23 + $0x9c] sm:$0xf]
          %v4244 = vld [vmem:[%s23 + $0xa0] sm:$0xf]
          %v4245 = vld [vmem:[%s23 + $0xa4] sm:$0xf]
          %v4246 = vld [vmem:[%s23 + $0xa8] sm:$0xf]
          %v4247 = vld [vmem:[%s23 + $0xac] sm:$0xf]
          %v4248 = vld [vmem:[%s23 + $0xb0] sm:$0xf]
          %v4249 = vld [vmem:[%s23 + $0xb4] sm:$0xf]
          %v4250 = vld [vmem:[%s23 + $0xb8] sm:$0xf]
          %v4251 = vld [vmem:[%s23 + $0xbc] sm:$0xf]
          %v4252 = vld [vmem:[%s23 + $0xc0] sm:$0xf]
          %v4253 = vld [vmem:[%s23 + $0xc4] sm:$0xf]
          %v4254 = vld [vmem:[%s23 + $0xc8] sm:$0xf]
          %v4255 = vld [vmem:[%s23 + $0xcc] sm:$0xf]
          %v4256 = vld [vmem:[%s23 + $0xd0] sm:$0xf]
          %v4257 = vld [vmem:[%s23 + $0xd4] sm:$0xf]
          %v4258 = vld [vmem:[%s23 + $0xd8] sm:$0xf]
          %v4259 = vld [vmem:[%s23 + $0xdc] sm:$0xf]
          %v4260 = vld [vmem:[%s23 + $0xe0] sm:$0xf]
          %v4261 = vld [vmem:[%s23 + $0xe4] sm:$0xf]
          %v4262 = vld [vmem:[%s23 + $0xe8] sm:$0xf]
          %v4263 = vld [vmem:[%s23 + $0xec] sm:$0xf]
          %v4264 = vld [vmem:[%s23 + $0xf0] sm:$0xf]
          %v4265 = vld [vmem:[%s23 + $0xf4] sm:$0xf]
          %v4266 = vld [vmem:[%s23 + $0xf8] sm:$0xf]
          %v4267 = vld [vmem:[%s23 + $0xfc] sm:$0xf]
          %v4268 = vld [vmem:[%s25] sm:$0x1]
          %v4270 = vlaneseq
          %v4271 = vshrl.u32 %v4270, 7
          %v4272 = vsub.s32 0, %v4271
          %v4273 = vrot.slane %v4268, %v4272
          %v4339 = vunpack.c.l.b16 %v4204
          %v4340 = vunpack.c.l.b16 %v4205
          %v4341 = vunpack.c.l.b16 %v4206
          %v4342 = vunpack.c.l.b16 %v4207
          %v4343 = vunpack.c.l.b16 %v4208
          %v4344 = vunpack.c.l.b16 %v4209
          %v4345 = vunpack.c.l.b16 %v4210
          %v4346 = vunpack.c.l.b16 %v4211
          %v4347 = vunpack.c.l.b16 %v4212
          %v4348 = vunpack.c.l.b16 %v4213
          %v4349 = vunpack.c.l.b16 %v4214
          %v4350 = vunpack.c.l.b16 %v4215
          %v4351 = vunpack.c.l.b16 %v4216
          %v4352 = vunpack.c.l.b16 %v4217
          %v4353 = vunpack.c.l.b16 %v4218
          %v4354 = vunpack.c.l.b16 %v4219
          %v4355 = vunpack.c.l.b16 %v4220
          %v4356 = vunpack.c.l.b16 %v4221
          %v4357 = vunpack.c.l.b16 %v4222
          %v4358 = vunpack.c.l.b16 %v4223
          %v4359 = vunpack.c.l.b16 %v4224
          %v4360 = vunpack.c.l.b16 %v4225
          %v4361 = vunpack.c.l.b16 %v4226
          %v4362 = vunpack.c.l.b16 %v4227
          %v4363 = vunpack.c.l.b16 %v4228
          %v4364 = vunpack.c.l.b16 %v4229
          %v4365 = vunpack.c.l.b16 %v4230
          %v4366 = vunpack.c.l.b16 %v4231
          %v4367 = vunpack.c.l.b16 %v4232
          %v4368 = vunpack.c.l.b16 %v4233
          %v4369 = vunpack.c.l.b16 %v4234
          %v4370 = vunpack.c.l.b16 %v4235
          %v4371 = vunpack.c.l.b16 %v4236
          %v4372 = vunpack.c.l.b16 %v4237
          %v4373 = vunpack.c.l.b16 %v4238
          %v4374 = vunpack.c.l.b16 %v4239
          %v4375 = vunpack.c.l.b16 %v4240
          %v4376 = vunpack.c.l.b16 %v4241
          %v4377 = vunpack.c.l.b16 %v4242
          %v4378 = vunpack.c.l.b16 %v4243
          %v4379 = vunpack.c.l.b16 %v4244
          %v4380 = vunpack.c.l.b16 %v4245
          %v4381 = vunpack.c.l.b16 %v4246
          %v4382 = vunpack.c.l.b16 %v4247
          %v4383 = vunpack.c.l.b16 %v4248
          %v4384 = vunpack.c.l.b16 %v4249
          %v4385 = vunpack.c.l.b16 %v4250
          %v4386 = vunpack.c.l.b16 %v4251
          %v4387 = vunpack.c.l.b16 %v4252
          %v4388 = vunpack.c.l.b16 %v4253
          %v4389 = vunpack.c.l.b16 %v4254
          %v4390 = vunpack.c.l.b16 %v4255
          %v4391 = vunpack.c.l.b16 %v4256
          %v4392 = vunpack.c.l.b16 %v4257
          %v4393 = vunpack.c.l.b16 %v4258
          %v4394 = vunpack.c.l.b16 %v4259
          %v4395 = vunpack.c.l.b16 %v4260
          %v4396 = vunpack.c.l.b16 %v4261
          %v4397 = vunpack.c.l.b16 %v4262
          %v4398 = vunpack.c.l.b16 %v4263
          %v4399 = vunpack.c.l.b16 %v4264
          %v4400 = vunpack.c.l.b16 %v4265
          %v4401 = vunpack.c.l.b16 %v4266
          %v4402 = vunpack.c.l.b16 %v4267
          %v4403 = vpack.c.b16 %v4340, %v4339
          %v4404 = vpack.c.b16 %v4342, %v4341
          %v4405 = vpack.c.b16 %v4344, %v4343
          %v4406 = vpack.c.b16 %v4346, %v4345
          %v4407 = vpack.c.b16 %v4348, %v4347
          %v4408 = vpack.c.b16 %v4350, %v4349
          %v4409 = vpack.c.b16 %v4352, %v4351
          %v4410 = vpack.c.b16 %v4354, %v4353
          %v4411 = vpack.c.b16 %v4356, %v4355
          %v4412 = vpack.c.b16 %v4358, %v4357
          %v4413 = vpack.c.b16 %v4360, %v4359
          %v4414 = vpack.c.b16 %v4362, %v4361
          %v4415 = vpack.c.b16 %v4364, %v4363
          %v4416 = vpack.c.b16 %v4366, %v4365
          %v4417 = vpack.c.b16 %v4368, %v4367
          %v4418 = vpack.c.b16 %v4370, %v4369
          %v4419 = vpack.c.b16 %v4372, %v4371
          %v4420 = vpack.c.b16 %v4374, %v4373
          %v4421 = vpack.c.b16 %v4376, %v4375
          %v4422 = vpack.c.b16 %v4378, %v4377
          %v4423 = vpack.c.b16 %v4380, %v4379
          %v4424 = vpack.c.b16 %v4382, %v4381
          %v4425 = vpack.c.b16 %v4384, %v4383
          %v4426 = vpack.c.b16 %v4386, %v4385
          %v4427 = vpack.c.b16 %v4388, %v4387
          %v4428 = vpack.c.b16 %v4390, %v4389
          %v4429 = vpack.c.b16 %v4392, %v4391
          %v4430 = vpack.c.b16 %v4394, %v4393
          %v4431 = vpack.c.b16 %v4396, %v4395
          %v4432 = vpack.c.b16 %v4398, %v4397
          %v4433 = vpack.c.b16 %v4400, %v4399
          %v4434 = vpack.c.b16 %v4402, %v4401
          %4467 = vmatprep.subr.bf16.mxu0 0
          %4468 = vmatpush1.bf16.msra.mxu0 %v4403
          %4469 = vmatprep.subr.bf16.mxu0 0
          %4470 = vmatpush1.bf16.msra.mxu0 %v4404
          %4471 = vmatprep.subr.bf16.mxu0 0
          %4472 = vmatpush1.bf16.msra.mxu0 %v4405
          %4473 = vmatprep.subr.bf16.mxu0 0
          %4474 = vmatpush1.bf16.msra.mxu0 %v4406
          %4475 = vmatprep.subr.bf16.mxu0 0
          %4476 = vmatpush1.bf16.msra.mxu0 %v4407
          %4477 = vmatprep.subr.bf16.mxu0 0
          %4478 = vmatpush1.bf16.msra.mxu0 %v4408
          %4479 = vmatprep.subr.bf16.mxu0 0
          %4480 = vmatpush1.bf16.msra.mxu0 %v4409
          %4481 = vmatprep.subr.bf16.mxu0 0
          %4482 = vmatpush1.bf16.msra.mxu0 %v4410
          %4483 = vmatprep.subr.bf16.mxu0 0
          %4484 = vmatpush1.bf16.msra.mxu0 %v4411
          %4485 = vmatprep.subr.bf16.mxu0 0
          %4486 = vmatpush1.bf16.msra.mxu0 %v4412
          %4487 = vmatprep.subr.bf16.mxu0 0
          %4488 = vmatpush1.bf16.msra.mxu0 %v4413
          %4489 = vmatprep.subr.bf16.mxu0 0
          %4490 = vmatpush1.bf16.msra.mxu0 %v4414
          %4491 = vmatprep.subr.bf16.mxu0 0
          %4492 = vmatpush1.bf16.msra.mxu0 %v4415
          %4493 = vmatprep.subr.bf16.mxu0 0
          %4494 = vmatpush1.bf16.msra.mxu0 %v4416
          %4495 = vmatprep.subr.bf16.mxu0 0
          %4496 = vmatpush1.bf16.msra.mxu0 %v4417
          %4497 = vmatprep.subr.bf16.mxu0 0
          %4498 = vmatpush1.bf16.msra.mxu0 %v4418
          %4499 = vmatprep.mubr.bf16.mxu0 %v4173
          %4500 = vmatmul.mubr.bf16.gmra.mrb[0].mxu0 %v4172
          %v4501 = vpop.f32.mrb[0].mxu0
          %v4502 = vadd.f32 %v4273, %v4501
          %v4503 = vpop.f32.mrb[0].mxu0
          %v4504 = vpop.f32.mrb[0].mxu0
          %v4505 = vadd.f32 %v4273, %v4504
          %v4506 = vpop.f32.mrb[0].mxu0
          %4507 = vmatprep.mubr.bf16.mxu0 %v4177
          %4508 = vmatmul.mubr.bf16.gmra.mrb[0].mxu0 %v4176
          %v4509 = vpop.f32.mrb[0].mxu0
          %v4510 = vadd.f32 %v4273, %v4509
          %v4511 = vpop.f32.mrb[0].mxu0
          %v4512 = vpop.f32.mrb[0].mxu0
          %v4513 = vadd.f32 %v4273, %v4512
          %v4514 = vpop.f32.mrb[0].mxu0
          %4515 = vmatprep.mubr.bf16.mxu0 %v4181
          %4516 = vmatmul.mubr.bf16.gmra.mrb[0].mxu0 %v4180
          %v4517 = vpop.f32.mrb[0].mxu0
          %v4518 = vadd.f32 %v4273, %v4517
          %v4519 = vpop.f32.mrb[0].mxu0
          %v4520 = vpop.f32.mrb[0].mxu0
          %v4521 = vadd.f32 %v4273, %v4520
          %v4522 = vpop.f32.mrb[0].mxu0
          %4523 = vmatprep.mubr.bf16.mxu0 %v4185
          %4524 = vmatmul.mubr.bf16.gmra.mrb[0].mxu0 %v4184
          %v4525 = vpop.f32.mrb[0].mxu0
          %v4526 = vadd.f32 %v4273, %v4525
          %v4527 = vpop.f32.mrb[0].mxu0
          %v4528 = vpop.f32.mrb[0].mxu0
          %v4529 = vadd.f32 %v4273, %v4528
          %v4530 = vpop.f32.mrb[0].mxu0
          %4531 = vmatprep.mubr.bf16.mxu0 %v4189
          %4532 = vmatmul.mubr.bf16.gmra.mrb[0].mxu0 %v4188
          %v4533 = vpop.f32.mrb[0].mxu0
          %v4534 = vadd.f32 %v4273, %v4533
          %v4535 = vpop.f32.mrb[0].mxu0
          %v4536 = vpop.f32.mrb[0].mxu0
          %v4537 = vadd.f32 %v4273, %v4536
          %v4538 = vpop.f32.mrb[0].mxu0
          %4539 = vmatprep.mubr.bf16.mxu0 %v4193
          %4540 = vmatmul.mubr.bf16.gmra.mrb[0].mxu0 %v4192
          %v4541 = vpop.f32.mrb[0].mxu0
          %v4542 = vadd.f32 %v4273, %v4541
          %v4543 = vpop.f32.mrb[0].mxu0
          %v4544 = vpop.f32.mrb[0].mxu0
          %v4545 = vadd.f32 %v4273, %v4544
          %v4546 = vpop.f32.mrb[0].mxu0
          %4547 = vmatprep.mubr.bf16.mxu0 %v4197
          %4548 = vmatmul.mubr.bf16.gmra.mrb[0].mxu0 %v4196
          %v4549 = vpop.f32.mrb[0].mxu0
          %v4550 = vadd.f32 %v4273, %v4549
          %v4551 = vpop.f32.mrb[0].mxu0
          %v4552 = vpop.f32.mrb[0].mxu0
          %v4553 = vadd.f32 %v4273, %v4552
          %v4554 = vpop.f32.mrb[0].mxu0
          %4555 = vmatprep.mubr.bf16.mxu0 %v4201
          %4556 = vmatmul.mubr.bf16.gmra.mrb[0].mxu0 %v4200
          %v4557 = vpop.f32.mrb[0].mxu0
          %v4558 = vadd.f32 %v4273, %v4557
          %v4559 = vpop.f32.mrb[0].mxu0
          %v4560 = vpop.f32.mrb[0].mxu0
          %v4561 = vadd.f32 %v4273, %v4560
          %v4562 = vpop.f32.mrb[0].mxu0
          %4563 = vdwg.mxu0
          %4564 = vmatprep.subr.bf16.mxu0 0
          %4565 = vmatpush1.bf16.msra.mxu0 %v4419
          %4566 = vmatprep.subr.bf16.mxu0 0
          %4567 = vmatpush1.bf16.msra.mxu0 %v4420
          %4568 = vmatprep.subr.bf16.mxu0 0
          %4569 = vmatpush1.bf16.msra.mxu0 %v4421
          %4570 = vmatprep.subr.bf16.mxu0 0
          %4571 = vmatpush1.bf16.msra.mxu0 %v4422
          %4572 = vmatprep.subr.bf16.mxu0 0
          %4573 = vmatpush1.bf16.msra.mxu0 %v4423
          %4574 = vmatprep.subr.bf16.mxu0 0
          %4575 = vmatpush1.bf16.msra.mxu0 %v4424
          %4576 = vmatprep.subr.bf16.mxu0 0
          %4577 = vmatpush1.bf16.msra.mxu0 %v4425
          %4578 = vmatprep.subr.bf16.mxu0 0
          %4579 = vmatpush1.bf16.msra.mxu0 %v4426
          %4580 = vmatprep.subr.bf16.mxu0 0
          %4581 = vmatpush1.bf16.msra.mxu0 %v4427
          %4582 = vmatprep.subr.bf16.mxu0 0
          %4583 = vmatpush1.bf16.msra.mxu0 %v4428
          %4584 = vmatprep.subr.bf16.mxu0 0
          %4585 = vmatpush1.bf16.msra.mxu0 %v4429
          %4586 = vmatprep.subr.bf16.mxu0 0
          %4587 = vmatpush1.bf16.msra.mxu0 %v4430
          %4588 = vmatprep.subr.bf16.mxu0 0
          %4589 = vmatpush1.bf16.msra.mxu0 %v4431
          %4590 = vmatprep.subr.bf16.mxu0 0
          %4591 = vmatpush1.bf16.msra.mxu0 %v4432
          %4592 = vmatprep.subr.bf16.mxu0 0
          %4593 = vmatpush1.bf16.msra.mxu0 %v4433
          %4594 = vmatprep.subr.bf16.mxu0 0
          %4595 = vmatpush1.bf16.msra.mxu0 %v4434
          %4596 = vmatprep.mubr.bf16.mxu0 %v4175
          %4597 = vmatmul.mubr.bf16.gmra.mrb[0].mxu0 %v4174
          %v4598 = vpop.f32.mrb[0].mxu0
          %v4599 = vadd.f32 %v4502, %v4598
          %v4600 = vpop.f32.mrb[0].mxu0
          %v4601 = vpop.f32.mrb[0].mxu0
          %v4602 = vadd.f32 %v4505, %v4601
          %v4603 = vpop.f32.mrb[0].mxu0
          %4604 = vmatprep.mubr.bf16.mxu0 %v4179
          %4605 = vmatmul.mubr.bf16.gmra.mrb[0].mxu0 %v4178
          %v4606 = vpop.f32.mrb[0].mxu0
          %v4607 = vadd.f32 %v4510, %v4606
          %v4608 = vpop.f32.mrb[0].mxu0
          %v4609 = vpop.f32.mrb[0].mxu0
          %v4610 = vadd.f32 %v4513, %v4609
          %v4611 = vpop.f32.mrb[0].mxu0
          %4612 = vmatprep.mubr.bf16.mxu0 %v4183
          %4613 = vmatmul.mubr.bf16.gmra.mrb[0].mxu0 %v4182
          %v4614 = vpop.f32.mrb[0].mxu0
          %v4615 = vadd.f32 %v4518, %v4614
          %v4616 = vpop.f32.mrb[0].mxu0
          %v4617 = vpop.f32.mrb[0].mxu0
          %v4618 = vadd.f32 %v4521, %v4617
          %v4619 = vpop.f32.mrb[0].mxu0
          %4620 = vmatprep.mubr.bf16.mxu0 %v4187
          %4621 = vmatmul.mubr.bf16.gmra.mrb[0].mxu0 %v4186
          %v4622 = vpop.f32.mrb[0].mxu0
          %v4623 = vadd.f32 %v4526, %v4622
          %v4624 = vpop.f32.mrb[0].mxu0
          %v4625 = vpop.f32.mrb[0].mxu0
          %v4626 = vadd.f32 %v4529, %v4625
          %v4627 = vpop.f32.mrb[0].mxu0
          %4628 = vmatprep.mubr.bf16.mxu0 %v4191
          %4629 = vmatmul.mubr.bf16.gmra.mrb[0].mxu0 %v4190
          %v4630 = vpop.f32.mrb[0].mxu0
          %v4631 = vadd.f32 %v4534, %v4630
          %v4632 = vpop.f32.mrb[0].mxu0
          %v4633 = vpop.f32.mrb[0].mxu0
          %v4634 = vadd.f32 %v4537, %v4633
          %v4635 = vpop.f32.mrb[0].mxu0
          %4636 = vmatprep.mubr.bf16.mxu0 %v4195
          %4637 = vmatmul.mubr.bf16.gmra.mrb[0].mxu0 %v4194
          %v4638 = vpop.f32.mrb[0].mxu0
          %v4639 = vadd.f32 %v4542, %v4638
          %v4640 = vpop.f32.mrb[0].mxu0
          %v4641 = vpop.f32.mrb[0].mxu0
          %v4642 = vadd.f32 %v4545, %v4641
          %v4643 = vpop.f32.mrb[0].mxu0
          %4644 = vmatprep.mubr.bf16.mxu0 %v4199
          %4645 = vmatmul.mubr.bf16.gmra.mrb[0].mxu0 %v4198
          %v4646 = vpop.f32.mrb[0].mxu0
          %v4647 = vadd.f32 %v4550, %v4646
          %v4648 = vpop.f32.mrb[0].mxu0
          %v4649 = vpop.f32.mrb[0].mxu0
          %v4650 = vadd.f32 %v4553, %v4649
          %v4651 = vpop.f32.mrb[0].mxu0
          %4652 = vmatprep.mubr.bf16.mxu0 %v4203
          %4653 = vmatmul.mubr.bf16.gmra.mrb[0].mxu0 %v4202
          %v4654 = vpop.f32.mrb[0].mxu0
          %v4655 = vadd.f32 %v4558, %v4654
          %v4656 = vpop.f32.mrb[0].mxu0
          %v4657 = vpop.f32.mrb[0].mxu0
          %v4658 = vadd.f32 %v4561, %v4657
          %v4659 = vpop.f32.mrb[0].mxu0
          %4660 = vdwg.mxu0
          %vm4661 = vcmask 523264
          %v4662 = vsel %vm4661, %v4599, -inf
          %v4663 = vsel %vm4661, %v4602, -inf
          %v4664 = vmax.f32 %v4662, %v4663
          %v4665 = vrot.slane %v4664, 4
          %v4666 = vmax.f32 %v4664, %v4665
          %v4667 = vrot.slane %v4666, 2
          %v4668 = vmax.f32 %v4666, %v4667
          %v4669 = vrot.slane %v4668, 1
          %v4670 = vmax.f32 %v4668, %v4669
          %v4671 = vsel %vm4661, %v4607, -inf
          %v4672 = vsel %vm4661, %v4610, -inf
          %v4673 = vmax.f32 %v4671, %v4672
          %v4674 = vrot.slane %v4673, 4
          %v4675 = vmax.f32 %v4673, %v4674
          %v4676 = vrot.slane %v4675, 2
          %v4677 = vmax.f32 %v4675, %v4676
          %v4678 = vrot.slane %v4677, 1
          %v4679 = vmax.f32 %v4677, %v4678
          %v4680 = vsel %vm4661, %v4615, -inf
          %v4681 = vsel %vm4661, %v4618, -inf
          %v4682 = vmax.f32 %v4680, %v4681
          %v4683 = vrot.slane %v4682, 4
          %v4684 = vmax.f32 %v4682, %v4683
          %v4685 = vrot.slane %v4684, 2
          %v4686 = vmax.f32 %v4684, %v4685
          %v4687 = vrot.slane %v4686, 1
          %v4688 = vmax.f32 %v4686, %v4687
          %v4689 = vsel %vm4661, %v4623, -inf
          %v4690 = vsel %vm4661, %v4626, -inf
          %v4691 = vmax.f32 %v4689, %v4690
          %v4692 = vrot.slane %v4691, 4
          %v4693 = vmax.f32 %v4691, %v4692
          %v4694 = vrot.slane %v4693, 2
          %v4695 = vmax.f32 %v4693, %v4694
          %v4696 = vrot.slane %v4695, 1
          %v4697 = vmax.f32 %v4695, %v4696
          %v4698 = vsel %vm4661, %v4631, -inf
          %v4699 = vsel %vm4661, %v4634, -inf
          %v4700 = vmax.f32 %v4698, %v4699
          %v4701 = vrot.slane %v4700, 4
          %v4702 = vmax.f32 %v4700, %v4701
          %v4703 = vrot.slane %v4702, 2
          %v4704 = vmax.f32 %v4702, %v4703
          %v4705 = vrot.slane %v4704, 1
          %v4706 = vmax.f32 %v4704, %v4705
          %v4707 = vsel %vm4661, %v4639, -inf
          %v4708 = vsel %vm4661, %v4642, -inf
          %v4709 = vmax.f32 %v4707, %v4708
          %v4710 = vrot.slane %v4709, 4
          %v4711 = vmax.f32 %v4709, %v4710
          %v4712 = vrot.slane %v4711, 2
          %v4713 = vmax.f32 %v4711, %v4712
          %v4714 = vrot.slane %v4713, 1
          %v4715 = vmax.f32 %v4713, %v4714
          %v4716 = vsel %vm4661, %v4647, -inf
          %v4717 = vsel %vm4661, %v4650, -inf
          %v4718 = vmax.f32 %v4716, %v4717
          %v4719 = vrot.slane %v4718, 4
          %v4720 = vmax.f32 %v4718, %v4719
          %v4721 = vrot.slane %v4720, 2
          %v4722 = vmax.f32 %v4720, %v4721
          %v4723 = vrot.slane %v4722, 1
          %v4724 = vmax.f32 %v4722, %v4723
          %v4725 = vsel %vm4661, %v4655, -inf
          %v4726 = vsel %vm4661, %v4658, -inf
          %v4727 = vmax.f32 %v4725, %v4726
          %v4728 = vrot.slane %v4727, 4
          %v4729 = vmax.f32 %v4727, %v4728
          %v4730 = vrot.slane %v4729, 2
          %v4731 = vmax.f32 %v4729, %v4730
          %v4732 = vrot.slane %v4731, 1
          %v4733 = vmax.f32 %v4731, %v4732
          %v4734 = vld [vmem:[%s1840] sm:$0xff]
          %v4735 = vld [vmem:[#allocation4] sm:$0xff]
          %v4736 = vld [vmem:[#allocation7] sm:$0x1]
          %v4738 = vlaneseq
          %v4739 = vshrl.u32 %v4738, 7
          %v4740 = vsub.s32 0, %v4739
          %v4741 = vrot.slane %v4736, %v4740
          %v4744 = vsel %vm1878, %v4734, 0
          %4746 = vmatprep.subr.mxu0 0.0
          %4747 = vmatpush1.msra.mxu0 %v4735
          %4748 = vmatprep.subr.mxu0 0.0
          %4749 = vmatpush1.msra.mxu0 0.0
          %4750 = vmatprep.subr.mxu0 0.0
          %4751 = vmatpush1.msra.mxu0 0.0
          %4752 = vmatprep.subr.mxu0 0.0
          %4753 = vmatpush1.msra.mxu0 0.0
          %4754 = vmatprep.subr.mxu0 0.0
          %4755 = vmatpush1.msra.mxu0 0.0
          %4756 = vmatprep.subr.mxu0 0.0
          %4757 = vmatpush1.msra.mxu0 0.0
          %4758 = vmatprep.subr.mxu0 0.0
          %4759 = vmatpush1.msra.mxu0 0.0
          %4760 = vmatprep.subr.mxu0 0.0
          %4761 = vmatpush1.msra.mxu0 0.0
          %4762 = vmatprep.subr.mxu0 0.0
          %4763 = vmatpush1.msra.mxu0 0.0
          %4764 = vmatprep.subr.mxu0 0.0
          %4765 = vmatpush1.msra.mxu0 0.0
          %4766 = vmatprep.subr.mxu0 0.0
          %4767 = vmatpush1.msra.mxu0 0.0
          %4768 = vmatprep.subr.mxu0 0.0
          %4769 = vmatpush1.msra.mxu0 0.0
          %4770 = vmatprep.subr.mxu0 0.0
          %4771 = vmatpush1.msra.mxu0 0.0
          %4772 = vmatprep.subr.mxu0 0.0
          %4773 = vmatpush1.msra.mxu0 0.0
          %4774 = vmatprep.subr.mxu0 0.0
          %4775 = vmatpush1.msra.mxu0 0.0
          %4776 = vmatprep.subr.mxu0 0.0
          %4777 = vmatpush1.msra.mxu0 0.0
          %4778 = vmatprep.subr.mxu0 0.0
          %4779 = vmatpush1.msra.mxu0 0.0
          %4780 = vmatprep.subr.mxu0 0.0
          %4781 = vmatpush1.msra.mxu0 0.0
          %4782 = vmatprep.subr.mxu0 0.0
          %4783 = vmatpush1.msra.mxu0 0.0
          %4784 = vmatprep.subr.mxu0 0.0
          %4785 = vmatpush1.msra.mxu0 0.0
          %4786 = vmatprep.subr.mxu0 0.0
          %4787 = vmatpush1.msra.mxu0 0.0
          %4788 = vmatprep.subr.mxu0 0.0
          %4789 = vmatpush1.msra.mxu0 0.0
          %4790 = vmatprep.subr.mxu0 0.0
          %4791 = vmatpush1.msra.mxu0 0.0
          %4792 = vmatprep.subr.mxu0 0.0
          %4793 = vmatpush1.msra.mxu0 0.0
          %4794 = vmatprep.subr.mxu0 0.0
          %4795 = vmatpush1.msra.mxu0 0.0
          %4796 = vmatprep.subr.mxu0 0.0
          %4797 = vmatpush1.msra.mxu0 0.0
          %4798 = vmatprep.subr.mxu0 0.0
          %4799 = vmatpush1.msra.mxu0 0.0
          %4800 = vmatprep.subr.mxu0 0.0
          %4801 = vmatpush1.msra.mxu0 0.0
          %4802 = vmatprep.subr.mxu0 0.0
          %4803 = vmatpush1.msra.mxu0 0.0
          %4804 = vmatprep.subr.mxu0 0.0
          %4805 = vmatpush1.msra.mxu0 0.0
          %4806 = vmatprep.subr.mxu0 0.0
          %4807 = vmatpush1.msra.mxu0 0.0
          %4808 = vmatprep.subr.mxu0 0.0
          %4809 = vmatpush1.msra.mxu0 0.0
          %4810 = vmatprep.mubr.f32.mxu0 0.0
          %4811 = vmatmul.mubr.f32.gmra.mrb[0].mxu0 %v4744
          %v4812 = vpop.f32.mrb[0].mxu0
          %v4813 = vadd.f32 %v4741, %v4812
          %v4814 = vpop.f32.mrb[0].mxu0
          %4815 = vdwg.mxu0
          %v4816 = vmul.f32 %v4813, 0.5
          %v4817 = vmul.f32 %v4813, 0.044715
          %v4818 = vmul.f32 %v4817, %v4813
          %v4819 = vmul.f32 %v4818, %v4813
          %v4820 = vadd.f32 %v4813, %v4819
          %v4821 = vmul.f32 %v4820, 0.7978846
          %v4822 = vtanh.pop %v4821
          %v4823 = vadd.f32 %v4822, 1.0
          %v4824 = vmul.f32 %v4816, %v4823
          %v4825 = vpack.c.bf16 %v4824, %v4824
          %v4826 = vld [vmem:[%s31] sm:$0xf]
          %v4827 = vld [vmem:[%s31 + $0x4] sm:$0xf]
          %v4828 = vld [vmem:[%s31 + $0x8] sm:$0xf]
          %v4829 = vld [vmem:[%s31 + $0xc] sm:$0xf]
          %v4830 = vld [vmem:[%s31 + $0x10] sm:$0xf]
          %v4831 = vld [vmem:[%s31 + $0x14] sm:$0xf]
          %v4832 = vld [vmem:[%s31 + $0x18] sm:$0xf]
          %v4833 = vld [vmem:[%s31 + $0x1c] sm:$0xf]
          %v4834 = vld [vmem:[%s31 + $0x20] sm:$0xf]
          %v4835 = vld [vmem:[%s31 + $0x24] sm:$0xf]
          %v4836 = vld [vmem:[%s31 + $0x28] sm:$0xf]
          %v4837 = vld [vmem:[%s31 + $0x2c] sm:$0xf]
          %v4838 = vld [vmem:[%s31 + $0x30] sm:$0xf]
          %v4839 = vld [vmem:[%s31 + $0x34] sm:$0xf]
          %v4840 = vld [vmem:[%s31 + $0x38] sm:$0xf]
          %v4841 = vld [vmem:[%s31 + $0x3c] sm:$0xf]
          %v4842 = vld [vmem:[#allocation9] sm:$0x1]
          %v4844 = vlaneseq
          %v4845 = vshrl.u32 %v4844, 7
          %v4846 = vsub.s32 0, %v4845
          %v4847 = vrot.slane %v4842, %v4846
          %v4865 = vunpack.c.l.b16 %v4826
          %v4866 = vunpack.c.l.b16 %v4827
          %v4867 = vunpack.c.l.b16 %v4828
          %v4868 = vunpack.c.l.b16 %v4829
          %v4869 = vunpack.c.l.b16 %v4830
          %v4870 = vunpack.c.l.b16 %v4831
          %v4871 = vunpack.c.l.b16 %v4832
          %v4872 = vunpack.c.l.b16 %v4833
          %v4873 = vunpack.c.l.b16 %v4834
          %v4874 = vunpack.c.l.b16 %v4835
          %v4875 = vunpack.c.l.b16 %v4836
          %v4876 = vunpack.c.l.b16 %v4837
          %v4877 = vunpack.c.l.b16 %v4838
          %v4878 = vunpack.c.l.b16 %v4839
          %v4879 = vunpack.c.l.b16 %v4840
          %v4880 = vunpack.c.l.b16 %v4841
          %v4881 = vpack.c.b16 %v4866, %v4865
          %v4882 = vpack.c.b16 %v4868, %v4867
          %v4883 = vpack.c.b16 %v4870, %v4869
          %v4884 = vpack.c.b16 %v4872, %v4871
          %v4885 = vpack.c.b16 %v4874, %v4873
          %v4886 = vpack.c.b16 %v4876, %v4875
          %v4887 = vpack.c.b16 %v4878, %v4877
          %v4888 = vpack.c.b16 %v4880, %v4879
          %4897 = vmatprep.subr.bf16.mxu0 0
          %4898 = vmatpush1.bf16.msra.mxu0 %v4881
          %4899 = vmatprep.subr.bf16.mxu0 0
          %4900 = vmatpush1.bf16.msra.mxu0 %v4882
          %4901 = vmatprep.subr.bf16.mxu0 0
          %4902 = vmatpush1.bf16.msra.mxu0 %v4883
          %4903 = vmatprep.subr.bf16.mxu0 0
          %4904 = vmatpush1.bf16.msra.mxu0 %v4884
          %4905 = vmatprep.subr.bf16.mxu0 0
          %4906 = vmatpush1.bf16.msra.mxu0 %v4885
          %4907 = vmatprep.subr.bf16.mxu0 0
          %4908 = vmatpush1.bf16.msra.mxu0 %v4886
          %4909 = vmatprep.subr.bf16.mxu0 0
          %4910 = vmatpush1.bf16.msra.mxu0 %v4887
          %4911 = vmatprep.subr.bf16.mxu0 0
          %4912 = vmatpush1.bf16.msra.mxu0 %v4888
          %4913 = vmatprep.subr.bf16.mxu0 0
          %4914 = vmatpush1.bf16.msra.mxu0 0
          %4915 = vmatprep.subr.bf16.mxu0 0
          %4916 = vmatpush1.bf16.msra.mxu0 0
          %4917 = vmatprep.subr.bf16.mxu0 0
          %4918 = vmatpush1.bf16.msra.mxu0 0
          %4919 = vmatprep.subr.bf16.mxu0 0
          %4920 = vmatpush1.bf16.msra.mxu0 0
          %4921 = vmatprep.subr.bf16.mxu0 0
          %4922 = vmatpush1.bf16.msra.mxu0 0
          %4923 = vmatprep.subr.bf16.mxu0 0
          %4924 = vmatpush1.bf16.msra.mxu0 0
          %4925 = vmatprep.subr.bf16.mxu0 0
          %4926 = vmatpush1.bf16.msra.mxu0 0
          %4927 = vmatprep.subr.bf16.mxu0 0
          %4928 = vmatpush1.bf16.msra.mxu0 0
          %4929 = vmatprep.mubr.bf16.mxu0 0
          %4930 = vmatmul.mubr.bf16.gmra.mrb[0].mxu0 %v4825
          %v4931 = vpop.f32.mrb[0].mxu0
          %v4932 = vadd.f32 %v4847, %v4931
          %v4933 = vpop.f32.mrb[0].mxu0
          %v4934 = vpop.f32.mrb[0].mxu0
          %v4935 = vpop.f32.mrb[0].mxu0
          %4936 = vdwg.mxu0
          %v4937 = vld [vmem:[#allocation10] sm:$0x1]
          %v4938 = vld [vmem:[#allocation12] sm:$0x1]
          %v4947 = vsel %vm3215, %v4679, %v4670
          %v4948 = vsel %vm3217, %v4688, %v4947
          %v4949 = vsel %vm3219, %v4697, %v4948
          %v4950 = vsel %vm3221, %v4706, %v4949
          %v4951 = vsel %vm3223, %v4715, %v4950
          %v4952 = vsel %vm3225, %v4724, %v4951
          %vm4955 = vcmask 1040384
          %v4956 = vsel %vm4955, %v4937, %v4952
          %v4957 = vsel %vm4955, %v4733, 0.0
          %4958 = vst.msk [vmem:[#allocation2] sm:$0xff] %vm4661, %v4956
          %4959 = vst.msk [vmem:[#allocation2 + $0x8] sm:$0xff] %vm4661, %v4957
          %v4961 = vrot.slane %v4932, 7
          %v4963 = vsel %vm4955, %v4938, %v4961
          %v4964 = vsel %vm4955, %v4961, 0.0
          %4965 = vst.msk [vmem:[#allocation3] sm:$0xff] %vm4661, %v4963
          %4966 = vst.msk [vmem:[#allocation3 + $0x8] sm:$0xff] %vm4661, %v4964
        $region292: #{point_transformer_forward.1} parent=191 // pred_fallthru
          _
        %v4967 = vld [vmem:[#allocation2] sm:$0xff]
        %v4968 = vld [vmem:[#allocation2 + $0x8] sm:$0xff]
        %v4969 = vld [vmem:[#allocation3] sm:$0xff]
        %v4970 = vld [vmem:[#allocation3 + $0x8] sm:$0xff]
        %v4971 = vadd.f32 %v4967, %v4969
        %v4972 = vadd.f32 %v4968, %v4970
        %v4973 = vld [vmem:[%s1575] sm:$0x1]
        %v4974 = vld [vmem:[%s1583] sm:$0x1]
        %vm4975 = vcmask 523264
        %v4976 = vsel %vm4975, %v4971, 0.0
        %4977 = vadd.xlane.f32.xlu0 %v4976
        %v4978 = vpop.xlane.xlu0 %4977
        %v4979 = vsel %vm4975, %v4972, 0.0
        %4980 = vadd.xlane.f32.xlu0 %v4979
        %v4981 = vpop.xlane.xlu0 %4980
        %v4982 = vrcp.pop 64.0
        %v4983 = vmul.f32 %v4978, %v4982
        %v4984 = vmul.f32 %v4981, %v4982
        %v4985 = vsub.f32 %v4971, %v4983
        %v4986 = vsub.f32 %v4972, %v4984
        %v4987 = vmul.f32 %v4985, %v4985
        %v4988 = vmul.f32 %v4986, %v4986
        %v4989 = vsel %vm4975, %v4987, 0.0
        %4990 = vadd.xlane.f32.xlu0 %v4989
        %v4991 = vpop.xlane.xlu0 %4990
        %v4992 = vsel %vm4975, %v4988, 0.0
        %4993 = vadd.xlane.f32.xlu0 %v4992
        %v4994 = vpop.xlane.xlu0 %4993
        %v4995 = vmul.f32 %v4991, %v4982
        %v4996 = vmul.f32 %v4994, %v4982
        %v4997 = vadd.f32 %v4995, 1e-05
        %v4998 = vadd.f32 %v4996, 1e-05
        %v4999 = vrsqrt.pop %v4997
        %v5000 = vrsqrt.pop %v4998
        %v5001 = vmul.f32 %v4985, %v4999
        %v5002 = vmul.f32 %v4986, %v5000
        %v5004 = vlaneseq
        %v5005 = vshrl.u32 %v5004, 7
        %v5006 = vsub.s32 0, %v5005
        %v5007 = vrot.slane %v4973, %v5006
        %v5009 = vmul.f32 %v5001, %v5007
        %v5010 = vmul.f32 %v5002, %v5007
        %v5012 = vlaneseq
        %v5013 = vshrl.u32 %v5012, 7
        %v5014 = vsub.s32 0, %v5013
        %v5015 = vrot.slane %v4974, %v5014
        %v5017 = vadd.f32 %v5009, %v5015
        %v5018 = vadd.f32 %v5010, %v5015
        %v5019 = vpack.c.bf16 %v5018, %v5017
        %v5020 = vld [vmem:[%s1845] sm:$0xff]
        %v5021 = vld [vmem:[%s1845 + $0x8] sm:$0xff]
        %v5022 = vld [vmem:[%s1845 + $0x10] sm:$0xff]
        %v5023 = vld [vmem:[%s1845 + $0x18] sm:$0xff]
        %v5024 = vld [vmem:[%s1845 + $0x20] sm:$0xff]
        %v5025 = vld [vmem:[%s1845 + $0x28] sm:$0xff]
        %v5026 = vld [vmem:[%s1845 + $0x30] sm:$0xff]
        %v5027 = vld [vmem:[%s1845 + $0x38] sm:$0xff]
        %v5036 = vunpack.c.l.b16 %v5020
        %v5037 = vunpack.c.h.b16 %v5020
        %v5038 = vunpack.c.l.b16 %v5021
        %v5039 = vunpack.c.h.b16 %v5021
        %v5040 = vunpack.c.l.b16 %v5022
        %v5041 = vunpack.c.h.b16 %v5022
        %v5042 = vunpack.c.l.b16 %v5023
        %v5043 = vunpack.c.h.b16 %v5023
        %v5044 = vunpack.c.l.b16 %v5024
        %v5045 = vunpack.c.h.b16 %v5024
        %v5046 = vunpack.c.l.b16 %v5025
        %v5047 = vunpack.c.h.b16 %v5025
        %v5048 = vunpack.c.l.b16 %v5026
        %v5049 = vunpack.c.h.b16 %v5026
        %v5050 = vunpack.c.l.b16 %v5027
        %v5051 = vunpack.c.h.b16 %v5027
        %v5052 = vpack.c.b16 %v5038, %v5036
        %v5053 = vpack.c.b16 %v5039, %v5037
        %v5054 = vpack.c.b16 %v5042, %v5040
        %v5055 = vpack.c.b16 %v5043, %v5041
        %v5056 = vpack.c.b16 %v5046, %v5044
        %v5057 = vpack.c.b16 %v5047, %v5045
        %v5058 = vpack.c.b16 %v5050, %v5048
        %v5059 = vpack.c.b16 %v5051, %v5049
        %v5069 = vsel %vm4975, %v5019, 0
        %5071 = vmatprep.subr.bf16.mxu0 %v5053
        %5072 = vmatpush1.bf16.msra.mxu0 %v5052
        %5073 = vmatprep.subr.bf16.mxu0 %v5055
        %5074 = vmatpush1.bf16.msra.mxu0 %v5054
        %5075 = vmatprep.subr.bf16.mxu0 %v5057
        %5076 = vmatpush1.bf16.msra.mxu0 %v5056
        %5077 = vmatprep.subr.bf16.mxu0 %v5059
        %5078 = vmatpush1.bf16.msra.mxu0 %v5058
        %5079 = vmatprep.subr.bf16.mxu0 0
        %5080 = vmatpush1.bf16.msra.mxu0 0
        %5081 = vmatprep.subr.bf16.mxu0 0
        %5082 = vmatpush1.bf16.msra.mxu0 0
        %5083 = vmatprep.subr.bf16.mxu0 0
        %5084 = vmatpush1.bf16.msra.mxu0 0
        %5085 = vmatprep.subr.bf16.mxu0 0
        %5086 = vmatpush1.bf16.msra.mxu0 0
        %5087 = vmatprep.subr.bf16.mxu0 0
        %5088 = vmatpush1.bf16.msra.mxu0 0
        %5089 = vmatprep.subr.bf16.mxu0 0
        %5090 = vmatpush1.bf16.msra.mxu0 0
        %5091 = vmatprep.subr.bf16.mxu0 0
        %5092 = vmatpush1.bf16.msra.mxu0 0
        %5093 = vmatprep.subr.bf16.mxu0 0
        %5094 = vmatpush1.bf16.msra.mxu0 0
        %5095 = vmatprep.subr.bf16.mxu0 0
        %5096 = vmatpush1.bf16.msra.mxu0 0
        %5097 = vmatprep.subr.bf16.mxu0 0
        %5098 = vmatpush1.bf16.msra.mxu0 0
        %5099 = vmatprep.subr.bf16.mxu0 0
        %5100 = vmatpush1.bf16.msra.mxu0 0
        %5101 = vmatprep.subr.bf16.mxu0 0
        %5102 = vmatpush1.bf16.msra.mxu0 0
        %5103 = vmatprep.mubr.bf16.mxu0 0
        %5104 = vmatmul.mubr.bf16.gmra.mrb[0].mxu0 %v5069
        %v5105 = vpop.f32.mrb[0].mxu0
        %v5106 = vadd.f32 0.0, %v5105
        %v5107 = vpop.f32.mrb[0].mxu0
        %v5108 = vadd.f32 0.0, %v5107
        %v5109 = vpop.f32.mrb[0].mxu0
        %v5110 = vadd.f32 0.0, %v5109
        %v5111 = vpop.f32.mrb[0].mxu0
        %v5112 = vadd.f32 0.0, %v5111
        %5113 = vdwg.mxu0
        %v5114 = vlaneseq
        %v5115 = vand.u32 %v5114, 127
        %vm5116 = vcmp.lt.s32.totalorder %v5115, 9
        %v5117 = vsel %vm5116, 0.0, -1e+30
        %v5118 = vpack.c.bf16 %v5110, %v5106
        %v5119 = vpack.c.bf16 %v5112, %v5108
        %5121 = vrot.lane.b32.xlu0 %v5118, 64
        %v5122 = vpop.permute.xlu0 %5121
        %vm5123 = vcmask 130048
        %v5125 = vsel %vm5123, %v5118, 0
        %v5128 = vsel %vm5123, %v5122, 0
        %5130 = vmatprep.subr.bf16.mxu0 0
        %5131 = vmatpush1.bf16.xpose.msra.mxu0 %v5128
        %5132 = vmatprep.subr.bf16.mxu0 0
        %5133 = vmatpush1.bf16.xpose.msra.mxu0 0
        %5134 = vmatprep.subr.bf16.mxu0 0
        %5135 = vmatpush1.bf16.xpose.msra.mxu0 0
        %5136 = vmatprep.subr.bf16.mxu0 0
        %5137 = vmatpush1.bf16.xpose.msra.mxu0 0
        %5138 = vmatprep.subr.bf16.mxu0 0
        %5139 = vmatpush1.bf16.xpose.msra.mxu0 0
        %5140 = vmatprep.subr.bf16.mxu0 0
        %5141 = vmatpush1.bf16.xpose.msra.mxu0 0
        %5142 = vmatprep.subr.bf16.mxu0 0
        %5143 = vmatpush1.bf16.xpose.msra.mxu0 0
        %5144 = vmatprep.subr.bf16.mxu0 0
        %5145 = vmatpush1.bf16.xpose.msra.mxu0 0
        %5146 = vmatprep.subr.bf16.mxu0 0
        %5147 = vmatpush1.bf16.xpose.msra.mxu0 0
        %5148 = vmatprep.subr.bf16.mxu0 0
        %5149 = vmatpush1.bf16.xpose.msra.mxu0 0
        %5150 = vmatprep.subr.bf16.mxu0 0
        %5151 = vmatpush1.bf16.xpose.msra.mxu0 0
        %5152 = vmatprep.subr.bf16.mxu0 0
        %5153 = vmatpush1.bf16.xpose.msra.mxu0 0
        %5154 = vmatprep.subr.bf16.mxu0 0
        %5155 = vmatpush1.bf16.xpose.msra.mxu0 0
        %5156 = vmatprep.subr.bf16.mxu0 0
        %5157 = vmatpush1.bf16.xpose.msra.mxu0 0
        %5158 = vmatprep.subr.bf16.mxu0 0
        %5159 = vmatpush1.bf16.xpose.msra.mxu0 0
        %5160 = vmatprep.subr.bf16.mxu0 0
        %5161 = vmatpush1.bf16.xpose.msra.mxu0 0
        %5162 = vmatprep.mubr.bf16.mxu0 0
        %5163 = vmatmul.mubr.bf16.gmra.mrb[0].mxu0 %v5125
        %v5164 = vpop.f32.mrb[0].mxu0
        %v5165 = vadd.f32 %v5117, %v5164
        %v5166 = vpop.f32.mrb[0].mxu0
        %v5167 = vpop.f32.mrb[0].mxu0
        %v5168 = vadd.f32 %v5117, %v5167
        %v5169 = vpop.f32.mrb[0].mxu0
        %5170 = vdwg.mxu0
        %v5171 = vsel %vm5123, %v5165, -inf
        %5172 = vmax.xlane.f32.xlu0 %v5171
        %v5173 = vpop.xlane.xlu0 %5172
        %v5174 = vsel %vm5123, %v5168, -inf
        %5175 = vmax.xlane.f32.xlu0 %v5174
        %v5176 = vpop.xlane.xlu0 %5175
        %v5177 = vsub.f32 %v5165, %v5173
        %v5178 = vsub.f32 %v5168, %v5176
        %v5179 = vmul.f32 %v5177, 1.442695
        %v5180 = vpow.pop %v5179
        %v5181 = vmul.f32 %v5178, 1.442695
        %v5182 = vpow.pop %v5181
        %v5183 = vsel %vm5123, %v5180, 0.0
        %5184 = vadd.xlane.f32.xlu0 %v5183
        %v5185 = vpop.xlane.xlu0 %5184
        %v5186 = vsel %vm5123, %v5182, 0.0
        %5187 = vadd.xlane.f32.xlu0 %v5186
        %v5188 = vpop.xlane.xlu0 %5187
        %v5189 = vrcp.pop %v5185
        %v5190 = vrcp.pop %v5188
        %v5191 = vmul.f32 %v5180, %v5189
        %v5192 = vmul.f32 %v5182, %v5190
        %v5193 = vpack.c.bf16 %v5192, %v5191
        %v5195 = vsel %vm5123, %v5193, 0
        %5197 = vmatprep.subr.bf16.mxu0 0
        %5198 = vmatpush1.bf16.msra.mxu0 %v5119
        %5199 = vmatprep.subr.bf16.mxu0 0
        %5200 = vmatpush1.bf16.msra.mxu0 0
        %5201 = vmatprep.subr.bf16.mxu0 0
        %5202 = vmatpush1.bf16.msra.mxu0 0
        %5203 = vmatprep.subr.bf16.mxu0 0
        %5204 = vmatpush1.bf16.msra.mxu0 0
        %5205 = vmatprep.subr.bf16.mxu0 0
        %5206 = vmatpush1.bf16.msra.mxu0 0
        %5207 = vmatprep.subr.bf16.mxu0 0
        %5208 = vmatpush1.bf16.msra.mxu0 0
        %5209 = vmatprep.subr.bf16.mxu0 0
        %5210 = vmatpush1.bf16.msra.mxu0 0
        %5211 = vmatprep.subr.bf16.mxu0 0
        %5212 = vmatpush1.bf16.msra.mxu0 0
        %5213 = vmatprep.subr.bf16.mxu0 0
        %5214 = vmatpush1.bf16.msra.mxu0 0
        %5215 = vmatprep.subr.bf16.mxu0 0
        %5216 = vmatpush1.bf16.msra.mxu0 0
        %5217 = vmatprep.subr.bf16.mxu0 0
        %5218 = vmatpush1.bf16.msra.mxu0 0
        %5219 = vmatprep.subr.bf16.mxu0 0
        %5220 = vmatpush1.bf16.msra.mxu0 0
        %5221 = vmatprep.subr.bf16.mxu0 0
        %5222 = vmatpush1.bf16.msra.mxu0 0
        %5223 = vmatprep.subr.bf16.mxu0 0
        %5224 = vmatpush1.bf16.msra.mxu0 0
        %5225 = vmatprep.subr.bf16.mxu0 0
        %5226 = vmatpush1.bf16.msra.mxu0 0
        %5227 = vmatprep.subr.bf16.mxu0 0
        %5228 = vmatpush1.bf16.msra.mxu0 0
        %5229 = vmatprep.mubr.bf16.mxu0 0
        %5230 = vmatmul.mubr.bf16.gmra.mrb[0].mxu0 %v5195
        %v5231 = vpop.f32.mrb[0].mxu0
        %v5232 = vadd.f32 0.0, %v5231
        %v5233 = vpop.f32.mrb[0].mxu0
        %v5234 = vpop.f32.mrb[0].mxu0
        %v5235 = vadd.f32 0.0, %v5234
        %v5236 = vpop.f32.mrb[0].mxu0
        %5237 = vdwg.mxu0
        %5238 = vrot.lane.b32.xlu0 %v5118, 112
        %v5239 = vpop.permute.xlu0 %5238
        %5240 = vrot.lane.b32.xlu0 %v5118, 48
        %v5241 = vpop.permute.xlu0 %5240
        %v5243 = vsel %vm5123, %v5239, 0
        %v5246 = vsel %vm5123, %v5241, 0
        %5248 = vmatprep.subr.bf16.mxu0 0
        %5249 = vmatpush1.bf16.xpose.msra.mxu0 %v5246
        %5250 = vmatprep.subr.bf16.mxu0 0
        %5251 = vmatpush1.bf16.xpose.msra.mxu0 0
        %5252 = vmatprep.subr.bf16.mxu0 0
        %5253 = vmatpush1.bf16.xpose.msra.mxu0 0
        %5254 = vmatprep.subr.bf16.mxu0 0
        %5255 = vmatpush1.bf16.xpose.msra.mxu0 0
        %5256 = vmatprep.subr.bf16.mxu0 0
        %5257 = vmatpush1.bf16.xpose.msra.mxu0 0
        %5258 = vmatprep.subr.bf16.mxu0 0
        %5259 = vmatpush1.bf16.xpose.msra.mxu0 0
        %5260 = vmatprep.subr.bf16.mxu0 0
        %5261 = vmatpush1.bf16.xpose.msra.mxu0 0
        %5262 = vmatprep.subr.bf16.mxu0 0
        %5263 = vmatpush1.bf16.xpose.msra.mxu0 0
        %5264 = vmatprep.subr.bf16.mxu0 0
        %5265 = vmatpush1.bf16.xpose.msra.mxu0 0
        %5266 = vmatprep.subr.bf16.mxu0 0
        %5267 = vmatpush1.bf16.xpose.msra.mxu0 0
        %5268 = vmatprep.subr.bf16.mxu0 0
        %5269 = vmatpush1.bf16.xpose.msra.mxu0 0
        %5270 = vmatprep.subr.bf16.mxu0 0
        %5271 = vmatpush1.bf16.xpose.msra.mxu0 0
        %5272 = vmatprep.subr.bf16.mxu0 0
        %5273 = vmatpush1.bf16.xpose.msra.mxu0 0
        %5274 = vmatprep.subr.bf16.mxu0 0
        %5275 = vmatpush1.bf16.xpose.msra.mxu0 0
        %5276 = vmatprep.subr.bf16.mxu0 0
        %5277 = vmatpush1.bf16.xpose.msra.mxu0 0
        %5278 = vmatprep.subr.bf16.mxu0 0
        %5279 = vmatpush1.bf16.xpose.msra.mxu0 0
        %5280 = vmatprep.mubr.bf16.mxu0 0
        %5281 = vmatmul.mubr.bf16.gmra.mrb[0].mxu0 %v5243
        %v5282 = vpop.f32.mrb[0].mxu0
        %v5283 = vadd.f32 %v5117, %v5282
        %v5284 = vpop.f32.mrb[0].mxu0
        %v5285 = vpop.f32.mrb[0].mxu0
        %v5286 = vadd.f32 %v5117, %v5285
        %v5287 = vpop.f32.mrb[0].mxu0
        %5288 = vdwg.mxu0
        %v5289 = vsel %vm5123, %v5283, -inf
        %5290 = vmax.xlane.f32.xlu0 %v5289
        %v5291 = vpop.xlane.xlu0 %5290
        %v5292 = vsel %vm5123, %v5286, -inf
        %5293 = vmax.xlane.f32.xlu0 %v5292
        %v5294 = vpop.xlane.xlu0 %5293
        %v5295 = vsub.f32 %v5283, %v5291
        %v5296 = vsub.f32 %v5286, %v5294
        %v5297 = vmul.f32 %v5295, 1.442695
        %v5298 = vpow.pop %v5297
        %v5299 = vmul.f32 %v5296, 1.442695
        %v5300 = vpow.pop %v5299
        %v5301 = vsel %vm5123, %v5298, 0.0
        %5302 = vadd.xlane.f32.xlu0 %v5301
        %v5303 = vpop.xlane.xlu0 %5302
        %v5304 = vsel %vm5123, %v5300, 0.0
        %5305 = vadd.xlane.f32.xlu0 %v5304
        %v5306 = vpop.xlane.xlu0 %5305
        %v5307 = vrcp.pop %v5303
        %v5308 = vrcp.pop %v5306
        %v5309 = vmul.f32 %v5298, %v5307
        %v5310 = vmul.f32 %v5300, %v5308
        %v5311 = vpack.c.bf16 %v5310, %v5309
        %5313 = vrot.lane.b32.xlu0 %v5119, 112
        %v5314 = vpop.permute.xlu0 %5313
        %v5317 = vsel %vm5123, %v5311, 0
        %5319 = vmatprep.subr.bf16.mxu0 0
        %5320 = vmatpush1.bf16.msra.mxu0 %v5314
        %5321 = vmatprep.subr.bf16.mxu0 0
        %5322 = vmatpush1.bf16.msra.mxu0 0
        %5323 = vmatprep.subr.bf16.mxu0 0
        %5324 = vmatpush1.bf16.msra.mxu0 0
        %5325 = vmatprep.subr.bf16.mxu0 0
        %5326 = vmatpush1.bf16.msra.mxu0 0
        %5327 = vmatprep.subr.bf16.mxu0 0
        %5328 = vmatpush1.bf16.msra.mxu0 0
        %5329 = vmatprep.subr.bf16.mxu0 0
        %5330 = vmatpush1.bf16.msra.mxu0 0
        %5331 = vmatprep.subr.bf16.mxu0 0
        %5332 = vmatpush1.bf16.msra.mxu0 0
        %5333 = vmatprep.subr.bf16.mxu0 0
        %5334 = vmatpush1.bf16.msra.mxu0 0
        %5335 = vmatprep.subr.bf16.mxu0 0
        %5336 = vmatpush1.bf16.msra.mxu0 0
        %5337 = vmatprep.subr.bf16.mxu0 0
        %5338 = vmatpush1.bf16.msra.mxu0 0
        %5339 = vmatprep.subr.bf16.mxu0 0
        %5340 = vmatpush1.bf16.msra.mxu0 0
        %5341 = vmatprep.subr.bf16.mxu0 0
        %5342 = vmatpush1.bf16.msra.mxu0 0
        %5343 = vmatprep.subr.bf16.mxu0 0
        %5344 = vmatpush1.bf16.msra.mxu0 0
        %5345 = vmatprep.subr.bf16.mxu0 0
        %5346 = vmatpush1.bf16.msra.mxu0 0
        %5347 = vmatprep.subr.bf16.mxu0 0
        %5348 = vmatpush1.bf16.msra.mxu0 0
        %5349 = vmatprep.subr.bf16.mxu0 0
        %5350 = vmatpush1.bf16.msra.mxu0 0
        %5351 = vmatprep.mubr.bf16.mxu0 0
        %5352 = vmatmul.mubr.bf16.gmra.mrb[0].mxu0 %v5317
        %v5353 = vpop.f32.mrb[0].mxu0
        %v5354 = vadd.f32 0.0, %v5353
        %v5355 = vpop.f32.mrb[0].mxu0
        %v5356 = vpop.f32.mrb[0].mxu0
        %v5357 = vadd.f32 0.0, %v5356
        %v5358 = vpop.f32.mrb[0].mxu0
        %5359 = vdwg.mxu0
        %5360 = vrot.lane.b32.xlu0 %v5118, 96
        %v5361 = vpop.permute.xlu0 %5360
        %5362 = vrot.lane.b32.xlu0 %v5118, 32
        %v5363 = vpop.permute.xlu0 %5362
        %v5365 = vsel %vm5123, %v5361, 0
        %v5368 = vsel %vm5123, %v5363, 0
        %5370 = vmatprep.subr.bf16.mxu0 0
        %5371 = vmatpush1.bf16.xpose.msra.mxu0 %v5368
        %5372 = vmatprep.subr.bf16.mxu0 0
        %5373 = vmatpush1.bf16.xpose.msra.mxu0 0
        %5374 = vmatprep.subr.bf16.mxu0 0
        %5375 = vmatpush1.bf16.xpose.msra.mxu0 0
        %5376 = vmatprep.subr.bf16.mxu0 0
        %5377 = vmatpush1.bf16.xpose.msra.mxu0 0
        %5378 = vmatprep.subr.bf16.mxu0 0
        %5379 = vmatpush1.bf16.xpose.msra.mxu0 0
        %5380 = vmatprep.subr.bf16.mxu0 0
        %5381 = vmatpush1.bf16.xpose.msra.mxu0 0
        %5382 = vmatprep.subr.bf16.mxu0 0
        %5383 = vmatpush1.bf16.xpose.msra.mxu0 0
        %5384 = vmatprep.subr.bf16.mxu0 0
        %5385 = vmatpush1.bf16.xpose.msra.mxu0 0
        %5386 = vmatprep.subr.bf16.mxu0 0
        %5387 = vmatpush1.bf16.xpose.msra.mxu0 0
        %5388 = vmatprep.subr.bf16.mxu0 0
        %5389 = vmatpush1.bf16.xpose.msra.mxu0 0
        %5390 = vmatprep.subr.bf16.mxu0 0
        %5391 = vmatpush1.bf16.xpose.msra.mxu0 0
        %5392 = vmatprep.subr.bf16.mxu0 0
        %5393 = vmatpush1.bf16.xpose.msra.mxu0 0
        %5394 = vmatprep.subr.bf16.mxu0 0
        %5395 = vmatpush1.bf16.xpose.msra.mxu0 0
        %5396 = vmatprep.subr.bf16.mxu0 0
        %5397 = vmatpush1.bf16.xpose.msra.mxu0 0
        %5398 = vmatprep.subr.bf16.mxu0 0
        %5399 = vmatpush1.bf16.xpose.msra.mxu0 0
        %5400 = vmatprep.subr.bf16.mxu0 0
        %5401 = vmatpush1.bf16.xpose.msra.mxu0 0
        %5402 = vmatprep.mubr.bf16.mxu0 0
        %5403 = vmatmul.mubr.bf16.gmra.mrb[0].mxu0 %v5365
        %v5404 = vpop.f32.mrb[0].mxu0
        %v5405 = vadd.f32 %v5117, %v5404
        %v5406 = vpop.f32.mrb[0].mxu0
        %v5407 = vpop.f32.mrb[0].mxu0
        %v5408 = vadd.f32 %v5117, %v5407
        %v5409 = vpop.f32.mrb[0].mxu0
        %5410 = vdwg.mxu0
        %v5411 = vsel %vm5123, %v5405, -inf
        %5412 = vmax.xlane.f32.xlu0 %v5411
        %v5413 = vpop.xlane.xlu0 %5412
        %v5414 = vsel %vm5123, %v5408, -inf
        %5415 = vmax.xlane.f32.xlu0 %v5414
        %v5416 = vpop.xlane.xlu0 %5415
        %v5417 = vsub.f32 %v5405, %v5413
        %v5418 = vsub.f32 %v5408, %v5416
        %v5419 = vmul.f32 %v5417, 1.442695
        %v5420 = vpow.pop %v5419
        %v5421 = vmul.f32 %v5418, 1.442695
        %v5422 = vpow.pop %v5421
        %v5423 = vsel %vm5123, %v5420, 0.0
        %5424 = vadd.xlane.f32.xlu0 %v5423
        %v5425 = vpop.xlane.xlu0 %5424
        %v5426 = vsel %vm5123, %v5422, 0.0
        %5427 = vadd.xlane.f32.xlu0 %v5426
        %v5428 = vpop.xlane.xlu0 %5427
        %v5429 = vrcp.pop %v5425
        %v5430 = vrcp.pop %v5428
        %v5431 = vmul.f32 %v5420, %v5429
        %v5432 = vmul.f32 %v5422, %v5430
        %v5433 = vpack.c.bf16 %v5432, %v5431
        %5434 = vrot.lane.b32.xlu0 %v5119, 96
        %v5435 = vpop.permute.xlu0 %5434
        %v5438 = vsel %vm5123, %v5433, 0
        %5440 = vmatprep.subr.bf16.mxu0 0
        %5441 = vmatpush1.bf16.msra.mxu0 %v5435
        %5442 = vmatprep.subr.bf16.mxu0 0
        %5443 = vmatpush1.bf16.msra.mxu0 0
        %5444 = vmatprep.subr.bf16.mxu0 0
        %5445 = vmatpush1.bf16.msra.mxu0 0
        %5446 = vmatprep.subr.bf16.mxu0 0
        %5447 = vmatpush1.bf16.msra.mxu0 0
        %5448 = vmatprep.subr.bf16.mxu0 0
        %5449 = vmatpush1.bf16.msra.mxu0 0
        %5450 = vmatprep.subr.bf16.mxu0 0
        %5451 = vmatpush1.bf16.msra.mxu0 0
        %5452 = vmatprep.subr.bf16.mxu0 0
        %5453 = vmatpush1.bf16.msra.mxu0 0
        %5454 = vmatprep.subr.bf16.mxu0 0
        %5455 = vmatpush1.bf16.msra.mxu0 0
        %5456 = vmatprep.subr.bf16.mxu0 0
        %5457 = vmatpush1.bf16.msra.mxu0 0
        %5458 = vmatprep.subr.bf16.mxu0 0
        %5459 = vmatpush1.bf16.msra.mxu0 0
        %5460 = vmatprep.subr.bf16.mxu0 0
        %5461 = vmatpush1.bf16.msra.mxu0 0
        %5462 = vmatprep.subr.bf16.mxu0 0
        %5463 = vmatpush1.bf16.msra.mxu0 0
        %5464 = vmatprep.subr.bf16.mxu0 0
        %5465 = vmatpush1.bf16.msra.mxu0 0
        %5466 = vmatprep.subr.bf16.mxu0 0
        %5467 = vmatpush1.bf16.msra.mxu0 0
        %5468 = vmatprep.subr.bf16.mxu0 0
        %5469 = vmatpush1.bf16.msra.mxu0 0
        %5470 = vmatprep.subr.bf16.mxu0 0
        %5471 = vmatpush1.bf16.msra.mxu0 0
        %5472 = vmatprep.mubr.bf16.mxu0 0
        %5473 = vmatmul.mubr.bf16.gmra.mrb[0].mxu0 %v5438
        %v5474 = vpop.f32.mrb[0].mxu0
        %v5475 = vadd.f32 0.0, %v5474
        %v5476 = vpop.f32.mrb[0].mxu0
        %v5477 = vpop.f32.mrb[0].mxu0
        %v5478 = vadd.f32 0.0, %v5477
        %v5479 = vpop.f32.mrb[0].mxu0
        %5480 = vdwg.mxu0
        %5481 = vrot.lane.b32.xlu0 %v5118, 80
        %v5482 = vpop.permute.xlu0 %5481
        %5483 = vrot.lane.b32.xlu0 %v5118, 16
        %v5484 = vpop.permute.xlu0 %5483
        %v5486 = vsel %vm5123, %v5482, 0
        %v5489 = vsel %vm5123, %v5484, 0
        %5491 = vmatprep.subr.bf16.mxu0 0
        %5492 = vmatpush1.bf16.xpose.msra.mxu0 %v5489
        %5493 = vmatprep.subr.bf16.mxu0 0
        %5494 = vmatpush1.bf16.xpose.msra.mxu0 0
        %5495 = vmatprep.subr.bf16.mxu0 0
        %5496 = vmatpush1.bf16.xpose.msra.mxu0 0
        %5497 = vmatprep.subr.bf16.mxu0 0
        %5498 = vmatpush1.bf16.xpose.msra.mxu0 0
        %5499 = vmatprep.subr.bf16.mxu0 0
        %5500 = vmatpush1.bf16.xpose.msra.mxu0 0
        %5501 = vmatprep.subr.bf16.mxu0 0
        %5502 = vmatpush1.bf16.xpose.msra.mxu0 0
        %5503 = vmatprep.subr.bf16.mxu0 0
        %5504 = vmatpush1.bf16.xpose.msra.mxu0 0
        %5505 = vmatprep.subr.bf16.mxu0 0
        %5506 = vmatpush1.bf16.xpose.msra.mxu0 0
        %5507 = vmatprep.subr.bf16.mxu0 0
        %5508 = vmatpush1.bf16.xpose.msra.mxu0 0
        %5509 = vmatprep.subr.bf16.mxu0 0
        %5510 = vmatpush1.bf16.xpose.msra.mxu0 0
        %5511 = vmatprep.subr.bf16.mxu0 0
        %5512 = vmatpush1.bf16.xpose.msra.mxu0 0
        %5513 = vmatprep.subr.bf16.mxu0 0
        %5514 = vmatpush1.bf16.xpose.msra.mxu0 0
        %5515 = vmatprep.subr.bf16.mxu0 0
        %5516 = vmatpush1.bf16.xpose.msra.mxu0 0
        %5517 = vmatprep.subr.bf16.mxu0 0
        %5518 = vmatpush1.bf16.xpose.msra.mxu0 0
        %5519 = vmatprep.subr.bf16.mxu0 0
        %5520 = vmatpush1.bf16.xpose.msra.mxu0 0
        %5521 = vmatprep.subr.bf16.mxu0 0
        %5522 = vmatpush1.bf16.xpose.msra.mxu0 0
        %5523 = vmatprep.mubr.bf16.mxu0 0
        %5524 = vmatmul.mubr.bf16.gmra.mrb[0].mxu0 %v5486
        %v5525 = vpop.f32.mrb[0].mxu0
        %v5526 = vadd.f32 %v5117, %v5525
        %v5527 = vpop.f32.mrb[0].mxu0
        %v5528 = vpop.f32.mrb[0].mxu0
        %v5529 = vadd.f32 %v5117, %v5528
        %v5530 = vpop.f32.mrb[0].mxu0
        %5531 = vdwg.mxu0
        %v5532 = vsel %vm5123, %v5526, -inf
        %5533 = vmax.xlane.f32.xlu0 %v5532
        %v5534 = vpop.xlane.xlu0 %5533
        %v5535 = vsel %vm5123, %v5529, -inf
        %5536 = vmax.xlane.f32.xlu0 %v5535
        %v5537 = vpop.xlane.xlu0 %5536
        %v5538 = vsub.f32 %v5526, %v5534
        %v5539 = vsub.f32 %v5529, %v5537
        %v5540 = vmul.f32 %v5538, 1.442695
        %v5541 = vpow.pop %v5540
        %v5542 = vmul.f32 %v5539, 1.442695
        %v5543 = vpow.pop %v5542
        %v5544 = vsel %vm5123, %v5541, 0.0
        %5545 = vadd.xlane.f32.xlu0 %v5544
        %v5546 = vpop.xlane.xlu0 %5545
        %v5547 = vsel %vm5123, %v5543, 0.0
        %5548 = vadd.xlane.f32.xlu0 %v5547
        %v5549 = vpop.xlane.xlu0 %5548
        %v5550 = vrcp.pop %v5546
        %v5551 = vrcp.pop %v5549
        %v5552 = vmul.f32 %v5541, %v5550
        %v5553 = vmul.f32 %v5543, %v5551
        %v5554 = vpack.c.bf16 %v5553, %v5552
        %5555 = vrot.lane.b32.xlu0 %v5119, 80
        %v5556 = vpop.permute.xlu0 %5555
        %v5559 = vsel %vm5123, %v5554, 0
        %5561 = vmatprep.subr.bf16.mxu0 0
        %5562 = vmatpush1.bf16.msra.mxu0 %v5556
        %5563 = vmatprep.subr.bf16.mxu0 0
        %5564 = vmatpush1.bf16.msra.mxu0 0
        %5565 = vmatprep.subr.bf16.mxu0 0
        %5566 = vmatpush1.bf16.msra.mxu0 0
        %5567 = vmatprep.subr.bf16.mxu0 0
        %5568 = vmatpush1.bf16.msra.mxu0 0
        %5569 = vmatprep.subr.bf16.mxu0 0
        %5570 = vmatpush1.bf16.msra.mxu0 0
        %5571 = vmatprep.subr.bf16.mxu0 0
        %5572 = vmatpush1.bf16.msra.mxu0 0
        %5573 = vmatprep.subr.bf16.mxu0 0
        %5574 = vmatpush1.bf16.msra.mxu0 0
        %5575 = vmatprep.subr.bf16.mxu0 0
        %5576 = vmatpush1.bf16.msra.mxu0 0
        %5577 = vmatprep.subr.bf16.mxu0 0
        %5578 = vmatpush1.bf16.msra.mxu0 0
        %5579 = vmatprep.subr.bf16.mxu0 0
        %5580 = vmatpush1.bf16.msra.mxu0 0
        %5581 = vmatprep.subr.bf16.mxu0 0
        %5582 = vmatpush1.bf16.msra.mxu0 0
        %5583 = vmatprep.subr.bf16.mxu0 0
        %5584 = vmatpush1.bf16.msra.mxu0 0
        %5585 = vmatprep.subr.bf16.mxu0 0
        %5586 = vmatpush1.bf16.msra.mxu0 0
        %5587 = vmatprep.subr.bf16.mxu0 0
        %5588 = vmatpush1.bf16.msra.mxu0 0
        %5589 = vmatprep.subr.bf16.mxu0 0
        %5590 = vmatpush1.bf16.msra.mxu0 0
        %5591 = vmatprep.subr.bf16.mxu0 0
        %5592 = vmatpush1.bf16.msra.mxu0 0
        %5593 = vmatprep.mubr.bf16.mxu0 0
        %5594 = vmatmul.mubr.bf16.gmra.mrb[0].mxu0 %v5559
        %v5595 = vpop.f32.mrb[0].mxu0
        %v5596 = vadd.f32 0.0, %v5595
        %v5597 = vpop.f32.mrb[0].mxu0
        %v5598 = vpop.f32.mrb[0].mxu0
        %v5599 = vadd.f32 0.0, %v5598
        %v5600 = vpop.f32.mrb[0].mxu0
        %5601 = vdwg.mxu0
        %5604 = vrot.lane.b32.xlu0 %v5354, 16
        %v5605 = vpop.permute.xlu0 %5604
        %5606 = vrot.lane.b32.xlu0 %v5357, 16
        %v5607 = vpop.permute.xlu0 %5606
        %5612 = vrot.lane.b32.xlu0 %v5475, 32
        %v5613 = vpop.permute.xlu0 %5612
        %5614 = vrot.lane.b32.xlu0 %v5478, 32
        %v5615 = vpop.permute.xlu0 %5614
        %5620 = vrot.lane.b32.xlu0 %v5596, 48
        %v5621 = vpop.permute.xlu0 %5620
        %5622 = vrot.lane.b32.xlu0 %v5599, 48
        %v5623 = vpop.permute.xlu0 %5622
        %v5626 = vsel %vm5123, %v5232, %v5605
        %v5627 = vsel %vm5123, %v5235, %v5607
        %vm5628 = vcmask 261120
        %v5629 = vsel %vm5628, %v5626, %v5613
        %v5630 = vsel %vm5628, %v5627, %v5615
        %vm5631 = vcmask 392192
        %v5632 = vsel %vm5631, %v5629, %v5621
        %v5633 = vsel %vm5631, %v5630, %v5623
        %v5634 = vpack.c.bf16 %v5633, %v5632
        %v5635 = vld [vmem:[%s1592] sm:$0xf]
        %v5636 = vld [vmem:[%s1592 + $0x4] sm:$0xf]
        %v5637 = vld [vmem:[%s1592 + $0x8] sm:$0xf]
        %v5638 = vld [vmem:[%s1592 + $0xc] sm:$0xf]
        %v5639 = vld [vmem:[%s1592 + $0x10] sm:$0xf]
        %v5640 = vld [vmem:[%s1592 + $0x14] sm:$0xf]
        %v5641 = vld [vmem:[%s1592 + $0x18] sm:$0xf]
        %v5642 = vld [vmem:[%s1592 + $0x1c] sm:$0xf]
        %v5643 = vld [vmem:[%s1600] sm:$0x1]
        %v5645 = vlaneseq
        %v5646 = vshrl.u32 %v5645, 7
        %v5647 = vsub.s32 0, %v5646
        %v5648 = vrot.slane %v5643, %v5647
        %v5658 = vunpack.c.l.b16 %v5635
        %v5659 = vunpack.c.l.b16 %v5636
        %v5660 = vunpack.c.l.b16 %v5637
        %v5661 = vunpack.c.l.b16 %v5638
        %v5662 = vunpack.c.l.b16 %v5639
        %v5663 = vunpack.c.l.b16 %v5640
        %v5664 = vunpack.c.l.b16 %v5641
        %v5665 = vunpack.c.l.b16 %v5642
        %v5666 = vpack.c.b16 %v5659, %v5658
        %v5667 = vpack.c.b16 %v5661, %v5660
        %v5668 = vpack.c.b16 %v5663, %v5662
        %v5669 = vpack.c.b16 %v5665, %v5664
        %v5675 = vsel %vm4975, %v5634, 0
        %5677 = vmatprep.subr.bf16.mxu0 0
        %5678 = vmatpush1.bf16.msra.mxu0 %v5666
        %5679 = vmatprep.subr.bf16.mxu0 0
        %5680 = vmatpush1.bf16.msra.mxu0 %v5667
        %5681 = vmatprep.subr.bf16.mxu0 0
        %5682 = vmatpush1.bf16.msra.mxu0 %v5668
        %5683 = vmatprep.subr.bf16.mxu0 0
        %5684 = vmatpush1.bf16.msra.mxu0 %v5669
        %5685 = vmatprep.subr.bf16.mxu0 0
        %5686 = vmatpush1.bf16.msra.mxu0 0
        %5687 = vmatprep.subr.bf16.mxu0 0
        %5688 = vmatpush1.bf16.msra.mxu0 0
        %5689 = vmatprep.subr.bf16.mxu0 0
        %5690 = vmatpush1.bf16.msra.mxu0 0
        %5691 = vmatprep.subr.bf16.mxu0 0
        %5692 = vmatpush1.bf16.msra.mxu0 0
        %5693 = vmatprep.subr.bf16.mxu0 0
        %5694 = vmatpush1.bf16.msra.mxu0 0
        %5695 = vmatprep.subr.bf16.mxu0 0
        %5696 = vmatpush1.bf16.msra.mxu0 0
        %5697 = vmatprep.subr.bf16.mxu0 0
        %5698 = vmatpush1.bf16.msra.mxu0 0
        %5699 = vmatprep.subr.bf16.mxu0 0
        %5700 = vmatpush1.bf16.msra.mxu0 0
        %5701 = vmatprep.subr.bf16.mxu0 0
        %5702 = vmatpush1.bf16.msra.mxu0 0
        %5703 = vmatprep.subr.bf16.mxu0 0
        %5704 = vmatpush1.bf16.msra.mxu0 0
        %5705 = vmatprep.subr.bf16.mxu0 0
        %5706 = vmatpush1.bf16.msra.mxu0 0
        %5707 = vmatprep.subr.bf16.mxu0 0
        %5708 = vmatpush1.bf16.msra.mxu0 0
        %5709 = vmatprep.mubr.bf16.mxu0 0
        %5710 = vmatmul.mubr.bf16.gmra.mrb[0].mxu0 %v5675
        %v5711 = vpop.f32.mrb[0].mxu0
        %v5712 = vadd.f32 %v5648, %v5711
        %v5713 = vpop.f32.mrb[0].mxu0
        %v5714 = vpop.f32.mrb[0].mxu0
        %v5715 = vadd.f32 %v5648, %v5714
        %v5716 = vpop.f32.mrb[0].mxu0
        %5717 = vdwg.mxu0
        %v5718 = vadd.f32 %v4971, %v5712
        %v5719 = vadd.f32 %v4972, %v5715
        %v5720 = vld [vmem:[%s1608] sm:$0x1]
        %v5721 = vld [vmem:[%s1616] sm:$0x1]
        %v5722 = vsel %vm4975, %v5718, 0.0
        %5723 = vadd.xlane.f32.xlu0 %v5722
        %v5724 = vpop.xlane.xlu0 %5723
        %v5725 = vsel %vm4975, %v5719, 0.0
        %5726 = vadd.xlane.f32.xlu0 %v5725
        %v5727 = vpop.xlane.xlu0 %5726
        %v5728 = vmul.f32 %v5724, %v4982
        %v5729 = vmul.f32 %v5727, %v4982
        %v5730 = vsub.f32 %v5718, %v5728
        %v5731 = vsub.f32 %v5719, %v5729
        %v5732 = vmul.f32 %v5730, %v5730
        %v5733 = vmul.f32 %v5731, %v5731
        %v5734 = vsel %vm4975, %v5732, 0.0
        %5735 = vadd.xlane.f32.xlu0 %v5734
        %v5736 = vpop.xlane.xlu0 %5735
        %v5737 = vsel %vm4975, %v5733, 0.0
        %5738 = vadd.xlane.f32.xlu0 %v5737
        %v5739 = vpop.xlane.xlu0 %5738
        %v5740 = vmul.f32 %v5736, %v4982
        %v5741 = vmul.f32 %v5739, %v4982
        %v5742 = vadd.f32 %v5740, 1e-05
        %v5743 = vadd.f32 %v5741, 1e-05
        %v5744 = vrsqrt.pop %v5742
        %v5745 = vrsqrt.pop %v5743
        %v5746 = vmul.f32 %v5730, %v5744
        %v5747 = vmul.f32 %v5731, %v5745
        %v5749 = vlaneseq
        %v5750 = vshrl.u32 %v5749, 7
        %v5751 = vsub.s32 0, %v5750
        %v5752 = vrot.slane %v5720, %v5751
        %v5754 = vmul.f32 %v5746, %v5752
        %v5755 = vmul.f32 %v5747, %v5752
        %v5757 = vlaneseq
        %v5758 = vshrl.u32 %v5757, 7
        %v5759 = vsub.s32 0, %v5758
        %v5760 = vrot.slane %v5721, %v5759
        %v5762 = vadd.f32 %v5754, %v5760
        %v5763 = vadd.f32 %v5755, %v5760
        %v5764 = vpack.c.bf16 %v5763, %v5762
        %v5765 = vld [vmem:[%s1850] sm:$0xff]
        %v5766 = vld [vmem:[%s1850 + $0x8] sm:$0xff]
        %v5767 = vld [vmem:[%s1850 + $0x10] sm:$0xff]
        %v5768 = vld [vmem:[%s1850 + $0x18] sm:$0xff]
        %v5769 = vld [vmem:[%s1850 + $0x20] sm:$0xff]
        %v5770 = vld [vmem:[%s1850 + $0x28] sm:$0xff]
        %v5771 = vld [vmem:[%s1850 + $0x30] sm:$0xff]
        %v5772 = vld [vmem:[%s1850 + $0x38] sm:$0xff]
        %v5773 = vld [vmem:[%s1625] sm:$0x3]
        %v5775 = vlaneseq
        %v5776 = vshrl.u32 %v5775, 7
        %v5777 = vsub.s32 0, %v5776
        %v5778 = vrot.slane %v5773, %v5777
        %v5779 = vlaneseq
        %v5780 = vshrl.u32 %v5779, 7
        %v5781 = vsub.s32 1, %v5780
        %v5782 = vrot.slane %v5773, %v5781
        %v5793 = vunpack.c.l.b16 %v5765
        %v5794 = vunpack.c.h.b16 %v5765
        %v5795 = vunpack.c.l.b16 %v5766
        %v5796 = vunpack.c.h.b16 %v5766
        %v5797 = vunpack.c.l.b16 %v5767
        %v5798 = vunpack.c.h.b16 %v5767
        %v5799 = vunpack.c.l.b16 %v5768
        %v5800 = vunpack.c.h.b16 %v5768
        %v5801 = vunpack.c.l.b16 %v5769
        %v5802 = vunpack.c.h.b16 %v5769
        %v5803 = vunpack.c.l.b16 %v5770
        %v5804 = vunpack.c.h.b16 %v5770
        %v5805 = vunpack.c.l.b16 %v5771
        %v5806 = vunpack.c.h.b16 %v5771
        %v5807 = vunpack.c.l.b16 %v5772
        %v5808 = vunpack.c.h.b16 %v5772
        %v5809 = vpack.c.b16 %v5795, %v5793
        %v5810 = vpack.c.b16 %v5796, %v5794
        %v5811 = vpack.c.b16 %v5799, %v5797
        %v5812 = vpack.c.b16 %v5800, %v5798
        %v5813 = vpack.c.b16 %v5803, %v5801
        %v5814 = vpack.c.b16 %v5804, %v5802
        %v5815 = vpack.c.b16 %v5807, %v5805
        %v5816 = vpack.c.b16 %v5808, %v5806
        %v5826 = vsel %vm4975, %v5764, 0
        %5828 = vmatprep.subr.bf16.mxu0 %v5810
        %5829 = vmatpush1.bf16.msra.mxu0 %v5809
        %5830 = vmatprep.subr.bf16.mxu0 %v5812
        %5831 = vmatpush1.bf16.msra.mxu0 %v5811
        %5832 = vmatprep.subr.bf16.mxu0 %v5814
        %5833 = vmatpush1.bf16.msra.mxu0 %v5813
        %5834 = vmatprep.subr.bf16.mxu0 %v5816
        %5835 = vmatpush1.bf16.msra.mxu0 %v5815
        %5836 = vmatprep.subr.bf16.mxu0 0
        %5837 = vmatpush1.bf16.msra.mxu0 0
        %5838 = vmatprep.subr.bf16.mxu0 0
        %5839 = vmatpush1.bf16.msra.mxu0 0
        %5840 = vmatprep.subr.bf16.mxu0 0
        %5841 = vmatpush1.bf16.msra.mxu0 0
        %5842 = vmatprep.subr.bf16.mxu0 0
        %5843 = vmatpush1.bf16.msra.mxu0 0
        %5844 = vmatprep.subr.bf16.mxu0 0
        %5845 = vmatpush1.bf16.msra.mxu0 0
        %5846 = vmatprep.subr.bf16.mxu0 0
        %5847 = vmatpush1.bf16.msra.mxu0 0
        %5848 = vmatprep.subr.bf16.mxu0 0
        %5849 = vmatpush1.bf16.msra.mxu0 0
        %5850 = vmatprep.subr.bf16.mxu0 0
        %5851 = vmatpush1.bf16.msra.mxu0 0
        %5852 = vmatprep.subr.bf16.mxu0 0
        %5853 = vmatpush1.bf16.msra.mxu0 0
        %5854 = vmatprep.subr.bf16.mxu0 0
        %5855 = vmatpush1.bf16.msra.mxu0 0
        %5856 = vmatprep.subr.bf16.mxu0 0
        %5857 = vmatpush1.bf16.msra.mxu0 0
        %5858 = vmatprep.subr.bf16.mxu0 0
        %5859 = vmatpush1.bf16.msra.mxu0 0
        %5860 = vmatprep.mubr.bf16.mxu0 0
        %5861 = vmatmul.mubr.bf16.gmra.mrb[0].mxu0 %v5826
        %v5862 = vpop.f32.mrb[0].mxu0
        %v5863 = vadd.f32 %v5778, %v5862
        %v5864 = vpop.f32.mrb[0].mxu0
        %v5865 = vadd.f32 %v5782, %v5864
        %v5866 = vpop.f32.mrb[0].mxu0
        %v5867 = vadd.f32 %v5778, %v5866
        %v5868 = vpop.f32.mrb[0].mxu0
        %v5869 = vadd.f32 %v5782, %v5868
        %5870 = vdwg.mxu0
        %v5871 = vmul.f32 %v5863, 0.5
        %v5872 = vmul.f32 %v5865, 0.5
        %v5873 = vmul.f32 %v5867, 0.5
        %v5874 = vmul.f32 %v5869, 0.5
        %v5875 = vmul.f32 %v5863, 0.044715
        %v5876 = vmul.f32 %v5865, 0.044715
        %v5877 = vmul.f32 %v5867, 0.044715
        %v5878 = vmul.f32 %v5869, 0.044715
        %v5879 = vmul.f32 %v5875, %v5863
        %v5880 = vmul.f32 %v5876, %v5865
        %v5881 = vmul.f32 %v5877, %v5867
        %v5882 = vmul.f32 %v5878, %v5869
        %v5883 = vmul.f32 %v5879, %v5863
        %v5884 = vmul.f32 %v5880, %v5865
        %v5885 = vmul.f32 %v5881, %v5867
        %v5886 = vmul.f32 %v5882, %v5869
        %v5887 = vadd.f32 %v5863, %v5883
        %v5888 = vadd.f32 %v5865, %v5884
        %v5889 = vadd.f32 %v5867, %v5885
        %v5890 = vadd.f32 %v5869, %v5886
        %v5891 = vmul.f32 %v5887, 0.7978846
        %v5892 = vmul.f32 %v5888, 0.7978846
        %v5893 = vmul.f32 %v5889, 0.7978846
        %v5894 = vmul.f32 %v5890, 0.7978846
        %v5895 = vtanh.pop %v5891
        %v5896 = vtanh.pop %v5892
        %v5897 = vtanh.pop %v5893
        %v5898 = vtanh.pop %v5894
        %v5899 = vadd.f32 %v5895, 1.0
        %v5900 = vadd.f32 %v5896, 1.0
        %v5901 = vadd.f32 %v5897, 1.0
        %v5902 = vadd.f32 %v5898, 1.0
        %v5903 = vmul.f32 %v5871, %v5899
        %v5904 = vmul.f32 %v5872, %v5900
        %v5905 = vmul.f32 %v5873, %v5901
        %v5906 = vmul.f32 %v5874, %v5902
        %v5907 = vpack.c.bf16 %v5905, %v5903
        %v5908 = vpack.c.bf16 %v5906, %v5904
        %v5909 = vld [vmem:[%s1855] sm:$0xf]
        %v5910 = vld [vmem:[%s1855 + $0x4] sm:$0xf]
        %v5911 = vld [vmem:[%s1855 + $0x8] sm:$0xf]
        %v5912 = vld [vmem:[%s1855 + $0xc] sm:$0xf]
        %v5913 = vld [vmem:[%s1855 + $0x10] sm:$0xf]
        %v5914 = vld [vmem:[%s1855 + $0x14] sm:$0xf]
        %v5915 = vld [vmem:[%s1855 + $0x18] sm:$0xf]
        %v5916 = vld [vmem:[%s1855 + $0x1c] sm:$0xf]
        %v5917 = vld [vmem:[%s1855 + $0x20] sm:$0xf]
        %v5918 = vld [vmem:[%s1855 + $0x24] sm:$0xf]
        %v5919 = vld [vmem:[%s1855 + $0x28] sm:$0xf]
        %v5920 = vld [vmem:[%s1855 + $0x2c] sm:$0xf]
        %v5921 = vld [vmem:[%s1855 + $0x30] sm:$0xf]
        %v5922 = vld [vmem:[%s1855 + $0x34] sm:$0xf]
        %v5923 = vld [vmem:[%s1855 + $0x38] sm:$0xf]
        %v5924 = vld [vmem:[%s1855 + $0x3c] sm:$0xf]
        %v5925 = vld [vmem:[%s1855 + $0x40] sm:$0xf]
        %v5926 = vld [vmem:[%s1855 + $0x44] sm:$0xf]
        %v5927 = vld [vmem:[%s1855 + $0x48] sm:$0xf]
        %v5928 = vld [vmem:[%s1855 + $0x4c] sm:$0xf]
        %v5929 = vld [vmem:[%s1855 + $0x50] sm:$0xf]
        %v5930 = vld [vmem:[%s1855 + $0x54] sm:$0xf]
        %v5931 = vld [vmem:[%s1855 + $0x58] sm:$0xf]
        %v5932 = vld [vmem:[%s1855 + $0x5c] sm:$0xf]
        %v5933 = vld [vmem:[%s1855 + $0x60] sm:$0xf]
        %v5934 = vld [vmem:[%s1855 + $0x64] sm:$0xf]
        %v5935 = vld [vmem:[%s1855 + $0x68] sm:$0xf]
        %v5936 = vld [vmem:[%s1855 + $0x6c] sm:$0xf]
        %v5937 = vld [vmem:[%s1855 + $0x70] sm:$0xf]
        %v5938 = vld [vmem:[%s1855 + $0x74] sm:$0xf]
        %v5939 = vld [vmem:[%s1855 + $0x78] sm:$0xf]
        %v5940 = vld [vmem:[%s1855 + $0x7c] sm:$0xf]
        %v5973 = vunpack.c.l.b16 %v5909
        %v5974 = vunpack.c.l.b16 %v5910
        %v5975 = vunpack.c.l.b16 %v5911
        %v5976 = vunpack.c.l.b16 %v5912
        %v5977 = vunpack.c.l.b16 %v5913
        %v5978 = vunpack.c.l.b16 %v5914
        %v5979 = vunpack.c.l.b16 %v5915
        %v5980 = vunpack.c.l.b16 %v5916
        %v5981 = vunpack.c.l.b16 %v5917
        %v5982 = vunpack.c.l.b16 %v5918
        %v5983 = vunpack.c.l.b16 %v5919
        %v5984 = vunpack.c.l.b16 %v5920
        %v5985 = vunpack.c.l.b16 %v5921
        %v5986 = vunpack.c.l.b16 %v5922
        %v5987 = vunpack.c.l.b16 %v5923
        %v5988 = vunpack.c.l.b16 %v5924
        %v5989 = vunpack.c.l.b16 %v5925
        %v5990 = vunpack.c.l.b16 %v5926
        %v5991 = vunpack.c.l.b16 %v5927
        %v5992 = vunpack.c.l.b16 %v5928
        %v5993 = vunpack.c.l.b16 %v5929
        %v5994 = vunpack.c.l.b16 %v5930
        %v5995 = vunpack.c.l.b16 %v5931
        %v5996 = vunpack.c.l.b16 %v5932
        %v5997 = vunpack.c.l.b16 %v5933
        %v5998 = vunpack.c.l.b16 %v5934
        %v5999 = vunpack.c.l.b16 %v5935
        %v6000 = vunpack.c.l.b16 %v5936
        %v6001 = vunpack.c.l.b16 %v5937
        %v6002 = vunpack.c.l.b16 %v5938
        %v6003 = vunpack.c.l.b16 %v5939
        %v6004 = vunpack.c.l.b16 %v5940
        %v6005 = vpack.c.b16 %v5974, %v5973
        %v6006 = vpack.c.b16 %v5976, %v5975
        %v6007 = vpack.c.b16 %v5978, %v5977
        %v6008 = vpack.c.b16 %v5980, %v5979
        %v6009 = vpack.c.b16 %v5982, %v5981
        %v6010 = vpack.c.b16 %v5984, %v5983
        %v6011 = vpack.c.b16 %v5986, %v5985
        %v6012 = vpack.c.b16 %v5988, %v5987
        %v6013 = vpack.c.b16 %v5990, %v5989
        %v6014 = vpack.c.b16 %v5992, %v5991
        %v6015 = vpack.c.b16 %v5994, %v5993
        %v6016 = vpack.c.b16 %v5996, %v5995
        %v6017 = vpack.c.b16 %v5998, %v5997
        %v6018 = vpack.c.b16 %v6000, %v5999
        %v6019 = vpack.c.b16 %v6002, %v6001
        %v6020 = vpack.c.b16 %v6004, %v6003
        %6037 = vmatprep.subr.bf16.mxu0 0
        %6038 = vmatpush1.bf16.msra.mxu0 %v6005
        %6039 = vmatprep.subr.bf16.mxu0 0
        %6040 = vmatpush1.bf16.msra.mxu0 %v6006
        %6041 = vmatprep.subr.bf16.mxu0 0
        %6042 = vmatpush1.bf16.msra.mxu0 %v6007
        %6043 = vmatprep.subr.bf16.mxu0 0
        %6044 = vmatpush1.bf16.msra.mxu0 %v6008
        %6045 = vmatprep.subr.bf16.mxu0 0
        %6046 = vmatpush1.bf16.msra.mxu0 %v6009
        %6047 = vmatprep.subr.bf16.mxu0 0
        %6048 = vmatpush1.bf16.msra.mxu0 %v6010
        %6049 = vmatprep.subr.bf16.mxu0 0
        %6050 = vmatpush1.bf16.msra.mxu0 %v6011
        %6051 = vmatprep.subr.bf16.mxu0 0
        %6052 = vmatpush1.bf16.msra.mxu0 %v6012
        %6053 = vmatprep.subr.bf16.mxu0 0
        %6054 = vmatpush1.bf16.msra.mxu0 %v6013
        %6055 = vmatprep.subr.bf16.mxu0 0
        %6056 = vmatpush1.bf16.msra.mxu0 %v6014
        %6057 = vmatprep.subr.bf16.mxu0 0
        %6058 = vmatpush1.bf16.msra.mxu0 %v6015
        %6059 = vmatprep.subr.bf16.mxu0 0
        %6060 = vmatpush1.bf16.msra.mxu0 %v6016
        %6061 = vmatprep.subr.bf16.mxu0 0
        %6062 = vmatpush1.bf16.msra.mxu0 %v6017
        %6063 = vmatprep.subr.bf16.mxu0 0
        %6064 = vmatpush1.bf16.msra.mxu0 %v6018
        %6065 = vmatprep.subr.bf16.mxu0 0
        %6066 = vmatpush1.bf16.msra.mxu0 %v6019
        %6067 = vmatprep.subr.bf16.mxu0 0
        %6068 = vmatpush1.bf16.msra.mxu0 %v6020
        %6069 = vmatprep.mubr.bf16.mxu0 %v5908
        %6070 = vmatmul.mubr.bf16.gmra.mrb[0].mxu0 %v5907
        %v6071 = vpop.f32.mrb[0].mxu0
        %v6072 = vadd.f32 0.0, %v6071
        %v6073 = vpop.f32.mrb[0].mxu0
        %v6074 = vpop.f32.mrb[0].mxu0
        %v6075 = vadd.f32 0.0, %v6074
        %v6076 = vpop.f32.mrb[0].mxu0
        %6077 = vdwg.mxu0
        %v6078 = vadd.f32 %v5718, %v6072
        %v6079 = vadd.f32 %v5719, %v6075
        %v6080 = vld [vmem:[%s1633] sm:$0x1]
        %v6082 = vlaneseq
        %v6083 = vshrl.u32 %v6082, 7
        %v6084 = vsub.s32 0, %v6083
        %v6085 = vrot.slane %v6080, %v6084
        %v6087 = vadd.f32 %v6078, %v6085
        %v6088 = vadd.f32 %v6079, %v6085
        %6089 = vst.msk [vmem:[#allocation2] sm:$0xff] %vm4975, %v6087
        %6090 = vst.msk [vmem:[#allocation2 + $0x8] sm:$0xff] %vm4975, %v6088
        %p6091 = scmp.eq.s32.totalorder %s127, 1
        // Predicated region
        $region293: #{point_transformer_forward.1} parent=191 // pred_check
          %p6092 = pneg %p6091
        $region294: #{point_transformer_forward.1} parent=191 // pred_check_branch
          %6094 = sbr.rel (%p6092) target = $region296
        $region295: #{point_transformer_forward.1} parent=191 // pred_region
          %v6095 = vld [vmem:[#allocation25] sm:$0x1]
          %v6096 = vld [vmem:[#allocation27] sm:$0x1]
          %v6097 = vsel %vm4975, %v6087, 0.0
          %6098 = vadd.xlane.f32.xlu0 %v6097
          %v6099 = vpop.xlane.xlu0 %6098
          %v6100 = vsel %vm4975, %v6088, 0.0
          %6101 = vadd.xlane.f32.xlu0 %v6100
          %v6102 = vpop.xlane.xlu0 %6101
          %v6103 = vmul.f32 %v6099, %v4982
          %v6104 = vmul.f32 %v6102, %v4982
          %v6105 = vsub.f32 %v6087, %v6103
          %v6106 = vsub.f32 %v6088, %v6104
          %v6107 = vmul.f32 %v6105, %v6105
          %v6108 = vmul.f32 %v6106, %v6106
          %v6109 = vsel %vm4975, %v6107, 0.0
          %6110 = vadd.xlane.f32.xlu0 %v6109
          %v6111 = vpop.xlane.xlu0 %6110
          %v6112 = vsel %vm4975, %v6108, 0.0
          %6113 = vadd.xlane.f32.xlu0 %v6112
          %v6114 = vpop.xlane.xlu0 %6113
          %v6115 = vmul.f32 %v6111, %v4982
          %v6116 = vmul.f32 %v6114, %v4982
          %v6117 = vadd.f32 %v6115, 1e-05
          %v6118 = vadd.f32 %v6116, 1e-05
          %v6119 = vrsqrt.pop %v6117
          %v6120 = vrsqrt.pop %v6118
          %v6121 = vmul.f32 %v6105, %v6119
          %v6122 = vmul.f32 %v6106, %v6120
          %v6124 = vlaneseq
          %v6125 = vshrl.u32 %v6124, 7
          %v6126 = vsub.s32 0, %v6125
          %v6127 = vrot.slane %v6095, %v6126
          %v6129 = vmul.f32 %v6121, %v6127
          %v6130 = vmul.f32 %v6122, %v6127
          %v6132 = vlaneseq
          %v6133 = vshrl.u32 %v6132, 7
          %v6134 = vsub.s32 0, %v6133
          %v6135 = vrot.slane %v6096, %v6134
          %v6137 = vadd.f32 %v6129, %v6135
          %v6138 = vadd.f32 %v6130, %v6135
          %v6139 = vlaneseq
          %v6140 = vshrl.u32 %v6139, 7
          %v6141 = vadd.s32 %v6140, 8
          %vm6142 = vcmp.ge.s32.totalorder %v6140, 1
          %vm6143 = vcmp.ge.s32.totalorder %v6141, 1
          %vm6144 = vcmp.lt.s32.totalorder %v6140, 9
          %vm6145 = vcmp.lt.s32.totalorder %v6141, 9
          %vm6146 = vmand %vm6142, %vm6144
          %vm6147 = vmand %vm6143, %vm6145
          %v6148 = vsel %vm6146, 1, 0
          %v6149 = vsel %vm6147, 1, 0
          %vm6150 = vcmp.eq.s32.totalorder %v6148, 1
          %vm6151 = vcmp.eq.s32.totalorder %v6149, 1
          %v6152 = vsel %vm6150, %v6137, -1e+30
          %v6153 = vsel %vm6151, %v6138, -1e+30
          %v6154 = vsel %vm4975, %v6152, -inf
          %v6155 = vsel %vm4975, %v6153, -inf
          %v6156 = vmax.f32 %v6154, %v6155
          %v6157 = vrot.slane %v6156, 4
          %v6158 = vmax.f32 %v6156, %v6157
          %v6159 = vrot.slane %v6158, 2
          %v6160 = vmax.f32 %v6158, %v6159
          %v6161 = vrot.slane %v6160, 1
          %v6162 = vmax.f32 %v6160, %v6161
          %v6163 = vpack.c.bf16 %v6137, %v6137
          %v6164 = vld [vmem:[#allocation28] sm:$0xff]
          %v6165 = vld [vmem:[#allocation28 + $0x8] sm:$0xff]
          %v6166 = vld [vmem:[#allocation28 + $0x10] sm:$0xff]
          %v6167 = vld [vmem:[#allocation28 + $0x18] sm:$0xff]
          %v6168 = vld [vmem:[#allocation28 + $0x20] sm:$0xff]
          %v6169 = vld [vmem:[#allocation28 + $0x28] sm:$0xff]
          %v6170 = vld [vmem:[#allocation28 + $0x30] sm:$0xff]
          %v6171 = vld [vmem:[#allocation28 + $0x38] sm:$0xff]
          %v6172 = vpack.c.bf16 %v6162, %v6162
          %v6173 = vld [vmem:[#allocation30] sm:$0xff]
          %v6174 = vld [vmem:[#allocation30 + $0x8] sm:$0xff]
          %v6175 = vld [vmem:[#allocation30 + $0x10] sm:$0xff]
          %v6176 = vld [vmem:[#allocation30 + $0x18] sm:$0xff]
          %v6177 = vld [vmem:[#allocation30 + $0x20] sm:$0xff]
          %v6178 = vld [vmem:[#allocation30 + $0x28] sm:$0xff]
          %v6179 = vld [vmem:[#allocation30 + $0x30] sm:$0xff]
          %v6180 = vld [vmem:[#allocation30 + $0x38] sm:$0xff]
          %v6189 = vunpack.c.l.b16 %v6173
          %v6190 = vunpack.c.h.b16 %v6173
          %v6191 = vunpack.c.l.b16 %v6174
          %v6192 = vunpack.c.h.b16 %v6174
          %v6193 = vunpack.c.l.b16 %v6175
          %v6194 = vunpack.c.h.b16 %v6175
          %v6195 = vunpack.c.l.b16 %v6176
          %v6196 = vunpack.c.h.b16 %v6176
          %v6197 = vunpack.c.l.b16 %v6177
          %v6198 = vunpack.c.h.b16 %v6177
          %v6199 = vunpack.c.l.b16 %v6178
          %v6200 = vunpack.c.h.b16 %v6178
          %v6201 = vunpack.c.l.b16 %v6179
          %v6202 = vunpack.c.h.b16 %v6179
          %v6203 = vunpack.c.l.b16 %v6180
          %v6204 = vunpack.c.h.b16 %v6180
          %v6205 = vpack.c.b16 %v6191, %v6189
          %v6206 = vpack.c.b16 %v6192, %v6190
          %v6207 = vpack.c.b16 %v6195, %v6193
          %v6208 = vpack.c.b16 %v6196, %v6194
          %v6209 = vpack.c.b16 %v6199, %v6197
          %v6210 = vpack.c.b16 %v6200, %v6198
          %v6211 = vpack.c.b16 %v6203, %v6201
          %v6212 = vpack.c.b16 %v6204, %v6202
          %v6222 = vsel %vm4975, %v6172, 0
          %6224 = vmatprep.subr.bf16.mxu0 %v6206
          %6225 = vmatpush1.bf16.msra.mxu0 %v6205
          %6226 = vmatprep.subr.bf16.mxu0 %v6208
          %6227 = vmatpush1.bf16.msra.mxu0 %v6207
          %6228 = vmatprep.subr.bf16.mxu0 %v6210
          %6229 = vmatpush1.bf16.msra.mxu0 %v6209
          %6230 = vmatprep.subr.bf16.mxu0 %v6212
          %6231 = vmatpush1.bf16.msra.mxu0 %v6211
          %6232 = vmatprep.subr.bf16.mxu0 0
          %6233 = vmatpush1.bf16.msra.mxu0 0
          %6234 = vmatprep.subr.bf16.mxu0 0
          %6235 = vmatpush1.bf16.msra.mxu0 0
          %6236 = vmatprep.subr.bf16.mxu0 0
          %6237 = vmatpush1.bf16.msra.mxu0 0
          %6238 = vmatprep.subr.bf16.mxu0 0
          %6239 = vmatpush1.bf16.msra.mxu0 0
          %6240 = vmatprep.subr.bf16.mxu0 0
          %6241 = vmatpush1.bf16.msra.mxu0 0
          %6242 = vmatprep.subr.bf16.mxu0 0
          %6243 = vmatpush1.bf16.msra.mxu0 0
          %6244 = vmatprep.subr.bf16.mxu0 0
          %6245 = vmatpush1.bf16.msra.mxu0 0
          %6246 = vmatprep.subr.bf16.mxu0 0
          %6247 = vmatpush1.bf16.msra.mxu0 0
          %6248 = vmatprep.subr.bf16.mxu0 0
          %6249 = vmatpush1.bf16.msra.mxu0 0
          %6250 = vmatprep.subr.bf16.mxu0 0
          %6251 = vmatpush1.bf16.msra.mxu0 0
          %6252 = vmatprep.subr.bf16.mxu0 0
          %6253 = vmatpush1.bf16.msra.mxu0 0
          %6254 = vmatprep.subr.bf16.mxu0 0
          %6255 = vmatpush1.bf16.msra.mxu0 0
          %6256 = vmatprep.mubr.bf16.mxu0 0
          %6257 = vmatmul.mubr.bf16.gmra.mrb[0].mxu0 %v6222
          %v6258 = vpop.f32.mrb[0].mxu0
          %v6259 = vadd.f32 0.0, %v6258
          %v6260 = vpop.f32.mrb[0].mxu0
          %v6261 = vadd.f32 0.0, %v6260
          %v6262 = vpop.f32.mrb[0].mxu0
          %v6263 = vpop.f32.mrb[0].mxu0
          %6264 = vdwg.mxu0
          %v6273 = vunpack.c.l.b16 %v6164
          %v6274 = vunpack.c.h.b16 %v6164
          %v6275 = vunpack.c.l.b16 %v6165
          %v6276 = vunpack.c.h.b16 %v6165
          %v6277 = vunpack.c.l.b16 %v6166
          %v6278 = vunpack.c.h.b16 %v6166
          %v6279 = vunpack.c.l.b16 %v6167
          %v6280 = vunpack.c.h.b16 %v6167
          %v6281 = vunpack.c.l.b16 %v6168
          %v6282 = vunpack.c.h.b16 %v6168
          %v6283 = vunpack.c.l.b16 %v6169
          %v6284 = vunpack.c.h.b16 %v6169
          %v6285 = vunpack.c.l.b16 %v6170
          %v6286 = vunpack.c.h.b16 %v6170
          %v6287 = vunpack.c.l.b16 %v6171
          %v6288 = vunpack.c.h.b16 %v6171
          %v6289 = vpack.c.b16 %v6275, %v6273
          %v6290 = vpack.c.b16 %v6276, %v6274
          %v6291 = vpack.c.b16 %v6279, %v6277
          %v6292 = vpack.c.b16 %v6280, %v6278
          %v6293 = vpack.c.b16 %v6283, %v6281
          %v6294 = vpack.c.b16 %v6284, %v6282
          %v6295 = vpack.c.b16 %v6287, %v6285
          %v6296 = vpack.c.b16 %v6288, %v6286
          %v6306 = vsel %vm4975, %v6163, 0
          %6308 = vmatprep.subr.bf16.mxu0 %v6290
          %6309 = vmatpush1.bf16.msra.mxu0 %v6289
          %6310 = vmatprep.subr.bf16.mxu0 %v6292
          %6311 = vmatpush1.bf16.msra.mxu0 %v6291
          %6312 = vmatprep.subr.bf16.mxu0 %v6294
          %6313 = vmatpush1.bf16.msra.mxu0 %v6293
          %6314 = vmatprep.subr.bf16.mxu0 %v6296
          %6315 = vmatpush1.bf16.msra.mxu0 %v6295
          %6316 = vmatprep.subr.bf16.mxu0 0
          %6317 = vmatpush1.bf16.msra.mxu0 0
          %6318 = vmatprep.subr.bf16.mxu0 0
          %6319 = vmatpush1.bf16.msra.mxu0 0
          %6320 = vmatprep.subr.bf16.mxu0 0
          %6321 = vmatpush1.bf16.msra.mxu0 0
          %6322 = vmatprep.subr.bf16.mxu0 0
          %6323 = vmatpush1.bf16.msra.mxu0 0
          %6324 = vmatprep.subr.bf16.mxu0 0
          %6325 = vmatpush1.bf16.msra.mxu0 0
          %6326 = vmatprep.subr.bf16.mxu0 0
          %6327 = vmatpush1.bf16.msra.mxu0 0
          %6328 = vmatprep.subr.bf16.mxu0 0
          %6329 = vmatpush1.bf16.msra.mxu0 0
          %6330 = vmatprep.subr.bf16.mxu0 0
          %6331 = vmatpush1.bf16.msra.mxu0 0
          %6332 = vmatprep.subr.bf16.mxu0 0
          %6333 = vmatpush1.bf16.msra.mxu0 0
          %6334 = vmatprep.subr.bf16.mxu0 0
          %6335 = vmatpush1.bf16.msra.mxu0 0
          %6336 = vmatprep.subr.bf16.mxu0 0
          %6337 = vmatpush1.bf16.msra.mxu0 0
          %6338 = vmatprep.subr.bf16.mxu0 0
          %6339 = vmatpush1.bf16.msra.mxu0 0
          %6340 = vmatprep.mubr.bf16.mxu0 0
          %6341 = vmatmul.mubr.bf16.gmra.mrb[0].mxu0 %v6306
          %v6342 = vpop.f32.mrb[0].mxu0
          %v6343 = vadd.f32 %v6259, %v6342
          %v6344 = vpop.f32.mrb[0].mxu0
          %v6345 = vadd.f32 %v6261, %v6344
          %v6346 = vpop.f32.mrb[0].mxu0
          %v6347 = vpop.f32.mrb[0].mxu0
          %6348 = vdwg.mxu0
          %v6349 = vld [vmem:[#allocation31] sm:$0x3]
          %v6351 = vlaneseq
          %v6352 = vshrl.u32 %v6351, 7
          %v6353 = vsub.s32 0, %v6352
          %v6354 = vrot.slane %v6349, %v6353
          %v6355 = vlaneseq
          %v6356 = vshrl.u32 %v6355, 7
          %v6357 = vsub.s32 1, %v6356
          %v6358 = vrot.slane %v6349, %v6357
          %v6361 = vadd.f32 %v6343, %v6354
          %v6362 = vadd.f32 %v6345, %v6358
          %v6363 = vld [vmem:[#allocation33] sm:$0x3]
          %v6365 = vlaneseq
          %v6366 = vshrl.u32 %v6365, 7
          %v6367 = vsub.s32 0, %v6366
          %v6368 = vrot.slane %v6363, %v6367
          %v6369 = vlaneseq
          %v6370 = vshrl.u32 %v6369, 7
          %v6371 = vsub.s32 1, %v6370
          %v6372 = vrot.slane %v6363, %v6371
          %v6375 = vmul.f32 %v6361, %v6368
          %v6376 = vmul.f32 %v6362, %v6372
          %v6377 = vld [vmem:[#allocation34] sm:$0x3]
          %v6379 = vlaneseq
          %v6380 = vshrl.u32 %v6379, 7
          %v6381 = vsub.s32 0, %v6380
          %v6382 = vrot.slane %v6377, %v6381
          %v6383 = vlaneseq
          %v6384 = vshrl.u32 %v6383, 7
          %v6385 = vsub.s32 1, %v6384
          %v6386 = vrot.slane %v6377, %v6385
          %v6389 = vadd.f32 %v6375, %v6382
          %v6390 = vadd.f32 %v6376, %v6386
          %v6391 = vmax.f32 %v6389, 0.0
          %v6392 = vmax.f32 %v6390, 0.0
          %v6393 = vpack.c.bf16 %v6391, %v6391
          %v6394 = vpack.c.bf16 %v6392, %v6392
          %v6395 = vld [vmem:[%s75] sm:$0xff]
          %v6396 = vld [vmem:[%s75 + $0x8] sm:$0xff]
          %v6397 = vld [vmem:[%s75 + $0x10] sm:$0xff]
          %v6398 = vld [vmem:[%s75 + $0x18] sm:$0xff]
          %v6399 = vld [vmem:[%s75 + $0x20] sm:$0xff]
          %v6400 = vld [vmem:[%s75 + $0x28] sm:$0xff]
          %v6401 = vld [vmem:[%s75 + $0x30] sm:$0xff]
          %v6402 = vld [vmem:[%s75 + $0x38] sm:$0xff]
          %v6403 = vld [vmem:[%s75 + $0x40] sm:$0xff]
          %v6404 = vld [vmem:[%s75 + $0x48] sm:$0xff]
          %v6405 = vld [vmem:[%s75 + $0x50] sm:$0xff]
          %v6406 = vld [vmem:[%s75 + $0x58] sm:$0xff]
          %v6407 = vld [vmem:[%s75 + $0x60] sm:$0xff]
          %v6408 = vld [vmem:[%s75 + $0x68] sm:$0xff]
          %v6409 = vld [vmem:[%s75 + $0x70] sm:$0xff]
          %v6410 = vld [vmem:[%s75 + $0x78] sm:$0xff]
          %v6411 = vld [vmem:[%s75 + $0x80] sm:$0xff]
          %v6412 = vld [vmem:[%s75 + $0x88] sm:$0xff]
          %v6413 = vld [vmem:[%s75 + $0x90] sm:$0xff]
          %v6414 = vld [vmem:[%s75 + $0x98] sm:$0xff]
          %v6415 = vld [vmem:[%s75 + $0xa0] sm:$0xff]
          %v6416 = vld [vmem:[%s75 + $0xa8] sm:$0xff]
          %v6417 = vld [vmem:[%s75 + $0xb0] sm:$0xff]
          %v6418 = vld [vmem:[%s75 + $0xb8] sm:$0xff]
          %v6419 = vld [vmem:[%s75 + $0xc0] sm:$0xff]
          %v6420 = vld [vmem:[%s75 + $0xc8] sm:$0xff]
          %v6421 = vld [vmem:[%s75 + $0xd0] sm:$0xff]
          %v6422 = vld [vmem:[%s75 + $0xd8] sm:$0xff]
          %v6423 = vld [vmem:[%s75 + $0xe0] sm:$0xff]
          %v6424 = vld [vmem:[%s75 + $0xe8] sm:$0xff]
          %v6425 = vld [vmem:[%s75 + $0xf0] sm:$0xff]
          %v6426 = vld [vmem:[%s75 + $0xf8] sm:$0xff]
          %v6427 = vld [vmem:[#allocation36] sm:$0x3]
          %v6460 = vunpack.c.l.b16 %v6395
          %v6461 = vunpack.c.h.b16 %v6395
          %v6462 = vunpack.c.l.b16 %v6396
          %v6463 = vunpack.c.h.b16 %v6396
          %v6464 = vunpack.c.l.b16 %v6397
          %v6465 = vunpack.c.h.b16 %v6397
          %v6466 = vunpack.c.l.b16 %v6398
          %v6467 = vunpack.c.h.b16 %v6398
          %v6468 = vunpack.c.l.b16 %v6399
          %v6469 = vunpack.c.h.b16 %v6399
          %v6470 = vunpack.c.l.b16 %v6400
          %v6471 = vunpack.c.h.b16 %v6400
          %v6472 = vunpack.c.l.b16 %v6401
          %v6473 = vunpack.c.h.b16 %v6401
          %v6474 = vunpack.c.l.b16 %v6402
          %v6475 = vunpack.c.h.b16 %v6402
          %v6476 = vunpack.c.l.b16 %v6403
          %v6477 = vunpack.c.h.b16 %v6403
          %v6478 = vunpack.c.l.b16 %v6404
          %v6479 = vunpack.c.h.b16 %v6404
          %v6480 = vunpack.c.l.b16 %v6405
          %v6481 = vunpack.c.h.b16 %v6405
          %v6482 = vunpack.c.l.b16 %v6406
          %v6483 = vunpack.c.h.b16 %v6406
          %v6484 = vunpack.c.l.b16 %v6407
          %v6485 = vunpack.c.h.b16 %v6407
          %v6486 = vunpack.c.l.b16 %v6408
          %v6487 = vunpack.c.h.b16 %v6408
          %v6488 = vunpack.c.l.b16 %v6409
          %v6489 = vunpack.c.h.b16 %v6409
          %v6490 = vunpack.c.l.b16 %v6410
          %v6491 = vunpack.c.h.b16 %v6410
          %v6492 = vunpack.c.l.b16 %v6411
          %v6493 = vunpack.c.h.b16 %v6411
          %v6494 = vunpack.c.l.b16 %v6412
          %v6495 = vunpack.c.h.b16 %v6412
          %v6496 = vunpack.c.l.b16 %v6413
          %v6497 = vunpack.c.h.b16 %v6413
          %v6498 = vunpack.c.l.b16 %v6414
          %v6499 = vunpack.c.h.b16 %v6414
          %v6500 = vunpack.c.l.b16 %v6415
          %v6501 = vunpack.c.h.b16 %v6415
          %v6502 = vunpack.c.l.b16 %v6416
          %v6503 = vunpack.c.h.b16 %v6416
          %v6504 = vunpack.c.l.b16 %v6417
          %v6505 = vunpack.c.h.b16 %v6417
          %v6506 = vunpack.c.l.b16 %v6418
          %v6507 = vunpack.c.h.b16 %v6418
          %v6508 = vunpack.c.l.b16 %v6419
          %v6509 = vunpack.c.h.b16 %v6419
          %v6510 = vunpack.c.l.b16 %v6420
          %v6511 = vunpack.c.h.b16 %v6420
          %v6512 = vunpack.c.l.b16 %v6421
          %v6513 = vunpack.c.h.b16 %v6421
          %v6514 = vunpack.c.l.b16 %v6422
          %v6515 = vunpack.c.h.b16 %v6422
          %v6516 = vunpack.c.l.b16 %v6423
          %v6517 = vunpack.c.h.b16 %v6423
          %v6518 = vunpack.c.l.b16 %v6424
          %v6519 = vunpack.c.h.b16 %v6424
          %v6520 = vunpack.c.l.b16 %v6425
          %v6521 = vunpack.c.h.b16 %v6425
          %v6522 = vunpack.c.l.b16 %v6426
          %v6523 = vunpack.c.h.b16 %v6426
          %v6524 = vpack.c.b16 %v6462, %v6460
          %v6525 = vpack.c.b16 %v6463, %v6461
          %v6526 = vpack.c.b16 %v6466, %v6464
          %v6527 = vpack.c.b16 %v6467, %v6465
          %v6528 = vpack.c.b16 %v6470, %v6468
          %v6529 = vpack.c.b16 %v6471, %v6469
          %v6530 = vpack.c.b16 %v6474, %v6472
          %v6531 = vpack.c.b16 %v6475, %v6473
          %v6532 = vpack.c.b16 %v6478, %v6476
          %v6533 = vpack.c.b16 %v6479, %v6477
          %v6534 = vpack.c.b16 %v6482, %v6480
          %v6535 = vpack.c.b16 %v6483, %v6481
          %v6536 = vpack.c.b16 %v6486, %v6484
          %v6537 = vpack.c.b16 %v6487, %v6485
          %v6538 = vpack.c.b16 %v6490, %v6488
          %v6539 = vpack.c.b16 %v6491, %v6489
          %v6540 = vpack.c.b16 %v6494, %v6492
          %v6541 = vpack.c.b16 %v6495, %v6493
          %v6542 = vpack.c.b16 %v6498, %v6496
          %v6543 = vpack.c.b16 %v6499, %v6497
          %v6544 = vpack.c.b16 %v6502, %v6500
          %v6545 = vpack.c.b16 %v6503, %v6501
          %v6546 = vpack.c.b16 %v6506, %v6504
          %v6547 = vpack.c.b16 %v6507, %v6505
          %v6548 = vpack.c.b16 %v6510, %v6508
          %v6549 = vpack.c.b16 %v6511, %v6509
          %v6550 = vpack.c.b16 %v6514, %v6512
          %v6551 = vpack.c.b16 %v6515, %v6513
          %v6552 = vpack.c.b16 %v6518, %v6516
          %v6553 = vpack.c.b16 %v6519, %v6517
          %v6554 = vpack.c.b16 %v6522, %v6520
          %v6555 = vpack.c.b16 %v6523, %v6521
          %v6589 = vlaneseq
          %v6590 = vshrl.u32 %v6589, 7
          %v6591 = vsub.s32 0, %v6590
          %v6592 = vrot.slane %v6427, %v6591
          %v6593 = vlaneseq
          %v6594 = vshrl.u32 %v6593, 7
          %v6595 = vsub.s32 1, %v6594
          %v6596 = vrot.slane %v6427, %v6595
          %6599 = vmatprep.subr.bf16.mxu0 %v6525
          %6600 = vmatpush1.bf16.msra.mxu0 %v6524
          %6601 = vmatprep.subr.bf16.mxu0 %v6527
          %6602 = vmatpush1.bf16.msra.mxu0 %v6526
          %6603 = vmatprep.subr.bf16.mxu0 %v6529
          %6604 = vmatpush1.bf16.msra.mxu0 %v6528
          %6605 = vmatprep.subr.bf16.mxu0 %v6531
          %6606 = vmatpush1.bf16.msra.mxu0 %v6530
          %6607 = vmatprep.subr.bf16.mxu0 %v6533
          %6608 = vmatpush1.bf16.msra.mxu0 %v6532
          %6609 = vmatprep.subr.bf16.mxu0 %v6535
          %6610 = vmatpush1.bf16.msra.mxu0 %v6534
          %6611 = vmatprep.subr.bf16.mxu0 %v6537
          %6612 = vmatpush1.bf16.msra.mxu0 %v6536
          %6613 = vmatprep.subr.bf16.mxu0 %v6539
          %6614 = vmatpush1.bf16.msra.mxu0 %v6538
          %6615 = vmatprep.subr.bf16.mxu0 %v6541
          %6616 = vmatpush1.bf16.msra.mxu0 %v6540
          %6617 = vmatprep.subr.bf16.mxu0 %v6543
          %6618 = vmatpush1.bf16.msra.mxu0 %v6542
          %6619 = vmatprep.subr.bf16.mxu0 %v6545
          %6620 = vmatpush1.bf16.msra.mxu0 %v6544
          %6621 = vmatprep.subr.bf16.mxu0 %v6547
          %6622 = vmatpush1.bf16.msra.mxu0 %v6546
          %6623 = vmatprep.subr.bf16.mxu0 %v6549
          %6624 = vmatpush1.bf16.msra.mxu0 %v6548
          %6625 = vmatprep.subr.bf16.mxu0 %v6551
          %6626 = vmatpush1.bf16.msra.mxu0 %v6550
          %6627 = vmatprep.subr.bf16.mxu0 %v6553
          %6628 = vmatpush1.bf16.msra.mxu0 %v6552
          %6629 = vmatprep.subr.bf16.mxu0 %v6555
          %6630 = vmatpush1.bf16.msra.mxu0 %v6554
          %6631 = vmatprep.mubr.bf16.mxu0 %v6394
          %6632 = vmatmul.mubr.bf16.gmra.mrb[0].mxu0 %v6393
          %v6633 = vpop.f32.mrb[0].mxu0
          %v6634 = vadd.f32 %v6592, %v6633
          %v6635 = vpop.f32.mrb[0].mxu0
          %v6636 = vadd.f32 %v6596, %v6635
          %v6637 = vpop.f32.mrb[0].mxu0
          %v6638 = vpop.f32.mrb[0].mxu0
          %6639 = vdwg.mxu0
          %v6640 = vld [vmem:[#allocation37] sm:$0x3]
          %v6642 = vlaneseq
          %v6643 = vshrl.u32 %v6642, 7
          %v6644 = vsub.s32 0, %v6643
          %v6645 = vrot.slane %v6640, %v6644
          %v6646 = vlaneseq
          %v6647 = vshrl.u32 %v6646, 7
          %v6648 = vsub.s32 1, %v6647
          %v6649 = vrot.slane %v6640, %v6648
          %v6652 = vmul.f32 %v6634, %v6645
          %v6653 = vmul.f32 %v6636, %v6649
          %v6654 = vld [vmem:[#allocation39] sm:$0x3]
          %v6656 = vlaneseq
          %v6657 = vshrl.u32 %v6656, 7
          %v6658 = vsub.s32 0, %v6657
          %v6659 = vrot.slane %v6654, %v6658
          %v6660 = vlaneseq
          %v6661 = vshrl.u32 %v6660, 7
          %v6662 = vsub.s32 1, %v6661
          %v6663 = vrot.slane %v6654, %v6662
          %v6666 = vadd.f32 %v6652, %v6659
          %v6667 = vadd.f32 %v6653, %v6663
          %v6668 = vmax.f32 %v6666, 0.0
          %v6669 = vmax.f32 %v6667, 0.0
          %v6670 = vpack.c.bf16 %v6668, %v6668
          %v6671 = vpack.c.bf16 %v6669, %v6669
          %v6672 = vld [vmem:[%s83] sm:$0xf]
          %v6673 = vld [vmem:[%s83 + $0x4] sm:$0xf]
          %v6674 = vld [vmem:[%s83 + $0x8] sm:$0xf]
          %v6675 = vld [vmem:[%s83 + $0xc] sm:$0xf]
          %v6676 = vld [vmem:[%s83 + $0x10] sm:$0xf]
          %v6677 = vld [vmem:[%s83 + $0x14] sm:$0xf]
          %v6678 = vld [vmem:[%s83 + $0x18] sm:$0xf]
          %v6679 = vld [vmem:[%s83 + $0x1c] sm:$0xf]
          %v6680 = vld [vmem:[%s83 + $0x20] sm:$0xf]
          %v6681 = vld [vmem:[%s83 + $0x24] sm:$0xf]
          %v6682 = vld [vmem:[%s83 + $0x28] sm:$0xf]
          %v6683 = vld [vmem:[%s83 + $0x2c] sm:$0xf]
          %v6684 = vld [vmem:[%s83 + $0x30] sm:$0xf]
          %v6685 = vld [vmem:[%s83 + $0x34] sm:$0xf]
          %v6686 = vld [vmem:[%s83 + $0x38] sm:$0xf]
          %v6687 = vld [vmem:[%s83 + $0x3c] sm:$0xf]
          %v6688 = vld [vmem:[%s83 + $0x40] sm:$0xf]
          %v6689 = vld [vmem:[%s83 + $0x44] sm:$0xf]
          %v6690 = vld [vmem:[%s83 + $0x48] sm:$0xf]
          %v6691 = vld [vmem:[%s83 + $0x4c] sm:$0xf]
          %v6692 = vld [vmem:[%s83 + $0x50] sm:$0xf]
          %v6693 = vld [vmem:[%s83 + $0x54] sm:$0xf]
          %v6694 = vld [vmem:[%s83 + $0x58] sm:$0xf]
          %v6695 = vld [vmem:[%s83 + $0x5c] sm:$0xf]
          %v6696 = vld [vmem:[%s83 + $0x60] sm:$0xf]
          %v6697 = vld [vmem:[%s83 + $0x64] sm:$0xf]
          %v6698 = vld [vmem:[%s83 + $0x68] sm:$0xf]
          %v6699 = vld [vmem:[%s83 + $0x6c] sm:$0xf]
          %v6700 = vld [vmem:[%s83 + $0x70] sm:$0xf]
          %v6701 = vld [vmem:[%s83 + $0x74] sm:$0xf]
          %v6702 = vld [vmem:[%s83 + $0x78] sm:$0xf]
          %v6703 = vld [vmem:[%s83 + $0x7c] sm:$0xf]
          %v6704 = vld [vmem:[#allocation40] sm:$0x1]
          %v6737 = vunpack.c.l.b16 %v6672
          %v6738 = vunpack.c.l.b16 %v6673
          %v6739 = vunpack.c.l.b16 %v6674
          %v6740 = vunpack.c.l.b16 %v6675
          %v6741 = vunpack.c.l.b16 %v6676
          %v6742 = vunpack.c.l.b16 %v6677
          %v6743 = vunpack.c.l.b16 %v6678
          %v6744 = vunpack.c.l.b16 %v6679
          %v6745 = vunpack.c.l.b16 %v6680
          %v6746 = vunpack.c.l.b16 %v6681
          %v6747 = vunpack.c.l.b16 %v6682
          %v6748 = vunpack.c.l.b16 %v6683
          %v6749 = vunpack.c.l.b16 %v6684
          %v6750 = vunpack.c.l.b16 %v6685
          %v6751 = vunpack.c.l.b16 %v6686
          %v6752 = vunpack.c.l.b16 %v6687
          %v6753 = vunpack.c.l.b16 %v6688
          %v6754 = vunpack.c.l.b16 %v6689
          %v6755 = vunpack.c.l.b16 %v6690
          %v6756 = vunpack.c.l.b16 %v6691
          %v6757 = vunpack.c.l.b16 %v6692
          %v6758 = vunpack.c.l.b16 %v6693
          %v6759 = vunpack.c.l.b16 %v6694
          %v6760 = vunpack.c.l.b16 %v6695
          %v6761 = vunpack.c.l.b16 %v6696
          %v6762 = vunpack.c.l.b16 %v6697
          %v6763 = vunpack.c.l.b16 %v6698
          %v6764 = vunpack.c.l.b16 %v6699
          %v6765 = vunpack.c.l.b16 %v6700
          %v6766 = vunpack.c.l.b16 %v6701
          %v6767 = vunpack.c.l.b16 %v6702
          %v6768 = vunpack.c.l.b16 %v6703
          %v6769 = vpack.c.b16 %v6738, %v6737
          %v6770 = vpack.c.b16 %v6740, %v6739
          %v6771 = vpack.c.b16 %v6742, %v6741
          %v6772 = vpack.c.b16 %v6744, %v6743
          %v6773 = vpack.c.b16 %v6746, %v6745
          %v6774 = vpack.c.b16 %v6748, %v6747
          %v6775 = vpack.c.b16 %v6750, %v6749
          %v6776 = vpack.c.b16 %v6752, %v6751
          %v6777 = vpack.c.b16 %v6754, %v6753
          %v6778 = vpack.c.b16 %v6756, %v6755
          %v6779 = vpack.c.b16 %v6758, %v6757
          %v6780 = vpack.c.b16 %v6760, %v6759
          %v6781 = vpack.c.b16 %v6762, %v6761
          %v6782 = vpack.c.b16 %v6764, %v6763
          %v6783 = vpack.c.b16 %v6766, %v6765
          %v6784 = vpack.c.b16 %v6768, %v6767
          %6801 = vmatprep.subr.bf16.mxu0 0
          %6802 = vmatpush1.bf16.msra.mxu0 %v6769
          %6803 = vmatprep.subr.bf16.mxu0 0
          %6804 = vmatpush1.bf16.msra.mxu0 %v6770
          %6805 = vmatprep.subr.bf16.mxu0 0
          %6806 = vmatpush1.bf16.msra.mxu0 %v6771
          %6807 = vmatprep.subr.bf16.mxu0 0
          %6808 = vmatpush1.bf16.msra.mxu0 %v6772
          %6809 = vmatprep.subr.bf16.mxu0 0
          %6810 = vmatpush1.bf16.msra.mxu0 %v6773
          %6811 = vmatprep.subr.bf16.mxu0 0
          %6812 = vmatpush1.bf16.msra.mxu0 %v6774
          %6813 = vmatprep.subr.bf16.mxu0 0
          %6814 = vmatpush1.bf16.msra.mxu0 %v6775
          %6815 = vmatprep.subr.bf16.mxu0 0
          %6816 = vmatpush1.bf16.msra.mxu0 %v6776
          %6817 = vmatprep.subr.bf16.mxu0 0
          %6818 = vmatpush1.bf16.msra.mxu0 %v6777
          %6819 = vmatprep.subr.bf16.mxu0 0
          %6820 = vmatpush1.bf16.msra.mxu0 %v6778
          %6821 = vmatprep.subr.bf16.mxu0 0
          %6822 = vmatpush1.bf16.msra.mxu0 %v6779
          %6823 = vmatprep.subr.bf16.mxu0 0
          %6824 = vmatpush1.bf16.msra.mxu0 %v6780
          %6825 = vmatprep.subr.bf16.mxu0 0
          %6826 = vmatpush1.bf16.msra.mxu0 %v6781
          %6827 = vmatprep.subr.bf16.mxu0 0
          %6828 = vmatpush1.bf16.msra.mxu0 %v6782
          %6829 = vmatprep.subr.bf16.mxu0 0
          %6830 = vmatpush1.bf16.msra.mxu0 %v6783
          %6831 = vmatprep.subr.bf16.mxu0 0
          %6832 = vmatpush1.bf16.msra.mxu0 %v6784
          %6833 = vmatprep.mubr.bf16.mxu0 %v6671
          %6834 = vmatmul.mubr.bf16.gmra.mrb[0].mxu0 %v6670
          %v6835 = vpop.f32.mrb[0].mxu0
          %v6836 = vadd.f32 %v6704, %v6835
          %v6837 = vpop.f32.mrb[0].mxu0
          %v6838 = vpop.f32.mrb[0].mxu0
          %v6839 = vpop.f32.mrb[0].mxu0
          %6840 = vdwg.mxu0
          %vm6841 = vcmask 73728
          %6842 = vst.msk [vmem:[%s1831] sm:$0x1] %vm6841, %v6836
        $region296: #{point_transformer_forward.1} parent=191 // pred_fallthru
          _
        %s6843 = sand.u32 %s1110, 1
        %s6844 = scalar_lea.sflag [#allocation6], %s6843
        %s6845 = sand.u32 %s1110, 1
        %s6846 = scalar_lea.vmem [#allocation42], %s6845
        // Predicated region
        $region297: #{point_transformer_forward.1} parent=191 // pred_check
          %p6847 = pneg %p1120
        $region298: #{point_transformer_forward.1} parent=191 // pred_check_branch
          %6849 = sbr.rel (%p6847) target = $region300
        $region299: #{point_transformer_forward.1} parent=191 // pred_region
          %s6851 = ssub.s32 16, 16
          %6852 = vsyncadd %s6844, %s6851
          %s6853 = smul.addr %s126, 16
          %s6854 = scalar_lea.hbm %s87, %s6853
          %s6856 = sshll.u32 %s6846, 4
          %s6857 = int_to_ptr.vmem [resolvable:$true] %s6856
          %6859 = dma.vmem_to_hbm [thread:$0]  %s6857, 16, %s6854, %s6844
        $region300: #{point_transformer_forward.1} parent=191 // pred_fallthru
          _
      $region192: #{point_transformer_forward.1} parent=5 // pred_fallthru
        _
      %p6860 = scmp.le.s32.totalorder 2, %s117
      // Predicated region
      $region301: #{point_transformer_forward.1} parent=5 // pred_check
        %p6861 = pneg %p6860
      $region302: #{point_transformer_forward.1} parent=5 // pred_check_branch
        %6863 = sbr.rel (%p6861) target = $region304
      $region303: #{point_transformer_forward.1} parent=5 // pred_region
        %s6864 = ssub.s32 %s117, 2
        // Predicated region
        $region305: #{point_transformer_forward.1} parent=303 // pred_check
          %p6865 = pneg %p1126
        $region306: #{point_transformer_forward.1} parent=303 // pred_check_branch
          %6867 = sbr.rel (%p6865) target = $region308
        $region307: #{point_transformer_forward.1} parent=303 // pred_region
          %s6868 = sand.u32 %s1111, 1
          %s6869 = scalar_lea.sflag [#allocation6], %s6868
          %s6870 = sand.u32 %s1111, 1
          %s6871 = scalar_lea.vmem [#allocation42], %s6870
          %6872 = dma.done %s6869, 16
        $region308: #{point_transformer_forward.1} parent=303 // pred_fallthru
          _
      $region304: #{point_transformer_forward.1} parent=5 // pred_fallthru
        _
    $region6: #{point_transformer_forward.1} parent=1 // loop_footer
      %s121 = sadd.s32 1, %s117
    $region7: #{point_transformer_forward.1} parent=1 // loop_footer_branch
      %116 = sbr.rel target = $region3
    $region8: #{point_transformer_forward.1} parent=1 // loop_exit
      _
    %6873 = vsyncpa [#allocation5], 1
    %s6874 = scalar_lea.sflag [#allocation5], 1
    %6875 = vsyncpa %s6874, 1
    %6876 = vsyncpa [#allocation8], 1
    %6877 = vsyncpa [#allocation11], 1
    %6878 = vsyncpa [#allocation14], 1
    %s6879 = scalar_lea.sflag [#allocation14], 1
    %6880 = vsyncpa %s6879, 1
    %6881 = vsyncpa [#allocation17], 1
    %s6882 = scalar_lea.sflag [#allocation17], 1
    %6883 = vsyncpa %s6882, 1
    %6884 = vsyncpa [#allocation20], 1
    %s6885 = scalar_lea.sflag [#allocation20], 1
    %6886 = vsyncpa %s6885, 1
    %6887 = vsyncpa [#allocation23], 1
    %s6888 = scalar_lea.sflag [#allocation23], 1
    %6889 = vsyncpa %s6888, 1
    %6890 = vsyncpa [#allocation26], 1
    %6891 = vsyncpa [#allocation29], 1
    %6892 = vsyncpa [#allocation32], 1
    %6893 = vsyncpa [#allocation35], 1
    %6894 = vsyncpa [#allocation38], 1
    %6895 = vsyncpa [#allocation41], 1
    %6896 = vsyncpa [#allocation6], 1
    %s6897 = scalar_lea.sflag [#allocation6], 1
    %6898 = vsyncpa %s6897, 1

</llo_original>
